<compile_context>
chip_gen: v6e
topology: v6e:2x2x1
jax: 0.10.0
libtpu: 0.0.40
codegen_flags: <defaults>
</compile_context>

<pallas_src>
import jax
import jax.numpy as jnp
from jax.experimental import pallas as pl
from jax.experimental.pallas import tpu as pltpu

A_SCALE = 1.7159
S_SCALE = 2.0 / 3.0

CONNECTIONS = [[0, 1, 2], [1, 2, 3], [2, 3, 4], [3, 4, 5], [0, 4, 5], [0, 1, 5],
               [0, 1, 2, 3], [1, 2, 3, 4], [2, 3, 4, 5], [0, 3, 4, 5],
               [0, 1, 4, 5], [0, 1, 2, 5], [0, 1, 3, 4], [1, 2, 4, 5],
               [0, 2, 3, 5], [0, 1, 2, 3, 4, 5]]

_DIGITS = [
    ['       ', '  ***  ', ' *   * ', '*     *', '*     *', '*     *', '*     *', '*     *', ' *   * ', ' ** ** ', '  ***  ', '       '],
    ['   **  ', '  ***  ', ' * **  ', '   **  ', '   **  ', '   **  ', '   **  ', '   **  ', '   **  ', '   **  ', '  **** ', '       '],
    [' ***** ', ' *   **', '     **', '     **', '    ** ', '   **  ', '  **   ', ' **    ', ' *     ', '**     ', '*******', '       '],
    [' ***** ', '**    *', '      *', '     * ', '    ** ', '  ***  ', '    ** ', '      *', '      *', '**   **', ' ***** ', '       '],
    ['       ', '*     *', '**    *', '**    *', '*     *', '*******', '     **', '      *', '      *', '      *', '      *', '       '],
    ['       ', '*******', '*      ', '**     ', '**     ', '  **** ', '     **', '      *', '      *', '*    **', ' ***** ', '       '],
    [' ***** ', '**     ', '*      ', '*      ', '****** ', '**   **', '*     *', '*     *', '*     *', '**    *', ' ***** ', '       '],
    ['*******', '     **', '     **', '    ** ', '    *  ', '   **  ', '   *   ', '  **   ', '  **   ', '  *    ', '  *    ', '       '],
    [' ***** ', '**   **', '*     *', '**    *', ' ***** ', '**   **', '*     *', '*     *', '*     *', '**   **', ' ***** ', '       '],
    [' ***** ', '*     *', '*     *', '**    *', ' ******', '      *', '      *', '      *', '      *', '     **', '  **** ', '       ']]


def _squash(x):
    # TanhActivation: 1.7159 * tanh(2/3 * x)
    return A_SCALE * jnp.tanh(S_SCALE * x)


# ----------------------------------------------------------------------------
# Fused forward kernel.  Per grid step = TB images, stacked along sublanes.
#
# Batched activation layouts (all float32, lane-dense):
#   x      : (TB*32, 32)        row = b*32 + h
#   C1 out : (TB*32-4, 168)     row = b*32 + h (h<28 valid),  lane = f*28 + w
#   S2 out : (TB*14, 84)        row = b*14 + i,               lane = c*14 + j
#   C3 out : (TB*14-4, 160)     row = b*14 + h (h<10 valid),  lane = f*10 + w
#   S4 out : (TB*5, 80)         row = b*5 + di,               lane = c*5 + dj
#   C5/F6  : (TB, 120) / (TB, 84)
# ----------------------------------------------------------------------------
def _lenet5_kernel(x_ref, m1_ref, b1_ref, se2_ref, so2_ref, ge1_ref, go1_ref, b2_ref,
                   m3_ref, b3_ref, se4_ref, so4_ref, ge4_ref, go4_ref, b4_ref,
                   sel5_ref, w5_ref, b5_ref, w6_ref, b6_ref, rbw_ref, rbs_ref,
                   out_ref, p1_scr, p3_scr):
    f32 = jnp.float32
    tb = out_ref.shape[0]
    n1 = tb * 32
    r1 = n1 - 4
    n3 = tb * 14
    r3 = n3 - 4

    x = x_ref[...]                                                  # (TB*32, 32)

    # ---- C1: 5 banded dots -> scratch, shifted-row sum, tanh (S folded) -----
    for di in range(5):
        p1_scr[di * n1:(di + 1) * n1, :] = jnp.dot(
            x, m1_ref[di * 32:(di + 1) * 32, :], preferred_element_type=f32)
    a1 = p1_scr[0:r1, :]
    for di in range(1, 5):
        a1 = a1 + p1_scr[di * n1 + di: di * n1 + di + r1, :]
    a1 = jnp.tanh(a1 + b1_ref[...])                                 # (TB*32-4, 168)

    # ---- S2: even/odd-row select + grouped avg-pool (0.25*w, A*S folded) ----
    ae = jnp.dot(se2_ref[...], a1, preferred_element_type=f32)      # (TB*14, 168)
    ao = jnp.dot(so2_ref[...], a1, preferred_element_type=f32)
    s2 = jnp.tanh(jnp.dot(ae, ge1_ref[...], preferred_element_type=f32) +
                  jnp.dot(ao, go1_ref[...], preferred_element_type=f32) +
                  b2_ref[...])                                      # (TB*14, 84)

    # ---- C3: sparse-connection conv (mask folded into zeroed weights) -------
    for di in range(5):
        p3_scr[di * n3:(di + 1) * n3, :] = jnp.dot(
            s2, m3_ref[di * 84:(di + 1) * 84, :], preferred_element_type=f32)
    a3 = p3_scr[0:r3, :]
    for di in range(1, 5):
        a3 = a3 + p3_scr[di * n3 + di: di * n3 + di + r3, :]
    a3 = jnp.tanh(a3 + b3_ref[...])                                 # (TB*14-4, 160)

    # ---- S4: even/odd-row select + straddling group-of-4 pool ---------------
    ae4 = jnp.dot(se4_ref[...], a3, preferred_element_type=f32)     # (TB*5, 160)
    ao4 = jnp.dot(so4_ref[...], a3, preferred_element_type=f32)
    s4 = jnp.tanh(jnp.dot(ae4, ge4_ref[...], preferred_element_type=f32) +
                  jnp.dot(ao4, go4_ref[...], preferred_element_type=f32) +
                  b4_ref[...])                                      # (TB*5, 80)

    # ---- C5: gather per-image rows b*5+di, accumulate banded dot -------------
    rows0 = jnp.dot(sel5_ref[0:tb, :], s4, preferred_element_type=f32)
    c5 = jnp.dot(rows0, w5_ref[0:80, :], preferred_element_type=f32)
    for di in range(1, 5):
        rows = jnp.dot(sel5_ref[di * tb:(di + 1) * tb, :], s4,
                       preferred_element_type=f32)                  # (TB, 80)
        c5 = c5 + jnp.dot(rows, w5_ref[di * 80:(di + 1) * 80, :],
                          preferred_element_type=f32)
    a5 = jnp.tanh(c5 + b5_ref[...])                                 # (TB, 120)

    # ---- F6 (A*S folded into w6); final A stays explicit for the RBF --------
    a6 = A_SCALE * jnp.tanh(jnp.dot(a5, w6_ref[...], preferred_element_type=f32) +
                            b6_ref[...])                            # (TB, 84)

    # ---- RBF on the MXU: ||x||^2 - 2 x@W^T + ||w_i||^2 ----------------------
    sq = jnp.sum(a6 * a6, axis=1, keepdims=True)                    # (TB, 1)
    out_ref[...] = (sq - 2.0 * jnp.dot(a6, rbw_ref[...], preferred_element_type=f32)
                    + rbs_ref[...])                                 # (TB, 10)


# ----------------------------------------------------------------------------
# Parameter packing (done ONCE, outside the hot path).  tb is baked into the
# block-diagonal selection matrices.
# ----------------------------------------------------------------------------
def _conv_band_matrix(w, in_w, out_w):
    """w: (F, C, k, k) -> (k*C*in_w, F*out_w) with
       M[di*C*in_w + c*in_w + wi, f*out_w + ow] = w[f, c, di, wi-ow] (0<=wi-ow<k)."""
    F, C, k, _ = w.shape
    wi = jnp.arange(in_w)[:, None]
    ow = jnp.arange(out_w)[None, :]
    dj = wi - ow
    valid = ((dj >= 0) & (dj < k)).astype(w.dtype)
    djc = jnp.clip(dj, 0, k - 1)
    wt = jnp.transpose(w, (2, 1, 0, 3))                 # (k, C, F, k): [di, c, f, dj]
    band = wt[:, :, :, djc] * valid[None, None, None, :, :]
    band = jnp.transpose(band, (0, 1, 3, 2, 4))         # (k, C, in_w, F, out_w)
    return band.reshape(k * C * in_w, F * out_w)


def prepare_kernel_params(p, tb):
    f32 = jnp.float32
    A, S = A_SCALE, S_SCALE

    # --- C1 (S folded) ---
    m1 = S * _conv_band_matrix(p['W1'].astype(f32), 32, 28)             # (160, 168)
    b1row = S * jnp.repeat(p['b1'], 28)[None, :]                        # (1, 168)

    # --- S2 grouped pool + even/odd recombination (0.25*w and A*S folded) ---
    rf = jnp.repeat(jnp.arange(6), 28); rw = jnp.tile(jnp.arange(28), 6)
    cf = jnp.repeat(jnp.arange(6), 7);  cj = jnp.tile(jnp.arange(7), 6)
    g1 = ((rf[:, None] == cf[None, :]) & ((rw[:, None] // 4) == cj[None, :])).astype(f32)
    g1s = g1 * (0.25 * p['s2_w'])[cf][None, :]                          # (168, 42)
    pf = jnp.repeat(jnp.arange(6), 7);  pj = jnp.tile(jnp.arange(7), 6)
    qf = jnp.repeat(jnp.arange(6), 14); qo = jnp.tile(jnp.arange(14), 6)
    same = pf[:, None] == qf[None, :]
    re_mat = (same & (qo[None, :] == pj[:, None])).astype(f32)          # (42, 84)
    ro_mat = (same & (qo[None, :] == pj[:, None] + 7)).astype(f32)
    ge1 = (A * S) * (g1s @ re_mat)                                      # (168, 84)
    go1 = (A * S) * (g1s @ ro_mat)
    b2row = S * jnp.repeat(p['s2_b'], 14)[None, :]                      # (1, 84)
    # batched even/odd row selection: picks rows b*32 + 2i (+1) of the C1 output
    o2 = jnp.arange(tb * 14); b2i = o2 // 14; i2 = o2 % 14
    r2 = jnp.arange(tb * 32 - 4)
    se2 = (r2[None, :] == (b2i * 32 + 2 * i2)[:, None]).astype(f32)     # (tb*14, tb*32-4)
    so2 = (r2[None, :] == (b2i * 32 + 2 * i2 + 1)[:, None]).astype(f32)

    # --- C3 (connection mask is folded as zeros in W3; A*S folded) ---
    m3 = (A * S) * _conv_band_matrix(p['W3'].astype(f32), 14, 10)       # (420, 160)
    b3row = S * jnp.repeat(p['b3'], 10)[None, :]                        # (1, 160)

    # --- S4 (flat group-of-4 pool on 10-wide rows: groups straddle row pairs) ---
    rc = jnp.repeat(jnp.arange(16), 10); rw4 = jnp.tile(jnp.arange(10), 16)
    cc = jnp.repeat(jnp.arange(16), 5);  ct = jnp.tile(jnp.arange(5), 16)
    same4 = rc[:, None] == cc[None, :]
    ge4 = (same4 & ((rw4[:, None] // 4) == ct[None, :])).astype(f32)
    go4 = (same4 & (((rw4[:, None] + 2) // 4 + 2) == ct[None, :])).astype(f32)
    scale4 = (A * S) * (0.25 * p['s4_w'])[cc][None, :]
    ge4 = ge4 * scale4                                                  # (160, 80)
    go4 = go4 * scale4
    b4row = S * jnp.repeat(p['s4_b'], 5)[None, :]                       # (1, 80)
    o4 = jnp.arange(tb * 5); b4i = o4 // 5; i4 = o4 % 5
    r4 = jnp.arange(tb * 14 - 4)
    se4 = (r4[None, :] == (b4i * 14 + 2 * i4)[:, None]).astype(f32)     # (tb*5, tb*14-4)
    so4 = (r4[None, :] == (b4i * 14 + 2 * i4 + 1)[:, None]).astype(f32)

    # --- C5 (A*S folded); sel5 gathers rows b*5 + di ---
    rr = jnp.arange(5 * tb); di_r = rr // tb; b_r = rr % tb
    c5c = jnp.arange(tb * 5)
    sel5 = (c5c[None, :] == (b_r * 5 + di_r)[:, None]).astype(f32)      # (5*tb, tb*5)
    w5k = (A * S) * jnp.transpose(p['W5'], (2, 1, 3, 0)).reshape(400, 120)
    b5row = S * p['b5'][None, :]                                        # (1, 120)

    # --- F6 (A*S folded) ---
    w6t = (A * S) * p['W6'].T.astype(f32)                               # (120, 84)
    b6row = S * p['b6'][None, :]                                        # (1, 84)

    # --- RBF ---
    rbw = p['rbf_w'].T.astype(f32)                                      # (84, 10)
    rbs = jnp.sum(p['rbf_w'] * p['rbf_w'], axis=1)[None, :]             # (1, 10)

    return (m1, b1row, se2, so2, ge1, go1, b2row,
            m3, b3row, se4, so4, ge4, go4, b4row,
            sel5, w5k, b5row, w6t, b6row, rbw, rbs)


# ----------------------------------------------------------------------------
# Single fused pallas_call for the whole forward pass (TB images per step).
# ----------------------------------------------------------------------------
def _pick_tb(batch):
    for t in (64, 32, 16, 8):
        if batch % t == 0 and batch // t >= 2:   # keep grid >= 2 for v7x megacore
            return t
    return batch


def lenet5_forward(kparams, x, tb):
    B = x.shape[0]
    assert B % tb == 0 and (tb % 8 == 0 or tb == B), (B, tb)
    assert kparams[2].shape[0] == tb * 14, "kparams were packed for a different tb"
    x2d = x.reshape(B * 32, 32).astype(jnp.float32)

    in_specs = [pl.BlockSpec((tb * 32, 32), lambda i: (i, 0))]
    for arr in kparams:
        in_specs.append(pl.BlockSpec(arr.shape, lambda i: (0, 0)))

    out = pl.pallas_call(
        _lenet5_kernel,
        out_shape=jax.ShapeDtypeStruct((B, 10), jnp.float32),
        grid=(B // tb,),
        in_specs=in_specs,
        out_specs=pl.BlockSpec((tb, 10), lambda i: (i, 0)),
        scratch_shapes=[pltpu.VMEM((5 * tb * 32, 168), jnp.float32),   # C1 partials
                        pltpu.VMEM((5 * tb * 14, 160), jnp.float32)],  # C3 partials
        compiler_params=pltpu.CompilerParams(
            dimension_semantics=("parallel",),       # v7x: 2 TCs share the batch grid
            vmem_limit_bytes=32 * 1024 * 1024),
    )(x2d, *kparams)
    return out


# ----------------------------------------------------------------------------
# Parameters (same semantics as the PyTorch module; C3 sparse connections are
# represented as zero-masked dense weights, mathematically identical).
# ----------------------------------------------------------------------------
def rbf_bitmap():
    rows = []
    for digit in _DIGITS:
        rows.append([1.0 if ch == '*' else -1.0 for row in digit for ch in row])
    bitmap = jnp.array(rows, dtype=jnp.float32)
    assert bitmap.shape == (10, 84)
    return bitmap


def init_params(key):
    ks = jax.random.split(key, 12)
    p = {}
    p['W1'] = 0.2 * jax.random.normal(ks[0], (6, 1, 5, 5), jnp.float32)
    p['b1'] = 0.1 * jax.random.normal(ks[1], (6,), jnp.float32)
    p['s2_w'] = 1.0 + 0.1 * jax.random.normal(ks[2], (6,), jnp.float32)
    p['s2_b'] = 0.1 * jax.random.normal(ks[3], (6,), jnp.float32)
    W3 = 0.1 * jax.random.normal(ks[4], (16, 6, 5, 5), jnp.float32)
    mask = jnp.zeros((16, 6), jnp.float32)
    for i, conn in enumerate(CONNECTIONS):
        mask = mask.at[i, jnp.array(conn)].set(1.0)
    p['W3'] = W3 * mask[:, :, None, None]
    p['b3'] = 0.1 * jax.random.normal(ks[5], (16,), jnp.float32)
    p['s4_w'] = 1.0 + 0.1 * jax.random.normal(ks[6], (16,), jnp.float32)
    p['s4_b'] = 0.1 * jax.random.normal(ks[7], (16,), jnp.float32)
    p['W5'] = 0.05 * jax.random.normal(ks[8], (120, 16, 5, 5), jnp.float32)
    p['b5'] = 0.1 * jax.random.normal(ks[9], (120,), jnp.float32)
    p['W6'] = 0.1 * jax.random.normal(ks[10], (84, 120), jnp.float32)
    p['b6'] = 0.1 * jax.random.normal(ks[11], (84,), jnp.float32)
    p['rbf_w'] = rbf_bitmap()
    return p


# Pure-JAX reference (same semantics as the PyTorch module) for a sanity check.
def lenet5_reference(p, x):
    HI = jax.lax.Precision.HIGHEST

    def conv(y, w, b):
        y = jax.lax.conv_general_dilated(
            y, w, window_strides=(1, 1), padding='VALID',
            dimension_numbers=('NCHW', 'OIHW', 'NCHW'), precision=HI)
        return _squash(y + b.reshape(1, -1, 1, 1))

    def pool(y, w, b):
        B, C, H, W = y.shape
        pooled = y.reshape(B, C, H // 2, W // 2, 2, 2).mean(axis=(4, 5))
        return _squash(w.reshape(1, C, 1, 1) * pooled + b.reshape(1, C, 1, 1))

    y = conv(x, p['W1'], p['b1'])
    y = pool(y, p['s2_w'], p['s2_b'])
    y = conv(y, p['W3'], p['b3'])
    y = pool(y, p['s4_w'], p['s4_b'])
    y = conv(y, p['W5'], p['b5'])
    y = y.reshape(x.shape[0], 120)
    y = _squash(jnp.dot(y, p['W6'].T, precision=HI) + p['b6'])
    d = y[:, None, :] - p['rbf_w'][None, :, :]
    return jnp.sum(d * d, axis=-1)


if __name__ == "__main__":
    key = jax.random.PRNGKey(0)
    pkey, xkey = jax.random.split(key)
    params = init_params(pkey)

    # LeNet-5 requires 32x32 single-channel inputs for the shapes to work out.
    B = 16
    x = jax.random.normal(xkey, (B, 1, 32, 32), dtype=jnp.float32)

    TB = _pick_tb(B)                       # 8 -> grid=(2,), both v7x TCs busy
    kparams = prepare_kernel_params(params, TB)

    fwd = jax.jit(lenet5_forward, static_argnums=(2,))
    out = jax.block_until_ready(fwd(kparams, x, TB))

    assert out.shape == (B, 10), out.shape
    assert out.dtype == jnp.float32
    assert bool(jnp.all(jnp.isfinite(out)))

    # Numerical sanity check against a plain-JAX reference of the module.
    ref = jax.block_until_ready(jax.jit(lenet5_reference)(params, x))
    max_err = float(jnp.max(jnp.abs(out - ref)))
    assert bool(jnp.allclose(out, ref, rtol=5e-2, atol=5e-1)), (max_err, out, ref)

    print("KERNEL_OK")
</pallas_src>

<mosaic_0001>
module attributes {stable_mosaic.version = 11 : i64} {
  func.func @_lenet5_kernel(%arg0: i32, %arg1: memref<256x32xf32, #tpu.memory_space<vmem>>, %arg2: memref<160x168xf32, #tpu.memory_space<vmem>>, %arg3: memref<1x168xf32, #tpu.memory_space<vmem>>, %arg4: memref<112x252xf32, #tpu.memory_space<vmem>>, %arg5: memref<112x252xf32, #tpu.memory_space<vmem>>, %arg6: memref<168x84xf32, #tpu.memory_space<vmem>>, %arg7: memref<168x84xf32, #tpu.memory_space<vmem>>, %arg8: memref<1x84xf32, #tpu.memory_space<vmem>>, %arg9: memref<420x160xf32, #tpu.memory_space<vmem>>, %arg10: memref<1x160xf32, #tpu.memory_space<vmem>>, %arg11: memref<40x108xf32, #tpu.memory_space<vmem>>, %arg12: memref<40x108xf32, #tpu.memory_space<vmem>>, %arg13: memref<160x80xf32, #tpu.memory_space<vmem>>, %arg14: memref<160x80xf32, #tpu.memory_space<vmem>>, %arg15: memref<1x80xf32, #tpu.memory_space<vmem>>, %arg16: memref<40x40xf32, #tpu.memory_space<vmem>>, %arg17: memref<400x120xf32, #tpu.memory_space<vmem>>, %arg18: memref<1x120xf32, #tpu.memory_space<vmem>>, %arg19: memref<120x84xf32, #tpu.memory_space<vmem>>, %arg20: memref<1x84xf32, #tpu.memory_space<vmem>>, %arg21: memref<84x10xf32, #tpu.memory_space<vmem>>, %arg22: memref<1x10xf32, #tpu.memory_space<vmem>>, %arg23: memref<8x10xf32, #tpu.memory_space<vmem>>, %arg24: memref<1280x168xf32, #tpu.memory_space<vmem>>, %arg25: memref<560x160xf32, #tpu.memory_space<vmem>>) attributes {dimension_semantics = [#tpu.dimension_semantics<parallel>], iteration_bounds = array<i64: 2>, scalar_prefetch = 0 : i64, scratch_operands = 2 : i64, tpu.core_type = #tpu.core_type<tc>, window_params = [{transform_indices = @transform_0, window_bounds = array<i64: 256, 32>}, {pipeline_mode = #tpu.pipeline_mode<synchronous>, transform_indices = @transform_1, window_bounds = array<i64: 160, 168>}, {pipeline_mode = #tpu.pipeline_mode<synchronous>, transform_indices = @transform_2, window_bounds = array<i64: 1, 168>}, {pipeline_mode = #tpu.pipeline_mode<synchronous>, transform_indices = @transform_3, window_bounds = array<i64: 112, 252>}, {pipeline_mode = #tpu.pipeline_mode<synchronous>, transform_indices = @transform_4, window_bounds = array<i64: 112, 252>}, {pipeline_mode = #tpu.pipeline_mode<synchronous>, transform_indices = @transform_5, window_bounds = array<i64: 168, 84>}, {pipeline_mode = #tpu.pipeline_mode<synchronous>, transform_indices = @transform_6, window_bounds = array<i64: 168, 84>}, {pipeline_mode = #tpu.pipeline_mode<synchronous>, transform_indices = @transform_7, window_bounds = array<i64: 1, 84>}, {pipeline_mode = #tpu.pipeline_mode<synchronous>, transform_indices = @transform_8, window_bounds = array<i64: 420, 160>}, {pipeline_mode = #tpu.pipeline_mode<synchronous>, transform_indices = @transform_9, window_bounds = array<i64: 1, 160>}, {pipeline_mode = #tpu.pipeline_mode<synchronous>, transform_indices = @transform_10, window_bounds = array<i64: 40, 108>}, {pipeline_mode = #tpu.pipeline_mode<synchronous>, transform_indices = @transform_11, window_bounds = array<i64: 40, 108>}, {pipeline_mode = #tpu.pipeline_mode<synchronous>, transform_indices = @transform_12, window_bounds = array<i64: 160, 80>}, {pipeline_mode = #tpu.pipeline_mode<synchronous>, transform_indices = @transform_13, window_bounds = array<i64: 160, 80>}, {pipeline_mode = #tpu.pipeline_mode<synchronous>, transform_indices = @transform_14, window_bounds = array<i64: 1, 80>}, {pipeline_mode = #tpu.pipeline_mode<synchronous>, transform_indices = @transform_15, window_bounds = array<i64: 40, 40>}, {pipeline_mode = #tpu.pipeline_mode<synchronous>, transform_indices = @transform_16, window_bounds = array<i64: 400, 120>}, {pipeline_mode = #tpu.pipeline_mode<synchronous>, transform_indices = @transform_17, window_bounds = array<i64: 1, 120>}, {pipeline_mode = #tpu.pipeline_mode<synchronous>, transform_indices = @transform_18, window_bounds = array<i64: 120, 84>}, {pipeline_mode = #tpu.pipeline_mode<synchronous>, transform_indices = @transform_19, window_bounds = array<i64: 1, 84>}, {pipeline_mode = #tpu.pipeline_mode<synchronous>, transform_indices = @transform_20, window_bounds = array<i64: 84, 10>}, {pipeline_mode = #tpu.pipeline_mode<synchronous>, transform_indices = @transform_21, window_bounds = array<i64: 1, 10>}, {transform_indices = @transform_22, window_bounds = array<i64: 8, 10>}]} {
    %c0 = arith.constant 0 : index
    %c0_0 = arith.constant 0 : index
    %0 = vector.load %arg1[%c0, %c0_0] : memref<256x32xf32, #tpu.memory_space<vmem>>, vector<256x32xf32>
    %c0_1 = arith.constant 0 : index
    %c0_2 = arith.constant 0 : index
    %1 = vector.load %arg2[%c0_1, %c0_2] : memref<160x168xf32, #tpu.memory_space<vmem>>, vector<32x168xf32>
    %cst = arith.constant dense<0.000000e+00> : vector<256x168xf32>
    %2 = tpu.matmul %0, %1, %cst {dimension_numbers = #tpu.dot_dimension_numbers<[1], [0], [0], [1], [0, 0, 1, 1], [], []>} : vector<256x32xf32>, vector<32x168xf32>, vector<256x168xf32> -> vector<256x168xf32>
    %c0_3 = arith.constant 0 : index
    %c0_4 = arith.constant 0 : index
    %3 = vector.load %arg24[%c0_3, %c0_4] : memref<1280x168xf32, #tpu.memory_space<vmem>>, vector<256x168xf32>
    tpu.vector_store %arg24[%c0_3, %c0_4], %2 {strides = array<i32>} : memref<1280x168xf32, #tpu.memory_space<vmem>>, vector<256x168xf32>,
    %c32 = arith.constant 32 : index
    %c0_5 = arith.constant 0 : index
    %4 = vector.load %arg2[%c32, %c0_5] : memref<160x168xf32, #tpu.memory_space<vmem>>, vector<32x168xf32>
    %cst_6 = arith.constant dense<0.000000e+00> : vector<256x168xf32>
    %5 = tpu.matmul %0, %4, %cst_6 {dimension_numbers = #tpu.dot_dimension_numbers<[1], [0], [0], [1], [0, 0, 1, 1], [], []>} : vector<256x32xf32>, vector<32x168xf32>, vector<256x168xf32> -> vector<256x168xf32>
    %c256 = arith.constant 256 : index
    %c0_7 = arith.constant 0 : index
    %6 = vector.load %arg24[%c256, %c0_7] : memref<1280x168xf32, #tpu.memory_space<vmem>>, vector<256x168xf32>
    tpu.vector_store %arg24[%c256, %c0_7], %5 {strides = array<i32>} : memref<1280x168xf32, #tpu.memory_space<vmem>>, vector<256x168xf32>,
    %c64 = arith.constant 64 : index
    %c0_8 = arith.constant 0 : index
    %7 = vector.load %arg2[%c64, %c0_8] : memref<160x168xf32, #tpu.memory_space<vmem>>, vector<32x168xf32>
    %cst_9 = arith.constant dense<0.000000e+00> : vector<256x168xf32>
    %8 = tpu.matmul %0, %7, %cst_9 {dimension_numbers = #tpu.dot_dimension_numbers<[1], [0], [0], [1], [0, 0, 1, 1], [], []>} : vector<256x32xf32>, vector<32x168xf32>, vector<256x168xf32> -> vector<256x168xf32>
    %c512 = arith.constant 512 : index
    %c0_10 = arith.constant 0 : index
    %9 = vector.load %arg24[%c512, %c0_10] : memref<1280x168xf32, #tpu.memory_space<vmem>>, vector<256x168xf32>
    tpu.vector_store %arg24[%c512, %c0_10], %8 {strides = array<i32>} : memref<1280x168xf32, #tpu.memory_space<vmem>>, vector<256x168xf32>,
    %c96 = arith.constant 96 : index
    %c0_11 = arith.constant 0 : index
    %10 = vector.load %arg2[%c96, %c0_11] : memref<160x168xf32, #tpu.memory_space<vmem>>, vector<32x168xf32>
    %cst_12 = arith.constant dense<0.000000e+00> : vector<256x168xf32>
    %11 = tpu.matmul %0, %10, %cst_12 {dimension_numbers = #tpu.dot_dimension_numbers<[1], [0], [0], [1], [0, 0, 1, 1], [], []>} : vector<256x32xf32>, vector<32x168xf32>, vector<256x168xf32> -> vector<256x168xf32>
    %c768 = arith.constant 768 : index
    %c0_13 = arith.constant 0 : index
    %12 = vector.load %arg24[%c768, %c0_13] : memref<1280x168xf32, #tpu.memory_space<vmem>>, vector<256x168xf32>
    tpu.vector_store %arg24[%c768, %c0_13], %11 {strides = array<i32>} : memref<1280x168xf32, #tpu.memory_space<vmem>>, vector<256x168xf32>,
    %c128 = arith.constant 128 : index
    %c0_14 = arith.constant 0 : index
    %13 = vector.load %arg2[%c128, %c0_14] : memref<160x168xf32, #tpu.memory_space<vmem>>, vector<32x168xf32>
    %cst_15 = arith.constant dense<0.000000e+00> : vector<256x168xf32>
    %14 = tpu.matmul %0, %13, %cst_15 {dimension_numbers = #tpu.dot_dimension_numbers<[1], [0], [0], [1], [0, 0, 1, 1], [], []>} : vector<256x32xf32>, vector<32x168xf32>, vector<256x168xf32> -> vector<256x168xf32>
    %c1024 = arith.constant 1024 : index
    %c0_16 = arith.constant 0 : index
    %15 = vector.load %arg24[%c1024, %c0_16] : memref<1280x168xf32, #tpu.memory_space<vmem>>, vector<256x168xf32>
    tpu.vector_store %arg24[%c1024, %c0_16], %14 {strides = array<i32>} : memref<1280x168xf32, #tpu.memory_space<vmem>>, vector<256x168xf32>,
    %c0_17 = arith.constant 0 : index
    %c0_18 = arith.constant 0 : index
    %16 = vector.load %arg24[%c0_17, %c0_18] : memref<1280x168xf32, #tpu.memory_space<vmem>>, vector<252x168xf32>
    %c257 = arith.constant 257 : index
    %c0_19 = arith.constant 0 : index
    %17 = vector.load %arg24[%c257, %c0_19] : memref<1280x168xf32, #tpu.memory_space<vmem>>, vector<252x168xf32>
    %18 = arith.addf %16, %17 : vector<252x168xf32>
    %c514 = arith.constant 514 : index
    %c0_20 = arith.constant 0 : index
    %19 = vector.load %arg24[%c514, %c0_20] : memref<1280x168xf32, #tpu.memory_space<vmem>>, vector<252x168xf32>
    %20 = arith.addf %18, %19 : vector<252x168xf32>
    %c771 = arith.constant 771 : index
    %c0_21 = arith.constant 0 : index
    %21 = vector.load %arg24[%c771, %c0_21] : memref<1280x168xf32, #tpu.memory_space<vmem>>, vector<252x168xf32>
    %22 = arith.addf %20, %21 : vector<252x168xf32>
    %c1028 = arith.constant 1028 : index
    %c0_22 = arith.constant 0 : index
    %23 = vector.load %arg24[%c1028, %c0_22] : memref<1280x168xf32, #tpu.memory_space<vmem>>, vector<252x168xf32>
    %24 = arith.addf %22, %23 : vector<252x168xf32>
    %c0_23 = arith.constant 0 : index
    %c0_24 = arith.constant 0 : index
    %25 = vector.load %arg3[%c0_23, %c0_24] : memref<1x168xf32, #tpu.memory_space<vmem>>, vector<1x168xf32>
    %26 = vector.broadcast %25 : vector<1x168xf32> to vector<252x168xf32>
    %27 = arith.addf %24, %26 : vector<252x168xf32>
    %28 = math.tanh %27 : vector<252x168xf32>
    %c0_25 = arith.constant 0 : index
    %c0_26 = arith.constant 0 : index
    %29 = vector.load %arg4[%c0_25, %c0_26] : memref<112x252xf32, #tpu.memory_space<vmem>>, vector<112x252xf32>
    %cst_27 = arith.constant dense<0.000000e+00> : vector<112x168xf32>
    %30 = tpu.matmul %29, %28, %cst_27 {dimension_numbers = #tpu.dot_dimension_numbers<[1], [0], [0], [1], [0, 0, 1, 1], [], []>} : vector<112x252xf32>, vector<252x168xf32>, vector<112x168xf32> -> vector<112x168xf32>
    %c0_28 = arith.constant 0 : index
    %c0_29 = arith.constant 0 : index
    %31 = vector.load %arg5[%c0_28, %c0_29] : memref<112x252xf32, #tpu.memory_space<vmem>>, vector<112x252xf32>
    %cst_30 = arith.constant dense<0.000000e+00> : vector<112x168xf32>
    %32 = tpu.matmul %31, %28, %cst_30 {dimension_numbers = #tpu.dot_dimension_numbers<[1], [0], [0], [1], [0, 0, 1, 1], [], []>} : vector<112x252xf32>, vector<252x168xf32>, vector<112x168xf32> -> vector<112x168xf32>
    %c0_31 = arith.constant 0 : index
    %c0_32 = arith.constant 0 : index
    %33 = vector.load %arg6[%c0_31, %c0_32] : memref<168x84xf32, #tpu.memory_space<vmem>>, vector<168x84xf32>
    %cst_33 = arith.constant dense<0.000000e+00> : vector<112x84xf32>
    %34 = tpu.matmul %30, %33, %cst_33 {dimension_numbers = #tpu.dot_dimension_numbers<[1], [0], [0], [1], [0, 0, 1, 1], [], []>} : vector<112x168xf32>, vector<168x84xf32>, vector<112x84xf32> -> vector<112x84xf32>
    %c0_34 = arith.constant 0 : index
    %c0_35 = arith.constant 0 : index
    %35 = vector.load %arg7[%c0_34, %c0_35] : memref<168x84xf32, #tpu.memory_space<vmem>>, vector<168x84xf32>
    %cst_36 = arith.constant dense<0.000000e+00> : vector<112x84xf32>
    %36 = tpu.matmul %32, %35, %cst_36 {dimension_numbers = #tpu.dot_dimension_numbers<[1], [0], [0], [1], [0, 0, 1, 1], [], []>} : vector<112x168xf32>, vector<168x84xf32>, vector<112x84xf32> -> vector<112x84xf32>
    %37 = arith.addf %34, %36 : vector<112x84xf32>
    %c0_37 = arith.constant 0 : index
    %c0_38 = arith.constant 0 : index
    %38 = vector.load %arg8[%c0_37, %c0_38] : memref<1x84xf32, #tpu.memory_space<vmem>>, vector<1x84xf32>
    %39 = vector.broadcast %38 : vector<1x84xf32> to vector<112x84xf32>
    %40 = arith.addf %37, %39 : vector<112x84xf32>
    %41 = math.tanh %40 : vector<112x84xf32>
    %c0_39 = arith.constant 0 : index
    %c0_40 = arith.constant 0 : index
    %42 = vector.load %arg9[%c0_39, %c0_40] : memref<420x160xf32, #tpu.memory_space<vmem>>, vector<84x160xf32>
    %cst_41 = arith.constant dense<0.000000e+00> : vector<112x160xf32>
    %43 = tpu.matmul %41, %42, %cst_41 {dimension_numbers = #tpu.dot_dimension_numbers<[1], [0], [0], [1], [0, 0, 1, 1], [], []>} : vector<112x84xf32>, vector<84x160xf32>, vector<112x160xf32> -> vector<112x160xf32>
    %c0_42 = arith.constant 0 : index
    %c0_43 = arith.constant 0 : index
    %44 = vector.load %arg25[%c0_42, %c0_43] : memref<560x160xf32, #tpu.memory_space<vmem>>, vector<112x160xf32>
    tpu.vector_store %arg25[%c0_42, %c0_43], %43 {strides = array<i32>} : memref<560x160xf32, #tpu.memory_space<vmem>>, vector<112x160xf32>,
    %c84 = arith.constant 84 : index
    %c0_44 = arith.constant 0 : index
    %45 = vector.load %arg9[%c84, %c0_44] : memref<420x160xf32, #tpu.memory_space<vmem>>, vector<84x160xf32>
    %cst_45 = arith.constant dense<0.000000e+00> : vector<112x160xf32>
    %46 = tpu.matmul %41, %45, %cst_45 {dimension_numbers = #tpu.dot_dimension_numbers<[1], [0], [0], [1], [0, 0, 1, 1], [], []>} : vector<112x84xf32>, vector<84x160xf32>, vector<112x160xf32> -> vector<112x160xf32>
    %c112 = arith.constant 112 : index
    %c0_46 = arith.constant 0 : index
    %47 = vector.load %arg25[%c112, %c0_46] : memref<560x160xf32, #tpu.memory_space<vmem>>, vector<112x160xf32>
    tpu.vector_store %arg25[%c112, %c0_46], %46 {strides = array<i32>} : memref<560x160xf32, #tpu.memory_space<vmem>>, vector<112x160xf32>,
    %c168 = arith.constant 168 : index
    %c0_47 = arith.constant 0 : index
    %48 = vector.load %arg9[%c168, %c0_47] : memref<420x160xf32, #tpu.memory_space<vmem>>, vector<84x160xf32>
    %cst_48 = arith.constant dense<0.000000e+00> : vector<112x160xf32>
    %49 = tpu.matmul %41, %48, %cst_48 {dimension_numbers = #tpu.dot_dimension_numbers<[1], [0], [0], [1], [0, 0, 1, 1], [], []>} : vector<112x84xf32>, vector<84x160xf32>, vector<112x160xf32> -> vector<112x160xf32>
    %c224 = arith.constant 224 : index
    %c0_49 = arith.constant 0 : index
    %50 = vector.load %arg25[%c224, %c0_49] : memref<560x160xf32, #tpu.memory_space<vmem>>, vector<112x160xf32>
    tpu.vector_store %arg25[%c224, %c0_49], %49 {strides = array<i32>} : memref<560x160xf32, #tpu.memory_space<vmem>>, vector<112x160xf32>,
    %c252 = arith.constant 252 : index
    %c0_50 = arith.constant 0 : index
    %51 = vector.load %arg9[%c252, %c0_50] : memref<420x160xf32, #tpu.memory_space<vmem>>, vector<84x160xf32>
    %cst_51 = arith.constant dense<0.000000e+00> : vector<112x160xf32>
    %52 = tpu.matmul %41, %51, %cst_51 {dimension_numbers = #tpu.dot_dimension_numbers<[1], [0], [0], [1], [0, 0, 1, 1], [], []>} : vector<112x84xf32>, vector<84x160xf32>, vector<112x160xf32> -> vector<112x160xf32>
    %c336 = arith.constant 336 : index
    %c0_52 = arith.constant 0 : index
    %53 = vector.load %arg25[%c336, %c0_52] : memref<560x160xf32, #tpu.memory_space<vmem>>, vector<112x160xf32>
    tpu.vector_store %arg25[%c336, %c0_52], %52 {strides = array<i32>} : memref<560x160xf32, #tpu.memory_space<vmem>>, vector<112x160xf32>,
    %c336_53 = arith.constant 336 : index
    %c0_54 = arith.constant 0 : index
    %54 = vector.load %arg9[%c336_53, %c0_54] : memref<420x160xf32, #tpu.memory_space<vmem>>, vector<84x160xf32>
    %cst_55 = arith.constant dense<0.000000e+00> : vector<112x160xf32>
    %55 = tpu.matmul %41, %54, %cst_55 {dimension_numbers = #tpu.dot_dimension_numbers<[1], [0], [0], [1], [0, 0, 1, 1], [], []>} : vector<112x84xf32>, vector<84x160xf32>, vector<112x160xf32> -> vector<112x160xf32>
    %c448 = arith.constant 448 : index
    %c0_56 = arith.constant 0 : index
    %56 = vector.load %arg25[%c448, %c0_56] : memref<560x160xf32, #tpu.memory_space<vmem>>, vector<112x160xf32>
    tpu.vector_store %arg25[%c448, %c0_56], %55 {strides = array<i32>} : memref<560x160xf32, #tpu.memory_space<vmem>>, vector<112x160xf32>,
    %c0_57 = arith.constant 0 : index
    %c0_58 = arith.constant 0 : index
    %57 = vector.load %arg25[%c0_57, %c0_58] : memref<560x160xf32, #tpu.memory_space<vmem>>, vector<108x160xf32>
    %c113 = arith.constant 113 : index
    %c0_59 = arith.constant 0 : index
    %58 = vector.load %arg25[%c113, %c0_59] : memref<560x160xf32, #tpu.memory_space<vmem>>, vector<108x160xf32>
    %59 = arith.addf %57, %58 : vector<108x160xf32>
    %c226 = arith.constant 226 : index
    %c0_60 = arith.constant 0 : index
    %60 = vector.load %arg25[%c226, %c0_60] : memref<560x160xf32, #tpu.memory_space<vmem>>, vector<108x160xf32>
    %61 = arith.addf %59, %60 : vector<108x160xf32>
    %c339 = arith.constant 339 : index
    %c0_61 = arith.constant 0 : index
    %62 = vector.load %arg25[%c339, %c0_61] : memref<560x160xf32, #tpu.memory_space<vmem>>, vector<108x160xf32>
    %63 = arith.addf %61, %62 : vector<108x160xf32>
    %c452 = arith.constant 452 : index
    %c0_62 = arith.constant 0 : index
    %64 = vector.load %arg25[%c452, %c0_62] : memref<560x160xf32, #tpu.memory_space<vmem>>, vector<108x160xf32>
    %65 = arith.addf %63, %64 : vector<108x160xf32>
    %c0_63 = arith.constant 0 : index
    %c0_64 = arith.constant 0 : index
    %66 = vector.load %arg10[%c0_63, %c0_64] : memref<1x160xf32, #tpu.memory_space<vmem>>, vector<1x160xf32>
    %67 = vector.broadcast %66 : vector<1x160xf32> to vector<108x160xf32>
    %68 = arith.addf %65, %67 : vector<108x160xf32>
    %69 = math.tanh %68 : vector<108x160xf32>
    %c0_65 = arith.constant 0 : index
    %c0_66 = arith.constant 0 : index
    %70 = vector.load %arg11[%c0_65, %c0_66] : memref<40x108xf32, #tpu.memory_space<vmem>>, vector<40x108xf32>
    %cst_67 = arith.constant dense<0.000000e+00> : vector<40x160xf32>
    %71 = tpu.matmul %70, %69, %cst_67 {dimension_numbers = #tpu.dot_dimension_numbers<[1], [0], [0], [1], [0, 0, 1, 1], [], []>} : vector<40x108xf32>, vector<108x160xf32>, vector<40x160xf32> -> vector<40x160xf32>
    %c0_68 = arith.constant 0 : index
    %c0_69 = arith.constant 0 : index
    %72 = vector.load %arg12[%c0_68, %c0_69] : memref<40x108xf32, #tpu.memory_space<vmem>>, vector<40x108xf32>
    %cst_70 = arith.constant dense<0.000000e+00> : vector<40x160xf32>
    %73 = tpu.matmul %72, %69, %cst_70 {dimension_numbers = #tpu.dot_dimension_numbers<[1], [0], [0], [1], [0, 0, 1, 1], [], []>} : vector<40x108xf32>, vector<108x160xf32>, vector<40x160xf32> -> vector<40x160xf32>
    %c0_71 = arith.constant 0 : index
    %c0_72 = arith.constant 0 : index
    %74 = vector.load %arg13[%c0_71, %c0_72] : memref<160x80xf32, #tpu.memory_space<vmem>>, vector<160x80xf32>
    %cst_73 = arith.constant dense<0.000000e+00> : vector<40x80xf32>
    %75 = tpu.matmul %71, %74, %cst_73 {dimension_numbers = #tpu.dot_dimension_numbers<[1], [0], [0], [1], [0, 0, 1, 1], [], []>} : vector<40x160xf32>, vector<160x80xf32>, vector<40x80xf32> -> vector<40x80xf32>
    %c0_74 = arith.constant 0 : index
    %c0_75 = arith.constant 0 : index
    %76 = vector.load %arg14[%c0_74, %c0_75] : memref<160x80xf32, #tpu.memory_space<vmem>>, vector<160x80xf32>
    %cst_76 = arith.constant dense<0.000000e+00> : vector<40x80xf32>
    %77 = tpu.matmul %73, %76, %cst_76 {dimension_numbers = #tpu.dot_dimension_numbers<[1], [0], [0], [1], [0, 0, 1, 1], [], []>} : vector<40x160xf32>, vector<160x80xf32>, vector<40x80xf32> -> vector<40x80xf32>
    %78 = arith.addf %75, %77 : vector<40x80xf32>
    %c0_77 = arith.constant 0 : index
    %c0_78 = arith.constant 0 : index
    %79 = vector.load %arg15[%c0_77, %c0_78] : memref<1x80xf32, #tpu.memory_space<vmem>>, vector<1x80xf32>
    %80 = vector.broadcast %79 : vector<1x80xf32> to vector<40x80xf32>
    %81 = arith.addf %78, %80 : vector<40x80xf32>
    %82 = math.tanh %81 : vector<40x80xf32>
    %c0_79 = arith.constant 0 : index
    %c0_80 = arith.constant 0 : index
    %83 = vector.load %arg16[%c0_79, %c0_80] : memref<40x40xf32, #tpu.memory_space<vmem>>, vector<8x40xf32>
    %cst_81 = arith.constant dense<0.000000e+00> : vector<8x80xf32>
    %84 = tpu.matmul %83, %82, %cst_81 {dimension_numbers = #tpu.dot_dimension_numbers<[1], [0], [0], [1], [0, 0, 1, 1], [], []>} : vector<8x40xf32>, vector<40x80xf32>, vector<8x80xf32> -> vector<8x80xf32>
    %c0_82 = arith.constant 0 : index
    %c0_83 = arith.constant 0 : index
    %85 = vector.load %arg17[%c0_82, %c0_83] : memref<400x120xf32, #tpu.memory_space<vmem>>, vector<80x120xf32>
    %cst_84 = arith.constant dense<0.000000e+00> : vector<8x120xf32>
    %86 = tpu.matmul %84, %85, %cst_84 {dimension_numbers = #tpu.dot_dimension_numbers<[1], [0], [0], [1], [0, 0, 1, 1], [], []>} : vector<8x80xf32>, vector<80x120xf32>, vector<8x120xf32> -> vector<8x120xf32>
    %c8 = arith.constant 8 : index
    %c0_85 = arith.constant 0 : index
    %87 = vector.load %arg16[%c8, %c0_85] : memref<40x40xf32, #tpu.memory_space<vmem>>, vector<8x40xf32>
    %cst_86 = arith.constant dense<0.000000e+00> : vector<8x80xf32>
    %88 = tpu.matmul %87, %82, %cst_86 {dimension_numbers = #tpu.dot_dimension_numbers<[1], [0], [0], [1], [0, 0, 1, 1], [], []>} : vector<8x40xf32>, vector<40x80xf32>, vector<8x80xf32> -> vector<8x80xf32>
    %c80 = arith.constant 80 : index
    %c0_87 = arith.constant 0 : index
    %89 = vector.load %arg17[%c80, %c0_87] : memref<400x120xf32, #tpu.memory_space<vmem>>, vector<80x120xf32>
    %cst_88 = arith.constant dense<0.000000e+00> : vector<8x120xf32>
    %90 = tpu.matmul %88, %89, %cst_88 {dimension_numbers = #tpu.dot_dimension_numbers<[1], [0], [0], [1], [0, 0, 1, 1], [], []>} : vector<8x80xf32>, vector<80x120xf32>, vector<8x120xf32> -> vector<8x120xf32>
    %91 = arith.addf %86, %90 : vector<8x120xf32>
    %c16 = arith.constant 16 : index
    %c0_89 = arith.constant 0 : index
    %92 = vector.load %arg16[%c16, %c0_89] : memref<40x40xf32, #tpu.memory_space<vmem>>, vector<8x40xf32>
    %cst_90 = arith.constant dense<0.000000e+00> : vector<8x80xf32>
    %93 = tpu.matmul %92, %82, %cst_90 {dimension_numbers = #tpu.dot_dimension_numbers<[1], [0], [0], [1], [0, 0, 1, 1], [], []>} : vector<8x40xf32>, vector<40x80xf32>, vector<8x80xf32> -> vector<8x80xf32>
    %c160 = arith.constant 160 : index
    %c0_91 = arith.constant 0 : index
    %94 = vector.load %arg17[%c160, %c0_91] : memref<400x120xf32, #tpu.memory_space<vmem>>, vector<80x120xf32>
    %cst_92 = arith.constant dense<0.000000e+00> : vector<8x120xf32>
    %95 = tpu.matmul %93, %94, %cst_92 {dimension_numbers = #tpu.dot_dimension_numbers<[1], [0], [0], [1], [0, 0, 1, 1], [], []>} : vector<8x80xf32>, vector<80x120xf32>, vector<8x120xf32> -> vector<8x120xf32>
    %96 = arith.addf %91, %95 : vector<8x120xf32>
    %c24 = arith.constant 24 : index
    %c0_93 = arith.constant 0 : index
    %97 = vector.load %arg16[%c24, %c0_93] : memref<40x40xf32, #tpu.memory_space<vmem>>, vector<8x40xf32>
    %cst_94 = arith.constant dense<0.000000e+00> : vector<8x80xf32>
    %98 = tpu.matmul %97, %82, %cst_94 {dimension_numbers = #tpu.dot_dimension_numbers<[1], [0], [0], [1], [0, 0, 1, 1], [], []>} : vector<8x40xf32>, vector<40x80xf32>, vector<8x80xf32> -> vector<8x80xf32>
    %c240 = arith.constant 240 : index
    %c0_95 = arith.constant 0 : index
    %99 = vector.load %arg17[%c240, %c0_95] : memref<400x120xf32, #tpu.memory_space<vmem>>, vector<80x120xf32>
    %cst_96 = arith.constant dense<0.000000e+00> : vector<8x120xf32>
    %100 = tpu.matmul %98, %99, %cst_96 {dimension_numbers = #tpu.dot_dimension_numbers<[1], [0], [0], [1], [0, 0, 1, 1], [], []>} : vector<8x80xf32>, vector<80x120xf32>, vector<8x120xf32> -> vector<8x120xf32>
    %101 = arith.addf %96, %100 : vector<8x120xf32>
    %c32_97 = arith.constant 32 : index
    %c0_98 = arith.constant 0 : index
    %102 = vector.load %arg16[%c32_97, %c0_98] : memref<40x40xf32, #tpu.memory_space<vmem>>, vector<8x40xf32>
    %cst_99 = arith.constant dense<0.000000e+00> : vector<8x80xf32>
    %103 = tpu.matmul %102, %82, %cst_99 {dimension_numbers = #tpu.dot_dimension_numbers<[1], [0], [0], [1], [0, 0, 1, 1], [], []>} : vector<8x40xf32>, vector<40x80xf32>, vector<8x80xf32> -> vector<8x80xf32>
    %c320 = arith.constant 320 : index
    %c0_100 = arith.constant 0 : index
    %104 = vector.load %arg17[%c320, %c0_100] : memref<400x120xf32, #tpu.memory_space<vmem>>, vector<80x120xf32>
    %cst_101 = arith.constant dense<0.000000e+00> : vector<8x120xf32>
    %105 = tpu.matmul %103, %104, %cst_101 {dimension_numbers = #tpu.dot_dimension_numbers<[1], [0], [0], [1], [0, 0, 1, 1], [], []>} : vector<8x80xf32>, vector<80x120xf32>, vector<8x120xf32> -> vector<8x120xf32>
    %106 = arith.addf %101, %105 : vector<8x120xf32>
    %c0_102 = arith.constant 0 : index
    %c0_103 = arith.constant 0 : index
    %107 = vector.load %arg18[%c0_102, %c0_103] : memref<1x120xf32, #tpu.memory_space<vmem>>, vector<1x120xf32>
    %108 = vector.broadcast %107 : vector<1x120xf32> to vector<8x120xf32>
    %109 = arith.addf %106, %108 : vector<8x120xf32>
    %110 = math.tanh %109 : vector<8x120xf32>
    %c0_104 = arith.constant 0 : index
    %c0_105 = arith.constant 0 : index
    %111 = vector.load %arg19[%c0_104, %c0_105] : memref<120x84xf32, #tpu.memory_space<vmem>>, vector<120x84xf32>
    %cst_106 = arith.constant dense<0.000000e+00> : vector<8x84xf32>
    %112 = tpu.matmul %110, %111, %cst_106 {dimension_numbers = #tpu.dot_dimension_numbers<[1], [0], [0], [1], [0, 0, 1, 1], [], []>} : vector<8x120xf32>, vector<120x84xf32>, vector<8x84xf32> -> vector<8x84xf32>
    %c0_107 = arith.constant 0 : index
    %c0_108 = arith.constant 0 : index
    %113 = vector.load %arg20[%c0_107, %c0_108] : memref<1x84xf32, #tpu.memory_space<vmem>>, vector<1x84xf32>
    %114 = vector.broadcast %113 : vector<1x84xf32> to vector<8x84xf32>
    %115 = arith.addf %112, %114 : vector<8x84xf32>
    %116 = math.tanh %115 : vector<8x84xf32>
    %cst_109 = arith.constant 1.715900e+00 : f32
    %117 = vector.broadcast %cst_109 : f32 to vector<8x84xf32>
    %118 = arith.mulf %117, %116 : vector<8x84xf32>
    %119 = arith.mulf %118, %118 : vector<8x84xf32>
    %cst_110 = arith.constant dense<0.000000e+00> : vector<8xf32>
    %120 = vector.multi_reduction <add>, %119, %cst_110 [1] : vector<8x84xf32> to vector<8xf32>
    %121 = vector.shape_cast %120 : vector<8xf32> to vector<8x1xf32>
    %c0_111 = arith.constant 0 : index
    %c0_112 = arith.constant 0 : index
    %122 = vector.load %arg21[%c0_111, %c0_112] : memref<84x10xf32, #tpu.memory_space<vmem>>, vector<84x10xf32>
    %cst_113 = arith.constant dense<0.000000e+00> : vector<8x10xf32>
    %123 = tpu.matmul %118, %122, %cst_113 {dimension_numbers = #tpu.dot_dimension_numbers<[1], [0], [0], [1], [0, 0, 1, 1], [], []>} : vector<8x84xf32>, vector<84x10xf32>, vector<8x10xf32> -> vector<8x10xf32>
    %cst_114 = arith.constant 2.000000e+00 : f32
    %124 = vector.broadcast %cst_114 : f32 to vector<8x10xf32>
    %125 = arith.mulf %124, %123 : vector<8x10xf32>
    %126 = vector.broadcast %121 : vector<8x1xf32> to vector<8x10xf32>
    %127 = arith.subf %126, %125 : vector<8x10xf32>
    %c0_115 = arith.constant 0 : index
    %c0_116 = arith.constant 0 : index
    %128 = vector.load %arg22[%c0_115, %c0_116] : memref<1x10xf32, #tpu.memory_space<vmem>>, vector<1x10xf32>
    %129 = vector.broadcast %128 : vector<1x10xf32> to vector<8x10xf32>
    %130 = arith.addf %127, %129 : vector<8x10xf32>
    %c0_117 = arith.constant 0 : index
    %c0_118 = arith.constant 0 : index
    %131 = vector.load %arg23[%c0_117, %c0_118] : memref<8x10xf32, #tpu.memory_space<vmem>>, vector<8x10xf32>
    tpu.vector_store %arg23[%c0_117, %c0_118], %130 {strides = array<i32>} : memref<8x10xf32, #tpu.memory_space<vmem>>, vector<8x10xf32>,
    return
  }
  func.func @transform_0(%arg0: i32) -> (i32, i32) {
    %c0_i32 = arith.constant 0 : i32
    %c0_i32_0 = arith.constant 0 : i32
    return %arg0, %c0_i32 : i32, i32
  }
  func.func @transform_1(%arg0: i32) -> (i32, i32) {
    %c0_i32 = arith.constant 0 : i32
    %c0_i32_0 = arith.constant 0 : i32
    %c0_i32_1 = arith.constant 0 : i32
    return %c0_i32, %c0_i32_0 : i32, i32
  }
  func.func @transform_2(%arg0: i32) -> (i32, i32) {
    %c0_i32 = arith.constant 0 : i32
    %c0_i32_0 = arith.constant 0 : i32
    %c0_i32_1 = arith.constant 0 : i32
    return %c0_i32, %c0_i32_0 : i32, i32
  }
  func.func @transform_3(%arg0: i32) -> (i32, i32) {
    %c0_i32 = arith.constant 0 : i32
    %c0_i32_0 = arith.constant 0 : i32
    %c0_i32_1 = arith.constant 0 : i32
    return %c0_i32, %c0_i32_0 : i32, i32
  }
  func.func @transform_4(%arg0: i32) -> (i32, i32) {
    %c0_i32 = arith.constant 0 : i32
    %c0_i32_0 = arith.constant 0 : i32
    %c0_i32_1 = arith.constant 0 : i32
    return %c0_i32, %c0_i32_0 : i32, i32
  }
  func.func @transform_5(%arg0: i32) -> (i32, i32) {
    %c0_i32 = arith.constant 0 : i32
    %c0_i32_0 = arith.constant 0 : i32
    %c0_i32_1 = arith.constant 0 : i32
    return %c0_i32, %c0_i32_0 : i32, i32
  }
  func.func @transform_6(%arg0: i32) -> (i32, i32) {
    %c0_i32 = arith.constant 0 : i32
    %c0_i32_0 = arith.constant 0 : i32
    %c0_i32_1 = arith.constant 0 : i32
    return %c0_i32, %c0_i32_0 : i32, i32
  }
  func.func @transform_7(%arg0: i32) -> (i32, i32) {
    %c0_i32 = arith.constant 0 : i32
    %c0_i32_0 = arith.constant 0 : i32
    %c0_i32_1 = arith.constant 0 : i32
    return %c0_i32, %c0_i32_0 : i32, i32
  }
  func.func @transform_8(%arg0: i32) -> (i32, i32) {
    %c0_i32 = arith.constant 0 : i32
    %c0_i32_0 = arith.constant 0 : i32
    %c0_i32_1 = arith.constant 0 : i32
    return %c0_i32, %c0_i32_0 : i32, i32
  }
  func.func @transform_9(%arg0: i32) -> (i32, i32) {
    %c0_i32 = arith.constant 0 : i32
    %c0_i32_0 = arith.constant 0 : i32
    %c0_i32_1 = arith.constant 0 : i32
    return %c0_i32, %c0_i32_0 : i32, i32
  }
  func.func @transform_10(%arg0: i32) -> (i32, i32) {
    %c0_i32 = arith.constant 0 : i32
    %c0_i32_0 = arith.constant 0 : i32
    %c0_i32_1 = arith.constant 0 : i32
    return %c0_i32, %c0_i32_0 : i32, i32
  }
  func.func @transform_11(%arg0: i32) -> (i32, i32) {
    %c0_i32 = arith.constant 0 : i32
    %c0_i32_0 = arith.constant 0 : i32
    %c0_i32_1 = arith.constant 0 : i32
    return %c0_i32, %c0_i32_0 : i32, i32
  }
  func.func @transform_12(%arg0: i32) -> (i32, i32) {
    %c0_i32 = arith.constant 0 : i32
    %c0_i32_0 = arith.constant 0 : i32
    %c0_i32_1 = arith.constant 0 : i32
    return %c0_i32, %c0_i32_0 : i32, i32
  }
  func.func @transform_13(%arg0: i32) -> (i32, i32) {
    %c0_i32 = arith.constant 0 : i32
    %c0_i32_0 = arith.constant 0 : i32
    %c0_i32_1 = arith.constant 0 : i32
    return %c0_i32, %c0_i32_0 : i32, i32
  }
  func.func @transform_14(%arg0: i32) -> (i32, i32) {
    %c0_i32 = arith.constant 0 : i32
    %c0_i32_0 = arith.constant 0 : i32
    %c0_i32_1 = arith.constant 0 : i32
    return %c0_i32, %c0_i32_0 : i32, i32
  }
  func.func @transform_15(%arg0: i32) -> (i32, i32) {
    %c0_i32 = arith.constant 0 : i32
    %c0_i32_0 = arith.constant 0 : i32
    %c0_i32_1 = arith.constant 0 : i32
    return %c0_i32, %c0_i32_0 : i32, i32
  }
  func.func @transform_16(%arg0: i32) -> (i32, i32) {
    %c0_i32 = arith.constant 0 : i32
    %c0_i32_0 = arith.constant 0 : i32
    %c0_i32_1 = arith.constant 0 : i32
    return %c0_i32, %c0_i32_0 : i32, i32
  }
  func.func @transform_17(%arg0: i32) -> (i32, i32) {
    %c0_i32 = arith.constant 0 : i32
    %c0_i32_0 = arith.constant 0 : i32
    %c0_i32_1 = arith.constant 0 : i32
    return %c0_i32, %c0_i32_0 : i32, i32
  }
  func.func @transform_18(%arg0: i32) -> (i32, i32) {
    %c0_i32 = arith.constant 0 : i32
    %c0_i32_0 = arith.constant 0 : i32
    %c0_i32_1 = arith.constant 0 : i32
    return %c0_i32, %c0_i32_0 : i32, i32
  }
  func.func @transform_19(%arg0: i32) -> (i32, i32) {
    %c0_i32 = arith.constant 0 : i32
    %c0_i32_0 = arith.constant 0 : i32
    %c0_i32_1 = arith.constant 0 : i32
    return %c0_i32, %c0_i32_0 : i32, i32
  }
  func.func @transform_20(%arg0: i32) -> (i32, i32) {
    %c0_i32 = arith.constant 0 : i32
    %c0_i32_0 = arith.constant 0 : i32
    %c0_i32_1 = arith.constant 0 : i32
    return %c0_i32, %c0_i32_0 : i32, i32
  }
  func.func @transform_21(%arg0: i32) -> (i32, i32) {
    %c0_i32 = arith.constant 0 : i32
    %c0_i32_0 = arith.constant 0 : i32
    %c0_i32_1 = arith.constant 0 : i32
    return %c0_i32, %c0_i32_0 : i32, i32
  }
  func.func @transform_22(%arg0: i32) -> (i32, i32) {
    %c0_i32 = arith.constant 0 : i32
    %c0_i32_0 = arith.constant 0 : i32
    return %arg0, %c0_i32 : i32, i32
  }
}

</mosaic_0001>

<llo_original>
// kernel: lenet5_forward.1
$region0: #{lenet5_forward.1}
  #allocation0 [shape = 'u32[]', space=smem, size = 0x4, offset = 0x4, fixed_abs, tag = 'smem constant byte address 0x4 - core index']
  #allocation1 [shape = 'u32[144,128]{1,0:T(1,128)}', space=vmem, size = 0x12000, scoped, tag = 'internal scratch']
  #allocation2 [shape = 'f32[1280,168]{1,0:T(8,128)}', space=vmem, size = 0x140000, scoped, tag = 'scratch operand']
  #allocation3 [shape = 'f32[560,160]{1,0:T(8,128)}', space=vmem, size = 0x8c000, scoped, tag = 'scratch operand']
  %s0 = inlined_call_operand.vmem [shape: f32[512,32], index: 0, kind: input, shape index: {}]
  %s1 = inlined_call_operand.vmem [shape: f32[160,168], index: 1, kind: input, shape index: {}]
  %s2 = inlined_call_operand.vmem [shape: f32[1,168], index: 2, kind: input, shape index: {}]
  %s3 = inlined_call_operand.vmem [shape: f32[112,252], index: 3, kind: input, shape index: {}]
  %s4 = inlined_call_operand.vmem [shape: f32[112,252], index: 4, kind: input, shape index: {}]
  %s5 = inlined_call_operand.hbm [shape: f32[168,84], index: 5, kind: input, shape index: {}]
  %s6 = inlined_call_operand.hbm [shape: f32[168,84], index: 6, kind: input, shape index: {}]
  %s7 = inlined_call_operand.vmem [shape: f32[1,84], index: 7, kind: input, shape index: {}]
  %s8 = inlined_call_operand.vmem [shape: f32[420,160], index: 8, kind: input, shape index: {}]
  %s9 = inlined_call_operand.vmem [shape: f32[1,160], index: 9, kind: input, shape index: {}]
  %s10 = inlined_call_operand.vmem [shape: f32[40,108], index: 10, kind: input, shape index: {}]
  %s11 = inlined_call_operand.hbm [shape: f32[40,108], index: 11, kind: input, shape index: {}]
  %s12 = inlined_call_operand.hbm [shape: f32[160,80], index: 12, kind: input, shape index: {}]
  %s13 = inlined_call_operand.hbm [shape: f32[160,80], index: 13, kind: input, shape index: {}]
  %s14 = inlined_call_operand.vmem [shape: f32[1,80], index: 14, kind: input, shape index: {}]
  %s15 = inlined_call_operand.hbm [shape: f32[40,40], index: 15, kind: input, shape index: {}]
  %s16 = inlined_call_operand.vmem [shape: f32[400,120], index: 16, kind: input, shape index: {}]
  %s17 = inlined_call_operand.vmem [shape: f32[1,120], index: 17, kind: input, shape index: {}]
  %s18 = inlined_call_operand.vmem [shape: f32[120,84], index: 18, kind: input, shape index: {}]
  %s19 = inlined_call_operand.vmem [shape: f32[1,84], index: 19, kind: input, shape index: {}]
  %s20 = inlined_call_operand.vmem [shape: f32[84,10], index: 20, kind: input, shape index: {}]
  %s21 = inlined_call_operand.vmem [shape: f32[1,10], index: 21, kind: input, shape index: {}]
  %s22 = inlined_call_operand.hbm [shape: f32[16,10], index: 22, kind: output, shape index: {}]
  %s23 = sld [smem:[#allocation0]]
  $region145: #{lenet5_forward.1} parent=0
    _
  %s25 = ssub.s32 1, %s23
  %s26 = scalar_select 0, %s25, %s23
  $region1: #{lenet5_forward.1} parent=0
    #allocation4 [shape = 'u8[86016]{0}', space=vmem, size = 0x15000, scoped, tag = 'input window, operand 5, single buffered']
    #allocation5 [shape = 's32[2]{0}', space=sflag, size = 0x8, scoped, tag = 'scoped memory for lenet5_forward.1']
    #allocation6 [shape = 's32[2]{0}', space=sflag, size = 0x8, scoped, tag = 'scoped memory for lenet5_forward.1']
    #allocation7 [shape = 'u8[86016]{0}', space=vmem, size = 0x15000, scoped, tag = 'input window, operand 6, single buffered']
    #allocation8 [shape = 's32[1]{0}', space=sflag, size = 0x4, scoped, tag = 'scoped memory for lenet5_forward.1']
    #allocation9 [shape = 'u8[20480]{0}', space=vmem, size = 0x5000, scoped, tag = 'input window, operand 11, single buffered']
    #allocation10 [shape = 'u8[81920]{0}', space=vmem, size = 0x14000, scoped, tag = 'input window, operand 12, single buffered']
    #allocation11 [shape = 's32[1]{0}', space=sflag, size = 0x4, scoped, tag = 'scoped memory for lenet5_forward.1']
    #allocation12 [shape = 'u8[81920]{0}', space=vmem, size = 0x14000, scoped, tag = 'input window, operand 13, single buffered']
    #allocation13 [shape = 'u8[20480]{0}', space=vmem, size = 0x5000, scoped, tag = 'input window, operand 15, single buffered']
    #allocation14 [shape = 's32[1]{0}', space=sflag, size = 0x4, scoped, tag = 'scoped memory for lenet5_forward.1']
    #allocation15 [shape = 'u8[8192]{0}', space=vmem, size = 0x2000, scoped, tag = 'output window, operand 0']
    %27 = vsyncpa [#allocation5], 0
    %28 = vsyncpa [#allocation8], 0
    %29 = vsyncpa [#allocation11], 0
    %30 = vsyncpa [#allocation14], 0
    %31 = vsyncpa [#allocation6], 0
    %s32 = scalar_lea.sflag [#allocation6], 1
    %33 = vsyncpa %s32, 0
    loop: start=0, step=1, limit=4
    $region2: #{lenet5_forward.1} parent=1 // loop_pre_header
      _
    $region3: #{lenet5_forward.1} parent=1 // loop_header
      %s35 = sphi 0, %s39
      %p36 = scmp.ge.s32.totalorder %s35, 4
      %s45 = sphi 0, %s47
      %s48 = sphi 0, %s45
      %s49 = sphi 0, %s48
      %s65 = sphi 0, %s49
      %s69 = sphi 0, %s69
      %s71 = sphi 0, %s69
      %s72 = sphi 0, %s71
      %s86 = sphi 0, %s72
      %s90 = sphi 0, %s90
      %s92 = sphi 0, %s90
      %s93 = sphi 0, %s92
      %s107 = sphi 0, %s93
      %s111 = sphi 0, %s111
      %s113 = sphi 0, %s111
      %s114 = sphi 0, %s113
      %s128 = sphi 0, %s114
      %s132 = sphi 0, %s132
      %s134 = sphi 0, %s132
      %s135 = sphi 0, %s134
      %s149 = sphi 0, %s135
      %s153 = sphi 0, %s153
      %s155 = sphi 0, %s153
      %s156 = sphi 0, %s155
      %s170 = sphi 0, %s156
      %s174 = sphi 0, %s174
      %s176 = sphi 0, %s174
      %s177 = sphi 0, %s176
      %s191 = sphi 0, %s177
      %s195 = sphi 0, %s195
      %s197 = sphi 0, %s195
      %s198 = sphi 0, %s197
      %s212 = sphi 0, %s198
      %s216 = sphi 0, %s216
      %s218 = sphi 0, %s216
      %s219 = sphi 0, %s218
      %s233 = sphi 0, %s219
      %s237 = sphi 0, %s237
      %s239 = sphi 0, %s237
      %s240 = sphi 0, %s239
      %s254 = sphi 0, %s240
      %s258 = sphi 0, %s258
      %s260 = sphi 0, %s258
      %s261 = sphi 0, %s260
      %s275 = sphi 0, %s261
      %s279 = sphi 0, %s279
      %s281 = sphi 0, %s279
      %s282 = sphi 0, %s281
      %s296 = sphi 0, %s282
      %s300 = sphi 0, %s300
      %s302 = sphi 0, %s300
      %s303 = sphi 0, %s302
      %s317 = sphi 0, %s303
      %s321 = sphi 0, %s321
      %s323 = sphi 0, %s321
      %s324 = sphi 0, %s323
      %s338 = sphi 0, %s324
      %s342 = sphi 0, %s342
      %s344 = sphi 0, %s342
      %s345 = sphi 0, %s344
      %s359 = sphi 0, %s345
      %s363 = sphi 0, %s363
      %s365 = sphi 0, %s363
      %s366 = sphi 0, %s365
      %s380 = sphi 0, %s366
      %s384 = sphi 0, %s384
      %s386 = sphi 0, %s384
      %s387 = sphi 0, %s386
      %s401 = sphi 0, %s387
      %s405 = sphi 0, %s405
      %s407 = sphi 0, %s405
      %s408 = sphi 0, %s407
      %s422 = sphi 0, %s408
      %s426 = sphi 0, %s426
      %s428 = sphi 0, %s426
      %s429 = sphi 0, %s428
      %s443 = sphi 0, %s429
      %s447 = sphi 0, %s447
      %s449 = sphi 0, %s447
      %s450 = sphi 0, %s449
      %s464 = sphi 0, %s450
      %s468 = sphi 0, %s468
      %s470 = sphi 0, %s468
      %s471 = sphi 0, %s470
      %s485 = sphi 0, %s471
      %s489 = sphi 0, %s489
      %s491 = sphi 0, %s489
      %s492 = sphi 0, %s491
      %s506 = sphi 0, %s492
      %s512 = sphi 0, %s514
      %s515 = sphi 0, %s512
      %s516 = sphi 0, %s515
      %s532 = sphi 0, %s516
    $region4: #{lenet5_forward.1} parent=1 // loop_header_branch
      %38 = sbr.rel (%p36) target = $region8
    $region5: #{lenet5_forward.1} parent=1 // loop_body
      %s40 = ssub.s32 %s35, 1
      %s41 = ssub.s32 %s35, 2
      %s42 = sadd.s32 %s35, 1
      %s43 = ssub.s32 %s35, %s42
      %p44 = scmp.eq.s32.totalorder %s43, 0
      %s46 = sadd.s32 %s45, 1
      %s47 = scalar_select %p44, %s45, %s46
      %p50 = pneg %p44
      %p51 = scmp.eq.s32.totalorder %s35, 1
      %p52 = por %p50, %p51
      %p53 = scmp.ne.s32.totalorder %s45, %s48
      %p54 = scmp.eq.s32.totalorder %s35, 0
      %p55 = por %p53, %p54
      %p56 = scmp.ne.s32.totalorder %s45, %s48
      %p57 = scmp.eq.s32.totalorder %s40, 1
      %p58 = por %p56, %p57
      %p59 = scmp.ne.s32.totalorder %s48, %s49
      %p60 = scmp.eq.s32.totalorder %s40, 0
      %p61 = por %p59, %p60
      %p62 = scmp.ne.s32.totalorder %s48, %s49
      %p63 = scmp.eq.s32.totalorder %s41, 1
      %p64 = por %p62, %p63
      %p66 = scmp.ne.s32.totalorder %s49, %s65
      %p67 = scmp.eq.s32.totalorder %s41, 0
      %p68 = por %p66, %p67
      %s70 = sadd.s32 %s69, 1
      %p73 = scmp.eq.s32.totalorder %s35, 1
      %p74 = scmp.ne.s32.totalorder %s69, %s71
      %p75 = scmp.eq.s32.totalorder %s35, 0
      %p76 = por %p74, %p75
      %p77 = scmp.ne.s32.totalorder %s69, %s71
      %p78 = scmp.eq.s32.totalorder %s40, 1
      %p79 = por %p77, %p78
      %p80 = scmp.ne.s32.totalorder %s71, %s72
      %p81 = scmp.eq.s32.totalorder %s40, 0
      %p82 = por %p80, %p81
      %p83 = scmp.ne.s32.totalorder %s71, %s72
      %p84 = scmp.eq.s32.totalorder %s41, 1
      %p85 = por %p83, %p84
      %p87 = scmp.ne.s32.totalorder %s72, %s86
      %p88 = scmp.eq.s32.totalorder %s41, 0
      %p89 = por %p87, %p88
      %s91 = sadd.s32 %s90, 1
      %p94 = scmp.eq.s32.totalorder %s35, 1
      %p95 = scmp.ne.s32.totalorder %s90, %s92
      %p96 = scmp.eq.s32.totalorder %s35, 0
      %p97 = por %p95, %p96
      %p98 = scmp.ne.s32.totalorder %s90, %s92
      %p99 = scmp.eq.s32.totalorder %s40, 1
      %p100 = por %p98, %p99
      %p101 = scmp.ne.s32.totalorder %s92, %s93
      %p102 = scmp.eq.s32.totalorder %s40, 0
      %p103 = por %p101, %p102
      %p104 = scmp.ne.s32.totalorder %s92, %s93
      %p105 = scmp.eq.s32.totalorder %s41, 1
      %p106 = por %p104, %p105
      %p108 = scmp.ne.s32.totalorder %s93, %s107
      %p109 = scmp.eq.s32.totalorder %s41, 0
      %p110 = por %p108, %p109
      %s112 = sadd.s32 %s111, 1
      %p115 = scmp.eq.s32.totalorder %s35, 1
      %p116 = scmp.ne.s32.totalorder %s111, %s113
      %p117 = scmp.eq.s32.totalorder %s35, 0
      %p118 = por %p116, %p117
      %p119 = scmp.ne.s32.totalorder %s111, %s113
      %p120 = scmp.eq.s32.totalorder %s40, 1
      %p121 = por %p119, %p120
      %p122 = scmp.ne.s32.totalorder %s113, %s114
      %p123 = scmp.eq.s32.totalorder %s40, 0
      %p124 = por %p122, %p123
      %p125 = scmp.ne.s32.totalorder %s113, %s114
      %p126 = scmp.eq.s32.totalorder %s41, 1
      %p127 = por %p125, %p126
      %p129 = scmp.ne.s32.totalorder %s114, %s128
      %p130 = scmp.eq.s32.totalorder %s41, 0
      %p131 = por %p129, %p130
      %s133 = sadd.s32 %s132, 1
      %p136 = scmp.eq.s32.totalorder %s35, 1
      %p137 = scmp.ne.s32.totalorder %s132, %s134
      %p138 = scmp.eq.s32.totalorder %s35, 0
      %p139 = por %p137, %p138
      %p140 = scmp.ne.s32.totalorder %s132, %s134
      %p141 = scmp.eq.s32.totalorder %s40, 1
      %p142 = por %p140, %p141
      %p143 = scmp.ne.s32.totalorder %s134, %s135
      %p144 = scmp.eq.s32.totalorder %s40, 0
      %p145 = por %p143, %p144
      %p146 = scmp.ne.s32.totalorder %s134, %s135
      %p147 = scmp.eq.s32.totalorder %s41, 1
      %p148 = por %p146, %p147
      %p150 = scmp.ne.s32.totalorder %s135, %s149
      %p151 = scmp.eq.s32.totalorder %s41, 0
      %p152 = por %p150, %p151
      %s154 = sadd.s32 %s153, 1
      %p157 = scmp.eq.s32.totalorder %s35, 1
      %p158 = scmp.ne.s32.totalorder %s153, %s155
      %p159 = scmp.eq.s32.totalorder %s35, 0
      %p160 = por %p158, %p159
      %p161 = scmp.ne.s32.totalorder %s153, %s155
      %p162 = scmp.eq.s32.totalorder %s40, 1
      %p163 = por %p161, %p162
      %p164 = scmp.ne.s32.totalorder %s155, %s156
      %p165 = scmp.eq.s32.totalorder %s40, 0
      %p166 = por %p164, %p165
      %p167 = scmp.ne.s32.totalorder %s155, %s156
      %p168 = scmp.eq.s32.totalorder %s41, 1
      %p169 = por %p167, %p168
      %p171 = scmp.ne.s32.totalorder %s156, %s170
      %p172 = scmp.eq.s32.totalorder %s41, 0
      %p173 = por %p171, %p172
      %s175 = sadd.s32 %s174, 1
      %p178 = scmp.eq.s32.totalorder %s35, 1
      %p179 = scmp.ne.s32.totalorder %s174, %s176
      %p180 = scmp.eq.s32.totalorder %s35, 0
      %p181 = por %p179, %p180
      %p182 = scmp.ne.s32.totalorder %s174, %s176
      %p183 = scmp.eq.s32.totalorder %s40, 1
      %p184 = por %p182, %p183
      %p185 = scmp.ne.s32.totalorder %s176, %s177
      %p186 = scmp.eq.s32.totalorder %s40, 0
      %p187 = por %p185, %p186
      %p188 = scmp.ne.s32.totalorder %s176, %s177
      %p189 = scmp.eq.s32.totalorder %s41, 1
      %p190 = por %p188, %p189
      %p192 = scmp.ne.s32.totalorder %s177, %s191
      %p193 = scmp.eq.s32.totalorder %s41, 0
      %p194 = por %p192, %p193
      %s196 = sadd.s32 %s195, 1
      %p199 = scmp.eq.s32.totalorder %s35, 1
      %p200 = scmp.ne.s32.totalorder %s195, %s197
      %p201 = scmp.eq.s32.totalorder %s35, 0
      %p202 = por %p200, %p201
      %p203 = scmp.ne.s32.totalorder %s195, %s197
      %p204 = scmp.eq.s32.totalorder %s40, 1
      %p205 = por %p203, %p204
      %p206 = scmp.ne.s32.totalorder %s197, %s198
      %p207 = scmp.eq.s32.totalorder %s40, 0
      %p208 = por %p206, %p207
      %p209 = scmp.ne.s32.totalorder %s197, %s198
      %p210 = scmp.eq.s32.totalorder %s41, 1
      %p211 = por %p209, %p210
      %p213 = scmp.ne.s32.totalorder %s198, %s212
      %p214 = scmp.eq.s32.totalorder %s41, 0
      %p215 = por %p213, %p214
      %s217 = sadd.s32 %s216, 1
      %p220 = scmp.eq.s32.totalorder %s35, 1
      %p221 = scmp.ne.s32.totalorder %s216, %s218
      %p222 = scmp.eq.s32.totalorder %s35, 0
      %p223 = por %p221, %p222
      %p224 = scmp.ne.s32.totalorder %s216, %s218
      %p225 = scmp.eq.s32.totalorder %s40, 1
      %p226 = por %p224, %p225
      %p227 = scmp.ne.s32.totalorder %s218, %s219
      %p228 = scmp.eq.s32.totalorder %s40, 0
      %p229 = por %p227, %p228
      %p230 = scmp.ne.s32.totalorder %s218, %s219
      %p231 = scmp.eq.s32.totalorder %s41, 1
      %p232 = por %p230, %p231
      %p234 = scmp.ne.s32.totalorder %s219, %s233
      %p235 = scmp.eq.s32.totalorder %s41, 0
      %p236 = por %p234, %p235
      %s238 = sadd.s32 %s237, 1
      %p241 = scmp.eq.s32.totalorder %s35, 1
      %p242 = scmp.ne.s32.totalorder %s237, %s239
      %p243 = scmp.eq.s32.totalorder %s35, 0
      %p244 = por %p242, %p243
      %p245 = scmp.ne.s32.totalorder %s237, %s239
      %p246 = scmp.eq.s32.totalorder %s40, 1
      %p247 = por %p245, %p246
      %p248 = scmp.ne.s32.totalorder %s239, %s240
      %p249 = scmp.eq.s32.totalorder %s40, 0
      %p250 = por %p248, %p249
      %p251 = scmp.ne.s32.totalorder %s239, %s240
      %p252 = scmp.eq.s32.totalorder %s41, 1
      %p253 = por %p251, %p252
      %p255 = scmp.ne.s32.totalorder %s240, %s254
      %p256 = scmp.eq.s32.totalorder %s41, 0
      %p257 = por %p255, %p256
      %s259 = sadd.s32 %s258, 1
      %p262 = scmp.eq.s32.totalorder %s35, 1
      %p263 = scmp.ne.s32.totalorder %s258, %s260
      %p264 = scmp.eq.s32.totalorder %s35, 0
      %p265 = por %p263, %p264
      %p266 = scmp.ne.s32.totalorder %s258, %s260
      %p267 = scmp.eq.s32.totalorder %s40, 1
      %p268 = por %p266, %p267
      %p269 = scmp.ne.s32.totalorder %s260, %s261
      %p270 = scmp.eq.s32.totalorder %s40, 0
      %p271 = por %p269, %p270
      %p272 = scmp.ne.s32.totalorder %s260, %s261
      %p273 = scmp.eq.s32.totalorder %s41, 1
      %p274 = por %p272, %p273
      %p276 = scmp.ne.s32.totalorder %s261, %s275
      %p277 = scmp.eq.s32.totalorder %s41, 0
      %p278 = por %p276, %p277
      %s280 = sadd.s32 %s279, 1
      %p283 = scmp.eq.s32.totalorder %s35, 1
      %p284 = scmp.ne.s32.totalorder %s279, %s281
      %p285 = scmp.eq.s32.totalorder %s35, 0
      %p286 = por %p284, %p285
      %p287 = scmp.ne.s32.totalorder %s279, %s281
      %p288 = scmp.eq.s32.totalorder %s40, 1
      %p289 = por %p287, %p288
      %p290 = scmp.ne.s32.totalorder %s281, %s282
      %p291 = scmp.eq.s32.totalorder %s40, 0
      %p292 = por %p290, %p291
      %p293 = scmp.ne.s32.totalorder %s281, %s282
      %p294 = scmp.eq.s32.totalorder %s41, 1
      %p295 = por %p293, %p294
      %p297 = scmp.ne.s32.totalorder %s282, %s296
      %p298 = scmp.eq.s32.totalorder %s41, 0
      %p299 = por %p297, %p298
      %s301 = sadd.s32 %s300, 1
      %p304 = scmp.eq.s32.totalorder %s35, 1
      %p305 = scmp.ne.s32.totalorder %s300, %s302
      %p306 = scmp.eq.s32.totalorder %s35, 0
      %p307 = por %p305, %p306
      %p308 = scmp.ne.s32.totalorder %s300, %s302
      %p309 = scmp.eq.s32.totalorder %s40, 1
      %p310 = por %p308, %p309
      %p311 = scmp.ne.s32.totalorder %s302, %s303
      %p312 = scmp.eq.s32.totalorder %s40, 0
      %p313 = por %p311, %p312
      %p314 = scmp.ne.s32.totalorder %s302, %s303
      %p315 = scmp.eq.s32.totalorder %s41, 1
      %p316 = por %p314, %p315
      %p318 = scmp.ne.s32.totalorder %s303, %s317
      %p319 = scmp.eq.s32.totalorder %s41, 0
      %p320 = por %p318, %p319
      %s322 = sadd.s32 %s321, 1
      %p325 = scmp.eq.s32.totalorder %s35, 1
      %p326 = scmp.ne.s32.totalorder %s321, %s323
      %p327 = scmp.eq.s32.totalorder %s35, 0
      %p328 = por %p326, %p327
      %p329 = scmp.ne.s32.totalorder %s321, %s323
      %p330 = scmp.eq.s32.totalorder %s40, 1
      %p331 = por %p329, %p330
      %p332 = scmp.ne.s32.totalorder %s323, %s324
      %p333 = scmp.eq.s32.totalorder %s40, 0
      %p334 = por %p332, %p333
      %p335 = scmp.ne.s32.totalorder %s323, %s324
      %p336 = scmp.eq.s32.totalorder %s41, 1
      %p337 = por %p335, %p336
      %p339 = scmp.ne.s32.totalorder %s324, %s338
      %p340 = scmp.eq.s32.totalorder %s41, 0
      %p341 = por %p339, %p340
      %s343 = sadd.s32 %s342, 1
      %p346 = scmp.eq.s32.totalorder %s35, 1
      %p347 = scmp.ne.s32.totalorder %s342, %s344
      %p348 = scmp.eq.s32.totalorder %s35, 0
      %p349 = por %p347, %p348
      %p350 = scmp.ne.s32.totalorder %s342, %s344
      %p351 = scmp.eq.s32.totalorder %s40, 1
      %p352 = por %p350, %p351
      %p353 = scmp.ne.s32.totalorder %s344, %s345
      %p354 = scmp.eq.s32.totalorder %s40, 0
      %p355 = por %p353, %p354
      %p356 = scmp.ne.s32.totalorder %s344, %s345
      %p357 = scmp.eq.s32.totalorder %s41, 1
      %p358 = por %p356, %p357
      %p360 = scmp.ne.s32.totalorder %s345, %s359
      %p361 = scmp.eq.s32.totalorder %s41, 0
      %p362 = por %p360, %p361
      %s364 = sadd.s32 %s363, 1
      %p367 = scmp.eq.s32.totalorder %s35, 1
      %p368 = scmp.ne.s32.totalorder %s363, %s365
      %p369 = scmp.eq.s32.totalorder %s35, 0
      %p370 = por %p368, %p369
      %p371 = scmp.ne.s32.totalorder %s363, %s365
      %p372 = scmp.eq.s32.totalorder %s40, 1
      %p373 = por %p371, %p372
      %p374 = scmp.ne.s32.totalorder %s365, %s366
      %p375 = scmp.eq.s32.totalorder %s40, 0
      %p376 = por %p374, %p375
      %p377 = scmp.ne.s32.totalorder %s365, %s366
      %p378 = scmp.eq.s32.totalorder %s41, 1
      %p379 = por %p377, %p378
      %p381 = scmp.ne.s32.totalorder %s366, %s380
      %p382 = scmp.eq.s32.totalorder %s41, 0
      %p383 = por %p381, %p382
      %s385 = sadd.s32 %s384, 1
      %p388 = scmp.eq.s32.totalorder %s35, 1
      %p389 = scmp.ne.s32.totalorder %s384, %s386
      %p390 = scmp.eq.s32.totalorder %s35, 0
      %p391 = por %p389, %p390
      %p392 = scmp.ne.s32.totalorder %s384, %s386
      %p393 = scmp.eq.s32.totalorder %s40, 1
      %p394 = por %p392, %p393
      %p395 = scmp.ne.s32.totalorder %s386, %s387
      %p396 = scmp.eq.s32.totalorder %s40, 0
      %p397 = por %p395, %p396
      %p398 = scmp.ne.s32.totalorder %s386, %s387
      %p399 = scmp.eq.s32.totalorder %s41, 1
      %p400 = por %p398, %p399
      %p402 = scmp.ne.s32.totalorder %s387, %s401
      %p403 = scmp.eq.s32.totalorder %s41, 0
      %p404 = por %p402, %p403
      %s406 = sadd.s32 %s405, 1
      %p409 = scmp.eq.s32.totalorder %s35, 1
      %p410 = scmp.ne.s32.totalorder %s405, %s407
      %p411 = scmp.eq.s32.totalorder %s35, 0
      %p412 = por %p410, %p411
      %p413 = scmp.ne.s32.totalorder %s405, %s407
      %p414 = scmp.eq.s32.totalorder %s40, 1
      %p415 = por %p413, %p414
      %p416 = scmp.ne.s32.totalorder %s407, %s408
      %p417 = scmp.eq.s32.totalorder %s40, 0
      %p418 = por %p416, %p417
      %p419 = scmp.ne.s32.totalorder %s407, %s408
      %p420 = scmp.eq.s32.totalorder %s41, 1
      %p421 = por %p419, %p420
      %p423 = scmp.ne.s32.totalorder %s408, %s422
      %p424 = scmp.eq.s32.totalorder %s41, 0
      %p425 = por %p423, %p424
      %s427 = sadd.s32 %s426, 1
      %p430 = scmp.eq.s32.totalorder %s35, 1
      %p431 = scmp.ne.s32.totalorder %s426, %s428
      %p432 = scmp.eq.s32.totalorder %s35, 0
      %p433 = por %p431, %p432
      %p434 = scmp.ne.s32.totalorder %s426, %s428
      %p435 = scmp.eq.s32.totalorder %s40, 1
      %p436 = por %p434, %p435
      %p437 = scmp.ne.s32.totalorder %s428, %s429
      %p438 = scmp.eq.s32.totalorder %s40, 0
      %p439 = por %p437, %p438
      %p440 = scmp.ne.s32.totalorder %s428, %s429
      %p441 = scmp.eq.s32.totalorder %s41, 1
      %p442 = por %p440, %p441
      %p444 = scmp.ne.s32.totalorder %s429, %s443
      %p445 = scmp.eq.s32.totalorder %s41, 0
      %p446 = por %p444, %p445
      %s448 = sadd.s32 %s447, 1
      %p451 = scmp.eq.s32.totalorder %s35, 1
      %p452 = scmp.ne.s32.totalorder %s447, %s449
      %p453 = scmp.eq.s32.totalorder %s35, 0
      %p454 = por %p452, %p453
      %p455 = scmp.ne.s32.totalorder %s447, %s449
      %p456 = scmp.eq.s32.totalorder %s40, 1
      %p457 = por %p455, %p456
      %p458 = scmp.ne.s32.totalorder %s449, %s450
      %p459 = scmp.eq.s32.totalorder %s40, 0
      %p460 = por %p458, %p459
      %p461 = scmp.ne.s32.totalorder %s449, %s450
      %p462 = scmp.eq.s32.totalorder %s41, 1
      %p463 = por %p461, %p462
      %p465 = scmp.ne.s32.totalorder %s450, %s464
      %p466 = scmp.eq.s32.totalorder %s41, 0
      %p467 = por %p465, %p466
      %s469 = sadd.s32 %s468, 1
      %p472 = scmp.eq.s32.totalorder %s35, 1
      %p473 = scmp.ne.s32.totalorder %s468, %s470
      %p474 = scmp.eq.s32.totalorder %s35, 0
      %p475 = por %p473, %p474
      %p476 = scmp.ne.s32.totalorder %s468, %s470
      %p477 = scmp.eq.s32.totalorder %s40, 1
      %p478 = por %p476, %p477
      %p479 = scmp.ne.s32.totalorder %s470, %s471
      %p480 = scmp.eq.s32.totalorder %s40, 0
      %p481 = por %p479, %p480
      %p482 = scmp.ne.s32.totalorder %s470, %s471
      %p483 = scmp.eq.s32.totalorder %s41, 1
      %p484 = por %p482, %p483
      %p486 = scmp.ne.s32.totalorder %s471, %s485
      %p487 = scmp.eq.s32.totalorder %s41, 0
      %p488 = por %p486, %p487
      %s490 = sadd.s32 %s489, 1
      %p493 = scmp.eq.s32.totalorder %s35, 1
      %p494 = scmp.ne.s32.totalorder %s489, %s491
      %p495 = scmp.eq.s32.totalorder %s35, 0
      %p496 = por %p494, %p495
      %p497 = scmp.ne.s32.totalorder %s489, %s491
      %p498 = scmp.eq.s32.totalorder %s40, 1
      %p499 = por %p497, %p498
      %p500 = scmp.ne.s32.totalorder %s491, %s492
      %p501 = scmp.eq.s32.totalorder %s40, 0
      %p502 = por %p500, %p501
      %p503 = scmp.ne.s32.totalorder %s491, %s492
      %p504 = scmp.eq.s32.totalorder %s41, 1
      %p505 = por %p503, %p504
      %p507 = scmp.ne.s32.totalorder %s492, %s506
      %p508 = scmp.eq.s32.totalorder %s41, 0
      %p509 = por %p507, %p508
      %s510 = ssub.s32 %s35, %s42
      %p511 = scmp.eq.s32.totalorder %s510, 0
      %s513 = sadd.s32 %s512, 1
      %s514 = scalar_select %p511, %s512, %s513
      %p517 = pneg %p511
      %p518 = scmp.eq.s32.totalorder %s35, 1
      %p519 = por %p517, %p518
      %p520 = scmp.ne.s32.totalorder %s512, %s515
      %p521 = scmp.eq.s32.totalorder %s35, 0
      %p522 = por %p520, %p521
      %p523 = scmp.ne.s32.totalorder %s512, %s515
      %p524 = scmp.eq.s32.totalorder %s40, 1
      %p525 = por %p523, %p524
      %p526 = scmp.ne.s32.totalorder %s515, %s516
      %p527 = scmp.eq.s32.totalorder %s40, 0
      %p528 = por %p526, %p527
      %p529 = scmp.ne.s32.totalorder %s515, %s516
      %p530 = scmp.eq.s32.totalorder %s41, 1
      %p531 = por %p529, %p530
      %p533 = scmp.ne.s32.totalorder %s516, %s532
      %p534 = scmp.eq.s32.totalorder %s41, 0
      %p535 = por %p533, %p534
      %p536 = scmp.le.s32.totalorder 1, %s35
      %p537 = scmp.lt.s32.totalorder %s35, 3
      %p538 = pnand %p536, %p537
      %p539 = pneg %p538
      // Predicated region
      $region9: #{lenet5_forward.1} parent=5 // pred_check
        _
      $region10: #{lenet5_forward.1} parent=5 // pred_check_branch
        %541 = sbr.rel (%p538) target = $region12
      $region11: #{lenet5_forward.1} parent=5 // pred_region
        %s542 = ssub.s32 %s35, 1
        // Predicated region
        $region13: #{lenet5_forward.1} parent=11 // pred_check
          %p543 = pneg %p82
        $region14: #{lenet5_forward.1} parent=11 // pred_check_branch
          %545 = sbr.rel (%p543) target = $region16
        $region15: #{lenet5_forward.1} parent=11 // pred_region
          _
        $region16: #{lenet5_forward.1} parent=11 // pred_fallthru
          _
        // Predicated region
        $region17: #{lenet5_forward.1} parent=11 // pred_check
          %p546 = pneg %p103
        $region18: #{lenet5_forward.1} parent=11 // pred_check_branch
          %548 = sbr.rel (%p546) target = $region20
        $region19: #{lenet5_forward.1} parent=11 // pred_region
          _
        $region20: #{lenet5_forward.1} parent=11 // pred_fallthru
          _
        // Predicated region
        $region21: #{lenet5_forward.1} parent=11 // pred_check
          %p549 = pneg %p124
        $region22: #{lenet5_forward.1} parent=11 // pred_check_branch
          %551 = sbr.rel (%p549) target = $region24
        $region23: #{lenet5_forward.1} parent=11 // pred_region
          _
        $region24: #{lenet5_forward.1} parent=11 // pred_fallthru
          _
        // Predicated region
        $region25: #{lenet5_forward.1} parent=11 // pred_check
          %p552 = pneg %p145
        $region26: #{lenet5_forward.1} parent=11 // pred_check_branch
          %554 = sbr.rel (%p552) target = $region28
        $region27: #{lenet5_forward.1} parent=11 // pred_region
          _
        $region28: #{lenet5_forward.1} parent=11 // pred_fallthru
          _
        // Predicated region
        $region29: #{lenet5_forward.1} parent=11 // pred_check
          %p555 = pneg %p166
        $region30: #{lenet5_forward.1} parent=11 // pred_check_branch
          %557 = sbr.rel (%p555) target = $region32
        $region31: #{lenet5_forward.1} parent=11 // pred_region
          %s559 = ssub.s32 2688, 2688
          %560 = vsyncadd [#allocation5], %s559
          %s561 = sshll.u32 [#allocation4], 4
          %s562 = int_to_ptr.vmem [resolvable:$true] %s561
          %567 = dma.hbm_to_vmem [thread:$0]  %s5, 2688, %s562, [#allocation5], 128, 128, 8
        $region32: #{lenet5_forward.1} parent=11 // pred_fallthru
          _
        // Predicated region
        $region33: #{lenet5_forward.1} parent=11 // pred_check
          %p568 = pneg %p187
        $region34: #{lenet5_forward.1} parent=11 // pred_check_branch
          %570 = sbr.rel (%p568) target = $region36
        $region35: #{lenet5_forward.1} parent=11 // pred_region
          %s572 = ssub.s32 2688, 2688
          %573 = vsyncadd [#allocation8], %s572
          %s574 = sshll.u32 [#allocation7], 4
          %s575 = int_to_ptr.vmem [resolvable:$true] %s574
          %580 = dma.hbm_to_vmem [thread:$0]  %s6, 2688, %s575, [#allocation8], 128, 128, 8
        $region36: #{lenet5_forward.1} parent=11 // pred_fallthru
          _
        // Predicated region
        $region37: #{lenet5_forward.1} parent=11 // pred_check
          %p581 = pneg %p208
        $region38: #{lenet5_forward.1} parent=11 // pred_check_branch
          %583 = sbr.rel (%p581) target = $region40
        $region39: #{lenet5_forward.1} parent=11 // pred_region
          _
        $region40: #{lenet5_forward.1} parent=11 // pred_fallthru
          _
        // Predicated region
        $region41: #{lenet5_forward.1} parent=11 // pred_check
          %p584 = pneg %p229
        $region42: #{lenet5_forward.1} parent=11 // pred_check_branch
          %586 = sbr.rel (%p584) target = $region44
        $region43: #{lenet5_forward.1} parent=11 // pred_region
          _
        $region44: #{lenet5_forward.1} parent=11 // pred_fallthru
          _
        // Predicated region
        $region45: #{lenet5_forward.1} parent=11 // pred_check
          %p587 = pneg %p250
        $region46: #{lenet5_forward.1} parent=11 // pred_check_branch
          %589 = sbr.rel (%p587) target = $region48
        $region47: #{lenet5_forward.1} parent=11 // pred_region
          _
        $region48: #{lenet5_forward.1} parent=11 // pred_fallthru
          _
        // Predicated region
        $region49: #{lenet5_forward.1} parent=11 // pred_check
          %p590 = pneg %p271
        $region50: #{lenet5_forward.1} parent=11 // pred_check_branch
          %592 = sbr.rel (%p590) target = $region52
        $region51: #{lenet5_forward.1} parent=11 // pred_region
          _
        $region52: #{lenet5_forward.1} parent=11 // pred_fallthru
          _
        // Predicated region
        $region53: #{lenet5_forward.1} parent=11 // pred_check
          %p593 = pneg %p292
        $region54: #{lenet5_forward.1} parent=11 // pred_check_branch
          %595 = sbr.rel (%p593) target = $region56
        $region55: #{lenet5_forward.1} parent=11 // pred_region
          %s597 = ssub.s32 640, 640
          %598 = vsyncadd [#allocation8], %s597
          %s599 = sshll.u32 [#allocation9], 4
          %s600 = int_to_ptr.vmem [resolvable:$true] %s599
          %605 = dma.hbm_to_vmem [thread:$0]  %s11, 640, %s600, [#allocation8], 128, 128, 8
        $region56: #{lenet5_forward.1} parent=11 // pred_fallthru
          _
        // Predicated region
        $region57: #{lenet5_forward.1} parent=11 // pred_check
          %p606 = pneg %p313
        $region58: #{lenet5_forward.1} parent=11 // pred_check_branch
          %608 = sbr.rel (%p606) target = $region60
        $region59: #{lenet5_forward.1} parent=11 // pred_region
          %s610 = ssub.s32 2560, 2560
          %611 = vsyncadd [#allocation11], %s610
          %s612 = sshll.u32 [#allocation10], 4
          %s613 = int_to_ptr.vmem [resolvable:$true] %s612
          %618 = dma.hbm_to_vmem [thread:$0]  %s12, 2560, %s613, [#allocation11], 128, 128, 8
        $region60: #{lenet5_forward.1} parent=11 // pred_fallthru
          _
        // Predicated region
        $region61: #{lenet5_forward.1} parent=11 // pred_check
          %p619 = pneg %p334
        $region62: #{lenet5_forward.1} parent=11 // pred_check_branch
          %621 = sbr.rel (%p619) target = $region64
        $region63: #{lenet5_forward.1} parent=11 // pred_region
          %s623 = ssub.s32 2560, 2560
          %624 = vsyncadd [#allocation11], %s623
          %s625 = sshll.u32 [#allocation12], 4
          %s626 = int_to_ptr.vmem [resolvable:$true] %s625
          %631 = dma.hbm_to_vmem [thread:$0]  %s13, 2560, %s626, [#allocation11], 128, 128, 8
        $region64: #{lenet5_forward.1} parent=11 // pred_fallthru
          _
        // Predicated region
        $region65: #{lenet5_forward.1} parent=11 // pred_check
          %p632 = pneg %p355
        $region66: #{lenet5_forward.1} parent=11 // pred_check_branch
          %634 = sbr.rel (%p632) target = $region68
        $region67: #{lenet5_forward.1} parent=11 // pred_region
          _
        $region68: #{lenet5_forward.1} parent=11 // pred_fallthru
          _
        // Predicated region
        $region69: #{lenet5_forward.1} parent=11 // pred_check
          %p635 = pneg %p376
        $region70: #{lenet5_forward.1} parent=11 // pred_check_branch
          %637 = sbr.rel (%p635) target = $region72
        $region71: #{lenet5_forward.1} parent=11 // pred_region
          %s639 = ssub.s32 640, 640
          %640 = vsyncadd [#allocation14], %s639
          %s641 = sshll.u32 [#allocation13], 4
          %s642 = int_to_ptr.vmem [resolvable:$true] %s641
          %647 = dma.hbm_to_vmem [thread:$0]  %s15, 640, %s642, [#allocation14], 128, 128, 8
        $region72: #{lenet5_forward.1} parent=11 // pred_fallthru
          _
        // Predicated region
        $region73: #{lenet5_forward.1} parent=11 // pred_check
          %p648 = pneg %p397
        $region74: #{lenet5_forward.1} parent=11 // pred_check_branch
          %650 = sbr.rel (%p648) target = $region76
        $region75: #{lenet5_forward.1} parent=11 // pred_region
          _
        $region76: #{lenet5_forward.1} parent=11 // pred_fallthru
          _
        // Predicated region
        $region77: #{lenet5_forward.1} parent=11 // pred_check
          %p651 = pneg %p418
        $region78: #{lenet5_forward.1} parent=11 // pred_check_branch
          %653 = sbr.rel (%p651) target = $region80
        $region79: #{lenet5_forward.1} parent=11 // pred_region
          _
        $region80: #{lenet5_forward.1} parent=11 // pred_fallthru
          _
        // Predicated region
        $region81: #{lenet5_forward.1} parent=11 // pred_check
          %p654 = pneg %p439
        $region82: #{lenet5_forward.1} parent=11 // pred_check_branch
          %656 = sbr.rel (%p654) target = $region84
        $region83: #{lenet5_forward.1} parent=11 // pred_region
          _
        $region84: #{lenet5_forward.1} parent=11 // pred_fallthru
          _
        // Predicated region
        $region85: #{lenet5_forward.1} parent=11 // pred_check
          %p657 = pneg %p460
        $region86: #{lenet5_forward.1} parent=11 // pred_check_branch
          %659 = sbr.rel (%p657) target = $region88
        $region87: #{lenet5_forward.1} parent=11 // pred_region
          _
        $region88: #{lenet5_forward.1} parent=11 // pred_fallthru
          _
        // Predicated region
        $region89: #{lenet5_forward.1} parent=11 // pred_check
          %p660 = pneg %p481
        $region90: #{lenet5_forward.1} parent=11 // pred_check_branch
          %662 = sbr.rel (%p660) target = $region92
        $region91: #{lenet5_forward.1} parent=11 // pred_region
          _
        $region92: #{lenet5_forward.1} parent=11 // pred_fallthru
          _
        // Predicated region
        $region93: #{lenet5_forward.1} parent=11 // pred_check
          %p663 = pneg %p502
        $region94: #{lenet5_forward.1} parent=11 // pred_check_branch
          %665 = sbr.rel (%p663) target = $region96
        $region95: #{lenet5_forward.1} parent=11 // pred_region
          _
        $region96: #{lenet5_forward.1} parent=11 // pred_fallthru
          _
      $region12: #{lenet5_forward.1} parent=5 // pred_fallthru
        _
      %p666 = scmp.lt.s32.totalorder %s35, 2
      // Predicated region
      $region97: #{lenet5_forward.1} parent=5 // pred_check
        %p667 = pneg %p666
      $region98: #{lenet5_forward.1} parent=5 // pred_check_branch
        %669 = sbr.rel (%p667) target = $region100
      $region99: #{lenet5_forward.1} parent=5 // pred_region
        // Predicated region
        $region101: #{lenet5_forward.1} parent=99 // pred_check
          %p670 = pneg %p55
        $region102: #{lenet5_forward.1} parent=99 // pred_check_branch
          %672 = sbr.rel (%p670) target = $region104
        $region103: #{lenet5_forward.1} parent=99 // pred_region
          %s673 = smul.u32 32, %s35
          %p674 = scmp.lt.s32.totalorder %s673, 63
          %s675 = scalar_select %p674, %s673, 63
          %s676 = smul.addr %s675, 8
          %s677 = scalar_lea.vmem %s0, %s676
          %s678 = smul.u32 32, %s35
        $region104: #{lenet5_forward.1} parent=99 // pred_fallthru
          _
      $region100: #{lenet5_forward.1} parent=5 // pred_fallthru
        _
      %p679 = scmp.le.s32.totalorder 1, %s35
      %p680 = scmp.lt.s32.totalorder %s35, 3
      %p681 = pnand %p679, %p680
      %p682 = pneg %p681
      // Predicated region
      $region105: #{lenet5_forward.1} parent=5 // pred_check
        _
      $region106: #{lenet5_forward.1} parent=5 // pred_check_branch
        %684 = sbr.rel (%p681) target = $region108
      $region107: #{lenet5_forward.1} parent=5 // pred_region
        %s685 = ssub.s32 %s35, 1
        // Predicated region
        $region109: #{lenet5_forward.1} parent=107 // pred_check
          %p686 = pneg %p166
        $region110: #{lenet5_forward.1} parent=107 // pred_check_branch
          %688 = sbr.rel (%p686) target = $region112
        $region111: #{lenet5_forward.1} parent=107 // pred_region
          %689 = dma.done [#allocation5], 2688
        $region112: #{lenet5_forward.1} parent=107 // pred_fallthru
          _
        // Predicated region
        $region113: #{lenet5_forward.1} parent=107 // pred_check
          %p690 = pneg %p187
        $region114: #{lenet5_forward.1} parent=107 // pred_check_branch
          %692 = sbr.rel (%p690) target = $region116
        $region115: #{lenet5_forward.1} parent=107 // pred_region
          %693 = dma.done [#allocation8], 2688
        $region116: #{lenet5_forward.1} parent=107 // pred_fallthru
          _
        // Predicated region
        $region117: #{lenet5_forward.1} parent=107 // pred_check
          %p694 = pneg %p292
        $region118: #{lenet5_forward.1} parent=107 // pred_check_branch
          %696 = sbr.rel (%p694) target = $region120
        $region119: #{lenet5_forward.1} parent=107 // pred_region
          %697 = dma.done [#allocation8], 640
        $region120: #{lenet5_forward.1} parent=107 // pred_fallthru
          _
        // Predicated region
        $region121: #{lenet5_forward.1} parent=107 // pred_check
          %p698 = pneg %p313
        $region122: #{lenet5_forward.1} parent=107 // pred_check_branch
          %700 = sbr.rel (%p698) target = $region124
        $region123: #{lenet5_forward.1} parent=107 // pred_region
          %701 = dma.done [#allocation11], 2560
        $region124: #{lenet5_forward.1} parent=107 // pred_fallthru
          _
        // Predicated region
        $region125: #{lenet5_forward.1} parent=107 // pred_check
          %p702 = pneg %p334
        $region126: #{lenet5_forward.1} parent=107 // pred_check_branch
          %704 = sbr.rel (%p702) target = $region128
        $region127: #{lenet5_forward.1} parent=107 // pred_region
          %705 = dma.done [#allocation11], 2560
        $region128: #{lenet5_forward.1} parent=107 // pred_fallthru
          _
        // Predicated region
        $region129: #{lenet5_forward.1} parent=107 // pred_check
          %p706 = pneg %p376
        $region130: #{lenet5_forward.1} parent=107 // pred_check_branch
          %708 = sbr.rel (%p706) target = $region132
        $region131: #{lenet5_forward.1} parent=107 // pred_region
          %709 = dma.done [#allocation14], 640
        $region132: #{lenet5_forward.1} parent=107 // pred_fallthru
          _
        %s710 = smul.u32 32, %s40
        %p711 = scmp.lt.s32.totalorder %s710, 63
        %s712 = scalar_select %p711, %s710, 63
        %s713 = smul.addr %s712, 8
        %s714 = scalar_lea.vmem %s0, %s713
        %p715 = pneg %p61
        %p716 = pneg %p58
        %p717 = pneg %p82
        %p718 = pneg %p79
        %p719 = pneg %p103
        %p720 = pneg %p100
        %p721 = pneg %p124
        %p722 = pneg %p121
        %p723 = pneg %p145
        %p724 = pneg %p142
        %p725 = pneg %p166
        %p726 = pneg %p163
        %p727 = pneg %p187
        %p728 = pneg %p184
        %p729 = pneg %p208
        %p730 = pneg %p205
        %p731 = pneg %p229
        %p732 = pneg %p226
        %p733 = pneg %p250
        %p734 = pneg %p247
        %p735 = pneg %p271
        %p736 = pneg %p268
        %p737 = pneg %p292
        %p738 = pneg %p289
        %p739 = pneg %p313
        %p740 = pneg %p310
        %p741 = pneg %p334
        %p742 = pneg %p331
        %p743 = pneg %p355
        %p744 = pneg %p352
        %p745 = pneg %p376
        %p746 = pneg %p373
        %p747 = pneg %p397
        %p748 = pneg %p394
        %p749 = pneg %p418
        %p750 = pneg %p415
        %p751 = pneg %p439
        %p752 = pneg %p436
        %p753 = pneg %p460
        %p754 = pneg %p457
        %p755 = pneg %p481
        %p756 = pneg %p478
        %p757 = pneg %p502
        %p758 = pneg %p499
        %p759 = pneg %p528
        %p760 = pneg %p525
        %s761 = sand.u32 %s515, 1
        %s762 = scalar_lea.sflag [#allocation6], %s761
        %s763 = sand.u32 %s515, 1
        %s764 = smul.addr %s763, 8
        %s765 = scalar_lea.vmem [#allocation15], %s764
        %s766 = smul.u32 32, %s40
        %p767 = scmp.lt.s32.totalorder %s766, 63
        %s768 = scalar_select %p767, %s766, 63
        %s769 = smul.addr %s768, 8
        %s770 = scalar_lea.vmem %s0, %s769
        %s771 = smul.u32 32, %s40
        %v772 = vld [vmem:[%s770] sm:$0xff]
        %v773 = vld [vmem:[%s770 + $0x8] sm:$0xff]
        %v774 = vld [vmem:[%s770 + $0x10] sm:$0xff]
        %v775 = vld [vmem:[%s770 + $0x18] sm:$0xff]
        %v776 = vld [vmem:[%s770 + $0x20] sm:$0xff]
        %v777 = vld [vmem:[%s770 + $0x28] sm:$0xff]
        %v778 = vld [vmem:[%s770 + $0x30] sm:$0xff]
        %v779 = vld [vmem:[%s770 + $0x38] sm:$0xff]
        %v780 = vld [vmem:[%s770 + $0x40] sm:$0xff]
        %v781 = vld [vmem:[%s770 + $0x48] sm:$0xff]
        %v782 = vld [vmem:[%s770 + $0x50] sm:$0xff]
        %v783 = vld [vmem:[%s770 + $0x58] sm:$0xff]
        %v784 = vld [vmem:[%s770 + $0x60] sm:$0xff]
        %v785 = vld [vmem:[%s770 + $0x68] sm:$0xff]
        %v786 = vld [vmem:[%s770 + $0x70] sm:$0xff]
        %v787 = vld [vmem:[%s770 + $0x78] sm:$0xff]
        %v788 = vld [vmem:[%s770 + $0x80] sm:$0xff]
        %v789 = vld [vmem:[%s770 + $0x88] sm:$0xff]
        %v790 = vld [vmem:[%s770 + $0x90] sm:$0xff]
        %v791 = vld [vmem:[%s770 + $0x98] sm:$0xff]
        %v792 = vld [vmem:[%s770 + $0xa0] sm:$0xff]
        %v793 = vld [vmem:[%s770 + $0xa8] sm:$0xff]
        %v794 = vld [vmem:[%s770 + $0xb0] sm:$0xff]
        %v795 = vld [vmem:[%s770 + $0xb8] sm:$0xff]
        %v796 = vld [vmem:[%s770 + $0xc0] sm:$0xff]
        %v797 = vld [vmem:[%s770 + $0xc8] sm:$0xff]
        %v798 = vld [vmem:[%s770 + $0xd0] sm:$0xff]
        %v799 = vld [vmem:[%s770 + $0xd8] sm:$0xff]
        %v800 = vld [vmem:[%s770 + $0xe0] sm:$0xff]
        %v801 = vld [vmem:[%s770 + $0xe8] sm:$0xff]
        %v802 = vld [vmem:[%s770 + $0xf0] sm:$0xff]
        %v803 = vld [vmem:[%s770 + $0xf8] sm:$0xff]
        %v804 = vld [vmem:[%s1] sm:$0xff]
        %v805 = vld [vmem:[%s1 + $0x8] sm:$0xff]
        %v806 = vld [vmem:[%s1 + $0x10] sm:$0xff]
        %v807 = vld [vmem:[%s1 + $0x18] sm:$0xff]
        %v808 = vld [vmem:[%s1 + $0x20] sm:$0xff]
        %v809 = vld [vmem:[%s1 + $0x28] sm:$0xff]
        %v810 = vld [vmem:[%s1 + $0x30] sm:$0xff]
        %v811 = vld [vmem:[%s1 + $0x38] sm:$0xff]
        %vm812 = vcmask 261120
        %v814 = vsel %vm812, %v772, 0
        %v817 = vsel %vm812, %v773, 0
        %v820 = vsel %vm812, %v774, 0
        %v823 = vsel %vm812, %v775, 0
        %v826 = vsel %vm812, %v776, 0
        %v829 = vsel %vm812, %v777, 0
        %v832 = vsel %vm812, %v778, 0
        %v835 = vsel %vm812, %v779, 0
        %v838 = vsel %vm812, %v780, 0
        %v841 = vsel %vm812, %v781, 0
        %v844 = vsel %vm812, %v782, 0
        %v847 = vsel %vm812, %v783, 0
        %v850 = vsel %vm812, %v784, 0
        %v853 = vsel %vm812, %v785, 0
        %v856 = vsel %vm812, %v786, 0
        %v859 = vsel %vm812, %v787, 0
        %v862 = vsel %vm812, %v788, 0
        %v865 = vsel %vm812, %v789, 0
        %v868 = vsel %vm812, %v790, 0
        %v871 = vsel %vm812, %v791, 0
        %v874 = vsel %vm812, %v792, 0
        %v877 = vsel %vm812, %v793, 0
        %v880 = vsel %vm812, %v794, 0
        %v883 = vsel %vm812, %v795, 0
        %v886 = vsel %vm812, %v796, 0
        %v889 = vsel %vm812, %v797, 0
        %v892 = vsel %vm812, %v798, 0
        %v895 = vsel %vm812, %v799, 0
        %v898 = vsel %vm812, %v800, 0
        %v901 = vsel %vm812, %v801, 0
        %v904 = vsel %vm812, %v802, 0
        %v907 = vsel %vm812, %v803, 0
        %909 = vmatprep.subr.mxu0 0.0
        %910 = vmatpush1.msra.mxu0 0.0
        %911 = vmatprep.subr.mxu0 0.0
        %912 = vmatpush1.msra.mxu0 0.0
        %913 = vmatprep.subr.mxu0 0.0
        %914 = vmatpush1.msra.mxu0 0.0
        %915 = vmatprep.subr.mxu0 0.0
        %916 = vmatpush1.msra.mxu0 0.0
        %917 = vmatprep.subr.mxu0 0.0
        %918 = vmatpush1.msra.mxu0 0.0
        %919 = vmatprep.subr.mxu0 0.0
        %920 = vmatpush1.msra.mxu0 0.0
        %921 = vmatprep.subr.mxu0 0.0
        %922 = vmatpush1.msra.mxu0 0.0
        %923 = vmatprep.subr.mxu0 0.0
        %924 = vmatpush1.msra.mxu0 0.0
        %925 = vmatprep.subr.mxu0 0.0
        %926 = vmatpush1.msra.mxu0 0.0
        %927 = vmatprep.subr.mxu0 0.0
        %928 = vmatpush1.msra.mxu0 0.0
        %929 = vmatprep.subr.mxu0 0.0
        %930 = vmatpush1.msra.mxu0 0.0
        %931 = vmatprep.subr.mxu0 0.0
        %932 = vmatpush1.msra.mxu0 0.0
        %933 = vmatprep.subr.mxu0 %v811
        %934 = vmatpush1.msra.mxu0 %v810
        %935 = vmatprep.subr.mxu0 %v809
        %936 = vmatpush1.msra.mxu0 %v808
        %937 = vmatprep.subr.mxu0 %v807
        %938 = vmatpush1.msra.mxu0 %v806
        %939 = vmatprep.subr.mxu0 %v805
        %940 = vmatpush1.msra.mxu0 %v804
        %941 = vmatprep.subr.mxu0 0.0
        %942 = vmatpush2.msra.mxu0 0.0
        %943 = vmatprep.subr.mxu0 0.0
        %944 = vmatpush2.msra.mxu0 0.0
        %945 = vmatprep.subr.mxu0 0.0
        %946 = vmatpush2.msra.mxu0 0.0
        %947 = vmatprep.subr.mxu0 0.0
        %948 = vmatpush2.msra.mxu0 0.0
        %949 = vmatprep.subr.mxu0 0.0
        %950 = vmatpush2.msra.mxu0 0.0
        %951 = vmatprep.subr.mxu0 0.0
        %952 = vmatpush2.msra.mxu0 0.0
        %953 = vmatprep.subr.mxu0 0.0
        %954 = vmatpush2.msra.mxu0 0.0
        %955 = vmatprep.subr.mxu0 0.0
        %956 = vmatpush2.msra.mxu0 0.0
        %957 = vmatprep.subr.mxu0 0.0
        %958 = vmatpush2.msra.mxu0 0.0
        %959 = vmatprep.subr.mxu0 0.0
        %960 = vmatpush2.msra.mxu0 0.0
        %961 = vmatprep.subr.mxu0 0.0
        %962 = vmatpush2.msra.mxu0 0.0
        %963 = vmatprep.subr.mxu0 0.0
        %964 = vmatpush2.msra.mxu0 0.0
        %965 = vmatprep.subr.mxu0 0.0
        %966 = vmatpush2.msra.mxu0 0.0
        %967 = vmatprep.subr.mxu0 0.0
        %968 = vmatpush2.msra.mxu0 0.0
        %969 = vmatprep.subr.mxu0 0.0
        %970 = vmatpush2.msra.mxu0 0.0
        %971 = vmatprep.subr.mxu0 0.0
        %972 = vmatpush2.msra.mxu0 0.0
        %973 = vmatprep.mubr.f32.mxu0 0.0
        %974 = vmatmul.mubr.f32.gmra.mxu0 %v814
        %v975 = vpop.f32.mrf.mxu0
        %v976 = vadd.f32 0.0, %v975
        %v977 = vpop.f32.mrf.mxu0
        %v978 = vadd.f32 0.0, %v977
        %979 = vmatprep.mubr.f32.mxu0 0.0
        %980 = vmatmul.mubr.f32.gmra.mxu0 %v817
        %v981 = vpop.f32.mrf.mxu0
        %v982 = vadd.f32 0.0, %v981
        %v983 = vpop.f32.mrf.mxu0
        %v984 = vadd.f32 0.0, %v983
        %985 = vmatprep.mubr.f32.mxu0 0.0
        %986 = vmatmul.mubr.f32.gmra.mxu0 %v820
        %v987 = vpop.f32.mrf.mxu0
        %v988 = vadd.f32 0.0, %v987
        %v989 = vpop.f32.mrf.mxu0
        %v990 = vadd.f32 0.0, %v989
        %991 = vmatprep.mubr.f32.mxu0 0.0
        %992 = vmatmul.mubr.f32.gmra.mxu0 %v823
        %v993 = vpop.f32.mrf.mxu0
        %v994 = vadd.f32 0.0, %v993
        %v995 = vpop.f32.mrf.mxu0
        %v996 = vadd.f32 0.0, %v995
        %997 = vmatprep.mubr.f32.mxu0 0.0
        %998 = vmatmul.mubr.f32.gmra.mxu0 %v826
        %v999 = vpop.f32.mrf.mxu0
        %v1000 = vadd.f32 0.0, %v999
        %v1001 = vpop.f32.mrf.mxu0
        %v1002 = vadd.f32 0.0, %v1001
        %1003 = vmatprep.mubr.f32.mxu0 0.0
        %1004 = vmatmul.mubr.f32.gmra.mxu0 %v829
        %v1005 = vpop.f32.mrf.mxu0
        %v1006 = vadd.f32 0.0, %v1005
        %v1007 = vpop.f32.mrf.mxu0
        %v1008 = vadd.f32 0.0, %v1007
        %1009 = vmatprep.mubr.f32.mxu0 0.0
        %1010 = vmatmul.mubr.f32.gmra.mxu0 %v832
        %v1011 = vpop.f32.mrf.mxu0
        %v1012 = vadd.f32 0.0, %v1011
        %v1013 = vpop.f32.mrf.mxu0
        %v1014 = vadd.f32 0.0, %v1013
        %1015 = vmatprep.mubr.f32.mxu0 0.0
        %1016 = vmatmul.mubr.f32.gmra.mxu0 %v835
        %v1017 = vpop.f32.mrf.mxu0
        %v1018 = vadd.f32 0.0, %v1017
        %v1019 = vpop.f32.mrf.mxu0
        %v1020 = vadd.f32 0.0, %v1019
        %1021 = vmatprep.mubr.f32.mxu0 0.0
        %1022 = vmatmul.mubr.f32.gmra.mxu0 %v838
        %v1023 = vpop.f32.mrf.mxu0
        %v1024 = vadd.f32 0.0, %v1023
        %v1025 = vpop.f32.mrf.mxu0
        %v1026 = vadd.f32 0.0, %v1025
        %1027 = vmatprep.mubr.f32.mxu0 0.0
        %1028 = vmatmul.mubr.f32.gmra.mxu0 %v841
        %v1029 = vpop.f32.mrf.mxu0
        %v1030 = vadd.f32 0.0, %v1029
        %v1031 = vpop.f32.mrf.mxu0
        %v1032 = vadd.f32 0.0, %v1031
        %1033 = vmatprep.mubr.f32.mxu0 0.0
        %1034 = vmatmul.mubr.f32.gmra.mxu0 %v844
        %v1035 = vpop.f32.mrf.mxu0
        %v1036 = vadd.f32 0.0, %v1035
        %v1037 = vpop.f32.mrf.mxu0
        %v1038 = vadd.f32 0.0, %v1037
        %1039 = vmatprep.mubr.f32.mxu0 0.0
        %1040 = vmatmul.mubr.f32.gmra.mxu0 %v847
        %v1041 = vpop.f32.mrf.mxu0
        %v1042 = vadd.f32 0.0, %v1041
        %v1043 = vpop.f32.mrf.mxu0
        %v1044 = vadd.f32 0.0, %v1043
        %1045 = vmatprep.mubr.f32.mxu0 0.0
        %1046 = vmatmul.mubr.f32.gmra.mxu0 %v850
        %v1047 = vpop.f32.mrf.mxu0
        %v1048 = vadd.f32 0.0, %v1047
        %v1049 = vpop.f32.mrf.mxu0
        %v1050 = vadd.f32 0.0, %v1049
        %1051 = vmatprep.mubr.f32.mxu0 0.0
        %1052 = vmatmul.mubr.f32.gmra.mxu0 %v853
        %v1053 = vpop.f32.mrf.mxu0
        %v1054 = vadd.f32 0.0, %v1053
        %v1055 = vpop.f32.mrf.mxu0
        %v1056 = vadd.f32 0.0, %v1055
        %1057 = vmatprep.mubr.f32.mxu0 0.0
        %1058 = vmatmul.mubr.f32.gmra.mxu0 %v856
        %v1059 = vpop.f32.mrf.mxu0
        %v1060 = vadd.f32 0.0, %v1059
        %v1061 = vpop.f32.mrf.mxu0
        %v1062 = vadd.f32 0.0, %v1061
        %1063 = vmatprep.mubr.f32.mxu0 0.0
        %1064 = vmatmul.mubr.f32.gmra.mxu0 %v859
        %v1065 = vpop.f32.mrf.mxu0
        %v1066 = vadd.f32 0.0, %v1065
        %v1067 = vpop.f32.mrf.mxu0
        %v1068 = vadd.f32 0.0, %v1067
        %1069 = vmatprep.mubr.f32.mxu0 0.0
        %1070 = vmatmul.mubr.f32.gmra.mxu0 %v862
        %v1071 = vpop.f32.mrf.mxu0
        %v1072 = vadd.f32 0.0, %v1071
        %v1073 = vpop.f32.mrf.mxu0
        %v1074 = vadd.f32 0.0, %v1073
        %1075 = vmatprep.mubr.f32.mxu0 0.0
        %1076 = vmatmul.mubr.f32.gmra.mxu0 %v865
        %v1077 = vpop.f32.mrf.mxu0
        %v1078 = vadd.f32 0.0, %v1077
        %v1079 = vpop.f32.mrf.mxu0
        %v1080 = vadd.f32 0.0, %v1079
        %1081 = vmatprep.mubr.f32.mxu0 0.0
        %1082 = vmatmul.mubr.f32.gmra.mxu0 %v868
        %v1083 = vpop.f32.mrf.mxu0
        %v1084 = vadd.f32 0.0, %v1083
        %v1085 = vpop.f32.mrf.mxu0
        %v1086 = vadd.f32 0.0, %v1085
        %1087 = vmatprep.mubr.f32.mxu0 0.0
        %1088 = vmatmul.mubr.f32.gmra.mxu0 %v871
        %v1089 = vpop.f32.mrf.mxu0
        %v1090 = vadd.f32 0.0, %v1089
        %v1091 = vpop.f32.mrf.mxu0
        %v1092 = vadd.f32 0.0, %v1091
        %1093 = vmatprep.mubr.f32.mxu0 0.0
        %1094 = vmatmul.mubr.f32.gmra.mxu0 %v874
        %v1095 = vpop.f32.mrf.mxu0
        %v1096 = vadd.f32 0.0, %v1095
        %v1097 = vpop.f32.mrf.mxu0
        %v1098 = vadd.f32 0.0, %v1097
        %1099 = vmatprep.mubr.f32.mxu0 0.0
        %1100 = vmatmul.mubr.f32.gmra.mxu0 %v877
        %v1101 = vpop.f32.mrf.mxu0
        %v1102 = vadd.f32 0.0, %v1101
        %v1103 = vpop.f32.mrf.mxu0
        %v1104 = vadd.f32 0.0, %v1103
        %1105 = vmatprep.mubr.f32.mxu0 0.0
        %1106 = vmatmul.mubr.f32.gmra.mxu0 %v880
        %v1107 = vpop.f32.mrf.mxu0
        %v1108 = vadd.f32 0.0, %v1107
        %v1109 = vpop.f32.mrf.mxu0
        %v1110 = vadd.f32 0.0, %v1109
        %1111 = vmatprep.mubr.f32.mxu0 0.0
        %1112 = vmatmul.mubr.f32.gmra.mxu0 %v883
        %v1113 = vpop.f32.mrf.mxu0
        %v1114 = vadd.f32 0.0, %v1113
        %v1115 = vpop.f32.mrf.mxu0
        %v1116 = vadd.f32 0.0, %v1115
        %1117 = vmatprep.mubr.f32.mxu0 0.0
        %1118 = vmatmul.mubr.f32.gmra.mxu0 %v886
        %v1119 = vpop.f32.mrf.mxu0
        %v1120 = vadd.f32 0.0, %v1119
        %v1121 = vpop.f32.mrf.mxu0
        %v1122 = vadd.f32 0.0, %v1121
        %1123 = vmatprep.mubr.f32.mxu0 0.0
        %1124 = vmatmul.mubr.f32.gmra.mxu0 %v889
        %v1125 = vpop.f32.mrf.mxu0
        %v1126 = vadd.f32 0.0, %v1125
        %v1127 = vpop.f32.mrf.mxu0
        %v1128 = vadd.f32 0.0, %v1127
        %1129 = vmatprep.mubr.f32.mxu0 0.0
        %1130 = vmatmul.mubr.f32.gmra.mxu0 %v892
        %v1131 = vpop.f32.mrf.mxu0
        %v1132 = vadd.f32 0.0, %v1131
        %v1133 = vpop.f32.mrf.mxu0
        %v1134 = vadd.f32 0.0, %v1133
        %1135 = vmatprep.mubr.f32.mxu0 0.0
        %1136 = vmatmul.mubr.f32.gmra.mxu0 %v895
        %v1137 = vpop.f32.mrf.mxu0
        %v1138 = vadd.f32 0.0, %v1137
        %v1139 = vpop.f32.mrf.mxu0
        %v1140 = vadd.f32 0.0, %v1139
        %1141 = vmatprep.mubr.f32.mxu0 0.0
        %1142 = vmatmul.mubr.f32.gmra.mxu0 %v898
        %v1143 = vpop.f32.mrf.mxu0
        %v1144 = vadd.f32 0.0, %v1143
        %v1145 = vpop.f32.mrf.mxu0
        %v1146 = vadd.f32 0.0, %v1145
        %1147 = vmatprep.mubr.f32.mxu0 0.0
        %1148 = vmatmul.mubr.f32.gmra.mxu0 %v901
        %v1149 = vpop.f32.mrf.mxu0
        %v1150 = vadd.f32 0.0, %v1149
        %v1151 = vpop.f32.mrf.mxu0
        %v1152 = vadd.f32 0.0, %v1151
        %1153 = vmatprep.mubr.f32.mxu0 0.0
        %1154 = vmatmul.mubr.f32.gmra.mxu0 %v904
        %v1155 = vpop.f32.mrf.mxu0
        %v1156 = vadd.f32 0.0, %v1155
        %v1157 = vpop.f32.mrf.mxu0
        %v1158 = vadd.f32 0.0, %v1157
        %1159 = vmatprep.mubr.f32.mxu0 0.0
        %1160 = vmatmul.mubr.f32.gmra.mxu0 %v907
        %v1161 = vpop.f32.mrf.mxu0
        %v1162 = vadd.f32 0.0, %v1161
        %v1163 = vpop.f32.mrf.mxu0
        %v1164 = vadd.f32 0.0, %v1163
        %1165 = vdwg.mxu0
        %1166 = vst [vmem:[#allocation2] sm:$0xff] %v976
        %vm1167 = vcmask 326656
        %1168 = vst.msk [vmem:[#allocation2 + $0x8] sm:$0xff] %vm1167, %v978
        %1169 = vst [vmem:[#allocation2 + $0x10] sm:$0xff] %v982
        %1170 = vst.msk [vmem:[#allocation2 + $0x18] sm:$0xff] %vm1167, %v984
        %1171 = vst [vmem:[#allocation2 + $0x20] sm:$0xff] %v988
        %1172 = vst.msk [vmem:[#allocation2 + $0x28] sm:$0xff] %vm1167, %v990
        %1173 = vst [vmem:[#allocation2 + $0x30] sm:$0xff] %v994
        %1174 = vst.msk [vmem:[#allocation2 + $0x38] sm:$0xff] %vm1167, %v996
        %1175 = vst [vmem:[#allocation2 + $0x40] sm:$0xff] %v1000
        %1176 = vst.msk [vmem:[#allocation2 + $0x48] sm:$0xff] %vm1167, %v1002
        %1177 = vst [vmem:[#allocation2 + $0x50] sm:$0xff] %v1006
        %1178 = vst.msk [vmem:[#allocation2 + $0x58] sm:$0xff] %vm1167, %v1008
        %1179 = vst [vmem:[#allocation2 + $0x60] sm:$0xff] %v1012
        %1180 = vst.msk [vmem:[#allocation2 + $0x68] sm:$0xff] %vm1167, %v1014
        %1181 = vst [vmem:[#allocation2 + $0x70] sm:$0xff] %v1018
        %1182 = vst.msk [vmem:[#allocation2 + $0x78] sm:$0xff] %vm1167, %v1020
        %1183 = vst [vmem:[#allocation2 + $0x80] sm:$0xff] %v1024
        %1184 = vst.msk [vmem:[#allocation2 + $0x88] sm:$0xff] %vm1167, %v1026
        %1185 = vst [vmem:[#allocation2 + $0x90] sm:$0xff] %v1030
        %1186 = vst.msk [vmem:[#allocation2 + $0x98] sm:$0xff] %vm1167, %v1032
        %1187 = vst [vmem:[#allocation2 + $0xa0] sm:$0xff] %v1036
        %1188 = vst.msk [vmem:[#allocation2 + $0xa8] sm:$0xff] %vm1167, %v1038
        %1189 = vst [vmem:[#allocation2 + $0xb0] sm:$0xff] %v1042
        %1190 = vst.msk [vmem:[#allocation2 + $0xb8] sm:$0xff] %vm1167, %v1044
        %1191 = vst [vmem:[#allocation2 + $0xc0] sm:$0xff] %v1048
        %1192 = vst.msk [vmem:[#allocation2 + $0xc8] sm:$0xff] %vm1167, %v1050
        %1193 = vst [vmem:[#allocation2 + $0xd0] sm:$0xff] %v1054
        %1194 = vst.msk [vmem:[#allocation2 + $0xd8] sm:$0xff] %vm1167, %v1056
        %1195 = vst [vmem:[#allocation2 + $0xe0] sm:$0xff] %v1060
        %1196 = vst.msk [vmem:[#allocation2 + $0xe8] sm:$0xff] %vm1167, %v1062
        %1197 = vst [vmem:[#allocation2 + $0xf0] sm:$0xff] %v1066
        %1198 = vst.msk [vmem:[#allocation2 + $0xf8] sm:$0xff] %vm1167, %v1068
        %1199 = vst [vmem:[#allocation2 + $0x100] sm:$0xff] %v1072
        %1200 = vst.msk [vmem:[#allocation2 + $0x108] sm:$0xff] %vm1167, %v1074
        %1201 = vst [vmem:[#allocation2 + $0x110] sm:$0xff] %v1078
        %1202 = vst.msk [vmem:[#allocation2 + $0x118] sm:$0xff] %vm1167, %v1080
        %1203 = vst [vmem:[#allocation2 + $0x120] sm:$0xff] %v1084
        %1204 = vst.msk [vmem:[#allocation2 + $0x128] sm:$0xff] %vm1167, %v1086
        %1205 = vst [vmem:[#allocation2 + $0x130] sm:$0xff] %v1090
        %1206 = vst.msk [vmem:[#allocation2 + $0x138] sm:$0xff] %vm1167, %v1092
        %1207 = vst [vmem:[#allocation2 + $0x140] sm:$0xff] %v1096
        %1208 = vst.msk [vmem:[#allocation2 + $0x148] sm:$0xff] %vm1167, %v1098
        %1209 = vst [vmem:[#allocation2 + $0x150] sm:$0xff] %v1102
        %1210 = vst.msk [vmem:[#allocation2 + $0x158] sm:$0xff] %vm1167, %v1104
        %1211 = vst [vmem:[#allocation2 + $0x160] sm:$0xff] %v1108
        %1212 = vst.msk [vmem:[#allocation2 + $0x168] sm:$0xff] %vm1167, %v1110
        %1213 = vst [vmem:[#allocation2 + $0x170] sm:$0xff] %v1114
        %1214 = vst.msk [vmem:[#allocation2 + $0x178] sm:$0xff] %vm1167, %v1116
        %1215 = vst [vmem:[#allocation2 + $0x180] sm:$0xff] %v1120
        %1216 = vst.msk [vmem:[#allocation2 + $0x188] sm:$0xff] %vm1167, %v1122
        %1217 = vst [vmem:[#allocation2 + $0x190] sm:$0xff] %v1126
        %1218 = vst.msk [vmem:[#allocation2 + $0x198] sm:$0xff] %vm1167, %v1128
        %1219 = vst [vmem:[#allocation2 + $0x1a0] sm:$0xff] %v1132
        %1220 = vst.msk [vmem:[#allocation2 + $0x1a8] sm:$0xff] %vm1167, %v1134
        %1221 = vst [vmem:[#allocation2 + $0x1b0] sm:$0xff] %v1138
        %1222 = vst.msk [vmem:[#allocation2 + $0x1b8] sm:$0xff] %vm1167, %v1140
        %1223 = vst [vmem:[#allocation2 + $0x1c0] sm:$0xff] %v1144
        %1224 = vst.msk [vmem:[#allocation2 + $0x1c8] sm:$0xff] %vm1167, %v1146
        %1225 = vst [vmem:[#allocation2 + $0x1d0] sm:$0xff] %v1150
        %1226 = vst.msk [vmem:[#allocation2 + $0x1d8] sm:$0xff] %vm1167, %v1152
        %1227 = vst [vmem:[#allocation2 + $0x1e0] sm:$0xff] %v1156
        %1228 = vst.msk [vmem:[#allocation2 + $0x1e8] sm:$0xff] %vm1167, %v1158
        %1229 = vst [vmem:[#allocation2 + $0x1f0] sm:$0xff] %v1162
        %1230 = vst.msk [vmem:[#allocation2 + $0x1f8] sm:$0xff] %vm1167, %v1164
        %v1231 = vld [vmem:[%s1 + $0x40] sm:$0xff]
        %v1232 = vld [vmem:[%s1 + $0x48] sm:$0xff]
        %v1233 = vld [vmem:[%s1 + $0x50] sm:$0xff]
        %v1234 = vld [vmem:[%s1 + $0x58] sm:$0xff]
        %v1235 = vld [vmem:[%s1 + $0x60] sm:$0xff]
        %v1236 = vld [vmem:[%s1 + $0x68] sm:$0xff]
        %v1237 = vld [vmem:[%s1 + $0x70] sm:$0xff]
        %v1238 = vld [vmem:[%s1 + $0x78] sm:$0xff]
        %1239 = vmatprep.subr.mxu0 0.0
        %1240 = vmatpush1.msra.mxu0 0.0
        %1241 = vmatprep.subr.mxu0 0.0
        %1242 = vmatpush1.msra.mxu0 0.0
        %1243 = vmatprep.subr.mxu0 0.0
        %1244 = vmatpush1.msra.mxu0 0.0
        %1245 = vmatprep.subr.mxu0 0.0
        %1246 = vmatpush1.msra.mxu0 0.0
        %1247 = vmatprep.subr.mxu0 0.0
        %1248 = vmatpush1.msra.mxu0 0.0
        %1249 = vmatprep.subr.mxu0 0.0
        %1250 = vmatpush1.msra.mxu0 0.0
        %1251 = vmatprep.subr.mxu0 0.0
        %1252 = vmatpush1.msra.mxu0 0.0
        %1253 = vmatprep.subr.mxu0 0.0
        %1254 = vmatpush1.msra.mxu0 0.0
        %1255 = vmatprep.subr.mxu0 0.0
        %1256 = vmatpush1.msra.mxu0 0.0
        %1257 = vmatprep.subr.mxu0 0.0
        %1258 = vmatpush1.msra.mxu0 0.0
        %1259 = vmatprep.subr.mxu0 0.0
        %1260 = vmatpush1.msra.mxu0 0.0
        %1261 = vmatprep.subr.mxu0 0.0
        %1262 = vmatpush1.msra.mxu0 0.0
        %1263 = vmatprep.subr.mxu0 %v1238
        %1264 = vmatpush1.msra.mxu0 %v1237
        %1265 = vmatprep.subr.mxu0 %v1236
        %1266 = vmatpush1.msra.mxu0 %v1235
        %1267 = vmatprep.subr.mxu0 %v1234
        %1268 = vmatpush1.msra.mxu0 %v1233
        %1269 = vmatprep.subr.mxu0 %v1232
        %1270 = vmatpush1.msra.mxu0 %v1231
        %1271 = vmatprep.subr.mxu0 0.0
        %1272 = vmatpush2.msra.mxu0 0.0
        %1273 = vmatprep.subr.mxu0 0.0
        %1274 = vmatpush2.msra.mxu0 0.0
        %1275 = vmatprep.subr.mxu0 0.0
        %1276 = vmatpush2.msra.mxu0 0.0
        %1277 = vmatprep.subr.mxu0 0.0
        %1278 = vmatpush2.msra.mxu0 0.0
        %1279 = vmatprep.subr.mxu0 0.0
        %1280 = vmatpush2.msra.mxu0 0.0
        %1281 = vmatprep.subr.mxu0 0.0
        %1282 = vmatpush2.msra.mxu0 0.0
        %1283 = vmatprep.subr.mxu0 0.0
        %1284 = vmatpush2.msra.mxu0 0.0
        %1285 = vmatprep.subr.mxu0 0.0
        %1286 = vmatpush2.msra.mxu0 0.0
        %1287 = vmatprep.subr.mxu0 0.0
        %1288 = vmatpush2.msra.mxu0 0.0
        %1289 = vmatprep.subr.mxu0 0.0
        %1290 = vmatpush2.msra.mxu0 0.0
        %1291 = vmatprep.subr.mxu0 0.0
        %1292 = vmatpush2.msra.mxu0 0.0
        %1293 = vmatprep.subr.mxu0 0.0
        %1294 = vmatpush2.msra.mxu0 0.0
        %1295 = vmatprep.subr.mxu0 0.0
        %1296 = vmatpush2.msra.mxu0 0.0
        %1297 = vmatprep.subr.mxu0 0.0
        %1298 = vmatpush2.msra.mxu0 0.0
        %1299 = vmatprep.subr.mxu0 0.0
        %1300 = vmatpush2.msra.mxu0 0.0
        %1301 = vmatprep.subr.mxu0 0.0
        %1302 = vmatpush2.msra.mxu0 0.0
        %1303 = vmatprep.mubr.f32.mxu0 0.0
        %1304 = vmatmul.mubr.f32.gmra.mxu0 %v814
        %v1305 = vpop.f32.mrf.mxu0
        %v1306 = vadd.f32 0.0, %v1305
        %v1307 = vpop.f32.mrf.mxu0
        %v1308 = vadd.f32 0.0, %v1307
        %1309 = vmatprep.mubr.f32.mxu0 0.0
        %1310 = vmatmul.mubr.f32.gmra.mxu0 %v817
        %v1311 = vpop.f32.mrf.mxu0
        %v1312 = vadd.f32 0.0, %v1311
        %v1313 = vpop.f32.mrf.mxu0
        %v1314 = vadd.f32 0.0, %v1313
        %1315 = vmatprep.mubr.f32.mxu0 0.0
        %1316 = vmatmul.mubr.f32.gmra.mxu0 %v820
        %v1317 = vpop.f32.mrf.mxu0
        %v1318 = vadd.f32 0.0, %v1317
        %v1319 = vpop.f32.mrf.mxu0
        %v1320 = vadd.f32 0.0, %v1319
        %1321 = vmatprep.mubr.f32.mxu0 0.0
        %1322 = vmatmul.mubr.f32.gmra.mxu0 %v823
        %v1323 = vpop.f32.mrf.mxu0
        %v1324 = vadd.f32 0.0, %v1323
        %v1325 = vpop.f32.mrf.mxu0
        %v1326 = vadd.f32 0.0, %v1325
        %1327 = vmatprep.mubr.f32.mxu0 0.0
        %1328 = vmatmul.mubr.f32.gmra.mxu0 %v826
        %v1329 = vpop.f32.mrf.mxu0
        %v1330 = vadd.f32 0.0, %v1329
        %v1331 = vpop.f32.mrf.mxu0
        %v1332 = vadd.f32 0.0, %v1331
        %1333 = vmatprep.mubr.f32.mxu0 0.0
        %1334 = vmatmul.mubr.f32.gmra.mxu0 %v829
        %v1335 = vpop.f32.mrf.mxu0
        %v1336 = vadd.f32 0.0, %v1335
        %v1337 = vpop.f32.mrf.mxu0
        %v1338 = vadd.f32 0.0, %v1337
        %1339 = vmatprep.mubr.f32.mxu0 0.0
        %1340 = vmatmul.mubr.f32.gmra.mxu0 %v832
        %v1341 = vpop.f32.mrf.mxu0
        %v1342 = vadd.f32 0.0, %v1341
        %v1343 = vpop.f32.mrf.mxu0
        %v1344 = vadd.f32 0.0, %v1343
        %1345 = vmatprep.mubr.f32.mxu0 0.0
        %1346 = vmatmul.mubr.f32.gmra.mxu0 %v835
        %v1347 = vpop.f32.mrf.mxu0
        %v1348 = vadd.f32 0.0, %v1347
        %v1349 = vpop.f32.mrf.mxu0
        %v1350 = vadd.f32 0.0, %v1349
        %1351 = vmatprep.mubr.f32.mxu0 0.0
        %1352 = vmatmul.mubr.f32.gmra.mxu0 %v838
        %v1353 = vpop.f32.mrf.mxu0
        %v1354 = vadd.f32 0.0, %v1353
        %v1355 = vpop.f32.mrf.mxu0
        %v1356 = vadd.f32 0.0, %v1355
        %1357 = vmatprep.mubr.f32.mxu0 0.0
        %1358 = vmatmul.mubr.f32.gmra.mxu0 %v841
        %v1359 = vpop.f32.mrf.mxu0
        %v1360 = vadd.f32 0.0, %v1359
        %v1361 = vpop.f32.mrf.mxu0
        %v1362 = vadd.f32 0.0, %v1361
        %1363 = vmatprep.mubr.f32.mxu0 0.0
        %1364 = vmatmul.mubr.f32.gmra.mxu0 %v844
        %v1365 = vpop.f32.mrf.mxu0
        %v1366 = vadd.f32 0.0, %v1365
        %v1367 = vpop.f32.mrf.mxu0
        %v1368 = vadd.f32 0.0, %v1367
        %1369 = vmatprep.mubr.f32.mxu0 0.0
        %1370 = vmatmul.mubr.f32.gmra.mxu0 %v847
        %v1371 = vpop.f32.mrf.mxu0
        %v1372 = vadd.f32 0.0, %v1371
        %v1373 = vpop.f32.mrf.mxu0
        %v1374 = vadd.f32 0.0, %v1373
        %1375 = vmatprep.mubr.f32.mxu0 0.0
        %1376 = vmatmul.mubr.f32.gmra.mxu0 %v850
        %v1377 = vpop.f32.mrf.mxu0
        %v1378 = vadd.f32 0.0, %v1377
        %v1379 = vpop.f32.mrf.mxu0
        %v1380 = vadd.f32 0.0, %v1379
        %1381 = vmatprep.mubr.f32.mxu0 0.0
        %1382 = vmatmul.mubr.f32.gmra.mxu0 %v853
        %v1383 = vpop.f32.mrf.mxu0
        %v1384 = vadd.f32 0.0, %v1383
        %v1385 = vpop.f32.mrf.mxu0
        %v1386 = vadd.f32 0.0, %v1385
        %1387 = vmatprep.mubr.f32.mxu0 0.0
        %1388 = vmatmul.mubr.f32.gmra.mxu0 %v856
        %v1389 = vpop.f32.mrf.mxu0
        %v1390 = vadd.f32 0.0, %v1389
        %v1391 = vpop.f32.mrf.mxu0
        %v1392 = vadd.f32 0.0, %v1391
        %1393 = vmatprep.mubr.f32.mxu0 0.0
        %1394 = vmatmul.mubr.f32.gmra.mxu0 %v859
        %v1395 = vpop.f32.mrf.mxu0
        %v1396 = vadd.f32 0.0, %v1395
        %v1397 = vpop.f32.mrf.mxu0
        %v1398 = vadd.f32 0.0, %v1397
        %1399 = vmatprep.mubr.f32.mxu0 0.0
        %1400 = vmatmul.mubr.f32.gmra.mxu0 %v862
        %v1401 = vpop.f32.mrf.mxu0
        %v1402 = vadd.f32 0.0, %v1401
        %v1403 = vpop.f32.mrf.mxu0
        %v1404 = vadd.f32 0.0, %v1403
        %1405 = vmatprep.mubr.f32.mxu0 0.0
        %1406 = vmatmul.mubr.f32.gmra.mxu0 %v865
        %v1407 = vpop.f32.mrf.mxu0
        %v1408 = vadd.f32 0.0, %v1407
        %v1409 = vpop.f32.mrf.mxu0
        %v1410 = vadd.f32 0.0, %v1409
        %1411 = vmatprep.mubr.f32.mxu0 0.0
        %1412 = vmatmul.mubr.f32.gmra.mxu0 %v868
        %v1413 = vpop.f32.mrf.mxu0
        %v1414 = vadd.f32 0.0, %v1413
        %v1415 = vpop.f32.mrf.mxu0
        %v1416 = vadd.f32 0.0, %v1415
        %1417 = vmatprep.mubr.f32.mxu0 0.0
        %1418 = vmatmul.mubr.f32.gmra.mxu0 %v871
        %v1419 = vpop.f32.mrf.mxu0
        %v1420 = vadd.f32 0.0, %v1419
        %v1421 = vpop.f32.mrf.mxu0
        %v1422 = vadd.f32 0.0, %v1421
        %1423 = vmatprep.mubr.f32.mxu0 0.0
        %1424 = vmatmul.mubr.f32.gmra.mxu0 %v874
        %v1425 = vpop.f32.mrf.mxu0
        %v1426 = vadd.f32 0.0, %v1425
        %v1427 = vpop.f32.mrf.mxu0
        %v1428 = vadd.f32 0.0, %v1427
        %1429 = vmatprep.mubr.f32.mxu0 0.0
        %1430 = vmatmul.mubr.f32.gmra.mxu0 %v877
        %v1431 = vpop.f32.mrf.mxu0
        %v1432 = vadd.f32 0.0, %v1431
        %v1433 = vpop.f32.mrf.mxu0
        %v1434 = vadd.f32 0.0, %v1433
        %1435 = vmatprep.mubr.f32.mxu0 0.0
        %1436 = vmatmul.mubr.f32.gmra.mxu0 %v880
        %v1437 = vpop.f32.mrf.mxu0
        %v1438 = vadd.f32 0.0, %v1437
        %v1439 = vpop.f32.mrf.mxu0
        %v1440 = vadd.f32 0.0, %v1439
        %1441 = vmatprep.mubr.f32.mxu0 0.0
        %1442 = vmatmul.mubr.f32.gmra.mxu0 %v883
        %v1443 = vpop.f32.mrf.mxu0
        %v1444 = vadd.f32 0.0, %v1443
        %v1445 = vpop.f32.mrf.mxu0
        %v1446 = vadd.f32 0.0, %v1445
        %1447 = vmatprep.mubr.f32.mxu0 0.0
        %1448 = vmatmul.mubr.f32.gmra.mxu0 %v886
        %v1449 = vpop.f32.mrf.mxu0
        %v1450 = vadd.f32 0.0, %v1449
        %v1451 = vpop.f32.mrf.mxu0
        %v1452 = vadd.f32 0.0, %v1451
        %1453 = vmatprep.mubr.f32.mxu0 0.0
        %1454 = vmatmul.mubr.f32.gmra.mxu0 %v889
        %v1455 = vpop.f32.mrf.mxu0
        %v1456 = vadd.f32 0.0, %v1455
        %v1457 = vpop.f32.mrf.mxu0
        %v1458 = vadd.f32 0.0, %v1457
        %1459 = vmatprep.mubr.f32.mxu0 0.0
        %1460 = vmatmul.mubr.f32.gmra.mxu0 %v892
        %v1461 = vpop.f32.mrf.mxu0
        %v1462 = vadd.f32 0.0, %v1461
        %v1463 = vpop.f32.mrf.mxu0
        %v1464 = vadd.f32 0.0, %v1463
        %1465 = vmatprep.mubr.f32.mxu0 0.0
        %1466 = vmatmul.mubr.f32.gmra.mxu0 %v895
        %v1467 = vpop.f32.mrf.mxu0
        %v1468 = vadd.f32 0.0, %v1467
        %v1469 = vpop.f32.mrf.mxu0
        %v1470 = vadd.f32 0.0, %v1469
        %1471 = vmatprep.mubr.f32.mxu0 0.0
        %1472 = vmatmul.mubr.f32.gmra.mxu0 %v898
        %v1473 = vpop.f32.mrf.mxu0
        %v1474 = vadd.f32 0.0, %v1473
        %v1475 = vpop.f32.mrf.mxu0
        %v1476 = vadd.f32 0.0, %v1475
        %1477 = vmatprep.mubr.f32.mxu0 0.0
        %1478 = vmatmul.mubr.f32.gmra.mxu0 %v901
        %v1479 = vpop.f32.mrf.mxu0
        %v1480 = vadd.f32 0.0, %v1479
        %v1481 = vpop.f32.mrf.mxu0
        %v1482 = vadd.f32 0.0, %v1481
        %1483 = vmatprep.mubr.f32.mxu0 0.0
        %1484 = vmatmul.mubr.f32.gmra.mxu0 %v904
        %v1485 = vpop.f32.mrf.mxu0
        %v1486 = vadd.f32 0.0, %v1485
        %v1487 = vpop.f32.mrf.mxu0
        %v1488 = vadd.f32 0.0, %v1487
        %1489 = vmatprep.mubr.f32.mxu0 0.0
        %1490 = vmatmul.mubr.f32.gmra.mxu0 %v907
        %v1491 = vpop.f32.mrf.mxu0
        %v1492 = vadd.f32 0.0, %v1491
        %v1493 = vpop.f32.mrf.mxu0
        %v1494 = vadd.f32 0.0, %v1493
        %1495 = vdwg.mxu0
        %1496 = vst [vmem:[#allocation2 + $0x200] sm:$0xff] %v1306
        %1497 = vst.msk [vmem:[#allocation2 + $0x208] sm:$0xff] %vm1167, %v1308
        %1498 = vst [vmem:[#allocation2 + $0x210] sm:$0xff] %v1312
        %1499 = vst.msk [vmem:[#allocation2 + $0x218] sm:$0xff] %vm1167, %v1314
        %1500 = vst [vmem:[#allocation2 + $0x220] sm:$0xff] %v1318
        %1501 = vst.msk [vmem:[#allocation2 + $0x228] sm:$0xff] %vm1167, %v1320
        %1502 = vst [vmem:[#allocation2 + $0x230] sm:$0xff] %v1324
        %1503 = vst.msk [vmem:[#allocation2 + $0x238] sm:$0xff] %vm1167, %v1326
        %1504 = vst [vmem:[#allocation2 + $0x240] sm:$0xff] %v1330
        %1505 = vst.msk [vmem:[#allocation2 + $0x248] sm:$0xff] %vm1167, %v1332
        %1506 = vst [vmem:[#allocation2 + $0x250] sm:$0xff] %v1336
        %1507 = vst.msk [vmem:[#allocation2 + $0x258] sm:$0xff] %vm1167, %v1338
        %1508 = vst [vmem:[#allocation2 + $0x260] sm:$0xff] %v1342
        %1509 = vst.msk [vmem:[#allocation2 + $0x268] sm:$0xff] %vm1167, %v1344
        %1510 = vst [vmem:[#allocation2 + $0x270] sm:$0xff] %v1348
        %1511 = vst.msk [vmem:[#allocation2 + $0x278] sm:$0xff] %vm1167, %v1350
        %1512 = vst [vmem:[#allocation2 + $0x280] sm:$0xff] %v1354
        %1513 = vst.msk [vmem:[#allocation2 + $0x288] sm:$0xff] %vm1167, %v1356
        %1514 = vst [vmem:[#allocation2 + $0x290] sm:$0xff] %v1360
        %1515 = vst.msk [vmem:[#allocation2 + $0x298] sm:$0xff] %vm1167, %v1362
        %1516 = vst [vmem:[#allocation2 + $0x2a0] sm:$0xff] %v1366
        %1517 = vst.msk [vmem:[#allocation2 + $0x2a8] sm:$0xff] %vm1167, %v1368
        %1518 = vst [vmem:[#allocation2 + $0x2b0] sm:$0xff] %v1372
        %1519 = vst.msk [vmem:[#allocation2 + $0x2b8] sm:$0xff] %vm1167, %v1374
        %1520 = vst [vmem:[#allocation2 + $0x2c0] sm:$0xff] %v1378
        %1521 = vst.msk [vmem:[#allocation2 + $0x2c8] sm:$0xff] %vm1167, %v1380
        %1522 = vst [vmem:[#allocation2 + $0x2d0] sm:$0xff] %v1384
        %1523 = vst.msk [vmem:[#allocation2 + $0x2d8] sm:$0xff] %vm1167, %v1386
        %1524 = vst [vmem:[#allocation2 + $0x2e0] sm:$0xff] %v1390
        %1525 = vst.msk [vmem:[#allocation2 + $0x2e8] sm:$0xff] %vm1167, %v1392
        %1526 = vst [vmem:[#allocation2 + $0x2f0] sm:$0xff] %v1396
        %1527 = vst.msk [vmem:[#allocation2 + $0x2f8] sm:$0xff] %vm1167, %v1398
        %1528 = vst [vmem:[#allocation2 + $0x300] sm:$0xff] %v1402
        %1529 = vst.msk [vmem:[#allocation2 + $0x308] sm:$0xff] %vm1167, %v1404
        %1530 = vst [vmem:[#allocation2 + $0x310] sm:$0xff] %v1408
        %1531 = vst.msk [vmem:[#allocation2 + $0x318] sm:$0xff] %vm1167, %v1410
        %1532 = vst [vmem:[#allocation2 + $0x320] sm:$0xff] %v1414
        %1533 = vst.msk [vmem:[#allocation2 + $0x328] sm:$0xff] %vm1167, %v1416
        %1534 = vst [vmem:[#allocation2 + $0x330] sm:$0xff] %v1420
        %1535 = vst.msk [vmem:[#allocation2 + $0x338] sm:$0xff] %vm1167, %v1422
        %1536 = vst [vmem:[#allocation2 + $0x340] sm:$0xff] %v1426
        %1537 = vst.msk [vmem:[#allocation2 + $0x348] sm:$0xff] %vm1167, %v1428
        %1538 = vst [vmem:[#allocation2 + $0x350] sm:$0xff] %v1432
        %1539 = vst.msk [vmem:[#allocation2 + $0x358] sm:$0xff] %vm1167, %v1434
        %1540 = vst [vmem:[#allocation2 + $0x360] sm:$0xff] %v1438
        %1541 = vst.msk [vmem:[#allocation2 + $0x368] sm:$0xff] %vm1167, %v1440
        %1542 = vst [vmem:[#allocation2 + $0x370] sm:$0xff] %v1444
        %1543 = vst.msk [vmem:[#allocation2 + $0x378] sm:$0xff] %vm1167, %v1446
        %1544 = vst [vmem:[#allocation2 + $0x380] sm:$0xff] %v1450
        %1545 = vst.msk [vmem:[#allocation2 + $0x388] sm:$0xff] %vm1167, %v1452
        %1546 = vst [vmem:[#allocation2 + $0x390] sm:$0xff] %v1456
        %1547 = vst.msk [vmem:[#allocation2 + $0x398] sm:$0xff] %vm1167, %v1458
        %1548 = vst [vmem:[#allocation2 + $0x3a0] sm:$0xff] %v1462
        %1549 = vst.msk [vmem:[#allocation2 + $0x3a8] sm:$0xff] %vm1167, %v1464
        %1550 = vst [vmem:[#allocation2 + $0x3b0] sm:$0xff] %v1468
        %1551 = vst.msk [vmem:[#allocation2 + $0x3b8] sm:$0xff] %vm1167, %v1470
        %1552 = vst [vmem:[#allocation2 + $0x3c0] sm:$0xff] %v1474
        %1553 = vst.msk [vmem:[#allocation2 + $0x3c8] sm:$0xff] %vm1167, %v1476
        %1554 = vst [vmem:[#allocation2 + $0x3d0] sm:$0xff] %v1480
        %1555 = vst.msk [vmem:[#allocation2 + $0x3d8] sm:$0xff] %vm1167, %v1482
        %1556 = vst [vmem:[#allocation2 + $0x3e0] sm:$0xff] %v1486
        %1557 = vst.msk [vmem:[#allocation2 + $0x3e8] sm:$0xff] %vm1167, %v1488
        %1558 = vst [vmem:[#allocation2 + $0x3f0] sm:$0xff] %v1492
        %1559 = vst.msk [vmem:[#allocation2 + $0x3f8] sm:$0xff] %vm1167, %v1494
        %v1560 = vld [vmem:[%s1 + $0x80] sm:$0xff]
        %v1561 = vld [vmem:[%s1 + $0x88] sm:$0xff]
        %v1562 = vld [vmem:[%s1 + $0x90] sm:$0xff]
        %v1563 = vld [vmem:[%s1 + $0x98] sm:$0xff]
        %v1564 = vld [vmem:[%s1 + $0xa0] sm:$0xff]
        %v1565 = vld [vmem:[%s1 + $0xa8] sm:$0xff]
        %v1566 = vld [vmem:[%s1 + $0xb0] sm:$0xff]
        %v1567 = vld [vmem:[%s1 + $0xb8] sm:$0xff]
        %1568 = vmatprep.subr.mxu0 0.0
        %1569 = vmatpush1.msra.mxu0 0.0
        %1570 = vmatprep.subr.mxu0 0.0
        %1571 = vmatpush1.msra.mxu0 0.0
        %1572 = vmatprep.subr.mxu0 0.0
        %1573 = vmatpush1.msra.mxu0 0.0
        %1574 = vmatprep.subr.mxu0 0.0
        %1575 = vmatpush1.msra.mxu0 0.0
        %1576 = vmatprep.subr.mxu0 0.0
        %1577 = vmatpush1.msra.mxu0 0.0
        %1578 = vmatprep.subr.mxu0 0.0
        %1579 = vmatpush1.msra.mxu0 0.0
        %1580 = vmatprep.subr.mxu0 0.0
        %1581 = vmatpush1.msra.mxu0 0.0
        %1582 = vmatprep.subr.mxu0 0.0
        %1583 = vmatpush1.msra.mxu0 0.0
        %1584 = vmatprep.subr.mxu0 0.0
        %1585 = vmatpush1.msra.mxu0 0.0
        %1586 = vmatprep.subr.mxu0 0.0
        %1587 = vmatpush1.msra.mxu0 0.0
        %1588 = vmatprep.subr.mxu0 0.0
        %1589 = vmatpush1.msra.mxu0 0.0
        %1590 = vmatprep.subr.mxu0 0.0
        %1591 = vmatpush1.msra.mxu0 0.0
        %1592 = vmatprep.subr.mxu0 %v1567
        %1593 = vmatpush1.msra.mxu0 %v1566
        %1594 = vmatprep.subr.mxu0 %v1565
        %1595 = vmatpush1.msra.mxu0 %v1564
        %1596 = vmatprep.subr.mxu0 %v1563
        %1597 = vmatpush1.msra.mxu0 %v1562
        %1598 = vmatprep.subr.mxu0 %v1561
        %1599 = vmatpush1.msra.mxu0 %v1560
        %1600 = vmatprep.subr.mxu0 0.0
        %1601 = vmatpush2.msra.mxu0 0.0
        %1602 = vmatprep.subr.mxu0 0.0
        %1603 = vmatpush2.msra.mxu0 0.0
        %1604 = vmatprep.subr.mxu0 0.0
        %1605 = vmatpush2.msra.mxu0 0.0
        %1606 = vmatprep.subr.mxu0 0.0
        %1607 = vmatpush2.msra.mxu0 0.0
        %1608 = vmatprep.subr.mxu0 0.0
        %1609 = vmatpush2.msra.mxu0 0.0
        %1610 = vmatprep.subr.mxu0 0.0
        %1611 = vmatpush2.msra.mxu0 0.0
        %1612 = vmatprep.subr.mxu0 0.0
        %1613 = vmatpush2.msra.mxu0 0.0
        %1614 = vmatprep.subr.mxu0 0.0
        %1615 = vmatpush2.msra.mxu0 0.0
        %1616 = vmatprep.subr.mxu0 0.0
        %1617 = vmatpush2.msra.mxu0 0.0
        %1618 = vmatprep.subr.mxu0 0.0
        %1619 = vmatpush2.msra.mxu0 0.0
        %1620 = vmatprep.subr.mxu0 0.0
        %1621 = vmatpush2.msra.mxu0 0.0
        %1622 = vmatprep.subr.mxu0 0.0
        %1623 = vmatpush2.msra.mxu0 0.0
        %1624 = vmatprep.subr.mxu0 0.0
        %1625 = vmatpush2.msra.mxu0 0.0
        %1626 = vmatprep.subr.mxu0 0.0
        %1627 = vmatpush2.msra.mxu0 0.0
        %1628 = vmatprep.subr.mxu0 0.0
        %1629 = vmatpush2.msra.mxu0 0.0
        %1630 = vmatprep.subr.mxu0 0.0
        %1631 = vmatpush2.msra.mxu0 0.0
        %1632 = vmatprep.mubr.f32.mxu0 0.0
        %1633 = vmatmul.mubr.f32.gmra.mxu0 %v814
        %v1634 = vpop.f32.mrf.mxu0
        %v1635 = vadd.f32 0.0, %v1634
        %v1636 = vpop.f32.mrf.mxu0
        %v1637 = vadd.f32 0.0, %v1636
        %1638 = vmatprep.mubr.f32.mxu0 0.0
        %1639 = vmatmul.mubr.f32.gmra.mxu0 %v817
        %v1640 = vpop.f32.mrf.mxu0
        %v1641 = vadd.f32 0.0, %v1640
        %v1642 = vpop.f32.mrf.mxu0
        %v1643 = vadd.f32 0.0, %v1642
        %1644 = vmatprep.mubr.f32.mxu0 0.0
        %1645 = vmatmul.mubr.f32.gmra.mxu0 %v820
        %v1646 = vpop.f32.mrf.mxu0
        %v1647 = vadd.f32 0.0, %v1646
        %v1648 = vpop.f32.mrf.mxu0
        %v1649 = vadd.f32 0.0, %v1648
        %1650 = vmatprep.mubr.f32.mxu0 0.0
        %1651 = vmatmul.mubr.f32.gmra.mxu0 %v823
        %v1652 = vpop.f32.mrf.mxu0
        %v1653 = vadd.f32 0.0, %v1652
        %v1654 = vpop.f32.mrf.mxu0
        %v1655 = vadd.f32 0.0, %v1654
        %1656 = vmatprep.mubr.f32.mxu0 0.0
        %1657 = vmatmul.mubr.f32.gmra.mxu0 %v826
        %v1658 = vpop.f32.mrf.mxu0
        %v1659 = vadd.f32 0.0, %v1658
        %v1660 = vpop.f32.mrf.mxu0
        %v1661 = vadd.f32 0.0, %v1660
        %1662 = vmatprep.mubr.f32.mxu0 0.0
        %1663 = vmatmul.mubr.f32.gmra.mxu0 %v829
        %v1664 = vpop.f32.mrf.mxu0
        %v1665 = vadd.f32 0.0, %v1664
        %v1666 = vpop.f32.mrf.mxu0
        %v1667 = vadd.f32 0.0, %v1666
        %1668 = vmatprep.mubr.f32.mxu0 0.0
        %1669 = vmatmul.mubr.f32.gmra.mxu0 %v832
        %v1670 = vpop.f32.mrf.mxu0
        %v1671 = vadd.f32 0.0, %v1670
        %v1672 = vpop.f32.mrf.mxu0
        %v1673 = vadd.f32 0.0, %v1672
        %1674 = vmatprep.mubr.f32.mxu0 0.0
        %1675 = vmatmul.mubr.f32.gmra.mxu0 %v835
        %v1676 = vpop.f32.mrf.mxu0
        %v1677 = vadd.f32 0.0, %v1676
        %v1678 = vpop.f32.mrf.mxu0
        %v1679 = vadd.f32 0.0, %v1678
        %1680 = vmatprep.mubr.f32.mxu0 0.0
        %1681 = vmatmul.mubr.f32.gmra.mxu0 %v838
        %v1682 = vpop.f32.mrf.mxu0
        %v1683 = vadd.f32 0.0, %v1682
        %v1684 = vpop.f32.mrf.mxu0
        %v1685 = vadd.f32 0.0, %v1684
        %1686 = vmatprep.mubr.f32.mxu0 0.0
        %1687 = vmatmul.mubr.f32.gmra.mxu0 %v841
        %v1688 = vpop.f32.mrf.mxu0
        %v1689 = vadd.f32 0.0, %v1688
        %v1690 = vpop.f32.mrf.mxu0
        %v1691 = vadd.f32 0.0, %v1690
        %1692 = vmatprep.mubr.f32.mxu0 0.0
        %1693 = vmatmul.mubr.f32.gmra.mxu0 %v844
        %v1694 = vpop.f32.mrf.mxu0
        %v1695 = vadd.f32 0.0, %v1694
        %v1696 = vpop.f32.mrf.mxu0
        %v1697 = vadd.f32 0.0, %v1696
        %1698 = vmatprep.mubr.f32.mxu0 0.0
        %1699 = vmatmul.mubr.f32.gmra.mxu0 %v847
        %v1700 = vpop.f32.mrf.mxu0
        %v1701 = vadd.f32 0.0, %v1700
        %v1702 = vpop.f32.mrf.mxu0
        %v1703 = vadd.f32 0.0, %v1702
        %1704 = vmatprep.mubr.f32.mxu0 0.0
        %1705 = vmatmul.mubr.f32.gmra.mxu0 %v850
        %v1706 = vpop.f32.mrf.mxu0
        %v1707 = vadd.f32 0.0, %v1706
        %v1708 = vpop.f32.mrf.mxu0
        %v1709 = vadd.f32 0.0, %v1708
        %1710 = vmatprep.mubr.f32.mxu0 0.0
        %1711 = vmatmul.mubr.f32.gmra.mxu0 %v853
        %v1712 = vpop.f32.mrf.mxu0
        %v1713 = vadd.f32 0.0, %v1712
        %v1714 = vpop.f32.mrf.mxu0
        %v1715 = vadd.f32 0.0, %v1714
        %1716 = vmatprep.mubr.f32.mxu0 0.0
        %1717 = vmatmul.mubr.f32.gmra.mxu0 %v856
        %v1718 = vpop.f32.mrf.mxu0
        %v1719 = vadd.f32 0.0, %v1718
        %v1720 = vpop.f32.mrf.mxu0
        %v1721 = vadd.f32 0.0, %v1720
        %1722 = vmatprep.mubr.f32.mxu0 0.0
        %1723 = vmatmul.mubr.f32.gmra.mxu0 %v859
        %v1724 = vpop.f32.mrf.mxu0
        %v1725 = vadd.f32 0.0, %v1724
        %v1726 = vpop.f32.mrf.mxu0
        %v1727 = vadd.f32 0.0, %v1726
        %1728 = vmatprep.mubr.f32.mxu0 0.0
        %1729 = vmatmul.mubr.f32.gmra.mxu0 %v862
        %v1730 = vpop.f32.mrf.mxu0
        %v1731 = vadd.f32 0.0, %v1730
        %v1732 = vpop.f32.mrf.mxu0
        %v1733 = vadd.f32 0.0, %v1732
        %1734 = vmatprep.mubr.f32.mxu0 0.0
        %1735 = vmatmul.mubr.f32.gmra.mxu0 %v865
        %v1736 = vpop.f32.mrf.mxu0
        %v1737 = vadd.f32 0.0, %v1736
        %v1738 = vpop.f32.mrf.mxu0
        %v1739 = vadd.f32 0.0, %v1738
        %1740 = vmatprep.mubr.f32.mxu0 0.0
        %1741 = vmatmul.mubr.f32.gmra.mxu0 %v868
        %v1742 = vpop.f32.mrf.mxu0
        %v1743 = vadd.f32 0.0, %v1742
        %v1744 = vpop.f32.mrf.mxu0
        %v1745 = vadd.f32 0.0, %v1744
        %1746 = vmatprep.mubr.f32.mxu0 0.0
        %1747 = vmatmul.mubr.f32.gmra.mxu0 %v871
        %v1748 = vpop.f32.mrf.mxu0
        %v1749 = vadd.f32 0.0, %v1748
        %v1750 = vpop.f32.mrf.mxu0
        %v1751 = vadd.f32 0.0, %v1750
        %1752 = vmatprep.mubr.f32.mxu0 0.0
        %1753 = vmatmul.mubr.f32.gmra.mxu0 %v874
        %v1754 = vpop.f32.mrf.mxu0
        %v1755 = vadd.f32 0.0, %v1754
        %v1756 = vpop.f32.mrf.mxu0
        %v1757 = vadd.f32 0.0, %v1756
        %1758 = vmatprep.mubr.f32.mxu0 0.0
        %1759 = vmatmul.mubr.f32.gmra.mxu0 %v877
        %v1760 = vpop.f32.mrf.mxu0
        %v1761 = vadd.f32 0.0, %v1760
        %v1762 = vpop.f32.mrf.mxu0
        %v1763 = vadd.f32 0.0, %v1762
        %1764 = vmatprep.mubr.f32.mxu0 0.0
        %1765 = vmatmul.mubr.f32.gmra.mxu0 %v880
        %v1766 = vpop.f32.mrf.mxu0
        %v1767 = vadd.f32 0.0, %v1766
        %v1768 = vpop.f32.mrf.mxu0
        %v1769 = vadd.f32 0.0, %v1768
        %1770 = vmatprep.mubr.f32.mxu0 0.0
        %1771 = vmatmul.mubr.f32.gmra.mxu0 %v883
        %v1772 = vpop.f32.mrf.mxu0
        %v1773 = vadd.f32 0.0, %v1772
        %v1774 = vpop.f32.mrf.mxu0
        %v1775 = vadd.f32 0.0, %v1774
        %1776 = vmatprep.mubr.f32.mxu0 0.0
        %1777 = vmatmul.mubr.f32.gmra.mxu0 %v886
        %v1778 = vpop.f32.mrf.mxu0
        %v1779 = vadd.f32 0.0, %v1778
        %v1780 = vpop.f32.mrf.mxu0
        %v1781 = vadd.f32 0.0, %v1780
        %1782 = vmatprep.mubr.f32.mxu0 0.0
        %1783 = vmatmul.mubr.f32.gmra.mxu0 %v889
        %v1784 = vpop.f32.mrf.mxu0
        %v1785 = vadd.f32 0.0, %v1784
        %v1786 = vpop.f32.mrf.mxu0
        %v1787 = vadd.f32 0.0, %v1786
        %1788 = vmatprep.mubr.f32.mxu0 0.0
        %1789 = vmatmul.mubr.f32.gmra.mxu0 %v892
        %v1790 = vpop.f32.mrf.mxu0
        %v1791 = vadd.f32 0.0, %v1790
        %v1792 = vpop.f32.mrf.mxu0
        %v1793 = vadd.f32 0.0, %v1792
        %1794 = vmatprep.mubr.f32.mxu0 0.0
        %1795 = vmatmul.mubr.f32.gmra.mxu0 %v895
        %v1796 = vpop.f32.mrf.mxu0
        %v1797 = vadd.f32 0.0, %v1796
        %v1798 = vpop.f32.mrf.mxu0
        %v1799 = vadd.f32 0.0, %v1798
        %1800 = vmatprep.mubr.f32.mxu0 0.0
        %1801 = vmatmul.mubr.f32.gmra.mxu0 %v898
        %v1802 = vpop.f32.mrf.mxu0
        %v1803 = vadd.f32 0.0, %v1802
        %v1804 = vpop.f32.mrf.mxu0
        %v1805 = vadd.f32 0.0, %v1804
        %1806 = vmatprep.mubr.f32.mxu0 0.0
        %1807 = vmatmul.mubr.f32.gmra.mxu0 %v901
        %v1808 = vpop.f32.mrf.mxu0
        %v1809 = vadd.f32 0.0, %v1808
        %v1810 = vpop.f32.mrf.mxu0
        %v1811 = vadd.f32 0.0, %v1810
        %1812 = vmatprep.mubr.f32.mxu0 0.0
        %1813 = vmatmul.mubr.f32.gmra.mxu0 %v904
        %v1814 = vpop.f32.mrf.mxu0
        %v1815 = vadd.f32 0.0, %v1814
        %v1816 = vpop.f32.mrf.mxu0
        %v1817 = vadd.f32 0.0, %v1816
        %1818 = vmatprep.mubr.f32.mxu0 0.0
        %1819 = vmatmul.mubr.f32.gmra.mxu0 %v907
        %v1820 = vpop.f32.mrf.mxu0
        %v1821 = vadd.f32 0.0, %v1820
        %v1822 = vpop.f32.mrf.mxu0
        %v1823 = vadd.f32 0.0, %v1822
        %1824 = vdwg.mxu0
        %1825 = vst [vmem:[#allocation2 + $0x400] sm:$0xff] %v1635
        %1826 = vst.msk [vmem:[#allocation2 + $0x408] sm:$0xff] %vm1167, %v1637
        %1827 = vst [vmem:[#allocation2 + $0x410] sm:$0xff] %v1641
        %1828 = vst.msk [vmem:[#allocation2 + $0x418] sm:$0xff] %vm1167, %v1643
        %1829 = vst [vmem:[#allocation2 + $0x420] sm:$0xff] %v1647
        %1830 = vst.msk [vmem:[#allocation2 + $0x428] sm:$0xff] %vm1167, %v1649
        %1831 = vst [vmem:[#allocation2 + $0x430] sm:$0xff] %v1653
        %1832 = vst.msk [vmem:[#allocation2 + $0x438] sm:$0xff] %vm1167, %v1655
        %1833 = vst [vmem:[#allocation2 + $0x440] sm:$0xff] %v1659
        %1834 = vst.msk [vmem:[#allocation2 + $0x448] sm:$0xff] %vm1167, %v1661
        %1835 = vst [vmem:[#allocation2 + $0x450] sm:$0xff] %v1665
        %1836 = vst.msk [vmem:[#allocation2 + $0x458] sm:$0xff] %vm1167, %v1667
        %1837 = vst [vmem:[#allocation2 + $0x460] sm:$0xff] %v1671
        %1838 = vst.msk [vmem:[#allocation2 + $0x468] sm:$0xff] %vm1167, %v1673
        %1839 = vst [vmem:[#allocation2 + $0x470] sm:$0xff] %v1677
        %1840 = vst.msk [vmem:[#allocation2 + $0x478] sm:$0xff] %vm1167, %v1679
        %1841 = vst [vmem:[#allocation2 + $0x480] sm:$0xff] %v1683
        %1842 = vst.msk [vmem:[#allocation2 + $0x488] sm:$0xff] %vm1167, %v1685
        %1843 = vst [vmem:[#allocation2 + $0x490] sm:$0xff] %v1689
        %1844 = vst.msk [vmem:[#allocation2 + $0x498] sm:$0xff] %vm1167, %v1691
        %1845 = vst [vmem:[#allocation2 + $0x4a0] sm:$0xff] %v1695
        %1846 = vst.msk [vmem:[#allocation2 + $0x4a8] sm:$0xff] %vm1167, %v1697
        %1847 = vst [vmem:[#allocation2 + $0x4b0] sm:$0xff] %v1701
        %1848 = vst.msk [vmem:[#allocation2 + $0x4b8] sm:$0xff] %vm1167, %v1703
        %1849 = vst [vmem:[#allocation2 + $0x4c0] sm:$0xff] %v1707
        %1850 = vst.msk [vmem:[#allocation2 + $0x4c8] sm:$0xff] %vm1167, %v1709
        %1851 = vst [vmem:[#allocation2 + $0x4d0] sm:$0xff] %v1713
        %1852 = vst.msk [vmem:[#allocation2 + $0x4d8] sm:$0xff] %vm1167, %v1715
        %1853 = vst [vmem:[#allocation2 + $0x4e0] sm:$0xff] %v1719
        %1854 = vst.msk [vmem:[#allocation2 + $0x4e8] sm:$0xff] %vm1167, %v1721
        %1855 = vst [vmem:[#allocation2 + $0x4f0] sm:$0xff] %v1725
        %1856 = vst.msk [vmem:[#allocation2 + $0x4f8] sm:$0xff] %vm1167, %v1727
        %1857 = vst [vmem:[#allocation2 + $0x500] sm:$0xff] %v1731
        %1858 = vst.msk [vmem:[#allocation2 + $0x508] sm:$0xff] %vm1167, %v1733
        %1859 = vst [vmem:[#allocation2 + $0x510] sm:$0xff] %v1737
        %1860 = vst.msk [vmem:[#allocation2 + $0x518] sm:$0xff] %vm1167, %v1739
        %1861 = vst [vmem:[#allocation2 + $0x520] sm:$0xff] %v1743
        %1862 = vst.msk [vmem:[#allocation2 + $0x528] sm:$0xff] %vm1167, %v1745
        %1863 = vst [vmem:[#allocation2 + $0x530] sm:$0xff] %v1749
        %1864 = vst.msk [vmem:[#allocation2 + $0x538] sm:$0xff] %vm1167, %v1751
        %1865 = vst [vmem:[#allocation2 + $0x540] sm:$0xff] %v1755
        %1866 = vst.msk [vmem:[#allocation2 + $0x548] sm:$0xff] %vm1167, %v1757
        %1867 = vst [vmem:[#allocation2 + $0x550] sm:$0xff] %v1761
        %1868 = vst.msk [vmem:[#allocation2 + $0x558] sm:$0xff] %vm1167, %v1763
        %1869 = vst [vmem:[#allocation2 + $0x560] sm:$0xff] %v1767
        %1870 = vst.msk [vmem:[#allocation2 + $0x568] sm:$0xff] %vm1167, %v1769
        %1871 = vst [vmem:[#allocation2 + $0x570] sm:$0xff] %v1773
        %1872 = vst.msk [vmem:[#allocation2 + $0x578] sm:$0xff] %vm1167, %v1775
        %1873 = vst [vmem:[#allocation2 + $0x580] sm:$0xff] %v1779
        %1874 = vst.msk [vmem:[#allocation2 + $0x588] sm:$0xff] %vm1167, %v1781
        %1875 = vst [vmem:[#allocation2 + $0x590] sm:$0xff] %v1785
        %1876 = vst.msk [vmem:[#allocation2 + $0x598] sm:$0xff] %vm1167, %v1787
        %1877 = vst [vmem:[#allocation2 + $0x5a0] sm:$0xff] %v1791
        %1878 = vst.msk [vmem:[#allocation2 + $0x5a8] sm:$0xff] %vm1167, %v1793
        %1879 = vst [vmem:[#allocation2 + $0x5b0] sm:$0xff] %v1797
        %1880 = vst.msk [vmem:[#allocation2 + $0x5b8] sm:$0xff] %vm1167, %v1799
        %1881 = vst [vmem:[#allocation2 + $0x5c0] sm:$0xff] %v1803
        %1882 = vst.msk [vmem:[#allocation2 + $0x5c8] sm:$0xff] %vm1167, %v1805
        %1883 = vst [vmem:[#allocation2 + $0x5d0] sm:$0xff] %v1809
        %1884 = vst.msk [vmem:[#allocation2 + $0x5d8] sm:$0xff] %vm1167, %v1811
        %1885 = vst [vmem:[#allocation2 + $0x5e0] sm:$0xff] %v1815
        %1886 = vst.msk [vmem:[#allocation2 + $0x5e8] sm:$0xff] %vm1167, %v1817
        %1887 = vst [vmem:[#allocation2 + $0x5f0] sm:$0xff] %v1821
        %1888 = vst.msk [vmem:[#allocation2 + $0x5f8] sm:$0xff] %vm1167, %v1823
        %v1889 = vld [vmem:[%s1 + $0xc0] sm:$0xff]
        %v1890 = vld [vmem:[%s1 + $0xc8] sm:$0xff]
        %v1891 = vld [vmem:[%s1 + $0xd0] sm:$0xff]
        %v1892 = vld [vmem:[%s1 + $0xd8] sm:$0xff]
        %v1893 = vld [vmem:[%s1 + $0xe0] sm:$0xff]
        %v1894 = vld [vmem:[%s1 + $0xe8] sm:$0xff]
        %v1895 = vld [vmem:[%s1 + $0xf0] sm:$0xff]
        %v1896 = vld [vmem:[%s1 + $0xf8] sm:$0xff]
        %1897 = vmatprep.subr.mxu0 0.0
        %1898 = vmatpush1.msra.mxu0 0.0
        %1899 = vmatprep.subr.mxu0 0.0
        %1900 = vmatpush1.msra.mxu0 0.0
        %1901 = vmatprep.subr.mxu0 0.0
        %1902 = vmatpush1.msra.mxu0 0.0
        %1903 = vmatprep.subr.mxu0 0.0
        %1904 = vmatpush1.msra.mxu0 0.0
        %1905 = vmatprep.subr.mxu0 0.0
        %1906 = vmatpush1.msra.mxu0 0.0
        %1907 = vmatprep.subr.mxu0 0.0
        %1908 = vmatpush1.msra.mxu0 0.0
        %1909 = vmatprep.subr.mxu0 0.0
        %1910 = vmatpush1.msra.mxu0 0.0
        %1911 = vmatprep.subr.mxu0 0.0
        %1912 = vmatpush1.msra.mxu0 0.0
        %1913 = vmatprep.subr.mxu0 0.0
        %1914 = vmatpush1.msra.mxu0 0.0
        %1915 = vmatprep.subr.mxu0 0.0
        %1916 = vmatpush1.msra.mxu0 0.0
        %1917 = vmatprep.subr.mxu0 0.0
        %1918 = vmatpush1.msra.mxu0 0.0
        %1919 = vmatprep.subr.mxu0 0.0
        %1920 = vmatpush1.msra.mxu0 0.0
        %1921 = vmatprep.subr.mxu0 %v1896
        %1922 = vmatpush1.msra.mxu0 %v1895
        %1923 = vmatprep.subr.mxu0 %v1894
        %1924 = vmatpush1.msra.mxu0 %v1893
        %1925 = vmatprep.subr.mxu0 %v1892
        %1926 = vmatpush1.msra.mxu0 %v1891
        %1927 = vmatprep.subr.mxu0 %v1890
        %1928 = vmatpush1.msra.mxu0 %v1889
        %1929 = vmatprep.subr.mxu0 0.0
        %1930 = vmatpush2.msra.mxu0 0.0
        %1931 = vmatprep.subr.mxu0 0.0
        %1932 = vmatpush2.msra.mxu0 0.0
        %1933 = vmatprep.subr.mxu0 0.0
        %1934 = vmatpush2.msra.mxu0 0.0
        %1935 = vmatprep.subr.mxu0 0.0
        %1936 = vmatpush2.msra.mxu0 0.0
        %1937 = vmatprep.subr.mxu0 0.0
        %1938 = vmatpush2.msra.mxu0 0.0
        %1939 = vmatprep.subr.mxu0 0.0
        %1940 = vmatpush2.msra.mxu0 0.0
        %1941 = vmatprep.subr.mxu0 0.0
        %1942 = vmatpush2.msra.mxu0 0.0
        %1943 = vmatprep.subr.mxu0 0.0
        %1944 = vmatpush2.msra.mxu0 0.0
        %1945 = vmatprep.subr.mxu0 0.0
        %1946 = vmatpush2.msra.mxu0 0.0
        %1947 = vmatprep.subr.mxu0 0.0
        %1948 = vmatpush2.msra.mxu0 0.0
        %1949 = vmatprep.subr.mxu0 0.0
        %1950 = vmatpush2.msra.mxu0 0.0
        %1951 = vmatprep.subr.mxu0 0.0
        %1952 = vmatpush2.msra.mxu0 0.0
        %1953 = vmatprep.subr.mxu0 0.0
        %1954 = vmatpush2.msra.mxu0 0.0
        %1955 = vmatprep.subr.mxu0 0.0
        %1956 = vmatpush2.msra.mxu0 0.0
        %1957 = vmatprep.subr.mxu0 0.0
        %1958 = vmatpush2.msra.mxu0 0.0
        %1959 = vmatprep.subr.mxu0 0.0
        %1960 = vmatpush2.msra.mxu0 0.0
        %1961 = vmatprep.mubr.f32.mxu0 0.0
        %1962 = vmatmul.mubr.f32.gmra.mxu0 %v814
        %v1963 = vpop.f32.mrf.mxu0
        %v1964 = vadd.f32 0.0, %v1963
        %v1965 = vpop.f32.mrf.mxu0
        %v1966 = vadd.f32 0.0, %v1965
        %1967 = vmatprep.mubr.f32.mxu0 0.0
        %1968 = vmatmul.mubr.f32.gmra.mxu0 %v817
        %v1969 = vpop.f32.mrf.mxu0
        %v1970 = vadd.f32 0.0, %v1969
        %v1971 = vpop.f32.mrf.mxu0
        %v1972 = vadd.f32 0.0, %v1971
        %1973 = vmatprep.mubr.f32.mxu0 0.0
        %1974 = vmatmul.mubr.f32.gmra.mxu0 %v820
        %v1975 = vpop.f32.mrf.mxu0
        %v1976 = vadd.f32 0.0, %v1975
        %v1977 = vpop.f32.mrf.mxu0
        %v1978 = vadd.f32 0.0, %v1977
        %1979 = vmatprep.mubr.f32.mxu0 0.0
        %1980 = vmatmul.mubr.f32.gmra.mxu0 %v823
        %v1981 = vpop.f32.mrf.mxu0
        %v1982 = vadd.f32 0.0, %v1981
        %v1983 = vpop.f32.mrf.mxu0
        %v1984 = vadd.f32 0.0, %v1983
        %1985 = vmatprep.mubr.f32.mxu0 0.0
        %1986 = vmatmul.mubr.f32.gmra.mxu0 %v826
        %v1987 = vpop.f32.mrf.mxu0
        %v1988 = vadd.f32 0.0, %v1987
        %v1989 = vpop.f32.mrf.mxu0
        %v1990 = vadd.f32 0.0, %v1989
        %1991 = vmatprep.mubr.f32.mxu0 0.0
        %1992 = vmatmul.mubr.f32.gmra.mxu0 %v829
        %v1993 = vpop.f32.mrf.mxu0
        %v1994 = vadd.f32 0.0, %v1993
        %v1995 = vpop.f32.mrf.mxu0
        %v1996 = vadd.f32 0.0, %v1995
        %1997 = vmatprep.mubr.f32.mxu0 0.0
        %1998 = vmatmul.mubr.f32.gmra.mxu0 %v832
        %v1999 = vpop.f32.mrf.mxu0
        %v2000 = vadd.f32 0.0, %v1999
        %v2001 = vpop.f32.mrf.mxu0
        %v2002 = vadd.f32 0.0, %v2001
        %2003 = vmatprep.mubr.f32.mxu0 0.0
        %2004 = vmatmul.mubr.f32.gmra.mxu0 %v835
        %v2005 = vpop.f32.mrf.mxu0
        %v2006 = vadd.f32 0.0, %v2005
        %v2007 = vpop.f32.mrf.mxu0
        %v2008 = vadd.f32 0.0, %v2007
        %2009 = vmatprep.mubr.f32.mxu0 0.0
        %2010 = vmatmul.mubr.f32.gmra.mxu0 %v838
        %v2011 = vpop.f32.mrf.mxu0
        %v2012 = vadd.f32 0.0, %v2011
        %v2013 = vpop.f32.mrf.mxu0
        %v2014 = vadd.f32 0.0, %v2013
        %2015 = vmatprep.mubr.f32.mxu0 0.0
        %2016 = vmatmul.mubr.f32.gmra.mxu0 %v841
        %v2017 = vpop.f32.mrf.mxu0
        %v2018 = vadd.f32 0.0, %v2017
        %v2019 = vpop.f32.mrf.mxu0
        %v2020 = vadd.f32 0.0, %v2019
        %2021 = vmatprep.mubr.f32.mxu0 0.0
        %2022 = vmatmul.mubr.f32.gmra.mxu0 %v844
        %v2023 = vpop.f32.mrf.mxu0
        %v2024 = vadd.f32 0.0, %v2023
        %v2025 = vpop.f32.mrf.mxu0
        %v2026 = vadd.f32 0.0, %v2025
        %2027 = vmatprep.mubr.f32.mxu0 0.0
        %2028 = vmatmul.mubr.f32.gmra.mxu0 %v847
        %v2029 = vpop.f32.mrf.mxu0
        %v2030 = vadd.f32 0.0, %v2029
        %v2031 = vpop.f32.mrf.mxu0
        %v2032 = vadd.f32 0.0, %v2031
        %2033 = vmatprep.mubr.f32.mxu0 0.0
        %2034 = vmatmul.mubr.f32.gmra.mxu0 %v850
        %v2035 = vpop.f32.mrf.mxu0
        %v2036 = vadd.f32 0.0, %v2035
        %v2037 = vpop.f32.mrf.mxu0
        %v2038 = vadd.f32 0.0, %v2037
        %2039 = vmatprep.mubr.f32.mxu0 0.0
        %2040 = vmatmul.mubr.f32.gmra.mxu0 %v853
        %v2041 = vpop.f32.mrf.mxu0
        %v2042 = vadd.f32 0.0, %v2041
        %v2043 = vpop.f32.mrf.mxu0
        %v2044 = vadd.f32 0.0, %v2043
        %2045 = vmatprep.mubr.f32.mxu0 0.0
        %2046 = vmatmul.mubr.f32.gmra.mxu0 %v856
        %v2047 = vpop.f32.mrf.mxu0
        %v2048 = vadd.f32 0.0, %v2047
        %v2049 = vpop.f32.mrf.mxu0
        %v2050 = vadd.f32 0.0, %v2049
        %2051 = vmatprep.mubr.f32.mxu0 0.0
        %2052 = vmatmul.mubr.f32.gmra.mxu0 %v859
        %v2053 = vpop.f32.mrf.mxu0
        %v2054 = vadd.f32 0.0, %v2053
        %v2055 = vpop.f32.mrf.mxu0
        %v2056 = vadd.f32 0.0, %v2055
        %2057 = vmatprep.mubr.f32.mxu0 0.0
        %2058 = vmatmul.mubr.f32.gmra.mxu0 %v862
        %v2059 = vpop.f32.mrf.mxu0
        %v2060 = vadd.f32 0.0, %v2059
        %v2061 = vpop.f32.mrf.mxu0
        %v2062 = vadd.f32 0.0, %v2061
        %2063 = vmatprep.mubr.f32.mxu0 0.0
        %2064 = vmatmul.mubr.f32.gmra.mxu0 %v865
        %v2065 = vpop.f32.mrf.mxu0
        %v2066 = vadd.f32 0.0, %v2065
        %v2067 = vpop.f32.mrf.mxu0
        %v2068 = vadd.f32 0.0, %v2067
        %2069 = vmatprep.mubr.f32.mxu0 0.0
        %2070 = vmatmul.mubr.f32.gmra.mxu0 %v868
        %v2071 = vpop.f32.mrf.mxu0
        %v2072 = vadd.f32 0.0, %v2071
        %v2073 = vpop.f32.mrf.mxu0
        %v2074 = vadd.f32 0.0, %v2073
        %2075 = vmatprep.mubr.f32.mxu0 0.0
        %2076 = vmatmul.mubr.f32.gmra.mxu0 %v871
        %v2077 = vpop.f32.mrf.mxu0
        %v2078 = vadd.f32 0.0, %v2077
        %v2079 = vpop.f32.mrf.mxu0
        %v2080 = vadd.f32 0.0, %v2079
        %2081 = vmatprep.mubr.f32.mxu0 0.0
        %2082 = vmatmul.mubr.f32.gmra.mxu0 %v874
        %v2083 = vpop.f32.mrf.mxu0
        %v2084 = vadd.f32 0.0, %v2083
        %v2085 = vpop.f32.mrf.mxu0
        %v2086 = vadd.f32 0.0, %v2085
        %2087 = vmatprep.mubr.f32.mxu0 0.0
        %2088 = vmatmul.mubr.f32.gmra.mxu0 %v877
        %v2089 = vpop.f32.mrf.mxu0
        %v2090 = vadd.f32 0.0, %v2089
        %v2091 = vpop.f32.mrf.mxu0
        %v2092 = vadd.f32 0.0, %v2091
        %2093 = vmatprep.mubr.f32.mxu0 0.0
        %2094 = vmatmul.mubr.f32.gmra.mxu0 %v880
        %v2095 = vpop.f32.mrf.mxu0
        %v2096 = vadd.f32 0.0, %v2095
        %v2097 = vpop.f32.mrf.mxu0
        %v2098 = vadd.f32 0.0, %v2097
        %2099 = vmatprep.mubr.f32.mxu0 0.0
        %2100 = vmatmul.mubr.f32.gmra.mxu0 %v883
        %v2101 = vpop.f32.mrf.mxu0
        %v2102 = vadd.f32 0.0, %v2101
        %v2103 = vpop.f32.mrf.mxu0
        %v2104 = vadd.f32 0.0, %v2103
        %2105 = vmatprep.mubr.f32.mxu0 0.0
        %2106 = vmatmul.mubr.f32.gmra.mxu0 %v886
        %v2107 = vpop.f32.mrf.mxu0
        %v2108 = vadd.f32 0.0, %v2107
        %v2109 = vpop.f32.mrf.mxu0
        %v2110 = vadd.f32 0.0, %v2109
        %2111 = vmatprep.mubr.f32.mxu0 0.0
        %2112 = vmatmul.mubr.f32.gmra.mxu0 %v889
        %v2113 = vpop.f32.mrf.mxu0
        %v2114 = vadd.f32 0.0, %v2113
        %v2115 = vpop.f32.mrf.mxu0
        %v2116 = vadd.f32 0.0, %v2115
        %2117 = vmatprep.mubr.f32.mxu0 0.0
        %2118 = vmatmul.mubr.f32.gmra.mxu0 %v892
        %v2119 = vpop.f32.mrf.mxu0
        %v2120 = vadd.f32 0.0, %v2119
        %v2121 = vpop.f32.mrf.mxu0
        %v2122 = vadd.f32 0.0, %v2121
        %2123 = vmatprep.mubr.f32.mxu0 0.0
        %2124 = vmatmul.mubr.f32.gmra.mxu0 %v895
        %v2125 = vpop.f32.mrf.mxu0
        %v2126 = vadd.f32 0.0, %v2125
        %v2127 = vpop.f32.mrf.mxu0
        %v2128 = vadd.f32 0.0, %v2127
        %2129 = vmatprep.mubr.f32.mxu0 0.0
        %2130 = vmatmul.mubr.f32.gmra.mxu0 %v898
        %v2131 = vpop.f32.mrf.mxu0
        %v2132 = vadd.f32 0.0, %v2131
        %v2133 = vpop.f32.mrf.mxu0
        %v2134 = vadd.f32 0.0, %v2133
        %2135 = vmatprep.mubr.f32.mxu0 0.0
        %2136 = vmatmul.mubr.f32.gmra.mxu0 %v901
        %v2137 = vpop.f32.mrf.mxu0
        %v2138 = vadd.f32 0.0, %v2137
        %v2139 = vpop.f32.mrf.mxu0
        %v2140 = vadd.f32 0.0, %v2139
        %2141 = vmatprep.mubr.f32.mxu0 0.0
        %2142 = vmatmul.mubr.f32.gmra.mxu0 %v904
        %v2143 = vpop.f32.mrf.mxu0
        %v2144 = vadd.f32 0.0, %v2143
        %v2145 = vpop.f32.mrf.mxu0
        %v2146 = vadd.f32 0.0, %v2145
        %2147 = vmatprep.mubr.f32.mxu0 0.0
        %2148 = vmatmul.mubr.f32.gmra.mxu0 %v907
        %v2149 = vpop.f32.mrf.mxu0
        %v2150 = vadd.f32 0.0, %v2149
        %v2151 = vpop.f32.mrf.mxu0
        %v2152 = vadd.f32 0.0, %v2151
        %2153 = vdwg.mxu0
        %2154 = vst [vmem:[#allocation2 + $0x600] sm:$0xff] %v1964
        %2155 = vst.msk [vmem:[#allocation2 + $0x608] sm:$0xff] %vm1167, %v1966
        %2156 = vst [vmem:[#allocation2 + $0x610] sm:$0xff] %v1970
        %2157 = vst.msk [vmem:[#allocation2 + $0x618] sm:$0xff] %vm1167, %v1972
        %2158 = vst [vmem:[#allocation2 + $0x620] sm:$0xff] %v1976
        %2159 = vst.msk [vmem:[#allocation2 + $0x628] sm:$0xff] %vm1167, %v1978
        %2160 = vst [vmem:[#allocation2 + $0x630] sm:$0xff] %v1982
        %2161 = vst.msk [vmem:[#allocation2 + $0x638] sm:$0xff] %vm1167, %v1984
        %2162 = vst [vmem:[#allocation2 + $0x640] sm:$0xff] %v1988
        %2163 = vst.msk [vmem:[#allocation2 + $0x648] sm:$0xff] %vm1167, %v1990
        %2164 = vst [vmem:[#allocation2 + $0x650] sm:$0xff] %v1994
        %2165 = vst.msk [vmem:[#allocation2 + $0x658] sm:$0xff] %vm1167, %v1996
        %2166 = vst [vmem:[#allocation2 + $0x660] sm:$0xff] %v2000
        %2167 = vst.msk [vmem:[#allocation2 + $0x668] sm:$0xff] %vm1167, %v2002
        %2168 = vst [vmem:[#allocation2 + $0x670] sm:$0xff] %v2006
        %2169 = vst.msk [vmem:[#allocation2 + $0x678] sm:$0xff] %vm1167, %v2008
        %2170 = vst [vmem:[#allocation2 + $0x680] sm:$0xff] %v2012
        %2171 = vst.msk [vmem:[#allocation2 + $0x688] sm:$0xff] %vm1167, %v2014
        %2172 = vst [vmem:[#allocation2 + $0x690] sm:$0xff] %v2018
        %2173 = vst.msk [vmem:[#allocation2 + $0x698] sm:$0xff] %vm1167, %v2020
        %2174 = vst [vmem:[#allocation2 + $0x6a0] sm:$0xff] %v2024
        %2175 = vst.msk [vmem:[#allocation2 + $0x6a8] sm:$0xff] %vm1167, %v2026
        %2176 = vst [vmem:[#allocation2 + $0x6b0] sm:$0xff] %v2030
        %2177 = vst.msk [vmem:[#allocation2 + $0x6b8] sm:$0xff] %vm1167, %v2032
        %2178 = vst [vmem:[#allocation2 + $0x6c0] sm:$0xff] %v2036
        %2179 = vst.msk [vmem:[#allocation2 + $0x6c8] sm:$0xff] %vm1167, %v2038
        %2180 = vst [vmem:[#allocation2 + $0x6d0] sm:$0xff] %v2042
        %2181 = vst.msk [vmem:[#allocation2 + $0x6d8] sm:$0xff] %vm1167, %v2044
        %2182 = vst [vmem:[#allocation2 + $0x6e0] sm:$0xff] %v2048
        %2183 = vst.msk [vmem:[#allocation2 + $0x6e8] sm:$0xff] %vm1167, %v2050
        %2184 = vst [vmem:[#allocation2 + $0x6f0] sm:$0xff] %v2054
        %2185 = vst.msk [vmem:[#allocation2 + $0x6f8] sm:$0xff] %vm1167, %v2056
        %2186 = vst [vmem:[#allocation2 + $0x700] sm:$0xff] %v2060
        %2187 = vst.msk [vmem:[#allocation2 + $0x708] sm:$0xff] %vm1167, %v2062
        %2188 = vst [vmem:[#allocation2 + $0x710] sm:$0xff] %v2066
        %2189 = vst.msk [vmem:[#allocation2 + $0x718] sm:$0xff] %vm1167, %v2068
        %2190 = vst [vmem:[#allocation2 + $0x720] sm:$0xff] %v2072
        %2191 = vst.msk [vmem:[#allocation2 + $0x728] sm:$0xff] %vm1167, %v2074
        %2192 = vst [vmem:[#allocation2 + $0x730] sm:$0xff] %v2078
        %2193 = vst.msk [vmem:[#allocation2 + $0x738] sm:$0xff] %vm1167, %v2080
        %2194 = vst [vmem:[#allocation2 + $0x740] sm:$0xff] %v2084
        %2195 = vst.msk [vmem:[#allocation2 + $0x748] sm:$0xff] %vm1167, %v2086
        %2196 = vst [vmem:[#allocation2 + $0x750] sm:$0xff] %v2090
        %2197 = vst.msk [vmem:[#allocation2 + $0x758] sm:$0xff] %vm1167, %v2092
        %2198 = vst [vmem:[#allocation2 + $0x760] sm:$0xff] %v2096
        %2199 = vst.msk [vmem:[#allocation2 + $0x768] sm:$0xff] %vm1167, %v2098
        %2200 = vst [vmem:[#allocation2 + $0x770] sm:$0xff] %v2102
        %2201 = vst.msk [vmem:[#allocation2 + $0x778] sm:$0xff] %vm1167, %v2104
        %2202 = vst [vmem:[#allocation2 + $0x780] sm:$0xff] %v2108
        %2203 = vst.msk [vmem:[#allocation2 + $0x788] sm:$0xff] %vm1167, %v2110
        %2204 = vst [vmem:[#allocation2 + $0x790] sm:$0xff] %v2114
        %2205 = vst.msk [vmem:[#allocation2 + $0x798] sm:$0xff] %vm1167, %v2116
        %2206 = vst [vmem:[#allocation2 + $0x7a0] sm:$0xff] %v2120
        %2207 = vst.msk [vmem:[#allocation2 + $0x7a8] sm:$0xff] %vm1167, %v2122
        %2208 = vst [vmem:[#allocation2 + $0x7b0] sm:$0xff] %v2126
        %2209 = vst.msk [vmem:[#allocation2 + $0x7b8] sm:$0xff] %vm1167, %v2128
        %2210 = vst [vmem:[#allocation2 + $0x7c0] sm:$0xff] %v2132
        %2211 = vst.msk [vmem:[#allocation2 + $0x7c8] sm:$0xff] %vm1167, %v2134
        %2212 = vst [vmem:[#allocation2 + $0x7d0] sm:$0xff] %v2138
        %2213 = vst.msk [vmem:[#allocation2 + $0x7d8] sm:$0xff] %vm1167, %v2140
        %2214 = vst [vmem:[#allocation2 + $0x7e0] sm:$0xff] %v2144
        %2215 = vst.msk [vmem:[#allocation2 + $0x7e8] sm:$0xff] %vm1167, %v2146
        %2216 = vst [vmem:[#allocation2 + $0x7f0] sm:$0xff] %v2150
        %2217 = vst.msk [vmem:[#allocation2 + $0x7f8] sm:$0xff] %vm1167, %v2152
        %v2218 = vld [vmem:[%s1 + $0x100] sm:$0xff]
        %v2219 = vld [vmem:[%s1 + $0x108] sm:$0xff]
        %v2220 = vld [vmem:[%s1 + $0x110] sm:$0xff]
        %v2221 = vld [vmem:[%s1 + $0x118] sm:$0xff]
        %v2222 = vld [vmem:[%s1 + $0x120] sm:$0xff]
        %v2223 = vld [vmem:[%s1 + $0x128] sm:$0xff]
        %v2224 = vld [vmem:[%s1 + $0x130] sm:$0xff]
        %v2225 = vld [vmem:[%s1 + $0x138] sm:$0xff]
        %2226 = vmatprep.subr.mxu0 0.0
        %2227 = vmatpush1.msra.mxu0 0.0
        %2228 = vmatprep.subr.mxu0 0.0
        %2229 = vmatpush1.msra.mxu0 0.0
        %2230 = vmatprep.subr.mxu0 0.0
        %2231 = vmatpush1.msra.mxu0 0.0
        %2232 = vmatprep.subr.mxu0 0.0
        %2233 = vmatpush1.msra.mxu0 0.0
        %2234 = vmatprep.subr.mxu0 0.0
        %2235 = vmatpush1.msra.mxu0 0.0
        %2236 = vmatprep.subr.mxu0 0.0
        %2237 = vmatpush1.msra.mxu0 0.0
        %2238 = vmatprep.subr.mxu0 0.0
        %2239 = vmatpush1.msra.mxu0 0.0
        %2240 = vmatprep.subr.mxu0 0.0
        %2241 = vmatpush1.msra.mxu0 0.0
        %2242 = vmatprep.subr.mxu0 0.0
        %2243 = vmatpush1.msra.mxu0 0.0
        %2244 = vmatprep.subr.mxu0 0.0
        %2245 = vmatpush1.msra.mxu0 0.0
        %2246 = vmatprep.subr.mxu0 0.0
        %2247 = vmatpush1.msra.mxu0 0.0
        %2248 = vmatprep.subr.mxu0 0.0
        %2249 = vmatpush1.msra.mxu0 0.0
        %2250 = vmatprep.subr.mxu0 %v2225
        %2251 = vmatpush1.msra.mxu0 %v2224
        %2252 = vmatprep.subr.mxu0 %v2223
        %2253 = vmatpush1.msra.mxu0 %v2222
        %2254 = vmatprep.subr.mxu0 %v2221
        %2255 = vmatpush1.msra.mxu0 %v2220
        %2256 = vmatprep.subr.mxu0 %v2219
        %2257 = vmatpush1.msra.mxu0 %v2218
        %2258 = vmatprep.subr.mxu0 0.0
        %2259 = vmatpush2.msra.mxu0 0.0
        %2260 = vmatprep.subr.mxu0 0.0
        %2261 = vmatpush2.msra.mxu0 0.0
        %2262 = vmatprep.subr.mxu0 0.0
        %2263 = vmatpush2.msra.mxu0 0.0
        %2264 = vmatprep.subr.mxu0 0.0
        %2265 = vmatpush2.msra.mxu0 0.0
        %2266 = vmatprep.subr.mxu0 0.0
        %2267 = vmatpush2.msra.mxu0 0.0
        %2268 = vmatprep.subr.mxu0 0.0
        %2269 = vmatpush2.msra.mxu0 0.0
        %2270 = vmatprep.subr.mxu0 0.0
        %2271 = vmatpush2.msra.mxu0 0.0
        %2272 = vmatprep.subr.mxu0 0.0
        %2273 = vmatpush2.msra.mxu0 0.0
        %2274 = vmatprep.subr.mxu0 0.0
        %2275 = vmatpush2.msra.mxu0 0.0
        %2276 = vmatprep.subr.mxu0 0.0
        %2277 = vmatpush2.msra.mxu0 0.0
        %2278 = vmatprep.subr.mxu0 0.0
        %2279 = vmatpush2.msra.mxu0 0.0
        %2280 = vmatprep.subr.mxu0 0.0
        %2281 = vmatpush2.msra.mxu0 0.0
        %2282 = vmatprep.subr.mxu0 0.0
        %2283 = vmatpush2.msra.mxu0 0.0
        %2284 = vmatprep.subr.mxu0 0.0
        %2285 = vmatpush2.msra.mxu0 0.0
        %2286 = vmatprep.subr.mxu0 0.0
        %2287 = vmatpush2.msra.mxu0 0.0
        %2288 = vmatprep.subr.mxu0 0.0
        %2289 = vmatpush2.msra.mxu0 0.0
        %2290 = vmatprep.mubr.f32.mxu0 0.0
        %2291 = vmatmul.mubr.f32.gmra.mxu0 %v814
        %v2292 = vpop.f32.mrf.mxu0
        %v2293 = vadd.f32 0.0, %v2292
        %v2294 = vpop.f32.mrf.mxu0
        %v2295 = vadd.f32 0.0, %v2294
        %2296 = vmatprep.mubr.f32.mxu0 0.0
        %2297 = vmatmul.mubr.f32.gmra.mxu0 %v817
        %v2298 = vpop.f32.mrf.mxu0
        %v2299 = vadd.f32 0.0, %v2298
        %v2300 = vpop.f32.mrf.mxu0
        %v2301 = vadd.f32 0.0, %v2300
        %2302 = vmatprep.mubr.f32.mxu0 0.0
        %2303 = vmatmul.mubr.f32.gmra.mxu0 %v820
        %v2304 = vpop.f32.mrf.mxu0
        %v2305 = vadd.f32 0.0, %v2304
        %v2306 = vpop.f32.mrf.mxu0
        %v2307 = vadd.f32 0.0, %v2306
        %2308 = vmatprep.mubr.f32.mxu0 0.0
        %2309 = vmatmul.mubr.f32.gmra.mxu0 %v823
        %v2310 = vpop.f32.mrf.mxu0
        %v2311 = vadd.f32 0.0, %v2310
        %v2312 = vpop.f32.mrf.mxu0
        %v2313 = vadd.f32 0.0, %v2312
        %2314 = vmatprep.mubr.f32.mxu0 0.0
        %2315 = vmatmul.mubr.f32.gmra.mxu0 %v826
        %v2316 = vpop.f32.mrf.mxu0
        %v2317 = vadd.f32 0.0, %v2316
        %v2318 = vpop.f32.mrf.mxu0
        %v2319 = vadd.f32 0.0, %v2318
        %2320 = vmatprep.mubr.f32.mxu0 0.0
        %2321 = vmatmul.mubr.f32.gmra.mxu0 %v829
        %v2322 = vpop.f32.mrf.mxu0
        %v2323 = vadd.f32 0.0, %v2322
        %v2324 = vpop.f32.mrf.mxu0
        %v2325 = vadd.f32 0.0, %v2324
        %2326 = vmatprep.mubr.f32.mxu0 0.0
        %2327 = vmatmul.mubr.f32.gmra.mxu0 %v832
        %v2328 = vpop.f32.mrf.mxu0
        %v2329 = vadd.f32 0.0, %v2328
        %v2330 = vpop.f32.mrf.mxu0
        %v2331 = vadd.f32 0.0, %v2330
        %2332 = vmatprep.mubr.f32.mxu0 0.0
        %2333 = vmatmul.mubr.f32.gmra.mxu0 %v835
        %v2334 = vpop.f32.mrf.mxu0
        %v2335 = vadd.f32 0.0, %v2334
        %v2336 = vpop.f32.mrf.mxu0
        %v2337 = vadd.f32 0.0, %v2336
        %2338 = vmatprep.mubr.f32.mxu0 0.0
        %2339 = vmatmul.mubr.f32.gmra.mxu0 %v838
        %v2340 = vpop.f32.mrf.mxu0
        %v2341 = vadd.f32 0.0, %v2340
        %v2342 = vpop.f32.mrf.mxu0
        %v2343 = vadd.f32 0.0, %v2342
        %2344 = vmatprep.mubr.f32.mxu0 0.0
        %2345 = vmatmul.mubr.f32.gmra.mxu0 %v841
        %v2346 = vpop.f32.mrf.mxu0
        %v2347 = vadd.f32 0.0, %v2346
        %v2348 = vpop.f32.mrf.mxu0
        %v2349 = vadd.f32 0.0, %v2348
        %2350 = vmatprep.mubr.f32.mxu0 0.0
        %2351 = vmatmul.mubr.f32.gmra.mxu0 %v844
        %v2352 = vpop.f32.mrf.mxu0
        %v2353 = vadd.f32 0.0, %v2352
        %v2354 = vpop.f32.mrf.mxu0
        %v2355 = vadd.f32 0.0, %v2354
        %2356 = vmatprep.mubr.f32.mxu0 0.0
        %2357 = vmatmul.mubr.f32.gmra.mxu0 %v847
        %v2358 = vpop.f32.mrf.mxu0
        %v2359 = vadd.f32 0.0, %v2358
        %v2360 = vpop.f32.mrf.mxu0
        %v2361 = vadd.f32 0.0, %v2360
        %2362 = vmatprep.mubr.f32.mxu0 0.0
        %2363 = vmatmul.mubr.f32.gmra.mxu0 %v850
        %v2364 = vpop.f32.mrf.mxu0
        %v2365 = vadd.f32 0.0, %v2364
        %v2366 = vpop.f32.mrf.mxu0
        %v2367 = vadd.f32 0.0, %v2366
        %2368 = vmatprep.mubr.f32.mxu0 0.0
        %2369 = vmatmul.mubr.f32.gmra.mxu0 %v853
        %v2370 = vpop.f32.mrf.mxu0
        %v2371 = vadd.f32 0.0, %v2370
        %v2372 = vpop.f32.mrf.mxu0
        %v2373 = vadd.f32 0.0, %v2372
        %2374 = vmatprep.mubr.f32.mxu0 0.0
        %2375 = vmatmul.mubr.f32.gmra.mxu0 %v856
        %v2376 = vpop.f32.mrf.mxu0
        %v2377 = vadd.f32 0.0, %v2376
        %v2378 = vpop.f32.mrf.mxu0
        %v2379 = vadd.f32 0.0, %v2378
        %2380 = vmatprep.mubr.f32.mxu0 0.0
        %2381 = vmatmul.mubr.f32.gmra.mxu0 %v859
        %v2382 = vpop.f32.mrf.mxu0
        %v2383 = vadd.f32 0.0, %v2382
        %v2384 = vpop.f32.mrf.mxu0
        %v2385 = vadd.f32 0.0, %v2384
        %2386 = vmatprep.mubr.f32.mxu0 0.0
        %2387 = vmatmul.mubr.f32.gmra.mxu0 %v862
        %v2388 = vpop.f32.mrf.mxu0
        %v2389 = vadd.f32 0.0, %v2388
        %v2390 = vpop.f32.mrf.mxu0
        %v2391 = vadd.f32 0.0, %v2390
        %2392 = vmatprep.mubr.f32.mxu0 0.0
        %2393 = vmatmul.mubr.f32.gmra.mxu0 %v865
        %v2394 = vpop.f32.mrf.mxu0
        %v2395 = vadd.f32 0.0, %v2394
        %v2396 = vpop.f32.mrf.mxu0
        %v2397 = vadd.f32 0.0, %v2396
        %2398 = vmatprep.mubr.f32.mxu0 0.0
        %2399 = vmatmul.mubr.f32.gmra.mxu0 %v868
        %v2400 = vpop.f32.mrf.mxu0
        %v2401 = vadd.f32 0.0, %v2400
        %v2402 = vpop.f32.mrf.mxu0
        %v2403 = vadd.f32 0.0, %v2402
        %2404 = vmatprep.mubr.f32.mxu0 0.0
        %2405 = vmatmul.mubr.f32.gmra.mxu0 %v871
        %v2406 = vpop.f32.mrf.mxu0
        %v2407 = vadd.f32 0.0, %v2406
        %v2408 = vpop.f32.mrf.mxu0
        %v2409 = vadd.f32 0.0, %v2408
        %2410 = vmatprep.mubr.f32.mxu0 0.0
        %2411 = vmatmul.mubr.f32.gmra.mxu0 %v874
        %v2412 = vpop.f32.mrf.mxu0
        %v2413 = vadd.f32 0.0, %v2412
        %v2414 = vpop.f32.mrf.mxu0
        %v2415 = vadd.f32 0.0, %v2414
        %2416 = vmatprep.mubr.f32.mxu0 0.0
        %2417 = vmatmul.mubr.f32.gmra.mxu0 %v877
        %v2418 = vpop.f32.mrf.mxu0
        %v2419 = vadd.f32 0.0, %v2418
        %v2420 = vpop.f32.mrf.mxu0
        %v2421 = vadd.f32 0.0, %v2420
        %2422 = vmatprep.mubr.f32.mxu0 0.0
        %2423 = vmatmul.mubr.f32.gmra.mxu0 %v880
        %v2424 = vpop.f32.mrf.mxu0
        %v2425 = vadd.f32 0.0, %v2424
        %v2426 = vpop.f32.mrf.mxu0
        %v2427 = vadd.f32 0.0, %v2426
        %2428 = vmatprep.mubr.f32.mxu0 0.0
        %2429 = vmatmul.mubr.f32.gmra.mxu0 %v883
        %v2430 = vpop.f32.mrf.mxu0
        %v2431 = vadd.f32 0.0, %v2430
        %v2432 = vpop.f32.mrf.mxu0
        %v2433 = vadd.f32 0.0, %v2432
        %2434 = vmatprep.mubr.f32.mxu0 0.0
        %2435 = vmatmul.mubr.f32.gmra.mxu0 %v886
        %v2436 = vpop.f32.mrf.mxu0
        %v2437 = vadd.f32 0.0, %v2436
        %v2438 = vpop.f32.mrf.mxu0
        %v2439 = vadd.f32 0.0, %v2438
        %2440 = vmatprep.mubr.f32.mxu0 0.0
        %2441 = vmatmul.mubr.f32.gmra.mxu0 %v889
        %v2442 = vpop.f32.mrf.mxu0
        %v2443 = vadd.f32 0.0, %v2442
        %v2444 = vpop.f32.mrf.mxu0
        %v2445 = vadd.f32 0.0, %v2444
        %2446 = vmatprep.mubr.f32.mxu0 0.0
        %2447 = vmatmul.mubr.f32.gmra.mxu0 %v892
        %v2448 = vpop.f32.mrf.mxu0
        %v2449 = vadd.f32 0.0, %v2448
        %v2450 = vpop.f32.mrf.mxu0
        %v2451 = vadd.f32 0.0, %v2450
        %2452 = vmatprep.mubr.f32.mxu0 0.0
        %2453 = vmatmul.mubr.f32.gmra.mxu0 %v895
        %v2454 = vpop.f32.mrf.mxu0
        %v2455 = vadd.f32 0.0, %v2454
        %v2456 = vpop.f32.mrf.mxu0
        %v2457 = vadd.f32 0.0, %v2456
        %2458 = vmatprep.mubr.f32.mxu0 0.0
        %2459 = vmatmul.mubr.f32.gmra.mxu0 %v898
        %v2460 = vpop.f32.mrf.mxu0
        %v2461 = vadd.f32 0.0, %v2460
        %v2462 = vpop.f32.mrf.mxu0
        %v2463 = vadd.f32 0.0, %v2462
        %2464 = vmatprep.mubr.f32.mxu0 0.0
        %2465 = vmatmul.mubr.f32.gmra.mxu0 %v901
        %v2466 = vpop.f32.mrf.mxu0
        %v2467 = vadd.f32 0.0, %v2466
        %v2468 = vpop.f32.mrf.mxu0
        %v2469 = vadd.f32 0.0, %v2468
        %2470 = vmatprep.mubr.f32.mxu0 0.0
        %2471 = vmatmul.mubr.f32.gmra.mxu0 %v904
        %v2472 = vpop.f32.mrf.mxu0
        %v2473 = vadd.f32 0.0, %v2472
        %v2474 = vpop.f32.mrf.mxu0
        %v2475 = vadd.f32 0.0, %v2474
        %2476 = vmatprep.mubr.f32.mxu0 0.0
        %2477 = vmatmul.mubr.f32.gmra.mxu0 %v907
        %v2478 = vpop.f32.mrf.mxu0
        %v2479 = vadd.f32 0.0, %v2478
        %v2480 = vpop.f32.mrf.mxu0
        %v2481 = vadd.f32 0.0, %v2480
        %2482 = vdwg.mxu0
        %2483 = vst [vmem:[#allocation2 + $0x800] sm:$0xff] %v2293
        %2484 = vst.msk [vmem:[#allocation2 + $0x808] sm:$0xff] %vm1167, %v2295
        %2485 = vst [vmem:[#allocation2 + $0x810] sm:$0xff] %v2299
        %2486 = vst.msk [vmem:[#allocation2 + $0x818] sm:$0xff] %vm1167, %v2301
        %2487 = vst [vmem:[#allocation2 + $0x820] sm:$0xff] %v2305
        %2488 = vst.msk [vmem:[#allocation2 + $0x828] sm:$0xff] %vm1167, %v2307
        %2489 = vst [vmem:[#allocation2 + $0x830] sm:$0xff] %v2311
        %2490 = vst.msk [vmem:[#allocation2 + $0x838] sm:$0xff] %vm1167, %v2313
        %2491 = vst [vmem:[#allocation2 + $0x840] sm:$0xff] %v2317
        %2492 = vst.msk [vmem:[#allocation2 + $0x848] sm:$0xff] %vm1167, %v2319
        %2493 = vst [vmem:[#allocation2 + $0x850] sm:$0xff] %v2323
        %2494 = vst.msk [vmem:[#allocation2 + $0x858] sm:$0xff] %vm1167, %v2325
        %2495 = vst [vmem:[#allocation2 + $0x860] sm:$0xff] %v2329
        %2496 = vst.msk [vmem:[#allocation2 + $0x868] sm:$0xff] %vm1167, %v2331
        %2497 = vst [vmem:[#allocation2 + $0x870] sm:$0xff] %v2335
        %2498 = vst.msk [vmem:[#allocation2 + $0x878] sm:$0xff] %vm1167, %v2337
        %2499 = vst [vmem:[#allocation2 + $0x880] sm:$0xff] %v2341
        %2500 = vst.msk [vmem:[#allocation2 + $0x888] sm:$0xff] %vm1167, %v2343
        %2501 = vst [vmem:[#allocation2 + $0x890] sm:$0xff] %v2347
        %2502 = vst.msk [vmem:[#allocation2 + $0x898] sm:$0xff] %vm1167, %v2349
        %2503 = vst [vmem:[#allocation2 + $0x8a0] sm:$0xff] %v2353
        %2504 = vst.msk [vmem:[#allocation2 + $0x8a8] sm:$0xff] %vm1167, %v2355
        %2505 = vst [vmem:[#allocation2 + $0x8b0] sm:$0xff] %v2359
        %2506 = vst.msk [vmem:[#allocation2 + $0x8b8] sm:$0xff] %vm1167, %v2361
        %2507 = vst [vmem:[#allocation2 + $0x8c0] sm:$0xff] %v2365
        %2508 = vst.msk [vmem:[#allocation2 + $0x8c8] sm:$0xff] %vm1167, %v2367
        %2509 = vst [vmem:[#allocation2 + $0x8d0] sm:$0xff] %v2371
        %2510 = vst.msk [vmem:[#allocation2 + $0x8d8] sm:$0xff] %vm1167, %v2373
        %2511 = vst [vmem:[#allocation2 + $0x8e0] sm:$0xff] %v2377
        %2512 = vst.msk [vmem:[#allocation2 + $0x8e8] sm:$0xff] %vm1167, %v2379
        %2513 = vst [vmem:[#allocation2 + $0x8f0] sm:$0xff] %v2383
        %2514 = vst.msk [vmem:[#allocation2 + $0x8f8] sm:$0xff] %vm1167, %v2385
        %2515 = vst [vmem:[#allocation2 + $0x900] sm:$0xff] %v2389
        %2516 = vst.msk [vmem:[#allocation2 + $0x908] sm:$0xff] %vm1167, %v2391
        %2517 = vst [vmem:[#allocation2 + $0x910] sm:$0xff] %v2395
        %2518 = vst.msk [vmem:[#allocation2 + $0x918] sm:$0xff] %vm1167, %v2397
        %2519 = vst [vmem:[#allocation2 + $0x920] sm:$0xff] %v2401
        %2520 = vst.msk [vmem:[#allocation2 + $0x928] sm:$0xff] %vm1167, %v2403
        %2521 = vst [vmem:[#allocation2 + $0x930] sm:$0xff] %v2407
        %2522 = vst.msk [vmem:[#allocation2 + $0x938] sm:$0xff] %vm1167, %v2409
        %2523 = vst [vmem:[#allocation2 + $0x940] sm:$0xff] %v2413
        %2524 = vst.msk [vmem:[#allocation2 + $0x948] sm:$0xff] %vm1167, %v2415
        %2525 = vst [vmem:[#allocation2 + $0x950] sm:$0xff] %v2419
        %2526 = vst.msk [vmem:[#allocation2 + $0x958] sm:$0xff] %vm1167, %v2421
        %2527 = vst [vmem:[#allocation2 + $0x960] sm:$0xff] %v2425
        %2528 = vst.msk [vmem:[#allocation2 + $0x968] sm:$0xff] %vm1167, %v2427
        %2529 = vst [vmem:[#allocation2 + $0x970] sm:$0xff] %v2431
        %2530 = vst.msk [vmem:[#allocation2 + $0x978] sm:$0xff] %vm1167, %v2433
        %2531 = vst [vmem:[#allocation2 + $0x980] sm:$0xff] %v2437
        %2532 = vst.msk [vmem:[#allocation2 + $0x988] sm:$0xff] %vm1167, %v2439
        %2533 = vst [vmem:[#allocation2 + $0x990] sm:$0xff] %v2443
        %2534 = vst.msk [vmem:[#allocation2 + $0x998] sm:$0xff] %vm1167, %v2445
        %2535 = vst [vmem:[#allocation2 + $0x9a0] sm:$0xff] %v2449
        %2536 = vst.msk [vmem:[#allocation2 + $0x9a8] sm:$0xff] %vm1167, %v2451
        %2537 = vst [vmem:[#allocation2 + $0x9b0] sm:$0xff] %v2455
        %2538 = vst.msk [vmem:[#allocation2 + $0x9b8] sm:$0xff] %vm1167, %v2457
        %2539 = vst [vmem:[#allocation2 + $0x9c0] sm:$0xff] %v2461
        %2540 = vst.msk [vmem:[#allocation2 + $0x9c8] sm:$0xff] %vm1167, %v2463
        %2541 = vst [vmem:[#allocation2 + $0x9d0] sm:$0xff] %v2467
        %2542 = vst.msk [vmem:[#allocation2 + $0x9d8] sm:$0xff] %vm1167, %v2469
        %2543 = vst [vmem:[#allocation2 + $0x9e0] sm:$0xff] %v2473
        %2544 = vst.msk [vmem:[#allocation2 + $0x9e8] sm:$0xff] %vm1167, %v2475
        %2545 = vst [vmem:[#allocation2 + $0x9f0] sm:$0xff] %v2479
        %2546 = vst.msk [vmem:[#allocation2 + $0x9f8] sm:$0xff] %vm1167, %v2481
        %v2547 = vld [vmem:[#allocation2] sm:$0xff]
        %v2548 = vld [vmem:[#allocation2 + $0x8] sm:$0xff]
        %v2549 = vld [vmem:[#allocation2 + $0x10] sm:$0xff]
        %v2550 = vld [vmem:[#allocation2 + $0x18] sm:$0xff]
        %v2551 = vld [vmem:[#allocation2 + $0x20] sm:$0xff]
        %v2552 = vld [vmem:[#allocation2 + $0x28] sm:$0xff]
        %v2553 = vld [vmem:[#allocation2 + $0x30] sm:$0xff]
        %v2554 = vld [vmem:[#allocation2 + $0x38] sm:$0xff]
        %v2555 = vld [vmem:[#allocation2 + $0x40] sm:$0xff]
        %v2556 = vld [vmem:[#allocation2 + $0x48] sm:$0xff]
        %v2557 = vld [vmem:[#allocation2 + $0x50] sm:$0xff]
        %v2558 = vld [vmem:[#allocation2 + $0x58] sm:$0xff]
        %v2559 = vld [vmem:[#allocation2 + $0x60] sm:$0xff]
        %v2560 = vld [vmem:[#allocation2 + $0x68] sm:$0xff]
        %v2561 = vld [vmem:[#allocation2 + $0x70] sm:$0xff]
        %v2562 = vld [vmem:[#allocation2 + $0x78] sm:$0xff]
        %v2563 = vld [vmem:[#allocation2 + $0x80] sm:$0xff]
        %v2564 = vld [vmem:[#allocation2 + $0x88] sm:$0xff]
        %v2565 = vld [vmem:[#allocation2 + $0x90] sm:$0xff]
        %v2566 = vld [vmem:[#allocation2 + $0x98] sm:$0xff]
        %v2567 = vld [vmem:[#allocation2 + $0xa0] sm:$0xff]
        %v2568 = vld [vmem:[#allocation2 + $0xa8] sm:$0xff]
        %v2569 = vld [vmem:[#allocation2 + $0xb0] sm:$0xff]
        %v2570 = vld [vmem:[#allocation2 + $0xb8] sm:$0xff]
        %v2571 = vld [vmem:[#allocation2 + $0xc0] sm:$0xff]
        %v2572 = vld [vmem:[#allocation2 + $0xc8] sm:$0xff]
        %v2573 = vld [vmem:[#allocation2 + $0xd0] sm:$0xff]
        %v2574 = vld [vmem:[#allocation2 + $0xd8] sm:$0xff]
        %v2575 = vld [vmem:[#allocation2 + $0xe0] sm:$0xff]
        %v2576 = vld [vmem:[#allocation2 + $0xe8] sm:$0xff]
        %v2577 = vld [vmem:[#allocation2 + $0xf0] sm:$0xff]
        %v2578 = vld [vmem:[#allocation2 + $0xf8] sm:$0xff]
        %v2579 = vld [vmem:[#allocation2 + $0x100] sm:$0xff]
        %v2580 = vld [vmem:[#allocation2 + $0x108] sm:$0xff]
        %v2581 = vld [vmem:[#allocation2 + $0x110] sm:$0xff]
        %v2582 = vld [vmem:[#allocation2 + $0x118] sm:$0xff]
        %v2583 = vld [vmem:[#allocation2 + $0x120] sm:$0xff]
        %v2584 = vld [vmem:[#allocation2 + $0x128] sm:$0xff]
        %v2585 = vld [vmem:[#allocation2 + $0x130] sm:$0xff]
        %v2586 = vld [vmem:[#allocation2 + $0x138] sm:$0xff]
        %v2587 = vld [vmem:[#allocation2 + $0x140] sm:$0xff]
        %v2588 = vld [vmem:[#allocation2 + $0x148] sm:$0xff]
        %v2589 = vld [vmem:[#allocation2 + $0x150] sm:$0xff]
        %v2590 = vld [vmem:[#allocation2 + $0x158] sm:$0xff]
        %v2591 = vld [vmem:[#allocation2 + $0x160] sm:$0xff]
        %v2592 = vld [vmem:[#allocation2 + $0x168] sm:$0xff]
        %v2593 = vld [vmem:[#allocation2 + $0x170] sm:$0xff]
        %v2594 = vld [vmem:[#allocation2 + $0x178] sm:$0xff]
        %v2595 = vld [vmem:[#allocation2 + $0x180] sm:$0xff]
        %v2596 = vld [vmem:[#allocation2 + $0x188] sm:$0xff]
        %v2597 = vld [vmem:[#allocation2 + $0x190] sm:$0xff]
        %v2598 = vld [vmem:[#allocation2 + $0x198] sm:$0xff]
        %v2599 = vld [vmem:[#allocation2 + $0x1a0] sm:$0xff]
        %v2600 = vld [vmem:[#allocation2 + $0x1a8] sm:$0xff]
        %v2601 = vld [vmem:[#allocation2 + $0x1b0] sm:$0xff]
        %v2602 = vld [vmem:[#allocation2 + $0x1b8] sm:$0xff]
        %v2603 = vld [vmem:[#allocation2 + $0x1c0] sm:$0xff]
        %v2604 = vld [vmem:[#allocation2 + $0x1c8] sm:$0xff]
        %v2605 = vld [vmem:[#allocation2 + $0x1d0] sm:$0xff]
        %v2606 = vld [vmem:[#allocation2 + $0x1d8] sm:$0xff]
        %v2607 = vld [vmem:[#allocation2 + $0x1e0] sm:$0xff]
        %v2608 = vld [vmem:[#allocation2 + $0x1e8] sm:$0xff]
        %v2609 = vld [vmem:[#allocation2 + $0x1f0] sm:$0xf]
        %v2610 = vld [vmem:[#allocation2 + $0x1f8] sm:$0xf]
        %v2611 = vld [vmem:[#allocation2 + $0x200] sm:$0xfe]
        %v2612 = vld [vmem:[#allocation2 + $0x208] sm:$0xfe]
        %v2613 = vld [vmem:[#allocation2 + $0x210] sm:$0xff]
        %v2614 = vld [vmem:[#allocation2 + $0x218] sm:$0xff]
        %v2615 = vld [vmem:[#allocation2 + $0x220] sm:$0xff]
        %v2616 = vld [vmem:[#allocation2 + $0x228] sm:$0xff]
        %v2617 = vld [vmem:[#allocation2 + $0x230] sm:$0xff]
        %v2618 = vld [vmem:[#allocation2 + $0x238] sm:$0xff]
        %v2619 = vld [vmem:[#allocation2 + $0x240] sm:$0xff]
        %v2620 = vld [vmem:[#allocation2 + $0x248] sm:$0xff]
        %v2621 = vld [vmem:[#allocation2 + $0x250] sm:$0xff]
        %v2622 = vld [vmem:[#allocation2 + $0x258] sm:$0xff]
        %v2623 = vld [vmem:[#allocation2 + $0x260] sm:$0xff]
        %v2624 = vld [vmem:[#allocation2 + $0x268] sm:$0xff]
        %v2625 = vld [vmem:[#allocation2 + $0x270] sm:$0xff]
        %v2626 = vld [vmem:[#allocation2 + $0x278] sm:$0xff]
        %v2627 = vld [vmem:[#allocation2 + $0x280] sm:$0xff]
        %v2628 = vld [vmem:[#allocation2 + $0x288] sm:$0xff]
        %v2629 = vld [vmem:[#allocation2 + $0x290] sm:$0xff]
        %v2630 = vld [vmem:[#allocation2 + $0x298] sm:$0xff]
        %v2631 = vld [vmem:[#allocation2 + $0x2a0] sm:$0xff]
        %v2632 = vld [vmem:[#allocation2 + $0x2a8] sm:$0xff]
        %v2633 = vld [vmem:[#allocation2 + $0x2b0] sm:$0xff]
        %v2634 = vld [vmem:[#allocation2 + $0x2b8] sm:$0xff]
        %v2635 = vld [vmem:[#allocation2 + $0x2c0] sm:$0xff]
        %v2636 = vld [vmem:[#allocation2 + $0x2c8] sm:$0xff]
        %v2637 = vld [vmem:[#allocation2 + $0x2d0] sm:$0xff]
        %v2638 = vld [vmem:[#allocation2 + $0x2d8] sm:$0xff]
        %v2639 = vld [vmem:[#allocation2 + $0x2e0] sm:$0xff]
        %v2640 = vld [vmem:[#allocation2 + $0x2e8] sm:$0xff]
        %v2641 = vld [vmem:[#allocation2 + $0x2f0] sm:$0xff]
        %v2642 = vld [vmem:[#allocation2 + $0x2f8] sm:$0xff]
        %v2643 = vld [vmem:[#allocation2 + $0x300] sm:$0xff]
        %v2644 = vld [vmem:[#allocation2 + $0x308] sm:$0xff]
        %v2645 = vld [vmem:[#allocation2 + $0x310] sm:$0xff]
        %v2646 = vld [vmem:[#allocation2 + $0x318] sm:$0xff]
        %v2647 = vld [vmem:[#allocation2 + $0x320] sm:$0xff]
        %v2648 = vld [vmem:[#allocation2 + $0x328] sm:$0xff]
        %v2649 = vld [vmem:[#allocation2 + $0x330] sm:$0xff]
        %v2650 = vld [vmem:[#allocation2 + $0x338] sm:$0xff]
        %v2651 = vld [vmem:[#allocation2 + $0x340] sm:$0xff]
        %v2652 = vld [vmem:[#allocation2 + $0x348] sm:$0xff]
        %v2653 = vld [vmem:[#allocation2 + $0x350] sm:$0xff]
        %v2654 = vld [vmem:[#allocation2 + $0x358] sm:$0xff]
        %v2655 = vld [vmem:[#allocation2 + $0x360] sm:$0xff]
        %v2656 = vld [vmem:[#allocation2 + $0x368] sm:$0xff]
        %v2657 = vld [vmem:[#allocation2 + $0x370] sm:$0xff]
        %v2658 = vld [vmem:[#allocation2 + $0x378] sm:$0xff]
        %v2659 = vld [vmem:[#allocation2 + $0x380] sm:$0xff]
        %v2660 = vld [vmem:[#allocation2 + $0x388] sm:$0xff]
        %v2661 = vld [vmem:[#allocation2 + $0x390] sm:$0xff]
        %v2662 = vld [vmem:[#allocation2 + $0x398] sm:$0xff]
        %v2663 = vld [vmem:[#allocation2 + $0x3a0] sm:$0xff]
        %v2664 = vld [vmem:[#allocation2 + $0x3a8] sm:$0xff]
        %v2665 = vld [vmem:[#allocation2 + $0x3b0] sm:$0xff]
        %v2666 = vld [vmem:[#allocation2 + $0x3b8] sm:$0xff]
        %v2667 = vld [vmem:[#allocation2 + $0x3c0] sm:$0xff]
        %v2668 = vld [vmem:[#allocation2 + $0x3c8] sm:$0xff]
        %v2669 = vld [vmem:[#allocation2 + $0x3d0] sm:$0xff]
        %v2670 = vld [vmem:[#allocation2 + $0x3d8] sm:$0xff]
        %v2671 = vld [vmem:[#allocation2 + $0x3e0] sm:$0xff]
        %v2672 = vld [vmem:[#allocation2 + $0x3e8] sm:$0xff]
        %v2673 = vld [vmem:[#allocation2 + $0x3f0] sm:$0x1f]
        %v2674 = vld [vmem:[#allocation2 + $0x3f8] sm:$0x1f]
        %vm2739 = vcmask 1046528
        %v2740 = vrot.slane %v2611, 1
        %v2741 = vrot.slane %v2613, 1
        %v2742 = vsel %vm2739, %v2740, %v2741
        %v2743 = vrot.slane %v2612, 1
        %v2744 = vrot.slane %v2614, 1
        %v2745 = vsel %vm2739, %v2743, %v2744
        %v2746 = vrot.slane %v2615, 1
        %v2747 = vsel %vm2739, %v2741, %v2746
        %v2748 = vrot.slane %v2616, 1
        %v2749 = vsel %vm2739, %v2744, %v2748
        %v2750 = vrot.slane %v2617, 1
        %v2751 = vsel %vm2739, %v2746, %v2750
        %v2752 = vrot.slane %v2618, 1
        %v2753 = vsel %vm2739, %v2748, %v2752
        %v2754 = vrot.slane %v2619, 1
        %v2755 = vsel %vm2739, %v2750, %v2754
        %v2756 = vrot.slane %v2620, 1
        %v2757 = vsel %vm2739, %v2752, %v2756
        %v2758 = vrot.slane %v2621, 1
        %v2759 = vsel %vm2739, %v2754, %v2758
        %v2760 = vrot.slane %v2622, 1
        %v2761 = vsel %vm2739, %v2756, %v2760
        %v2762 = vrot.slane %v2623, 1
        %v2763 = vsel %vm2739, %v2758, %v2762
        %v2764 = vrot.slane %v2624, 1
        %v2765 = vsel %vm2739, %v2760, %v2764
        %v2766 = vrot.slane %v2625, 1
        %v2767 = vsel %vm2739, %v2762, %v2766
        %v2768 = vrot.slane %v2626, 1
        %v2769 = vsel %vm2739, %v2764, %v2768
        %v2770 = vrot.slane %v2627, 1
        %v2771 = vsel %vm2739, %v2766, %v2770
        %v2772 = vrot.slane %v2628, 1
        %v2773 = vsel %vm2739, %v2768, %v2772
        %v2774 = vrot.slane %v2629, 1
        %v2775 = vsel %vm2739, %v2770, %v2774
        %v2776 = vrot.slane %v2630, 1
        %v2777 = vsel %vm2739, %v2772, %v2776
        %v2778 = vrot.slane %v2631, 1
        %v2779 = vsel %vm2739, %v2774, %v2778
        %v2780 = vrot.slane %v2632, 1
        %v2781 = vsel %vm2739, %v2776, %v2780
        %v2782 = vrot.slane %v2633, 1
        %v2783 = vsel %vm2739, %v2778, %v2782
        %v2784 = vrot.slane %v2634, 1
        %v2785 = vsel %vm2739, %v2780, %v2784
        %v2786 = vrot.slane %v2635, 1
        %v2787 = vsel %vm2739, %v2782, %v2786
        %v2788 = vrot.slane %v2636, 1
        %v2789 = vsel %vm2739, %v2784, %v2788
        %v2790 = vrot.slane %v2637, 1
        %v2791 = vsel %vm2739, %v2786, %v2790
        %v2792 = vrot.slane %v2638, 1
        %v2793 = vsel %vm2739, %v2788, %v2792
        %v2794 = vrot.slane %v2639, 1
        %v2795 = vsel %vm2739, %v2790, %v2794
        %v2796 = vrot.slane %v2640, 1
        %v2797 = vsel %vm2739, %v2792, %v2796
        %v2798 = vrot.slane %v2641, 1
        %v2799 = vsel %vm2739, %v2794, %v2798
        %v2800 = vrot.slane %v2642, 1
        %v2801 = vsel %vm2739, %v2796, %v2800
        %v2802 = vrot.slane %v2643, 1
        %v2803 = vsel %vm2739, %v2798, %v2802
        %v2804 = vrot.slane %v2644, 1
        %v2805 = vsel %vm2739, %v2800, %v2804
        %v2806 = vrot.slane %v2645, 1
        %v2807 = vsel %vm2739, %v2802, %v2806
        %v2808 = vrot.slane %v2646, 1
        %v2809 = vsel %vm2739, %v2804, %v2808
        %v2810 = vrot.slane %v2647, 1
        %v2811 = vsel %vm2739, %v2806, %v2810
        %v2812 = vrot.slane %v2648, 1
        %v2813 = vsel %vm2739, %v2808, %v2812
        %v2814 = vrot.slane %v2649, 1
        %v2815 = vsel %vm2739, %v2810, %v2814
        %v2816 = vrot.slane %v2650, 1
        %v2817 = vsel %vm2739, %v2812, %v2816
        %v2818 = vrot.slane %v2651, 1
        %v2819 = vsel %vm2739, %v2814, %v2818
        %v2820 = vrot.slane %v2652, 1
        %v2821 = vsel %vm2739, %v2816, %v2820
        %v2822 = vrot.slane %v2653, 1
        %v2823 = vsel %vm2739, %v2818, %v2822
        %v2824 = vrot.slane %v2654, 1
        %v2825 = vsel %vm2739, %v2820, %v2824
        %v2826 = vrot.slane %v2655, 1
        %v2827 = vsel %vm2739, %v2822, %v2826
        %v2828 = vrot.slane %v2656, 1
        %v2829 = vsel %vm2739, %v2824, %v2828
        %v2830 = vrot.slane %v2657, 1
        %v2831 = vsel %vm2739, %v2826, %v2830
        %v2832 = vrot.slane %v2658, 1
        %v2833 = vsel %vm2739, %v2828, %v2832
        %v2834 = vrot.slane %v2659, 1
        %v2835 = vsel %vm2739, %v2830, %v2834
        %v2836 = vrot.slane %v2660, 1
        %v2837 = vsel %vm2739, %v2832, %v2836
        %v2838 = vrot.slane %v2661, 1
        %v2839 = vsel %vm2739, %v2834, %v2838
        %v2840 = vrot.slane %v2662, 1
        %v2841 = vsel %vm2739, %v2836, %v2840
        %v2842 = vrot.slane %v2663, 1
        %v2843 = vsel %vm2739, %v2838, %v2842
        %v2844 = vrot.slane %v2664, 1
        %v2845 = vsel %vm2739, %v2840, %v2844
        %v2846 = vrot.slane %v2665, 1
        %v2847 = vsel %vm2739, %v2842, %v2846
        %v2848 = vrot.slane %v2666, 1
        %v2849 = vsel %vm2739, %v2844, %v2848
        %v2850 = vrot.slane %v2667, 1
        %v2851 = vsel %vm2739, %v2846, %v2850
        %v2852 = vrot.slane %v2668, 1
        %v2853 = vsel %vm2739, %v2848, %v2852
        %v2854 = vrot.slane %v2669, 1
        %v2855 = vsel %vm2739, %v2850, %v2854
        %v2856 = vrot.slane %v2670, 1
        %v2857 = vsel %vm2739, %v2852, %v2856
        %v2858 = vrot.slane %v2671, 1
        %v2859 = vsel %vm2739, %v2854, %v2858
        %v2860 = vrot.slane %v2672, 1
        %v2861 = vsel %vm2739, %v2856, %v2860
        %v2862 = vrot.slane %v2673, 1
        %v2863 = vsel %vm2739, %v2858, %v2862
        %v2864 = vrot.slane %v2674, 1
        %v2865 = vsel %vm2739, %v2860, %v2864
        %v2930 = vadd.f32 %v2547, %v2742
        %v2931 = vadd.f32 %v2548, %v2745
        %v2932 = vadd.f32 %v2549, %v2747
        %v2933 = vadd.f32 %v2550, %v2749
        %v2934 = vadd.f32 %v2551, %v2751
        %v2935 = vadd.f32 %v2552, %v2753
        %v2936 = vadd.f32 %v2553, %v2755
        %v2937 = vadd.f32 %v2554, %v2757
        %v2938 = vadd.f32 %v2555, %v2759
        %v2939 = vadd.f32 %v2556, %v2761
        %v2940 = vadd.f32 %v2557, %v2763
        %v2941 = vadd.f32 %v2558, %v2765
        %v2942 = vadd.f32 %v2559, %v2767
        %v2943 = vadd.f32 %v2560, %v2769
        %v2944 = vadd.f32 %v2561, %v2771
        %v2945 = vadd.f32 %v2562, %v2773
        %v2946 = vadd.f32 %v2563, %v2775
        %v2947 = vadd.f32 %v2564, %v2777
        %v2948 = vadd.f32 %v2565, %v2779
        %v2949 = vadd.f32 %v2566, %v2781
        %v2950 = vadd.f32 %v2567, %v2783
        %v2951 = vadd.f32 %v2568, %v2785
        %v2952 = vadd.f32 %v2569, %v2787
        %v2953 = vadd.f32 %v2570, %v2789
        %v2954 = vadd.f32 %v2571, %v2791
        %v2955 = vadd.f32 %v2572, %v2793
        %v2956 = vadd.f32 %v2573, %v2795
        %v2957 = vadd.f32 %v2574, %v2797
        %v2958 = vadd.f32 %v2575, %v2799
        %v2959 = vadd.f32 %v2576, %v2801
        %v2960 = vadd.f32 %v2577, %v2803
        %v2961 = vadd.f32 %v2578, %v2805
        %v2962 = vadd.f32 %v2579, %v2807
        %v2963 = vadd.f32 %v2580, %v2809
        %v2964 = vadd.f32 %v2581, %v2811
        %v2965 = vadd.f32 %v2582, %v2813
        %v2966 = vadd.f32 %v2583, %v2815
        %v2967 = vadd.f32 %v2584, %v2817
        %v2968 = vadd.f32 %v2585, %v2819
        %v2969 = vadd.f32 %v2586, %v2821
        %v2970 = vadd.f32 %v2587, %v2823
        %v2971 = vadd.f32 %v2588, %v2825
        %v2972 = vadd.f32 %v2589, %v2827
        %v2973 = vadd.f32 %v2590, %v2829
        %v2974 = vadd.f32 %v2591, %v2831
        %v2975 = vadd.f32 %v2592, %v2833
        %v2976 = vadd.f32 %v2593, %v2835
        %v2977 = vadd.f32 %v2594, %v2837
        %v2978 = vadd.f32 %v2595, %v2839
        %v2979 = vadd.f32 %v2596, %v2841
        %v2980 = vadd.f32 %v2597, %v2843
        %v2981 = vadd.f32 %v2598, %v2845
        %v2982 = vadd.f32 %v2599, %v2847
        %v2983 = vadd.f32 %v2600, %v2849
        %v2984 = vadd.f32 %v2601, %v2851
        %v2985 = vadd.f32 %v2602, %v2853
        %v2986 = vadd.f32 %v2603, %v2855
        %v2987 = vadd.f32 %v2604, %v2857
        %v2988 = vadd.f32 %v2605, %v2859
        %v2989 = vadd.f32 %v2606, %v2861
        %v2990 = vadd.f32 %v2607, %v2863
        %v2991 = vadd.f32 %v2608, %v2865
        %v2992 = vadd.f32 %v2609, %v2862
        %v2993 = vadd.f32 %v2610, %v2864
        %v2994 = vld [vmem:[#allocation2 + $0x400] sm:$0xfc]
        %v2995 = vld [vmem:[#allocation2 + $0x408] sm:$0xfc]
        %v2996 = vld [vmem:[#allocation2 + $0x410] sm:$0xff]
        %v2997 = vld [vmem:[#allocation2 + $0x418] sm:$0xff]
        %v2998 = vld [vmem:[#allocation2 + $0x420] sm:$0xff]
        %v2999 = vld [vmem:[#allocation2 + $0x428] sm:$0xff]
        %v3000 = vld [vmem:[#allocation2 + $0x430] sm:$0xff]
        %v3001 = vld [vmem:[#allocation2 + $0x438] sm:$0xff]
        %v3002 = vld [vmem:[#allocation2 + $0x440] sm:$0xff]
        %v3003 = vld [vmem:[#allocation2 + $0x448] sm:$0xff]
        %v3004 = vld [vmem:[#allocation2 + $0x450] sm:$0xff]
        %v3005 = vld [vmem:[#allocation2 + $0x458] sm:$0xff]
        %v3006 = vld [vmem:[#allocation2 + $0x460] sm:$0xff]
        %v3007 = vld [vmem:[#allocation2 + $0x468] sm:$0xff]
        %v3008 = vld [vmem:[#allocation2 + $0x470] sm:$0xff]
        %v3009 = vld [vmem:[#allocation2 + $0x478] sm:$0xff]
        %v3010 = vld [vmem:[#allocation2 + $0x480] sm:$0xff]
        %v3011 = vld [vmem:[#allocation2 + $0x488] sm:$0xff]
        %v3012 = vld [vmem:[#allocation2 + $0x490] sm:$0xff]
        %v3013 = vld [vmem:[#allocation2 + $0x498] sm:$0xff]
        %v3014 = vld [vmem:[#allocation2 + $0x4a0] sm:$0xff]
        %v3015 = vld [vmem:[#allocation2 + $0x4a8] sm:$0xff]
        %v3016 = vld [vmem:[#allocation2 + $0x4b0] sm:$0xff]
        %v3017 = vld [vmem:[#allocation2 + $0x4b8] sm:$0xff]
        %v3018 = vld [vmem:[#allocation2 + $0x4c0] sm:$0xff]
        %v3019 = vld [vmem:[#allocation2 + $0x4c8] sm:$0xff]
        %v3020 = vld [vmem:[#allocation2 + $0x4d0] sm:$0xff]
        %v3021 = vld [vmem:[#allocation2 + $0x4d8] sm:$0xff]
        %v3022 = vld [vmem:[#allocation2 + $0x4e0] sm:$0xff]
        %v3023 = vld [vmem:[#allocation2 + $0x4e8] sm:$0xff]
        %v3024 = vld [vmem:[#allocation2 + $0x4f0] sm:$0xff]
        %v3025 = vld [vmem:[#allocation2 + $0x4f8] sm:$0xff]
        %v3026 = vld [vmem:[#allocation2 + $0x500] sm:$0xff]
        %v3027 = vld [vmem:[#allocation2 + $0x508] sm:$0xff]
        %v3028 = vld [vmem:[#allocation2 + $0x510] sm:$0xff]
        %v3029 = vld [vmem:[#allocation2 + $0x518] sm:$0xff]
        %v3030 = vld [vmem:[#allocation2 + $0x520] sm:$0xff]
        %v3031 = vld [vmem:[#allocation2 + $0x528] sm:$0xff]
        %v3032 = vld [vmem:[#allocation2 + $0x530] sm:$0xff]
        %v3033 = vld [vmem:[#allocation2 + $0x538] sm:$0xff]
        %v3034 = vld [vmem:[#allocation2 + $0x540] sm:$0xff]
        %v3035 = vld [vmem:[#allocation2 + $0x548] sm:$0xff]
        %v3036 = vld [vmem:[#allocation2 + $0x550] sm:$0xff]
        %v3037 = vld [vmem:[#allocation2 + $0x558] sm:$0xff]
        %v3038 = vld [vmem:[#allocation2 + $0x560] sm:$0xff]
        %v3039 = vld [vmem:[#allocation2 + $0x568] sm:$0xff]
        %v3040 = vld [vmem:[#allocation2 + $0x570] sm:$0xff]
        %v3041 = vld [vmem:[#allocation2 + $0x578] sm:$0xff]
        %v3042 = vld [vmem:[#allocation2 + $0x580] sm:$0xff]
        %v3043 = vld [vmem:[#allocation2 + $0x588] sm:$0xff]
        %v3044 = vld [vmem:[#allocation2 + $0x590] sm:$0xff]
        %v3045 = vld [vmem:[#allocation2 + $0x598] sm:$0xff]
        %v3046 = vld [vmem:[#allocation2 + $0x5a0] sm:$0xff]
        %v3047 = vld [vmem:[#allocation2 + $0x5a8] sm:$0xff]
        %v3048 = vld [vmem:[#allocation2 + $0x5b0] sm:$0xff]
        %v3049 = vld [vmem:[#allocation2 + $0x5b8] sm:$0xff]
        %v3050 = vld [vmem:[#allocation2 + $0x5c0] sm:$0xff]
        %v3051 = vld [vmem:[#allocation2 + $0x5c8] sm:$0xff]
        %v3052 = vld [vmem:[#allocation2 + $0x5d0] sm:$0xff]
        %v3053 = vld [vmem:[#allocation2 + $0x5d8] sm:$0xff]
        %v3054 = vld [vmem:[#allocation2 + $0x5e0] sm:$0xff]
        %v3055 = vld [vmem:[#allocation2 + $0x5e8] sm:$0xff]
        %v3056 = vld [vmem:[#allocation2 + $0x5f0] sm:$0x3f]
        %v3057 = vld [vmem:[#allocation2 + $0x5f8] sm:$0x3f]
        %vm3122 = vcmask 1045504
        %v3123 = vrot.slane %v2994, 2
        %v3124 = vrot.slane %v2996, 2
        %v3125 = vsel %vm3122, %v3123, %v3124
        %v3126 = vrot.slane %v2995, 2
        %v3127 = vrot.slane %v2997, 2
        %v3128 = vsel %vm3122, %v3126, %v3127
        %v3129 = vrot.slane %v2998, 2
        %v3130 = vsel %vm3122, %v3124, %v3129
        %v3131 = vrot.slane %v2999, 2
        %v3132 = vsel %vm3122, %v3127, %v3131
        %v3133 = vrot.slane %v3000, 2
        %v3134 = vsel %vm3122, %v3129, %v3133
        %v3135 = vrot.slane %v3001, 2
        %v3136 = vsel %vm3122, %v3131, %v3135
        %v3137 = vrot.slane %v3002, 2
        %v3138 = vsel %vm3122, %v3133, %v3137
        %v3139 = vrot.slane %v3003, 2
        %v3140 = vsel %vm3122, %v3135, %v3139
        %v3141 = vrot.slane %v3004, 2
        %v3142 = vsel %vm3122, %v3137, %v3141
        %v3143 = vrot.slane %v3005, 2
        %v3144 = vsel %vm3122, %v3139, %v3143
        %v3145 = vrot.slane %v3006, 2
        %v3146 = vsel %vm3122, %v3141, %v3145
        %v3147 = vrot.slane %v3007, 2
        %v3148 = vsel %vm3122, %v3143, %v3147
        %v3149 = vrot.slane %v3008, 2
        %v3150 = vsel %vm3122, %v3145, %v3149
        %v3151 = vrot.slane %v3009, 2
        %v3152 = vsel %vm3122, %v3147, %v3151
        %v3153 = vrot.slane %v3010, 2
        %v3154 = vsel %vm3122, %v3149, %v3153
        %v3155 = vrot.slane %v3011, 2
        %v3156 = vsel %vm3122, %v3151, %v3155
        %v3157 = vrot.slane %v3012, 2
        %v3158 = vsel %vm3122, %v3153, %v3157
        %v3159 = vrot.slane %v3013, 2
        %v3160 = vsel %vm3122, %v3155, %v3159
        %v3161 = vrot.slane %v3014, 2
        %v3162 = vsel %vm3122, %v3157, %v3161
        %v3163 = vrot.slane %v3015, 2
        %v3164 = vsel %vm3122, %v3159, %v3163
        %v3165 = vrot.slane %v3016, 2
        %v3166 = vsel %vm3122, %v3161, %v3165
        %v3167 = vrot.slane %v3017, 2
        %v3168 = vsel %vm3122, %v3163, %v3167
        %v3169 = vrot.slane %v3018, 2
        %v3170 = vsel %vm3122, %v3165, %v3169
        %v3171 = vrot.slane %v3019, 2
        %v3172 = vsel %vm3122, %v3167, %v3171
        %v3173 = vrot.slane %v3020, 2
        %v3174 = vsel %vm3122, %v3169, %v3173
        %v3175 = vrot.slane %v3021, 2
        %v3176 = vsel %vm3122, %v3171, %v3175
        %v3177 = vrot.slane %v3022, 2
        %v3178 = vsel %vm3122, %v3173, %v3177
        %v3179 = vrot.slane %v3023, 2
        %v3180 = vsel %vm3122, %v3175, %v3179
        %v3181 = vrot.slane %v3024, 2
        %v3182 = vsel %vm3122, %v3177, %v3181
        %v3183 = vrot.slane %v3025, 2
        %v3184 = vsel %vm3122, %v3179, %v3183
        %v3185 = vrot.slane %v3026, 2
        %v3186 = vsel %vm3122, %v3181, %v3185
        %v3187 = vrot.slane %v3027, 2
        %v3188 = vsel %vm3122, %v3183, %v3187
        %v3189 = vrot.slane %v3028, 2
        %v3190 = vsel %vm3122, %v3185, %v3189
        %v3191 = vrot.slane %v3029, 2
        %v3192 = vsel %vm3122, %v3187, %v3191
        %v3193 = vrot.slane %v3030, 2
        %v3194 = vsel %vm3122, %v3189, %v3193
        %v3195 = vrot.slane %v3031, 2
        %v3196 = vsel %vm3122, %v3191, %v3195
        %v3197 = vrot.slane %v3032, 2
        %v3198 = vsel %vm3122, %v3193, %v3197
        %v3199 = vrot.slane %v3033, 2
        %v3200 = vsel %vm3122, %v3195, %v3199
        %v3201 = vrot.slane %v3034, 2
        %v3202 = vsel %vm3122, %v3197, %v3201
        %v3203 = vrot.slane %v3035, 2
        %v3204 = vsel %vm3122, %v3199, %v3203
        %v3205 = vrot.slane %v3036, 2
        %v3206 = vsel %vm3122, %v3201, %v3205
        %v3207 = vrot.slane %v3037, 2
        %v3208 = vsel %vm3122, %v3203, %v3207
        %v3209 = vrot.slane %v3038, 2
        %v3210 = vsel %vm3122, %v3205, %v3209
        %v3211 = vrot.slane %v3039, 2
        %v3212 = vsel %vm3122, %v3207, %v3211
        %v3213 = vrot.slane %v3040, 2
        %v3214 = vsel %vm3122, %v3209, %v3213
        %v3215 = vrot.slane %v3041, 2
        %v3216 = vsel %vm3122, %v3211, %v3215
        %v3217 = vrot.slane %v3042, 2
        %v3218 = vsel %vm3122, %v3213, %v3217
        %v3219 = vrot.slane %v3043, 2
        %v3220 = vsel %vm3122, %v3215, %v3219
        %v3221 = vrot.slane %v3044, 2
        %v3222 = vsel %vm3122, %v3217, %v3221
        %v3223 = vrot.slane %v3045, 2
        %v3224 = vsel %vm3122, %v3219, %v3223
        %v3225 = vrot.slane %v3046, 2
        %v3226 = vsel %vm3122, %v3221, %v3225
        %v3227 = vrot.slane %v3047, 2
        %v3228 = vsel %vm3122, %v3223, %v3227
        %v3229 = vrot.slane %v3048, 2
        %v3230 = vsel %vm3122, %v3225, %v3229
        %v3231 = vrot.slane %v3049, 2
        %v3232 = vsel %vm3122, %v3227, %v3231
        %v3233 = vrot.slane %v3050, 2
        %v3234 = vsel %vm3122, %v3229, %v3233
        %v3235 = vrot.slane %v3051, 2
        %v3236 = vsel %vm3122, %v3231, %v3235
        %v3237 = vrot.slane %v3052, 2
        %v3238 = vsel %vm3122, %v3233, %v3237
        %v3239 = vrot.slane %v3053, 2
        %v3240 = vsel %vm3122, %v3235, %v3239
        %v3241 = vrot.slane %v3054, 2
        %v3242 = vsel %vm3122, %v3237, %v3241
        %v3243 = vrot.slane %v3055, 2
        %v3244 = vsel %vm3122, %v3239, %v3243
        %v3245 = vrot.slane %v3056, 2
        %v3246 = vsel %vm3122, %v3241, %v3245
        %v3247 = vrot.slane %v3057, 2
        %v3248 = vsel %vm3122, %v3243, %v3247
        %v3313 = vadd.f32 %v2930, %v3125
        %v3314 = vadd.f32 %v2931, %v3128
        %v3315 = vadd.f32 %v2932, %v3130
        %v3316 = vadd.f32 %v2933, %v3132
        %v3317 = vadd.f32 %v2934, %v3134
        %v3318 = vadd.f32 %v2935, %v3136
        %v3319 = vadd.f32 %v2936, %v3138
        %v3320 = vadd.f32 %v2937, %v3140
        %v3321 = vadd.f32 %v2938, %v3142
        %v3322 = vadd.f32 %v2939, %v3144
        %v3323 = vadd.f32 %v2940, %v3146
        %v3324 = vadd.f32 %v2941, %v3148
        %v3325 = vadd.f32 %v2942, %v3150
        %v3326 = vadd.f32 %v2943, %v3152
        %v3327 = vadd.f32 %v2944, %v3154
        %v3328 = vadd.f32 %v2945, %v3156
        %v3329 = vadd.f32 %v2946, %v3158
        %v3330 = vadd.f32 %v2947, %v3160
        %v3331 = vadd.f32 %v2948, %v3162
        %v3332 = vadd.f32 %v2949, %v3164
        %v3333 = vadd.f32 %v2950, %v3166
        %v3334 = vadd.f32 %v2951, %v3168
        %v3335 = vadd.f32 %v2952, %v3170
        %v3336 = vadd.f32 %v2953, %v3172
        %v3337 = vadd.f32 %v2954, %v3174
        %v3338 = vadd.f32 %v2955, %v3176
        %v3339 = vadd.f32 %v2956, %v3178
        %v3340 = vadd.f32 %v2957, %v3180
        %v3341 = vadd.f32 %v2958, %v3182
        %v3342 = vadd.f32 %v2959, %v3184
        %v3343 = vadd.f32 %v2960, %v3186
        %v3344 = vadd.f32 %v2961, %v3188
        %v3345 = vadd.f32 %v2962, %v3190
        %v3346 = vadd.f32 %v2963, %v3192
        %v3347 = vadd.f32 %v2964, %v3194
        %v3348 = vadd.f32 %v2965, %v3196
        %v3349 = vadd.f32 %v2966, %v3198
        %v3350 = vadd.f32 %v2967, %v3200
        %v3351 = vadd.f32 %v2968, %v3202
        %v3352 = vadd.f32 %v2969, %v3204
        %v3353 = vadd.f32 %v2970, %v3206
        %v3354 = vadd.f32 %v2971, %v3208
        %v3355 = vadd.f32 %v2972, %v3210
        %v3356 = vadd.f32 %v2973, %v3212
        %v3357 = vadd.f32 %v2974, %v3214
        %v3358 = vadd.f32 %v2975, %v3216
        %v3359 = vadd.f32 %v2976, %v3218
        %v3360 = vadd.f32 %v2977, %v3220
        %v3361 = vadd.f32 %v2978, %v3222
        %v3362 = vadd.f32 %v2979, %v3224
        %v3363 = vadd.f32 %v2980, %v3226
        %v3364 = vadd.f32 %v2981, %v3228
        %v3365 = vadd.f32 %v2982, %v3230
        %v3366 = vadd.f32 %v2983, %v3232
        %v3367 = vadd.f32 %v2984, %v3234
        %v3368 = vadd.f32 %v2985, %v3236
        %v3369 = vadd.f32 %v2986, %v3238
        %v3370 = vadd.f32 %v2987, %v3240
        %v3371 = vadd.f32 %v2988, %v3242
        %v3372 = vadd.f32 %v2989, %v3244
        %v3373 = vadd.f32 %v2990, %v3246
        %v3374 = vadd.f32 %v2991, %v3248
        %v3375 = vadd.f32 %v2992, %v3245
        %v3376 = vadd.f32 %v2993, %v3247
        %v3377 = vld [vmem:[#allocation2 + $0x600] sm:$0xf8]
        %v3378 = vld [vmem:[#allocation2 + $0x608] sm:$0xf8]
        %v3379 = vld [vmem:[#allocation2 + $0x610] sm:$0xff]
        %v3380 = vld [vmem:[#allocation2 + $0x618] sm:$0xff]
        %v3381 = vld [vmem:[#allocation2 + $0x620] sm:$0xff]
        %v3382 = vld [vmem:[#allocation2 + $0x628] sm:$0xff]
        %v3383 = vld [vmem:[#allocation2 + $0x630] sm:$0xff]
        %v3384 = vld [vmem:[#allocation2 + $0x638] sm:$0xff]
        %v3385 = vld [vmem:[#allocation2 + $0x640] sm:$0xff]
        %v3386 = vld [vmem:[#allocation2 + $0x648] sm:$0xff]
        %v3387 = vld [vmem:[#allocation2 + $0x650] sm:$0xff]
        %v3388 = vld [vmem:[#allocation2 + $0x658] sm:$0xff]
        %v3389 = vld [vmem:[#allocation2 + $0x660] sm:$0xff]
        %v3390 = vld [vmem:[#allocation2 + $0x668] sm:$0xff]
        %v3391 = vld [vmem:[#allocation2 + $0x670] sm:$0xff]
        %v3392 = vld [vmem:[#allocation2 + $0x678] sm:$0xff]
        %v3393 = vld [vmem:[#allocation2 + $0x680] sm:$0xff]
        %v3394 = vld [vmem:[#allocation2 + $0x688] sm:$0xff]
        %v3395 = vld [vmem:[#allocation2 + $0x690] sm:$0xff]
        %v3396 = vld [vmem:[#allocation2 + $0x698] sm:$0xff]
        %v3397 = vld [vmem:[#allocation2 + $0x6a0] sm:$0xff]
        %v3398 = vld [vmem:[#allocation2 + $0x6a8] sm:$0xff]
        %v3399 = vld [vmem:[#allocation2 + $0x6b0] sm:$0xff]
        %v3400 = vld [vmem:[#allocation2 + $0x6b8] sm:$0xff]
        %v3401 = vld [vmem:[#allocation2 + $0x6c0] sm:$0xff]
        %v3402 = vld [vmem:[#allocation2 + $0x6c8] sm:$0xff]
        %v3403 = vld [vmem:[#allocation2 + $0x6d0] sm:$0xff]
        %v3404 = vld [vmem:[#allocation2 + $0x6d8] sm:$0xff]
        %v3405 = vld [vmem:[#allocation2 + $0x6e0] sm:$0xff]
        %v3406 = vld [vmem:[#allocation2 + $0x6e8] sm:$0xff]
        %v3407 = vld [vmem:[#allocation2 + $0x6f0] sm:$0xff]
        %v3408 = vld [vmem:[#allocation2 + $0x6f8] sm:$0xff]
        %v3409 = vld [vmem:[#allocation2 + $0x700] sm:$0xff]
        %v3410 = vld [vmem:[#allocation2 + $0x708] sm:$0xff]
        %v3411 = vld [vmem:[#allocation2 + $0x710] sm:$0xff]
        %v3412 = vld [vmem:[#allocation2 + $0x718] sm:$0xff]
        %v3413 = vld [vmem:[#allocation2 + $0x720] sm:$0xff]
        %v3414 = vld [vmem:[#allocation2 + $0x728] sm:$0xff]
        %v3415 = vld [vmem:[#allocation2 + $0x730] sm:$0xff]
        %v3416 = vld [vmem:[#allocation2 + $0x738] sm:$0xff]
        %v3417 = vld [vmem:[#allocation2 + $0x740] sm:$0xff]
        %v3418 = vld [vmem:[#allocation2 + $0x748] sm:$0xff]
        %v3419 = vld [vmem:[#allocation2 + $0x750] sm:$0xff]
        %v3420 = vld [vmem:[#allocation2 + $0x758] sm:$0xff]
        %v3421 = vld [vmem:[#allocation2 + $0x760] sm:$0xff]
        %v3422 = vld [vmem:[#allocation2 + $0x768] sm:$0xff]
        %v3423 = vld [vmem:[#allocation2 + $0x770] sm:$0xff]
        %v3424 = vld [vmem:[#allocation2 + $0x778] sm:$0xff]
        %v3425 = vld [vmem:[#allocation2 + $0x780] sm:$0xff]
        %v3426 = vld [vmem:[#allocation2 + $0x788] sm:$0xff]
        %v3427 = vld [vmem:[#allocation2 + $0x790] sm:$0xff]
        %v3428 = vld [vmem:[#allocation2 + $0x798] sm:$0xff]
        %v3429 = vld [vmem:[#allocation2 + $0x7a0] sm:$0xff]
        %v3430 = vld [vmem:[#allocation2 + $0x7a8] sm:$0xff]
        %v3431 = vld [vmem:[#allocation2 + $0x7b0] sm:$0xff]
        %v3432 = vld [vmem:[#allocation2 + $0x7b8] sm:$0xff]
        %v3433 = vld [vmem:[#allocation2 + $0x7c0] sm:$0xff]
        %v3434 = vld [vmem:[#allocation2 + $0x7c8] sm:$0xff]
        %v3435 = vld [vmem:[#allocation2 + $0x7d0] sm:$0xff]
        %v3436 = vld [vmem:[#allocation2 + $0x7d8] sm:$0xff]
        %v3437 = vld [vmem:[#allocation2 + $0x7e0] sm:$0xff]
        %v3438 = vld [vmem:[#allocation2 + $0x7e8] sm:$0xff]
        %v3439 = vld [vmem:[#allocation2 + $0x7f0] sm:$0x7f]
        %v3440 = vld [vmem:[#allocation2 + $0x7f8] sm:$0x7f]
        %vm3505 = vcmask 1044480
        %v3506 = vrot.slane %v3377, 3
        %v3507 = vrot.slane %v3379, 3
        %v3508 = vsel %vm3505, %v3506, %v3507
        %v3509 = vrot.slane %v3378, 3
        %v3510 = vrot.slane %v3380, 3
        %v3511 = vsel %vm3505, %v3509, %v3510
        %v3512 = vrot.slane %v3381, 3
        %v3513 = vsel %vm3505, %v3507, %v3512
        %v3514 = vrot.slane %v3382, 3
        %v3515 = vsel %vm3505, %v3510, %v3514
        %v3516 = vrot.slane %v3383, 3
        %v3517 = vsel %vm3505, %v3512, %v3516
        %v3518 = vrot.slane %v3384, 3
        %v3519 = vsel %vm3505, %v3514, %v3518
        %v3520 = vrot.slane %v3385, 3
        %v3521 = vsel %vm3505, %v3516, %v3520
        %v3522 = vrot.slane %v3386, 3
        %v3523 = vsel %vm3505, %v3518, %v3522
        %v3524 = vrot.slane %v3387, 3
        %v3525 = vsel %vm3505, %v3520, %v3524
        %v3526 = vrot.slane %v3388, 3
        %v3527 = vsel %vm3505, %v3522, %v3526
        %v3528 = vrot.slane %v3389, 3
        %v3529 = vsel %vm3505, %v3524, %v3528
        %v3530 = vrot.slane %v3390, 3
        %v3531 = vsel %vm3505, %v3526, %v3530
        %v3532 = vrot.slane %v3391, 3
        %v3533 = vsel %vm3505, %v3528, %v3532
        %v3534 = vrot.slane %v3392, 3
        %v3535 = vsel %vm3505, %v3530, %v3534
        %v3536 = vrot.slane %v3393, 3
        %v3537 = vsel %vm3505, %v3532, %v3536
        %v3538 = vrot.slane %v3394, 3
        %v3539 = vsel %vm3505, %v3534, %v3538
        %v3540 = vrot.slane %v3395, 3
        %v3541 = vsel %vm3505, %v3536, %v3540
        %v3542 = vrot.slane %v3396, 3
        %v3543 = vsel %vm3505, %v3538, %v3542
        %v3544 = vrot.slane %v3397, 3
        %v3545 = vsel %vm3505, %v3540, %v3544
        %v3546 = vrot.slane %v3398, 3
        %v3547 = vsel %vm3505, %v3542, %v3546
        %v3548 = vrot.slane %v3399, 3
        %v3549 = vsel %vm3505, %v3544, %v3548
        %v3550 = vrot.slane %v3400, 3
        %v3551 = vsel %vm3505, %v3546, %v3550
        %v3552 = vrot.slane %v3401, 3
        %v3553 = vsel %vm3505, %v3548, %v3552
        %v3554 = vrot.slane %v3402, 3
        %v3555 = vsel %vm3505, %v3550, %v3554
        %v3556 = vrot.slane %v3403, 3
        %v3557 = vsel %vm3505, %v3552, %v3556
        %v3558 = vrot.slane %v3404, 3
        %v3559 = vsel %vm3505, %v3554, %v3558
        %v3560 = vrot.slane %v3405, 3
        %v3561 = vsel %vm3505, %v3556, %v3560
        %v3562 = vrot.slane %v3406, 3
        %v3563 = vsel %vm3505, %v3558, %v3562
        %v3564 = vrot.slane %v3407, 3
        %v3565 = vsel %vm3505, %v3560, %v3564
        %v3566 = vrot.slane %v3408, 3
        %v3567 = vsel %vm3505, %v3562, %v3566
        %v3568 = vrot.slane %v3409, 3
        %v3569 = vsel %vm3505, %v3564, %v3568
        %v3570 = vrot.slane %v3410, 3
        %v3571 = vsel %vm3505, %v3566, %v3570
        %v3572 = vrot.slane %v3411, 3
        %v3573 = vsel %vm3505, %v3568, %v3572
        %v3574 = vrot.slane %v3412, 3
        %v3575 = vsel %vm3505, %v3570, %v3574
        %v3576 = vrot.slane %v3413, 3
        %v3577 = vsel %vm3505, %v3572, %v3576
        %v3578 = vrot.slane %v3414, 3
        %v3579 = vsel %vm3505, %v3574, %v3578
        %v3580 = vrot.slane %v3415, 3
        %v3581 = vsel %vm3505, %v3576, %v3580
        %v3582 = vrot.slane %v3416, 3
        %v3583 = vsel %vm3505, %v3578, %v3582
        %v3584 = vrot.slane %v3417, 3
        %v3585 = vsel %vm3505, %v3580, %v3584
        %v3586 = vrot.slane %v3418, 3
        %v3587 = vsel %vm3505, %v3582, %v3586
        %v3588 = vrot.slane %v3419, 3
        %v3589 = vsel %vm3505, %v3584, %v3588
        %v3590 = vrot.slane %v3420, 3
        %v3591 = vsel %vm3505, %v3586, %v3590
        %v3592 = vrot.slane %v3421, 3
        %v3593 = vsel %vm3505, %v3588, %v3592
        %v3594 = vrot.slane %v3422, 3
        %v3595 = vsel %vm3505, %v3590, %v3594
        %v3596 = vrot.slane %v3423, 3
        %v3597 = vsel %vm3505, %v3592, %v3596
        %v3598 = vrot.slane %v3424, 3
        %v3599 = vsel %vm3505, %v3594, %v3598
        %v3600 = vrot.slane %v3425, 3
        %v3601 = vsel %vm3505, %v3596, %v3600
        %v3602 = vrot.slane %v3426, 3
        %v3603 = vsel %vm3505, %v3598, %v3602
        %v3604 = vrot.slane %v3427, 3
        %v3605 = vsel %vm3505, %v3600, %v3604
        %v3606 = vrot.slane %v3428, 3
        %v3607 = vsel %vm3505, %v3602, %v3606
        %v3608 = vrot.slane %v3429, 3
        %v3609 = vsel %vm3505, %v3604, %v3608
        %v3610 = vrot.slane %v3430, 3
        %v3611 = vsel %vm3505, %v3606, %v3610
        %v3612 = vrot.slane %v3431, 3
        %v3613 = vsel %vm3505, %v3608, %v3612
        %v3614 = vrot.slane %v3432, 3
        %v3615 = vsel %vm3505, %v3610, %v3614
        %v3616 = vrot.slane %v3433, 3
        %v3617 = vsel %vm3505, %v3612, %v3616
        %v3618 = vrot.slane %v3434, 3
        %v3619 = vsel %vm3505, %v3614, %v3618
        %v3620 = vrot.slane %v3435, 3
        %v3621 = vsel %vm3505, %v3616, %v3620
        %v3622 = vrot.slane %v3436, 3
        %v3623 = vsel %vm3505, %v3618, %v3622
        %v3624 = vrot.slane %v3437, 3
        %v3625 = vsel %vm3505, %v3620, %v3624
        %v3626 = vrot.slane %v3438, 3
        %v3627 = vsel %vm3505, %v3622, %v3626
        %v3628 = vrot.slane %v3439, 3
        %v3629 = vsel %vm3505, %v3624, %v3628
        %v3630 = vrot.slane %v3440, 3
        %v3631 = vsel %vm3505, %v3626, %v3630
        %v3696 = vadd.f32 %v3313, %v3508
        %v3697 = vadd.f32 %v3314, %v3511
        %v3698 = vadd.f32 %v3315, %v3513
        %v3699 = vadd.f32 %v3316, %v3515
        %v3700 = vadd.f32 %v3317, %v3517
        %v3701 = vadd.f32 %v3318, %v3519
        %v3702 = vadd.f32 %v3319, %v3521
        %v3703 = vadd.f32 %v3320, %v3523
        %v3704 = vadd.f32 %v3321, %v3525
        %v3705 = vadd.f32 %v3322, %v3527
        %v3706 = vadd.f32 %v3323, %v3529
        %v3707 = vadd.f32 %v3324, %v3531
        %v3708 = vadd.f32 %v3325, %v3533
        %v3709 = vadd.f32 %v3326, %v3535
        %v3710 = vadd.f32 %v3327, %v3537
        %v3711 = vadd.f32 %v3328, %v3539
        %v3712 = vadd.f32 %v3329, %v3541
        %v3713 = vadd.f32 %v3330, %v3543
        %v3714 = vadd.f32 %v3331, %v3545
        %v3715 = vadd.f32 %v3332, %v3547
        %v3716 = vadd.f32 %v3333, %v3549
        %v3717 = vadd.f32 %v3334, %v3551
        %v3718 = vadd.f32 %v3335, %v3553
        %v3719 = vadd.f32 %v3336, %v3555
        %v3720 = vadd.f32 %v3337, %v3557
        %v3721 = vadd.f32 %v3338, %v3559
        %v3722 = vadd.f32 %v3339, %v3561
        %v3723 = vadd.f32 %v3340, %v3563
        %v3724 = vadd.f32 %v3341, %v3565
        %v3725 = vadd.f32 %v3342, %v3567
        %v3726 = vadd.f32 %v3343, %v3569
        %v3727 = vadd.f32 %v3344, %v3571
        %v3728 = vadd.f32 %v3345, %v3573
        %v3729 = vadd.f32 %v3346, %v3575
        %v3730 = vadd.f32 %v3347, %v3577
        %v3731 = vadd.f32 %v3348, %v3579
        %v3732 = vadd.f32 %v3349, %v3581
        %v3733 = vadd.f32 %v3350, %v3583
        %v3734 = vadd.f32 %v3351, %v3585
        %v3735 = vadd.f32 %v3352, %v3587
        %v3736 = vadd.f32 %v3353, %v3589
        %v3737 = vadd.f32 %v3354, %v3591
        %v3738 = vadd.f32 %v3355, %v3593
        %v3739 = vadd.f32 %v3356, %v3595
        %v3740 = vadd.f32 %v3357, %v3597
        %v3741 = vadd.f32 %v3358, %v3599
        %v3742 = vadd.f32 %v3359, %v3601
        %v3743 = vadd.f32 %v3360, %v3603
        %v3744 = vadd.f32 %v3361, %v3605
        %v3745 = vadd.f32 %v3362, %v3607
        %v3746 = vadd.f32 %v3363, %v3609
        %v3747 = vadd.f32 %v3364, %v3611
        %v3748 = vadd.f32 %v3365, %v3613
        %v3749 = vadd.f32 %v3366, %v3615
        %v3750 = vadd.f32 %v3367, %v3617
        %v3751 = vadd.f32 %v3368, %v3619
        %v3752 = vadd.f32 %v3369, %v3621
        %v3753 = vadd.f32 %v3370, %v3623
        %v3754 = vadd.f32 %v3371, %v3625
        %v3755 = vadd.f32 %v3372, %v3627
        %v3756 = vadd.f32 %v3373, %v3629
        %v3757 = vadd.f32 %v3374, %v3631
        %v3758 = vadd.f32 %v3375, %v3628
        %v3759 = vadd.f32 %v3376, %v3630
        %v3760 = vld [vmem:[#allocation2 + $0x800] sm:$0xf0]
        %v3761 = vld [vmem:[#allocation2 + $0x808] sm:$0xf0]
        %v3762 = vld [vmem:[#allocation2 + $0x810] sm:$0xff]
        %v3763 = vld [vmem:[#allocation2 + $0x818] sm:$0xff]
        %v3764 = vld [vmem:[#allocation2 + $0x820] sm:$0xff]
        %v3765 = vld [vmem:[#allocation2 + $0x828] sm:$0xff]
        %v3766 = vld [vmem:[#allocation2 + $0x830] sm:$0xff]
        %v3767 = vld [vmem:[#allocation2 + $0x838] sm:$0xff]
        %v3768 = vld [vmem:[#allocation2 + $0x840] sm:$0xff]
        %v3769 = vld [vmem:[#allocation2 + $0x848] sm:$0xff]
        %v3770 = vld [vmem:[#allocation2 + $0x850] sm:$0xff]
        %v3771 = vld [vmem:[#allocation2 + $0x858] sm:$0xff]
        %v3772 = vld [vmem:[#allocation2 + $0x860] sm:$0xff]
        %v3773 = vld [vmem:[#allocation2 + $0x868] sm:$0xff]
        %v3774 = vld [vmem:[#allocation2 + $0x870] sm:$0xff]
        %v3775 = vld [vmem:[#allocation2 + $0x878] sm:$0xff]
        %v3776 = vld [vmem:[#allocation2 + $0x880] sm:$0xff]
        %v3777 = vld [vmem:[#allocation2 + $0x888] sm:$0xff]
        %v3778 = vld [vmem:[#allocation2 + $0x890] sm:$0xff]
        %v3779 = vld [vmem:[#allocation2 + $0x898] sm:$0xff]
        %v3780 = vld [vmem:[#allocation2 + $0x8a0] sm:$0xff]
        %v3781 = vld [vmem:[#allocation2 + $0x8a8] sm:$0xff]
        %v3782 = vld [vmem:[#allocation2 + $0x8b0] sm:$0xff]
        %v3783 = vld [vmem:[#allocation2 + $0x8b8] sm:$0xff]
        %v3784 = vld [vmem:[#allocation2 + $0x8c0] sm:$0xff]
        %v3785 = vld [vmem:[#allocation2 + $0x8c8] sm:$0xff]
        %v3786 = vld [vmem:[#allocation2 + $0x8d0] sm:$0xff]
        %v3787 = vld [vmem:[#allocation2 + $0x8d8] sm:$0xff]
        %v3788 = vld [vmem:[#allocation2 + $0x8e0] sm:$0xff]
        %v3789 = vld [vmem:[#allocation2 + $0x8e8] sm:$0xff]
        %v3790 = vld [vmem:[#allocation2 + $0x8f0] sm:$0xff]
        %v3791 = vld [vmem:[#allocation2 + $0x8f8] sm:$0xff]
        %v3792 = vld [vmem:[#allocation2 + $0x900] sm:$0xff]
        %v3793 = vld [vmem:[#allocation2 + $0x908] sm:$0xff]
        %v3794 = vld [vmem:[#allocation2 + $0x910] sm:$0xff]
        %v3795 = vld [vmem:[#allocation2 + $0x918] sm:$0xff]
        %v3796 = vld [vmem:[#allocation2 + $0x920] sm:$0xff]
        %v3797 = vld [vmem:[#allocation2 + $0x928] sm:$0xff]
        %v3798 = vld [vmem:[#allocation2 + $0x930] sm:$0xff]
        %v3799 = vld [vmem:[#allocation2 + $0x938] sm:$0xff]
        %v3800 = vld [vmem:[#allocation2 + $0x940] sm:$0xff]
        %v3801 = vld [vmem:[#allocation2 + $0x948] sm:$0xff]
        %v3802 = vld [vmem:[#allocation2 + $0x950] sm:$0xff]
        %v3803 = vld [vmem:[#allocation2 + $0x958] sm:$0xff]
        %v3804 = vld [vmem:[#allocation2 + $0x960] sm:$0xff]
        %v3805 = vld [vmem:[#allocation2 + $0x968] sm:$0xff]
        %v3806 = vld [vmem:[#allocation2 + $0x970] sm:$0xff]
        %v3807 = vld [vmem:[#allocation2 + $0x978] sm:$0xff]
        %v3808 = vld [vmem:[#allocation2 + $0x980] sm:$0xff]
        %v3809 = vld [vmem:[#allocation2 + $0x988] sm:$0xff]
        %v3810 = vld [vmem:[#allocation2 + $0x990] sm:$0xff]
        %v3811 = vld [vmem:[#allocation2 + $0x998] sm:$0xff]
        %v3812 = vld [vmem:[#allocation2 + $0x9a0] sm:$0xff]
        %v3813 = vld [vmem:[#allocation2 + $0x9a8] sm:$0xff]
        %v3814 = vld [vmem:[#allocation2 + $0x9b0] sm:$0xff]
        %v3815 = vld [vmem:[#allocation2 + $0x9b8] sm:$0xff]
        %v3816 = vld [vmem:[#allocation2 + $0x9c0] sm:$0xff]
        %v3817 = vld [vmem:[#allocation2 + $0x9c8] sm:$0xff]
        %v3818 = vld [vmem:[#allocation2 + $0x9d0] sm:$0xff]
        %v3819 = vld [vmem:[#allocation2 + $0x9d8] sm:$0xff]
        %v3820 = vld [vmem:[#allocation2 + $0x9e0] sm:$0xff]
        %v3821 = vld [vmem:[#allocation2 + $0x9e8] sm:$0xff]
        %v3822 = vld [vmem:[#allocation2 + $0x9f0] sm:$0xff]
        %v3823 = vld [vmem:[#allocation2 + $0x9f8] sm:$0xff]
        %vm3888 = vcmask 1043456
        %v3889 = vrot.slane %v3760, 4
        %v3890 = vrot.slane %v3762, 4
        %v3891 = vsel %vm3888, %v3889, %v3890
        %v3892 = vrot.slane %v3761, 4
        %v3893 = vrot.slane %v3763, 4
        %v3894 = vsel %vm3888, %v3892, %v3893
        %v3895 = vrot.slane %v3764, 4
        %v3896 = vsel %vm3888, %v3890, %v3895
        %v3897 = vrot.slane %v3765, 4
        %v3898 = vsel %vm3888, %v3893, %v3897
        %v3899 = vrot.slane %v3766, 4
        %v3900 = vsel %vm3888, %v3895, %v3899
        %v3901 = vrot.slane %v3767, 4
        %v3902 = vsel %vm3888, %v3897, %v3901
        %v3903 = vrot.slane %v3768, 4
        %v3904 = vsel %vm3888, %v3899, %v3903
        %v3905 = vrot.slane %v3769, 4
        %v3906 = vsel %vm3888, %v3901, %v3905
        %v3907 = vrot.slane %v3770, 4
        %v3908 = vsel %vm3888, %v3903, %v3907
        %v3909 = vrot.slane %v3771, 4
        %v3910 = vsel %vm3888, %v3905, %v3909
        %v3911 = vrot.slane %v3772, 4
        %v3912 = vsel %vm3888, %v3907, %v3911
        %v3913 = vrot.slane %v3773, 4
        %v3914 = vsel %vm3888, %v3909, %v3913
        %v3915 = vrot.slane %v3774, 4
        %v3916 = vsel %vm3888, %v3911, %v3915
        %v3917 = vrot.slane %v3775, 4
        %v3918 = vsel %vm3888, %v3913, %v3917
        %v3919 = vrot.slane %v3776, 4
        %v3920 = vsel %vm3888, %v3915, %v3919
        %v3921 = vrot.slane %v3777, 4
        %v3922 = vsel %vm3888, %v3917, %v3921
        %v3923 = vrot.slane %v3778, 4
        %v3924 = vsel %vm3888, %v3919, %v3923
        %v3925 = vrot.slane %v3779, 4
        %v3926 = vsel %vm3888, %v3921, %v3925
        %v3927 = vrot.slane %v3780, 4
        %v3928 = vsel %vm3888, %v3923, %v3927
        %v3929 = vrot.slane %v3781, 4
        %v3930 = vsel %vm3888, %v3925, %v3929
        %v3931 = vrot.slane %v3782, 4
        %v3932 = vsel %vm3888, %v3927, %v3931
        %v3933 = vrot.slane %v3783, 4
        %v3934 = vsel %vm3888, %v3929, %v3933
        %v3935 = vrot.slane %v3784, 4
        %v3936 = vsel %vm3888, %v3931, %v3935
        %v3937 = vrot.slane %v3785, 4
        %v3938 = vsel %vm3888, %v3933, %v3937
        %v3939 = vrot.slane %v3786, 4
        %v3940 = vsel %vm3888, %v3935, %v3939
        %v3941 = vrot.slane %v3787, 4
        %v3942 = vsel %vm3888, %v3937, %v3941
        %v3943 = vrot.slane %v3788, 4
        %v3944 = vsel %vm3888, %v3939, %v3943
        %v3945 = vrot.slane %v3789, 4
        %v3946 = vsel %vm3888, %v3941, %v3945
        %v3947 = vrot.slane %v3790, 4
        %v3948 = vsel %vm3888, %v3943, %v3947
        %v3949 = vrot.slane %v3791, 4
        %v3950 = vsel %vm3888, %v3945, %v3949
        %v3951 = vrot.slane %v3792, 4
        %v3952 = vsel %vm3888, %v3947, %v3951
        %v3953 = vrot.slane %v3793, 4
        %v3954 = vsel %vm3888, %v3949, %v3953
        %v3955 = vrot.slane %v3794, 4
        %v3956 = vsel %vm3888, %v3951, %v3955
        %v3957 = vrot.slane %v3795, 4
        %v3958 = vsel %vm3888, %v3953, %v3957
        %v3959 = vrot.slane %v3796, 4
        %v3960 = vsel %vm3888, %v3955, %v3959
        %v3961 = vrot.slane %v3797, 4
        %v3962 = vsel %vm3888, %v3957, %v3961
        %v3963 = vrot.slane %v3798, 4
        %v3964 = vsel %vm3888, %v3959, %v3963
        %v3965 = vrot.slane %v3799, 4
        %v3966 = vsel %vm3888, %v3961, %v3965
        %v3967 = vrot.slane %v3800, 4
        %v3968 = vsel %vm3888, %v3963, %v3967
        %v3969 = vrot.slane %v3801, 4
        %v3970 = vsel %vm3888, %v3965, %v3969
        %v3971 = vrot.slane %v3802, 4
        %v3972 = vsel %vm3888, %v3967, %v3971
        %v3973 = vrot.slane %v3803, 4
        %v3974 = vsel %vm3888, %v3969, %v3973
        %v3975 = vrot.slane %v3804, 4
        %v3976 = vsel %vm3888, %v3971, %v3975
        %v3977 = vrot.slane %v3805, 4
        %v3978 = vsel %vm3888, %v3973, %v3977
        %v3979 = vrot.slane %v3806, 4
        %v3980 = vsel %vm3888, %v3975, %v3979
        %v3981 = vrot.slane %v3807, 4
        %v3982 = vsel %vm3888, %v3977, %v3981
        %v3983 = vrot.slane %v3808, 4
        %v3984 = vsel %vm3888, %v3979, %v3983
        %v3985 = vrot.slane %v3809, 4
        %v3986 = vsel %vm3888, %v3981, %v3985
        %v3987 = vrot.slane %v3810, 4
        %v3988 = vsel %vm3888, %v3983, %v3987
        %v3989 = vrot.slane %v3811, 4
        %v3990 = vsel %vm3888, %v3985, %v3989
        %v3991 = vrot.slane %v3812, 4
        %v3992 = vsel %vm3888, %v3987, %v3991
        %v3993 = vrot.slane %v3813, 4
        %v3994 = vsel %vm3888, %v3989, %v3993
        %v3995 = vrot.slane %v3814, 4
        %v3996 = vsel %vm3888, %v3991, %v3995
        %v3997 = vrot.slane %v3815, 4
        %v3998 = vsel %vm3888, %v3993, %v3997
        %v3999 = vrot.slane %v3816, 4
        %v4000 = vsel %vm3888, %v3995, %v3999
        %v4001 = vrot.slane %v3817, 4
        %v4002 = vsel %vm3888, %v3997, %v4001
        %v4003 = vrot.slane %v3818, 4
        %v4004 = vsel %vm3888, %v3999, %v4003
        %v4005 = vrot.slane %v3819, 4
        %v4006 = vsel %vm3888, %v4001, %v4005
        %v4007 = vrot.slane %v3820, 4
        %v4008 = vsel %vm3888, %v4003, %v4007
        %v4009 = vrot.slane %v3821, 4
        %v4010 = vsel %vm3888, %v4005, %v4009
        %v4011 = vrot.slane %v3822, 4
        %v4012 = vsel %vm3888, %v4007, %v4011
        %v4013 = vrot.slane %v3823, 4
        %v4014 = vsel %vm3888, %v4009, %v4013
        %v4079 = vadd.f32 %v3696, %v3891
        %v4080 = vadd.f32 %v3697, %v3894
        %v4081 = vadd.f32 %v3698, %v3896
        %v4082 = vadd.f32 %v3699, %v3898
        %v4083 = vadd.f32 %v3700, %v3900
        %v4084 = vadd.f32 %v3701, %v3902
        %v4085 = vadd.f32 %v3702, %v3904
        %v4086 = vadd.f32 %v3703, %v3906
        %v4087 = vadd.f32 %v3704, %v3908
        %v4088 = vadd.f32 %v3705, %v3910
        %v4089 = vadd.f32 %v3706, %v3912
        %v4090 = vadd.f32 %v3707, %v3914
        %v4091 = vadd.f32 %v3708, %v3916
        %v4092 = vadd.f32 %v3709, %v3918
        %v4093 = vadd.f32 %v3710, %v3920
        %v4094 = vadd.f32 %v3711, %v3922
        %v4095 = vadd.f32 %v3712, %v3924
        %v4096 = vadd.f32 %v3713, %v3926
        %v4097 = vadd.f32 %v3714, %v3928
        %v4098 = vadd.f32 %v3715, %v3930
        %v4099 = vadd.f32 %v3716, %v3932
        %v4100 = vadd.f32 %v3717, %v3934
        %v4101 = vadd.f32 %v3718, %v3936
        %v4102 = vadd.f32 %v3719, %v3938
        %v4103 = vadd.f32 %v3720, %v3940
        %v4104 = vadd.f32 %v3721, %v3942
        %v4105 = vadd.f32 %v3722, %v3944
        %v4106 = vadd.f32 %v3723, %v3946
        %v4107 = vadd.f32 %v3724, %v3948
        %v4108 = vadd.f32 %v3725, %v3950
        %v4109 = vadd.f32 %v3726, %v3952
        %v4110 = vadd.f32 %v3727, %v3954
        %v4111 = vadd.f32 %v3728, %v3956
        %v4112 = vadd.f32 %v3729, %v3958
        %v4113 = vadd.f32 %v3730, %v3960
        %v4114 = vadd.f32 %v3731, %v3962
        %v4115 = vadd.f32 %v3732, %v3964
        %v4116 = vadd.f32 %v3733, %v3966
        %v4117 = vadd.f32 %v3734, %v3968
        %v4118 = vadd.f32 %v3735, %v3970
        %v4119 = vadd.f32 %v3736, %v3972
        %v4120 = vadd.f32 %v3737, %v3974
        %v4121 = vadd.f32 %v3738, %v3976
        %v4122 = vadd.f32 %v3739, %v3978
        %v4123 = vadd.f32 %v3740, %v3980
        %v4124 = vadd.f32 %v3741, %v3982
        %v4125 = vadd.f32 %v3742, %v3984
        %v4126 = vadd.f32 %v3743, %v3986
        %v4127 = vadd.f32 %v3744, %v3988
        %v4128 = vadd.f32 %v3745, %v3990
        %v4129 = vadd.f32 %v3746, %v3992
        %v4130 = vadd.f32 %v3747, %v3994
        %v4131 = vadd.f32 %v3748, %v3996
        %v4132 = vadd.f32 %v3749, %v3998
        %v4133 = vadd.f32 %v3750, %v4000
        %v4134 = vadd.f32 %v3751, %v4002
        %v4135 = vadd.f32 %v3752, %v4004
        %v4136 = vadd.f32 %v3753, %v4006
        %v4137 = vadd.f32 %v3754, %v4008
        %v4138 = vadd.f32 %v3755, %v4010
        %v4139 = vadd.f32 %v3756, %v4012
        %v4140 = vadd.f32 %v3757, %v4014
        %v4141 = vadd.f32 %v3758, %v4011
        %v4142 = vadd.f32 %v3759, %v4013
        %v4143 = vld [vmem:[%s2] sm:$0x3]
        %v4145 = vlaneseq
        %v4146 = vshrl.u32 %v4145, 7
        %v4147 = vsub.s32 0, %v4146
        %v4148 = vrot.slane %v4143, %v4147
        %v4149 = vlaneseq
        %v4150 = vshrl.u32 %v4149, 7
        %v4151 = vsub.s32 1, %v4150
        %v4152 = vrot.slane %v4143, %v4151
        %v4155 = vadd.f32 %v4079, %v4148
        %v4156 = vadd.f32 %v4080, %v4152
        %v4157 = vadd.f32 %v4081, %v4148
        %v4158 = vadd.f32 %v4082, %v4152
        %v4159 = vadd.f32 %v4083, %v4148
        %v4160 = vadd.f32 %v4084, %v4152
        %v4161 = vadd.f32 %v4085, %v4148
        %v4162 = vadd.f32 %v4086, %v4152
        %v4163 = vadd.f32 %v4087, %v4148
        %v4164 = vadd.f32 %v4088, %v4152
        %v4165 = vadd.f32 %v4089, %v4148
        %v4166 = vadd.f32 %v4090, %v4152
        %v4167 = vadd.f32 %v4091, %v4148
        %v4168 = vadd.f32 %v4092, %v4152
        %v4169 = vadd.f32 %v4093, %v4148
        %v4170 = vadd.f32 %v4094, %v4152
        %v4171 = vadd.f32 %v4095, %v4148
        %v4172 = vadd.f32 %v4096, %v4152
        %v4173 = vadd.f32 %v4097, %v4148
        %v4174 = vadd.f32 %v4098, %v4152
        %v4175 = vadd.f32 %v4099, %v4148
        %v4176 = vadd.f32 %v4100, %v4152
        %v4177 = vadd.f32 %v4101, %v4148
        %v4178 = vadd.f32 %v4102, %v4152
        %v4179 = vadd.f32 %v4103, %v4148
        %v4180 = vadd.f32 %v4104, %v4152
        %v4181 = vadd.f32 %v4105, %v4148
        %v4182 = vadd.f32 %v4106, %v4152
        %v4183 = vadd.f32 %v4107, %v4148
        %v4184 = vadd.f32 %v4108, %v4152
        %v4185 = vadd.f32 %v4109, %v4148
        %v4186 = vadd.f32 %v4110, %v4152
        %v4187 = vadd.f32 %v4111, %v4148
        %v4188 = vadd.f32 %v4112, %v4152
        %v4189 = vadd.f32 %v4113, %v4148
        %v4190 = vadd.f32 %v4114, %v4152
        %v4191 = vadd.f32 %v4115, %v4148
        %v4192 = vadd.f32 %v4116, %v4152
        %v4193 = vadd.f32 %v4117, %v4148
        %v4194 = vadd.f32 %v4118, %v4152
        %v4195 = vadd.f32 %v4119, %v4148
        %v4196 = vadd.f32 %v4120, %v4152
        %v4197 = vadd.f32 %v4121, %v4148
        %v4198 = vadd.f32 %v4122, %v4152
        %v4199 = vadd.f32 %v4123, %v4148
        %v4200 = vadd.f32 %v4124, %v4152
        %v4201 = vadd.f32 %v4125, %v4148
        %v4202 = vadd.f32 %v4126, %v4152
        %v4203 = vadd.f32 %v4127, %v4148
        %v4204 = vadd.f32 %v4128, %v4152
        %v4205 = vadd.f32 %v4129, %v4148
        %v4206 = vadd.f32 %v4130, %v4152
        %v4207 = vadd.f32 %v4131, %v4148
        %v4208 = vadd.f32 %v4132, %v4152
        %v4209 = vadd.f32 %v4133, %v4148
        %v4210 = vadd.f32 %v4134, %v4152
        %v4211 = vadd.f32 %v4135, %v4148
        %v4212 = vadd.f32 %v4136, %v4152
        %v4213 = vadd.f32 %v4137, %v4148
        %v4214 = vadd.f32 %v4138, %v4152
        %v4215 = vadd.f32 %v4139, %v4148
        %v4216 = vadd.f32 %v4140, %v4152
        %v4217 = vadd.f32 %v4141, %v4148
        %v4218 = vadd.f32 %v4142, %v4152
        %v4219 = vtanh.pop %v4155
        %v4220 = vtanh.pop %v4156
        %v4221 = vtanh.pop %v4157
        %v4222 = vtanh.pop %v4158
        %v4223 = vtanh.pop %v4159
        %v4224 = vtanh.pop %v4160
        %v4225 = vtanh.pop %v4161
        %v4226 = vtanh.pop %v4162
        %v4227 = vtanh.pop %v4163
        %v4228 = vtanh.pop %v4164
        %v4229 = vtanh.pop %v4165
        %v4230 = vtanh.pop %v4166
        %v4231 = vtanh.pop %v4167
        %v4232 = vtanh.pop %v4168
        %v4233 = vtanh.pop %v4169
        %v4234 = vtanh.pop %v4170
        %v4235 = vtanh.pop %v4171
        %v4236 = vtanh.pop %v4172
        %v4237 = vtanh.pop %v4173
        %v4238 = vtanh.pop %v4174
        %v4239 = vtanh.pop %v4175
        %v4240 = vtanh.pop %v4176
        %v4241 = vtanh.pop %v4177
        %v4242 = vtanh.pop %v4178
        %v4243 = vtanh.pop %v4179
        %v4244 = vtanh.pop %v4180
        %v4245 = vtanh.pop %v4181
        %v4246 = vtanh.pop %v4182
        %v4247 = vtanh.pop %v4183
        %v4248 = vtanh.pop %v4184
        %v4249 = vtanh.pop %v4185
        %v4250 = vtanh.pop %v4186
        %v4251 = vtanh.pop %v4187
        %v4252 = vtanh.pop %v4188
        %v4253 = vtanh.pop %v4189
        %v4254 = vtanh.pop %v4190
        %v4255 = vtanh.pop %v4191
        %v4256 = vtanh.pop %v4192
        %v4257 = vtanh.pop %v4193
        %v4258 = vtanh.pop %v4194
        %v4259 = vtanh.pop %v4195
        %v4260 = vtanh.pop %v4196
        %v4261 = vtanh.pop %v4197
        %v4262 = vtanh.pop %v4198
        %v4263 = vtanh.pop %v4199
        %v4264 = vtanh.pop %v4200
        %v4265 = vtanh.pop %v4201
        %v4266 = vtanh.pop %v4202
        %v4267 = vtanh.pop %v4203
        %v4268 = vtanh.pop %v4204
        %v4269 = vtanh.pop %v4205
        %v4270 = vtanh.pop %v4206
        %v4271 = vtanh.pop %v4207
        %v4272 = vtanh.pop %v4208
        %v4273 = vtanh.pop %v4209
        %v4274 = vtanh.pop %v4210
        %v4275 = vtanh.pop %v4211
        %v4276 = vtanh.pop %v4212
        %v4277 = vtanh.pop %v4213
        %v4278 = vtanh.pop %v4214
        %v4279 = vtanh.pop %v4215
        %v4280 = vtanh.pop %v4216
        %v4281 = vtanh.pop %v4217
        %v4282 = vtanh.pop %v4218
        %v4283 = vld [vmem:[%s3] sm:$0xff]
        %v4284 = vld [vmem:[%s3 + $0x8] sm:$0xff]
        %v4285 = vld [vmem:[%s3 + $0x10] sm:$0xff]
        %v4286 = vld [vmem:[%s3 + $0x18] sm:$0xff]
        %v4287 = vld [vmem:[%s3 + $0x20] sm:$0xff]
        %v4288 = vld [vmem:[%s3 + $0x28] sm:$0xff]
        %v4289 = vld [vmem:[%s3 + $0x30] sm:$0xff]
        %v4290 = vld [vmem:[%s3 + $0x38] sm:$0xff]
        %v4291 = vld [vmem:[%s3 + $0x40] sm:$0xff]
        %v4292 = vld [vmem:[%s3 + $0x48] sm:$0xff]
        %v4293 = vld [vmem:[%s3 + $0x50] sm:$0xff]
        %v4294 = vld [vmem:[%s3 + $0x58] sm:$0xff]
        %v4295 = vld [vmem:[%s3 + $0x60] sm:$0xff]
        %v4296 = vld [vmem:[%s3 + $0x68] sm:$0xff]
        %v4297 = vld [vmem:[%s3 + $0x70] sm:$0xff]
        %v4298 = vld [vmem:[%s3 + $0x78] sm:$0xff]
        %v4299 = vld [vmem:[%s3 + $0x80] sm:$0xff]
        %v4300 = vld [vmem:[%s3 + $0x88] sm:$0xff]
        %v4301 = vld [vmem:[%s3 + $0x90] sm:$0xff]
        %v4302 = vld [vmem:[%s3 + $0x98] sm:$0xff]
        %v4303 = vld [vmem:[%s3 + $0xa0] sm:$0xff]
        %v4304 = vld [vmem:[%s3 + $0xa8] sm:$0xff]
        %v4305 = vld [vmem:[%s3 + $0xb0] sm:$0xff]
        %v4306 = vld [vmem:[%s3 + $0xb8] sm:$0xff]
        %v4307 = vld [vmem:[%s3 + $0xc0] sm:$0xff]
        %v4308 = vld [vmem:[%s3 + $0xc8] sm:$0xff]
        %v4309 = vld [vmem:[%s3 + $0xd0] sm:$0xff]
        %v4310 = vld [vmem:[%s3 + $0xd8] sm:$0xff]
        %vm4311 = vcmask 1014784
        %v4313 = vsel %vm4311, %v4284, 0
        %v4316 = vsel %vm4311, %v4286, 0
        %v4319 = vsel %vm4311, %v4288, 0
        %v4322 = vsel %vm4311, %v4290, 0
        %v4325 = vsel %vm4311, %v4292, 0
        %v4328 = vsel %vm4311, %v4294, 0
        %v4331 = vsel %vm4311, %v4296, 0
        %v4334 = vsel %vm4311, %v4298, 0
        %v4337 = vsel %vm4311, %v4300, 0
        %v4340 = vsel %vm4311, %v4302, 0
        %v4343 = vsel %vm4311, %v4304, 0
        %v4346 = vsel %vm4311, %v4306, 0
        %v4349 = vsel %vm4311, %v4308, 0
        %v4352 = vsel %vm4311, %v4310, 0
        %v4355 = vsel %vm3888, %v4281, 0
        %v4358 = vsel %vm3888, %v4282, 0
        %4360 = vmatprep.subr.mxu0 %v4250
        %4361 = vmatpush1.msra.mxu0 %v4249
        %4362 = vmatprep.subr.mxu0 %v4248
        %4363 = vmatpush1.msra.mxu0 %v4247
        %4364 = vmatprep.subr.mxu0 %v4246
        %4365 = vmatpush1.msra.mxu0 %v4245
        %4366 = vmatprep.subr.mxu0 %v4244
        %4367 = vmatpush1.msra.mxu0 %v4243
        %4368 = vmatprep.subr.mxu0 %v4242
        %4369 = vmatpush1.msra.mxu0 %v4241
        %4370 = vmatprep.subr.mxu0 %v4240
        %4371 = vmatpush1.msra.mxu0 %v4239
        %4372 = vmatprep.subr.mxu0 %v4238
        %4373 = vmatpush1.msra.mxu0 %v4237
        %4374 = vmatprep.subr.mxu0 %v4236
        %4375 = vmatpush1.msra.mxu0 %v4235
        %4376 = vmatprep.subr.mxu0 %v4234
        %4377 = vmatpush1.msra.mxu0 %v4233
        %4378 = vmatprep.subr.mxu0 %v4232
        %4379 = vmatpush1.msra.mxu0 %v4231
        %4380 = vmatprep.subr.mxu0 %v4230
        %4381 = vmatpush1.msra.mxu0 %v4229
        %4382 = vmatprep.subr.mxu0 %v4228
        %4383 = vmatpush1.msra.mxu0 %v4227
        %4384 = vmatprep.subr.mxu0 %v4226
        %4385 = vmatpush1.msra.mxu0 %v4225
        %4386 = vmatprep.subr.mxu0 %v4224
        %4387 = vmatpush1.msra.mxu0 %v4223
        %4388 = vmatprep.subr.mxu0 %v4222
        %4389 = vmatpush1.msra.mxu0 %v4221
        %4390 = vmatprep.subr.mxu0 %v4220
        %4391 = vmatpush1.msra.mxu0 %v4219
        %4392 = vmatprep.subr.mxu0 %v4358
        %4393 = vmatpush2.msra.mxu0 %v4355
        %4394 = vmatprep.subr.mxu0 %v4280
        %4395 = vmatpush2.msra.mxu0 %v4279
        %4396 = vmatprep.subr.mxu0 %v4278
        %4397 = vmatpush2.msra.mxu0 %v4277
        %4398 = vmatprep.subr.mxu0 %v4276
        %4399 = vmatpush2.msra.mxu0 %v4275
        %4400 = vmatprep.subr.mxu0 %v4274
        %4401 = vmatpush2.msra.mxu0 %v4273
        %4402 = vmatprep.subr.mxu0 %v4272
        %4403 = vmatpush2.msra.mxu0 %v4271
        %4404 = vmatprep.subr.mxu0 %v4270
        %4405 = vmatpush2.msra.mxu0 %v4269
        %4406 = vmatprep.subr.mxu0 %v4268
        %4407 = vmatpush2.msra.mxu0 %v4267
        %4408 = vmatprep.subr.mxu0 %v4266
        %4409 = vmatpush2.msra.mxu0 %v4265
        %4410 = vmatprep.subr.mxu0 %v4264
        %4411 = vmatpush2.msra.mxu0 %v4263
        %4412 = vmatprep.subr.mxu0 %v4262
        %4413 = vmatpush2.msra.mxu0 %v4261
        %4414 = vmatprep.subr.mxu0 %v4260
        %4415 = vmatpush2.msra.mxu0 %v4259
        %4416 = vmatprep.subr.mxu0 %v4258
        %4417 = vmatpush2.msra.mxu0 %v4257
        %4418 = vmatprep.subr.mxu0 %v4256
        %4419 = vmatpush2.msra.mxu0 %v4255
        %4420 = vmatprep.subr.mxu0 %v4254
        %4421 = vmatpush2.msra.mxu0 %v4253
        %4422 = vmatprep.subr.mxu0 %v4252
        %4423 = vmatpush2.msra.mxu0 %v4251
        %4424 = vmatprep.mubr.f32.mxu0 %v4313
        %4425 = vmatmul.mubr.f32.gmra.mxu0 %v4283
        %v4426 = vpop.f32.mrf.mxu0
        %v4427 = vadd.f32 0.0, %v4426
        %v4428 = vpop.f32.mrf.mxu0
        %v4429 = vadd.f32 0.0, %v4428
        %4430 = vmatprep.mubr.f32.mxu0 %v4316
        %4431 = vmatmul.mubr.f32.gmra.mxu0 %v4285
        %v4432 = vpop.f32.mrf.mxu0
        %v4433 = vadd.f32 0.0, %v4432
        %v4434 = vpop.f32.mrf.mxu0
        %v4435 = vadd.f32 0.0, %v4434
        %4436 = vmatprep.mubr.f32.mxu0 %v4319
        %4437 = vmatmul.mubr.f32.gmra.mxu0 %v4287
        %v4438 = vpop.f32.mrf.mxu0
        %v4439 = vadd.f32 0.0, %v4438
        %v4440 = vpop.f32.mrf.mxu0
        %v4441 = vadd.f32 0.0, %v4440
        %4442 = vmatprep.mubr.f32.mxu0 %v4322
        %4443 = vmatmul.mubr.f32.gmra.mxu0 %v4289
        %v4444 = vpop.f32.mrf.mxu0
        %v4445 = vadd.f32 0.0, %v4444
        %v4446 = vpop.f32.mrf.mxu0
        %v4447 = vadd.f32 0.0, %v4446
        %4448 = vmatprep.mubr.f32.mxu0 %v4325
        %4449 = vmatmul.mubr.f32.gmra.mxu0 %v4291
        %v4450 = vpop.f32.mrf.mxu0
        %v4451 = vadd.f32 0.0, %v4450
        %v4452 = vpop.f32.mrf.mxu0
        %v4453 = vadd.f32 0.0, %v4452
        %4454 = vmatprep.mubr.f32.mxu0 %v4328
        %4455 = vmatmul.mubr.f32.gmra.mxu0 %v4293
        %v4456 = vpop.f32.mrf.mxu0
        %v4457 = vadd.f32 0.0, %v4456
        %v4458 = vpop.f32.mrf.mxu0
        %v4459 = vadd.f32 0.0, %v4458
        %4460 = vmatprep.mubr.f32.mxu0 %v4331
        %4461 = vmatmul.mubr.f32.gmra.mxu0 %v4295
        %v4462 = vpop.f32.mrf.mxu0
        %v4463 = vadd.f32 0.0, %v4462
        %v4464 = vpop.f32.mrf.mxu0
        %v4465 = vadd.f32 0.0, %v4464
        %4466 = vmatprep.mubr.f32.mxu0 %v4334
        %4467 = vmatmul.mubr.f32.gmra.mxu0 %v4297
        %v4468 = vpop.f32.mrf.mxu0
        %v4469 = vadd.f32 0.0, %v4468
        %v4470 = vpop.f32.mrf.mxu0
        %v4471 = vadd.f32 0.0, %v4470
        %4472 = vmatprep.mubr.f32.mxu0 %v4337
        %4473 = vmatmul.mubr.f32.gmra.mxu0 %v4299
        %v4474 = vpop.f32.mrf.mxu0
        %v4475 = vadd.f32 0.0, %v4474
        %v4476 = vpop.f32.mrf.mxu0
        %v4477 = vadd.f32 0.0, %v4476
        %4478 = vmatprep.mubr.f32.mxu0 %v4340
        %4479 = vmatmul.mubr.f32.gmra.mxu0 %v4301
        %v4480 = vpop.f32.mrf.mxu0
        %v4481 = vadd.f32 0.0, %v4480
        %v4482 = vpop.f32.mrf.mxu0
        %v4483 = vadd.f32 0.0, %v4482
        %4484 = vmatprep.mubr.f32.mxu0 %v4343
        %4485 = vmatmul.mubr.f32.gmra.mxu0 %v4303
        %v4486 = vpop.f32.mrf.mxu0
        %v4487 = vadd.f32 0.0, %v4486
        %v4488 = vpop.f32.mrf.mxu0
        %v4489 = vadd.f32 0.0, %v4488
        %4490 = vmatprep.mubr.f32.mxu0 %v4346
        %4491 = vmatmul.mubr.f32.gmra.mxu0 %v4305
        %v4492 = vpop.f32.mrf.mxu0
        %v4493 = vadd.f32 0.0, %v4492
        %v4494 = vpop.f32.mrf.mxu0
        %v4495 = vadd.f32 0.0, %v4494
        %4496 = vmatprep.mubr.f32.mxu0 %v4349
        %4497 = vmatmul.mubr.f32.gmra.mxu0 %v4307
        %v4498 = vpop.f32.mrf.mxu0
        %v4499 = vadd.f32 0.0, %v4498
        %v4500 = vpop.f32.mrf.mxu0
        %v4501 = vadd.f32 0.0, %v4500
        %4502 = vmatprep.mubr.f32.mxu0 %v4352
        %4503 = vmatmul.mubr.f32.gmra.mxu0 %v4309
        %v4504 = vpop.f32.mrf.mxu0
        %v4505 = vadd.f32 0.0, %v4504
        %v4506 = vpop.f32.mrf.mxu0
        %v4507 = vadd.f32 0.0, %v4506
        %4508 = vdwg.mxu0
        %v4509 = vld [vmem:[%s4] sm:$0xff]
        %v4510 = vld [vmem:[%s4 + $0x8] sm:$0xff]
        %v4511 = vld [vmem:[%s4 + $0x10] sm:$0xff]
        %v4512 = vld [vmem:[%s4 + $0x18] sm:$0xff]
        %v4513 = vld [vmem:[%s4 + $0x20] sm:$0xff]
        %v4514 = vld [vmem:[%s4 + $0x28] sm:$0xff]
        %v4515 = vld [vmem:[%s4 + $0x30] sm:$0xff]
        %v4516 = vld [vmem:[%s4 + $0x38] sm:$0xff]
        %v4517 = vld [vmem:[%s4 + $0x40] sm:$0xff]
        %v4518 = vld [vmem:[%s4 + $0x48] sm:$0xff]
        %v4519 = vld [vmem:[%s4 + $0x50] sm:$0xff]
        %v4520 = vld [vmem:[%s4 + $0x58] sm:$0xff]
        %v4521 = vld [vmem:[%s4 + $0x60] sm:$0xff]
        %v4522 = vld [vmem:[%s4 + $0x68] sm:$0xff]
        %v4523 = vld [vmem:[%s4 + $0x70] sm:$0xff]
        %v4524 = vld [vmem:[%s4 + $0x78] sm:$0xff]
        %v4525 = vld [vmem:[%s4 + $0x80] sm:$0xff]
        %v4526 = vld [vmem:[%s4 + $0x88] sm:$0xff]
        %v4527 = vld [vmem:[%s4 + $0x90] sm:$0xff]
        %v4528 = vld [vmem:[%s4 + $0x98] sm:$0xff]
        %v4529 = vld [vmem:[%s4 + $0xa0] sm:$0xff]
        %v4530 = vld [vmem:[%s4 + $0xa8] sm:$0xff]
        %v4531 = vld [vmem:[%s4 + $0xb0] sm:$0xff]
        %v4532 = vld [vmem:[%s4 + $0xb8] sm:$0xff]
        %v4533 = vld [vmem:[%s4 + $0xc0] sm:$0xff]
        %v4534 = vld [vmem:[%s4 + $0xc8] sm:$0xff]
        %v4535 = vld [vmem:[%s4 + $0xd0] sm:$0xff]
        %v4536 = vld [vmem:[%s4 + $0xd8] sm:$0xff]
        %v4538 = vsel %vm4311, %v4510, 0
        %v4541 = vsel %vm4311, %v4512, 0
        %v4544 = vsel %vm4311, %v4514, 0
        %v4547 = vsel %vm4311, %v4516, 0
        %v4550 = vsel %vm4311, %v4518, 0
        %v4553 = vsel %vm4311, %v4520, 0
        %v4556 = vsel %vm4311, %v4522, 0
        %v4559 = vsel %vm4311, %v4524, 0
        %v4562 = vsel %vm4311, %v4526, 0
        %v4565 = vsel %vm4311, %v4528, 0
        %v4568 = vsel %vm4311, %v4530, 0
        %v4571 = vsel %vm4311, %v4532, 0
        %v4574 = vsel %vm4311, %v4534, 0
        %v4577 = vsel %vm4311, %v4536, 0
        %4579 = vmatprep.subr.mxu0 %v4250
        %4580 = vmatpush1.msra.mxu0 %v4249
        %4581 = vmatprep.subr.mxu0 %v4248
        %4582 = vmatpush1.msra.mxu0 %v4247
        %4583 = vmatprep.subr.mxu0 %v4246
        %4584 = vmatpush1.msra.mxu0 %v4245
        %4585 = vmatprep.subr.mxu0 %v4244
        %4586 = vmatpush1.msra.mxu0 %v4243
        %4587 = vmatprep.subr.mxu0 %v4242
        %4588 = vmatpush1.msra.mxu0 %v4241
        %4589 = vmatprep.subr.mxu0 %v4240
        %4590 = vmatpush1.msra.mxu0 %v4239
        %4591 = vmatprep.subr.mxu0 %v4238
        %4592 = vmatpush1.msra.mxu0 %v4237
        %4593 = vmatprep.subr.mxu0 %v4236
        %4594 = vmatpush1.msra.mxu0 %v4235
        %4595 = vmatprep.subr.mxu0 %v4234
        %4596 = vmatpush1.msra.mxu0 %v4233
        %4597 = vmatprep.subr.mxu0 %v4232
        %4598 = vmatpush1.msra.mxu0 %v4231
        %4599 = vmatprep.subr.mxu0 %v4230
        %4600 = vmatpush1.msra.mxu0 %v4229
        %4601 = vmatprep.subr.mxu0 %v4228
        %4602 = vmatpush1.msra.mxu0 %v4227
        %4603 = vmatprep.subr.mxu0 %v4226
        %4604 = vmatpush1.msra.mxu0 %v4225
        %4605 = vmatprep.subr.mxu0 %v4224
        %4606 = vmatpush1.msra.mxu0 %v4223
        %4607 = vmatprep.subr.mxu0 %v4222
        %4608 = vmatpush1.msra.mxu0 %v4221
        %4609 = vmatprep.subr.mxu0 %v4220
        %4610 = vmatpush1.msra.mxu0 %v4219
        %4611 = vmatprep.subr.mxu0 %v4358
        %4612 = vmatpush2.msra.mxu0 %v4355
        %4613 = vmatprep.subr.mxu0 %v4280
        %4614 = vmatpush2.msra.mxu0 %v4279
        %4615 = vmatprep.subr.mxu0 %v4278
        %4616 = vmatpush2.msra.mxu0 %v4277
        %4617 = vmatprep.subr.mxu0 %v4276
        %4618 = vmatpush2.msra.mxu0 %v4275
        %4619 = vmatprep.subr.mxu0 %v4274
        %4620 = vmatpush2.msra.mxu0 %v4273
        %4621 = vmatprep.subr.mxu0 %v4272
        %4622 = vmatpush2.msra.mxu0 %v4271
        %4623 = vmatprep.subr.mxu0 %v4270
        %4624 = vmatpush2.msra.mxu0 %v4269
        %4625 = vmatprep.subr.mxu0 %v4268
        %4626 = vmatpush2.msra.mxu0 %v4267
        %4627 = vmatprep.subr.mxu0 %v4266
        %4628 = vmatpush2.msra.mxu0 %v4265
        %4629 = vmatprep.subr.mxu0 %v4264
        %4630 = vmatpush2.msra.mxu0 %v4263
        %4631 = vmatprep.subr.mxu0 %v4262
        %4632 = vmatpush2.msra.mxu0 %v4261
        %4633 = vmatprep.subr.mxu0 %v4260
        %4634 = vmatpush2.msra.mxu0 %v4259
        %4635 = vmatprep.subr.mxu0 %v4258
        %4636 = vmatpush2.msra.mxu0 %v4257
        %4637 = vmatprep.subr.mxu0 %v4256
        %4638 = vmatpush2.msra.mxu0 %v4255
        %4639 = vmatprep.subr.mxu0 %v4254
        %4640 = vmatpush2.msra.mxu0 %v4253
        %4641 = vmatprep.subr.mxu0 %v4252
        %4642 = vmatpush2.msra.mxu0 %v4251
        %4643 = vmatprep.mubr.f32.mxu0 %v4538
        %4644 = vmatmul.mubr.f32.gmra.mxu0 %v4509
        %v4645 = vpop.f32.mrf.mxu0
        %v4646 = vadd.f32 0.0, %v4645
        %v4647 = vpop.f32.mrf.mxu0
        %v4648 = vadd.f32 0.0, %v4647
        %4649 = vmatprep.mubr.f32.mxu0 %v4541
        %4650 = vmatmul.mubr.f32.gmra.mxu0 %v4511
        %v4651 = vpop.f32.mrf.mxu0
        %v4652 = vadd.f32 0.0, %v4651
        %v4653 = vpop.f32.mrf.mxu0
        %v4654 = vadd.f32 0.0, %v4653
        %4655 = vmatprep.mubr.f32.mxu0 %v4544
        %4656 = vmatmul.mubr.f32.gmra.mxu0 %v4513
        %v4657 = vpop.f32.mrf.mxu0
        %v4658 = vadd.f32 0.0, %v4657
        %v4659 = vpop.f32.mrf.mxu0
        %v4660 = vadd.f32 0.0, %v4659
        %4661 = vmatprep.mubr.f32.mxu0 %v4547
        %4662 = vmatmul.mubr.f32.gmra.mxu0 %v4515
        %v4663 = vpop.f32.mrf.mxu0
        %v4664 = vadd.f32 0.0, %v4663
        %v4665 = vpop.f32.mrf.mxu0
        %v4666 = vadd.f32 0.0, %v4665
        %4667 = vmatprep.mubr.f32.mxu0 %v4550
        %4668 = vmatmul.mubr.f32.gmra.mxu0 %v4517
        %v4669 = vpop.f32.mrf.mxu0
        %v4670 = vadd.f32 0.0, %v4669
        %v4671 = vpop.f32.mrf.mxu0
        %v4672 = vadd.f32 0.0, %v4671
        %4673 = vmatprep.mubr.f32.mxu0 %v4553
        %4674 = vmatmul.mubr.f32.gmra.mxu0 %v4519
        %v4675 = vpop.f32.mrf.mxu0
        %v4676 = vadd.f32 0.0, %v4675
        %v4677 = vpop.f32.mrf.mxu0
        %v4678 = vadd.f32 0.0, %v4677
        %4679 = vmatprep.mubr.f32.mxu0 %v4556
        %4680 = vmatmul.mubr.f32.gmra.mxu0 %v4521
        %v4681 = vpop.f32.mrf.mxu0
        %v4682 = vadd.f32 0.0, %v4681
        %v4683 = vpop.f32.mrf.mxu0
        %v4684 = vadd.f32 0.0, %v4683
        %4685 = vmatprep.mubr.f32.mxu0 %v4559
        %4686 = vmatmul.mubr.f32.gmra.mxu0 %v4523
        %v4687 = vpop.f32.mrf.mxu0
        %v4688 = vadd.f32 0.0, %v4687
        %v4689 = vpop.f32.mrf.mxu0
        %v4690 = vadd.f32 0.0, %v4689
        %4691 = vmatprep.mubr.f32.mxu0 %v4562
        %4692 = vmatmul.mubr.f32.gmra.mxu0 %v4525
        %v4693 = vpop.f32.mrf.mxu0
        %v4694 = vadd.f32 0.0, %v4693
        %v4695 = vpop.f32.mrf.mxu0
        %v4696 = vadd.f32 0.0, %v4695
        %4697 = vmatprep.mubr.f32.mxu0 %v4565
        %4698 = vmatmul.mubr.f32.gmra.mxu0 %v4527
        %v4699 = vpop.f32.mrf.mxu0
        %v4700 = vadd.f32 0.0, %v4699
        %v4701 = vpop.f32.mrf.mxu0
        %v4702 = vadd.f32 0.0, %v4701
        %4703 = vmatprep.mubr.f32.mxu0 %v4568
        %4704 = vmatmul.mubr.f32.gmra.mxu0 %v4529
        %v4705 = vpop.f32.mrf.mxu0
        %v4706 = vadd.f32 0.0, %v4705
        %v4707 = vpop.f32.mrf.mxu0
        %v4708 = vadd.f32 0.0, %v4707
        %4709 = vmatprep.mubr.f32.mxu0 %v4571
        %4710 = vmatmul.mubr.f32.gmra.mxu0 %v4531
        %v4711 = vpop.f32.mrf.mxu0
        %v4712 = vadd.f32 0.0, %v4711
        %v4713 = vpop.f32.mrf.mxu0
        %v4714 = vadd.f32 0.0, %v4713
        %4715 = vmatprep.mubr.f32.mxu0 %v4574
        %4716 = vmatmul.mubr.f32.gmra.mxu0 %v4533
        %v4717 = vpop.f32.mrf.mxu0
        %v4718 = vadd.f32 0.0, %v4717
        %v4719 = vpop.f32.mrf.mxu0
        %v4720 = vadd.f32 0.0, %v4719
        %4721 = vmatprep.mubr.f32.mxu0 %v4577
        %4722 = vmatmul.mubr.f32.gmra.mxu0 %v4535
        %v4723 = vpop.f32.mrf.mxu0
        %v4724 = vadd.f32 0.0, %v4723
        %v4725 = vpop.f32.mrf.mxu0
        %v4726 = vadd.f32 0.0, %v4725
        %4727 = vdwg.mxu0
        %v4728 = vld [vmem:[#allocation4] sm:$0xff]
        %v4729 = vld [vmem:[#allocation4 + $0x8] sm:$0xff]
        %v4730 = vld [vmem:[#allocation4 + $0x10] sm:$0xff]
        %v4731 = vld [vmem:[#allocation4 + $0x18] sm:$0xff]
        %v4732 = vld [vmem:[#allocation4 + $0x20] sm:$0xff]
        %v4733 = vld [vmem:[#allocation4 + $0x28] sm:$0xff]
        %v4734 = vld [vmem:[#allocation4 + $0x30] sm:$0xff]
        %v4735 = vld [vmem:[#allocation4 + $0x38] sm:$0xff]
        %v4736 = vld [vmem:[#allocation4 + $0x40] sm:$0xff]
        %v4737 = vld [vmem:[#allocation4 + $0x48] sm:$0xff]
        %v4738 = vld [vmem:[#allocation4 + $0x50] sm:$0xff]
        %v4739 = vld [vmem:[#allocation4 + $0x58] sm:$0xff]
        %v4740 = vld [vmem:[#allocation4 + $0x60] sm:$0xff]
        %v4741 = vld [vmem:[#allocation4 + $0x68] sm:$0xff]
        %v4742 = vld [vmem:[#allocation4 + $0x70] sm:$0xff]
        %v4743 = vld [vmem:[#allocation4 + $0x78] sm:$0xff]
        %v4744 = vld [vmem:[#allocation4 + $0x80] sm:$0xff]
        %v4745 = vld [vmem:[#allocation4 + $0x88] sm:$0xff]
        %v4746 = vld [vmem:[#allocation4 + $0x90] sm:$0xff]
        %v4747 = vld [vmem:[#allocation4 + $0x98] sm:$0xff]
        %v4748 = vld [vmem:[#allocation4 + $0xa0] sm:$0xff]
        %v4749 = vld [vmem:[#allocation7] sm:$0xff]
        %v4750 = vld [vmem:[#allocation7 + $0x8] sm:$0xff]
        %v4751 = vld [vmem:[#allocation7 + $0x10] sm:$0xff]
        %v4752 = vld [vmem:[#allocation7 + $0x18] sm:$0xff]
        %v4753 = vld [vmem:[#allocation7 + $0x20] sm:$0xff]
        %v4754 = vld [vmem:[#allocation7 + $0x28] sm:$0xff]
        %v4755 = vld [vmem:[#allocation7 + $0x30] sm:$0xff]
        %v4756 = vld [vmem:[#allocation7 + $0x38] sm:$0xff]
        %v4757 = vld [vmem:[#allocation7 + $0x40] sm:$0xff]
        %v4758 = vld [vmem:[#allocation7 + $0x48] sm:$0xff]
        %v4759 = vld [vmem:[#allocation7 + $0x50] sm:$0xff]
        %v4760 = vld [vmem:[#allocation7 + $0x58] sm:$0xff]
        %v4761 = vld [vmem:[#allocation7 + $0x60] sm:$0xff]
        %v4762 = vld [vmem:[#allocation7 + $0x68] sm:$0xff]
        %v4763 = vld [vmem:[#allocation7 + $0x70] sm:$0xff]
        %v4764 = vld [vmem:[#allocation7 + $0x78] sm:$0xff]
        %v4765 = vld [vmem:[#allocation7 + $0x80] sm:$0xff]
        %v4766 = vld [vmem:[#allocation7 + $0x88] sm:$0xff]
        %v4767 = vld [vmem:[#allocation7 + $0x90] sm:$0xff]
        %v4768 = vld [vmem:[#allocation7 + $0x98] sm:$0xff]
        %v4769 = vld [vmem:[#allocation7 + $0xa0] sm:$0xff]
        %v4771 = vsel %vm1167, %v4648, 0
        %v4774 = vsel %vm1167, %v4654, 0
        %v4777 = vsel %vm1167, %v4660, 0
        %v4780 = vsel %vm1167, %v4666, 0
        %v4783 = vsel %vm1167, %v4672, 0
        %v4786 = vsel %vm1167, %v4678, 0
        %v4789 = vsel %vm1167, %v4684, 0
        %v4792 = vsel %vm1167, %v4690, 0
        %v4795 = vsel %vm1167, %v4696, 0
        %v4798 = vsel %vm1167, %v4702, 0
        %v4801 = vsel %vm1167, %v4708, 0
        %v4804 = vsel %vm1167, %v4714, 0
        %v4807 = vsel %vm1167, %v4720, 0
        %v4810 = vsel %vm1167, %v4726, 0
        %4812 = vmatprep.subr.mxu0 0.0
        %4813 = vmatpush1.msra.mxu0 %v4764
        %4814 = vmatprep.subr.mxu0 0.0
        %4815 = vmatpush1.msra.mxu0 %v4763
        %4816 = vmatprep.subr.mxu0 0.0
        %4817 = vmatpush1.msra.mxu0 %v4762
        %4818 = vmatprep.subr.mxu0 0.0
        %4819 = vmatpush1.msra.mxu0 %v4761
        %4820 = vmatprep.subr.mxu0 0.0
        %4821 = vmatpush1.msra.mxu0 %v4760
        %4822 = vmatprep.subr.mxu0 0.0
        %4823 = vmatpush1.msra.mxu0 %v4759
        %4824 = vmatprep.subr.mxu0 0.0
        %4825 = vmatpush1.msra.mxu0 %v4758
        %4826 = vmatprep.subr.mxu0 0.0
        %4827 = vmatpush1.msra.mxu0 %v4757
        %4828 = vmatprep.subr.mxu0 0.0
        %4829 = vmatpush1.msra.mxu0 %v4756
        %4830 = vmatprep.subr.mxu0 0.0
        %4831 = vmatpush1.msra.mxu0 %v4755
        %4832 = vmatprep.subr.mxu0 0.0
        %4833 = vmatpush1.msra.mxu0 %v4754
        %4834 = vmatprep.subr.mxu0 0.0
        %4835 = vmatpush1.msra.mxu0 %v4753
        %4836 = vmatprep.subr.mxu0 0.0
        %4837 = vmatpush1.msra.mxu0 %v4752
        %4838 = vmatprep.subr.mxu0 0.0
        %4839 = vmatpush1.msra.mxu0 %v4751
        %4840 = vmatprep.subr.mxu0 0.0
        %4841 = vmatpush1.msra.mxu0 %v4750
        %4842 = vmatprep.subr.mxu0 0.0
        %4843 = vmatpush1.msra.mxu0 %v4749
        %4844 = vmatprep.subr.mxu0 0.0
        %4845 = vmatpush2.msra.mxu0 0.0
        %4846 = vmatprep.subr.mxu0 0.0
        %4847 = vmatpush2.msra.mxu0 0.0
        %4848 = vmatprep.subr.mxu0 0.0
        %4849 = vmatpush2.msra.mxu0 0.0
        %4850 = vmatprep.subr.mxu0 0.0
        %4851 = vmatpush2.msra.mxu0 0.0
        %4852 = vmatprep.subr.mxu0 0.0
        %4853 = vmatpush2.msra.mxu0 0.0
        %4854 = vmatprep.subr.mxu0 0.0
        %4855 = vmatpush2.msra.mxu0 0.0
        %4856 = vmatprep.subr.mxu0 0.0
        %4857 = vmatpush2.msra.mxu0 0.0
        %4858 = vmatprep.subr.mxu0 0.0
        %4859 = vmatpush2.msra.mxu0 0.0
        %4860 = vmatprep.subr.mxu0 0.0
        %4861 = vmatpush2.msra.mxu0 0.0
        %4862 = vmatprep.subr.mxu0 0.0
        %4863 = vmatpush2.msra.mxu0 0.0
        %4864 = vmatprep.subr.mxu0 0.0
        %4865 = vmatpush2.msra.mxu0 0.0
        %4866 = vmatprep.subr.mxu0 0.0
        %4867 = vmatpush2.msra.mxu0 %v4769
        %4868 = vmatprep.subr.mxu0 0.0
        %4869 = vmatpush2.msra.mxu0 %v4768
        %4870 = vmatprep.subr.mxu0 0.0
        %4871 = vmatpush2.msra.mxu0 %v4767
        %4872 = vmatprep.subr.mxu0 0.0
        %4873 = vmatpush2.msra.mxu0 %v4766
        %4874 = vmatprep.subr.mxu0 0.0
        %4875 = vmatpush2.msra.mxu0 %v4765
        %4876 = vmatprep.mubr.f32.mxu0 %v4771
        %4877 = vmatmul.mubr.f32.gmra.mxu0 %v4646
        %v4878 = vpop.f32.mrf.mxu0
        %v4879 = vadd.f32 0.0, %v4878
        %v4880 = vpop.f32.mrf.mxu0
        %4881 = vmatprep.mubr.f32.mxu0 %v4774
        %4882 = vmatmul.mubr.f32.gmra.mxu0 %v4652
        %v4883 = vpop.f32.mrf.mxu0
        %v4884 = vadd.f32 0.0, %v4883
        %v4885 = vpop.f32.mrf.mxu0
        %4886 = vmatprep.mubr.f32.mxu0 %v4777
        %4887 = vmatmul.mubr.f32.gmra.mxu0 %v4658
        %v4888 = vpop.f32.mrf.mxu0
        %v4889 = vadd.f32 0.0, %v4888
        %v4890 = vpop.f32.mrf.mxu0
        %4891 = vmatprep.mubr.f32.mxu0 %v4780
        %4892 = vmatmul.mubr.f32.gmra.mxu0 %v4664
        %v4893 = vpop.f32.mrf.mxu0
        %v4894 = vadd.f32 0.0, %v4893
        %v4895 = vpop.f32.mrf.mxu0
        %4896 = vmatprep.mubr.f32.mxu0 %v4783
        %4897 = vmatmul.mubr.f32.gmra.mxu0 %v4670
        %v4898 = vpop.f32.mrf.mxu0
        %v4899 = vadd.f32 0.0, %v4898
        %v4900 = vpop.f32.mrf.mxu0
        %4901 = vmatprep.mubr.f32.mxu0 %v4786
        %4902 = vmatmul.mubr.f32.gmra.mxu0 %v4676
        %v4903 = vpop.f32.mrf.mxu0
        %v4904 = vadd.f32 0.0, %v4903
        %v4905 = vpop.f32.mrf.mxu0
        %4906 = vmatprep.mubr.f32.mxu0 %v4789
        %4907 = vmatmul.mubr.f32.gmra.mxu0 %v4682
        %v4908 = vpop.f32.mrf.mxu0
        %v4909 = vadd.f32 0.0, %v4908
        %v4910 = vpop.f32.mrf.mxu0
        %4911 = vmatprep.mubr.f32.mxu0 %v4792
        %4912 = vmatmul.mubr.f32.gmra.mxu0 %v4688
        %v4913 = vpop.f32.mrf.mxu0
        %v4914 = vadd.f32 0.0, %v4913
        %v4915 = vpop.f32.mrf.mxu0
        %4916 = vmatprep.mubr.f32.mxu0 %v4795
        %4917 = vmatmul.mubr.f32.gmra.mxu0 %v4694
        %v4918 = vpop.f32.mrf.mxu0
        %v4919 = vadd.f32 0.0, %v4918
        %v4920 = vpop.f32.mrf.mxu0
        %4921 = vmatprep.mubr.f32.mxu0 %v4798
        %4922 = vmatmul.mubr.f32.gmra.mxu0 %v4700
        %v4923 = vpop.f32.mrf.mxu0
        %v4924 = vadd.f32 0.0, %v4923
        %v4925 = vpop.f32.mrf.mxu0
        %4926 = vmatprep.mubr.f32.mxu0 %v4801
        %4927 = vmatmul.mubr.f32.gmra.mxu0 %v4706
        %v4928 = vpop.f32.mrf.mxu0
        %v4929 = vadd.f32 0.0, %v4928
        %v4930 = vpop.f32.mrf.mxu0
        %4931 = vmatprep.mubr.f32.mxu0 %v4804
        %4932 = vmatmul.mubr.f32.gmra.mxu0 %v4712
        %v4933 = vpop.f32.mrf.mxu0
        %v4934 = vadd.f32 0.0, %v4933
        %v4935 = vpop.f32.mrf.mxu0
        %4936 = vmatprep.mubr.f32.mxu0 %v4807
        %4937 = vmatmul.mubr.f32.gmra.mxu0 %v4718
        %v4938 = vpop.f32.mrf.mxu0
        %v4939 = vadd.f32 0.0, %v4938
        %v4940 = vpop.f32.mrf.mxu0
        %4941 = vmatprep.mubr.f32.mxu0 %v4810
        %4942 = vmatmul.mubr.f32.gmra.mxu0 %v4724
        %v4943 = vpop.f32.mrf.mxu0
        %v4944 = vadd.f32 0.0, %v4943
        %v4945 = vpop.f32.mrf.mxu0
        %4946 = vdwg.mxu0
        %v4948 = vsel %vm1167, %v4429, 0
        %v4951 = vsel %vm1167, %v4435, 0
        %v4954 = vsel %vm1167, %v4441, 0
        %v4957 = vsel %vm1167, %v4447, 0
        %v4960 = vsel %vm1167, %v4453, 0
        %v4963 = vsel %vm1167, %v4459, 0
        %v4966 = vsel %vm1167, %v4465, 0
        %v4969 = vsel %vm1167, %v4471, 0
        %v4972 = vsel %vm1167, %v4477, 0
        %v4975 = vsel %vm1167, %v4483, 0
        %v4978 = vsel %vm1167, %v4489, 0
        %v4981 = vsel %vm1167, %v4495, 0
        %v4984 = vsel %vm1167, %v4501, 0
        %v4987 = vsel %vm1167, %v4507, 0
        %4989 = vmatprep.subr.mxu0 0.0
        %4990 = vmatpush1.msra.mxu0 %v4743
        %4991 = vmatprep.subr.mxu0 0.0
        %4992 = vmatpush1.msra.mxu0 %v4742
        %4993 = vmatprep.subr.mxu0 0.0
        %4994 = vmatpush1.msra.mxu0 %v4741
        %4995 = vmatprep.subr.mxu0 0.0
        %4996 = vmatpush1.msra.mxu0 %v4740
        %4997 = vmatprep.subr.mxu0 0.0
        %4998 = vmatpush1.msra.mxu0 %v4739
        %4999 = vmatprep.subr.mxu0 0.0
        %5000 = vmatpush1.msra.mxu0 %v4738
        %5001 = vmatprep.subr.mxu0 0.0
        %5002 = vmatpush1.msra.mxu0 %v4737
        %5003 = vmatprep.subr.mxu0 0.0
        %5004 = vmatpush1.msra.mxu0 %v4736
        %5005 = vmatprep.subr.mxu0 0.0
        %5006 = vmatpush1.msra.mxu0 %v4735
        %5007 = vmatprep.subr.mxu0 0.0
        %5008 = vmatpush1.msra.mxu0 %v4734
        %5009 = vmatprep.subr.mxu0 0.0
        %5010 = vmatpush1.msra.mxu0 %v4733
        %5011 = vmatprep.subr.mxu0 0.0
        %5012 = vmatpush1.msra.mxu0 %v4732
        %5013 = vmatprep.subr.mxu0 0.0
        %5014 = vmatpush1.msra.mxu0 %v4731
        %5015 = vmatprep.subr.mxu0 0.0
        %5016 = vmatpush1.msra.mxu0 %v4730
        %5017 = vmatprep.subr.mxu0 0.0
        %5018 = vmatpush1.msra.mxu0 %v4729
        %5019 = vmatprep.subr.mxu0 0.0
        %5020 = vmatpush1.msra.mxu0 %v4728
        %5021 = vmatprep.subr.mxu0 0.0
        %5022 = vmatpush2.msra.mxu0 0.0
        %5023 = vmatprep.subr.mxu0 0.0
        %5024 = vmatpush2.msra.mxu0 0.0
        %5025 = vmatprep.subr.mxu0 0.0
        %5026 = vmatpush2.msra.mxu0 0.0
        %5027 = vmatprep.subr.mxu0 0.0
        %5028 = vmatpush2.msra.mxu0 0.0
        %5029 = vmatprep.subr.mxu0 0.0
        %5030 = vmatpush2.msra.mxu0 0.0
        %5031 = vmatprep.subr.mxu0 0.0
        %5032 = vmatpush2.msra.mxu0 0.0
        %5033 = vmatprep.subr.mxu0 0.0
        %5034 = vmatpush2.msra.mxu0 0.0
        %5035 = vmatprep.subr.mxu0 0.0
        %5036 = vmatpush2.msra.mxu0 0.0
        %5037 = vmatprep.subr.mxu0 0.0
        %5038 = vmatpush2.msra.mxu0 0.0
        %5039 = vmatprep.subr.mxu0 0.0
        %5040 = vmatpush2.msra.mxu0 0.0
        %5041 = vmatprep.subr.mxu0 0.0
        %5042 = vmatpush2.msra.mxu0 0.0
        %5043 = vmatprep.subr.mxu0 0.0
        %5044 = vmatpush2.msra.mxu0 %v4748
        %5045 = vmatprep.subr.mxu0 0.0
        %5046 = vmatpush2.msra.mxu0 %v4747
        %5047 = vmatprep.subr.mxu0 0.0
        %5048 = vmatpush2.msra.mxu0 %v4746
        %5049 = vmatprep.subr.mxu0 0.0
        %5050 = vmatpush2.msra.mxu0 %v4745
        %5051 = vmatprep.subr.mxu0 0.0
        %5052 = vmatpush2.msra.mxu0 %v4744
        %5053 = vmatprep.mubr.f32.mxu0 %v4948
        %5054 = vmatmul.mubr.f32.gmra.mxu0 %v4427
        %v5055 = vpop.f32.mrf.mxu0
        %v5056 = vadd.f32 %v4879, %v5055
        %v5057 = vpop.f32.mrf.mxu0
        %5058 = vmatprep.mubr.f32.mxu0 %v4951
        %5059 = vmatmul.mubr.f32.gmra.mxu0 %v4433
        %v5060 = vpop.f32.mrf.mxu0
        %v5061 = vadd.f32 %v4884, %v5060
        %v5062 = vpop.f32.mrf.mxu0
        %5063 = vmatprep.mubr.f32.mxu0 %v4954
        %5064 = vmatmul.mubr.f32.gmra.mxu0 %v4439
        %v5065 = vpop.f32.mrf.mxu0
        %v5066 = vadd.f32 %v4889, %v5065
        %v5067 = vpop.f32.mrf.mxu0
        %5068 = vmatprep.mubr.f32.mxu0 %v4957
        %5069 = vmatmul.mubr.f32.gmra.mxu0 %v4445
        %v5070 = vpop.f32.mrf.mxu0
        %v5071 = vadd.f32 %v4894, %v5070
        %v5072 = vpop.f32.mrf.mxu0
        %5073 = vmatprep.mubr.f32.mxu0 %v4960
        %5074 = vmatmul.mubr.f32.gmra.mxu0 %v4451
        %v5075 = vpop.f32.mrf.mxu0
        %v5076 = vadd.f32 %v4899, %v5075
        %v5077 = vpop.f32.mrf.mxu0
        %5078 = vmatprep.mubr.f32.mxu0 %v4963
        %5079 = vmatmul.mubr.f32.gmra.mxu0 %v4457
        %v5080 = vpop.f32.mrf.mxu0
        %v5081 = vadd.f32 %v4904, %v5080
        %v5082 = vpop.f32.mrf.mxu0
        %5083 = vmatprep.mubr.f32.mxu0 %v4966
        %5084 = vmatmul.mubr.f32.gmra.mxu0 %v4463
        %v5085 = vpop.f32.mrf.mxu0
        %v5086 = vadd.f32 %v4909, %v5085
        %v5087 = vpop.f32.mrf.mxu0
        %5088 = vmatprep.mubr.f32.mxu0 %v4969
        %5089 = vmatmul.mubr.f32.gmra.mxu0 %v4469
        %v5090 = vpop.f32.mrf.mxu0
        %v5091 = vadd.f32 %v4914, %v5090
        %v5092 = vpop.f32.mrf.mxu0
        %5093 = vmatprep.mubr.f32.mxu0 %v4972
        %5094 = vmatmul.mubr.f32.gmra.mxu0 %v4475
        %v5095 = vpop.f32.mrf.mxu0
        %v5096 = vadd.f32 %v4919, %v5095
        %v5097 = vpop.f32.mrf.mxu0
        %5098 = vmatprep.mubr.f32.mxu0 %v4975
        %5099 = vmatmul.mubr.f32.gmra.mxu0 %v4481
        %v5100 = vpop.f32.mrf.mxu0
        %v5101 = vadd.f32 %v4924, %v5100
        %v5102 = vpop.f32.mrf.mxu0
        %5103 = vmatprep.mubr.f32.mxu0 %v4978
        %5104 = vmatmul.mubr.f32.gmra.mxu0 %v4487
        %v5105 = vpop.f32.mrf.mxu0
        %v5106 = vadd.f32 %v4929, %v5105
        %v5107 = vpop.f32.mrf.mxu0
        %5108 = vmatprep.mubr.f32.mxu0 %v4981
        %5109 = vmatmul.mubr.f32.gmra.mxu0 %v4493
        %v5110 = vpop.f32.mrf.mxu0
        %v5111 = vadd.f32 %v4934, %v5110
        %v5112 = vpop.f32.mrf.mxu0
        %5113 = vmatprep.mubr.f32.mxu0 %v4984
        %5114 = vmatmul.mubr.f32.gmra.mxu0 %v4499
        %v5115 = vpop.f32.mrf.mxu0
        %v5116 = vadd.f32 %v4939, %v5115
        %v5117 = vpop.f32.mrf.mxu0
        %5118 = vmatprep.mubr.f32.mxu0 %v4987
        %5119 = vmatmul.mubr.f32.gmra.mxu0 %v4505
        %v5120 = vpop.f32.mrf.mxu0
        %v5121 = vadd.f32 %v4944, %v5120
        %v5122 = vpop.f32.mrf.mxu0
        %5123 = vdwg.mxu0
        %v5124 = vld [vmem:[%s7] sm:$0x1]
        %v5126 = vlaneseq
        %v5127 = vshrl.u32 %v5126, 7
        %v5128 = vsub.s32 0, %v5127
        %v5129 = vrot.slane %v5124, %v5128
        %v5131 = vadd.f32 %v5056, %v5129
        %v5132 = vadd.f32 %v5061, %v5129
        %v5133 = vadd.f32 %v5066, %v5129
        %v5134 = vadd.f32 %v5071, %v5129
        %v5135 = vadd.f32 %v5076, %v5129
        %v5136 = vadd.f32 %v5081, %v5129
        %v5137 = vadd.f32 %v5086, %v5129
        %v5138 = vadd.f32 %v5091, %v5129
        %v5139 = vadd.f32 %v5096, %v5129
        %v5140 = vadd.f32 %v5101, %v5129
        %v5141 = vadd.f32 %v5106, %v5129
        %v5142 = vadd.f32 %v5111, %v5129
        %v5143 = vadd.f32 %v5116, %v5129
        %v5144 = vadd.f32 %v5121, %v5129
        %v5145 = vtanh.pop %v5131
        %v5146 = vtanh.pop %v5132
        %v5147 = vtanh.pop %v5133
        %v5148 = vtanh.pop %v5134
        %v5149 = vtanh.pop %v5135
        %v5150 = vtanh.pop %v5136
        %v5151 = vtanh.pop %v5137
        %v5152 = vtanh.pop %v5138
        %v5153 = vtanh.pop %v5139
        %v5154 = vtanh.pop %v5140
        %v5155 = vtanh.pop %v5141
        %v5156 = vtanh.pop %v5142
        %v5157 = vtanh.pop %v5143
        %v5158 = vtanh.pop %v5144
        %v5159 = vld [vmem:[%s8] sm:$0xff]
        %v5160 = vld [vmem:[%s8 + $0x8] sm:$0xff]
        %v5161 = vld [vmem:[%s8 + $0x10] sm:$0xff]
        %v5162 = vld [vmem:[%s8 + $0x18] sm:$0xff]
        %v5163 = vld [vmem:[%s8 + $0x20] sm:$0xff]
        %v5164 = vld [vmem:[%s8 + $0x28] sm:$0xff]
        %v5165 = vld [vmem:[%s8 + $0x30] sm:$0xff]
        %v5166 = vld [vmem:[%s8 + $0x38] sm:$0xff]
        %v5167 = vld [vmem:[%s8 + $0x40] sm:$0xff]
        %v5168 = vld [vmem:[%s8 + $0x48] sm:$0xff]
        %v5169 = vld [vmem:[%s8 + $0x50] sm:$0xff]
        %v5170 = vld [vmem:[%s8 + $0x58] sm:$0xff]
        %v5171 = vld [vmem:[%s8 + $0x60] sm:$0xff]
        %v5172 = vld [vmem:[%s8 + $0x68] sm:$0xff]
        %v5173 = vld [vmem:[%s8 + $0x70] sm:$0xff]
        %v5174 = vld [vmem:[%s8 + $0x78] sm:$0xff]
        %v5175 = vld [vmem:[%s8 + $0x80] sm:$0xff]
        %v5176 = vld [vmem:[%s8 + $0x88] sm:$0xff]
        %v5177 = vld [vmem:[%s8 + $0x90] sm:$0xff]
        %v5178 = vld [vmem:[%s8 + $0x98] sm:$0xff]
        %v5179 = vld [vmem:[%s8 + $0xa0] sm:$0xf]
        %v5180 = vld [vmem:[%s8 + $0xa8] sm:$0xf]
        %vm5181 = vcmask 687104
        %v5183 = vsel %vm5181, %v5145, 0
        %v5186 = vsel %vm5181, %v5146, 0
        %v5189 = vsel %vm5181, %v5147, 0
        %v5192 = vsel %vm5181, %v5148, 0
        %v5195 = vsel %vm5181, %v5149, 0
        %v5198 = vsel %vm5181, %v5150, 0
        %v5201 = vsel %vm5181, %v5151, 0
        %v5204 = vsel %vm5181, %v5152, 0
        %v5207 = vsel %vm5181, %v5153, 0
        %v5210 = vsel %vm5181, %v5154, 0
        %v5213 = vsel %vm5181, %v5155, 0
        %v5216 = vsel %vm5181, %v5156, 0
        %v5219 = vsel %vm5181, %v5157, 0
        %v5222 = vsel %vm5181, %v5158, 0
        %v5225 = vsel %vm3888, %v5179, 0
        %v5228 = vsel %vm3888, %v5180, 0
        %5230 = vmatprep.subr.mxu0 0.0
        %5231 = vmatpush1.msra.mxu0 0.0
        %5232 = vmatprep.subr.mxu0 0.0
        %5233 = vmatpush1.msra.mxu0 0.0
        %5234 = vmatprep.subr.mxu0 0.0
        %5235 = vmatpush1.msra.mxu0 0.0
        %5236 = vmatprep.subr.mxu0 0.0
        %5237 = vmatpush1.msra.mxu0 0.0
        %5238 = vmatprep.subr.mxu0 0.0
        %5239 = vmatpush1.msra.mxu0 0.0
        %5240 = vmatprep.subr.mxu0 %v5228
        %5241 = vmatpush1.msra.mxu0 %v5225
        %5242 = vmatprep.subr.mxu0 %v5178
        %5243 = vmatpush1.msra.mxu0 %v5177
        %5244 = vmatprep.subr.mxu0 %v5176
        %5245 = vmatpush1.msra.mxu0 %v5175
        %5246 = vmatprep.subr.mxu0 %v5174
        %5247 = vmatpush1.msra.mxu0 %v5173
        %5248 = vmatprep.subr.mxu0 %v5172
        %5249 = vmatpush1.msra.mxu0 %v5171
        %5250 = vmatprep.subr.mxu0 %v5170
        %5251 = vmatpush1.msra.mxu0 %v5169
        %5252 = vmatprep.subr.mxu0 %v5168
        %5253 = vmatpush1.msra.mxu0 %v5167
        %5254 = vmatprep.subr.mxu0 %v5166
        %5255 = vmatpush1.msra.mxu0 %v5165
        %5256 = vmatprep.subr.mxu0 %v5164
        %5257 = vmatpush1.msra.mxu0 %v5163
        %5258 = vmatprep.subr.mxu0 %v5162
        %5259 = vmatpush1.msra.mxu0 %v5161
        %5260 = vmatprep.subr.mxu0 %v5160
        %5261 = vmatpush1.msra.mxu0 %v5159
        %5262 = vmatprep.subr.mxu0 0.0
        %5263 = vmatpush2.msra.mxu0 0.0
        %5264 = vmatprep.subr.mxu0 0.0
        %5265 = vmatpush2.msra.mxu0 0.0
        %5266 = vmatprep.subr.mxu0 0.0
        %5267 = vmatpush2.msra.mxu0 0.0
        %5268 = vmatprep.subr.mxu0 0.0
        %5269 = vmatpush2.msra.mxu0 0.0
        %5270 = vmatprep.subr.mxu0 0.0
        %5271 = vmatpush2.msra.mxu0 0.0
        %5272 = vmatprep.subr.mxu0 0.0
        %5273 = vmatpush2.msra.mxu0 0.0
        %5274 = vmatprep.subr.mxu0 0.0
        %5275 = vmatpush2.msra.mxu0 0.0
        %5276 = vmatprep.subr.mxu0 0.0
        %5277 = vmatpush2.msra.mxu0 0.0
        %5278 = vmatprep.subr.mxu0 0.0
        %5279 = vmatpush2.msra.mxu0 0.0
        %5280 = vmatprep.subr.mxu0 0.0
        %5281 = vmatpush2.msra.mxu0 0.0
        %5282 = vmatprep.subr.mxu0 0.0
        %5283 = vmatpush2.msra.mxu0 0.0
        %5284 = vmatprep.subr.mxu0 0.0
        %5285 = vmatpush2.msra.mxu0 0.0
        %5286 = vmatprep.subr.mxu0 0.0
        %5287 = vmatpush2.msra.mxu0 0.0
        %5288 = vmatprep.subr.mxu0 0.0
        %5289 = vmatpush2.msra.mxu0 0.0
        %5290 = vmatprep.subr.mxu0 0.0
        %5291 = vmatpush2.msra.mxu0 0.0
        %5292 = vmatprep.subr.mxu0 0.0
        %5293 = vmatpush2.msra.mxu0 0.0
        %5294 = vmatprep.mubr.f32.mxu0 0.0
        %5295 = vmatmul.mubr.f32.gmra.mxu0 %v5183
        %v5296 = vpop.f32.mrf.mxu0
        %v5297 = vadd.f32 0.0, %v5296
        %v5298 = vpop.f32.mrf.mxu0
        %v5299 = vadd.f32 0.0, %v5298
        %5300 = vmatprep.mubr.f32.mxu0 0.0
        %5301 = vmatmul.mubr.f32.gmra.mxu0 %v5186
        %v5302 = vpop.f32.mrf.mxu0
        %v5303 = vadd.f32 0.0, %v5302
        %v5304 = vpop.f32.mrf.mxu0
        %v5305 = vadd.f32 0.0, %v5304
        %5306 = vmatprep.mubr.f32.mxu0 0.0
        %5307 = vmatmul.mubr.f32.gmra.mxu0 %v5189
        %v5308 = vpop.f32.mrf.mxu0
        %v5309 = vadd.f32 0.0, %v5308
        %v5310 = vpop.f32.mrf.mxu0
        %v5311 = vadd.f32 0.0, %v5310
        %5312 = vmatprep.mubr.f32.mxu0 0.0
        %5313 = vmatmul.mubr.f32.gmra.mxu0 %v5192
        %v5314 = vpop.f32.mrf.mxu0
        %v5315 = vadd.f32 0.0, %v5314
        %v5316 = vpop.f32.mrf.mxu0
        %v5317 = vadd.f32 0.0, %v5316
        %5318 = vmatprep.mubr.f32.mxu0 0.0
        %5319 = vmatmul.mubr.f32.gmra.mxu0 %v5195
        %v5320 = vpop.f32.mrf.mxu0
        %v5321 = vadd.f32 0.0, %v5320
        %v5322 = vpop.f32.mrf.mxu0
        %v5323 = vadd.f32 0.0, %v5322
        %5324 = vmatprep.mubr.f32.mxu0 0.0
        %5325 = vmatmul.mubr.f32.gmra.mxu0 %v5198
        %v5326 = vpop.f32.mrf.mxu0
        %v5327 = vadd.f32 0.0, %v5326
        %v5328 = vpop.f32.mrf.mxu0
        %v5329 = vadd.f32 0.0, %v5328
        %5330 = vmatprep.mubr.f32.mxu0 0.0
        %5331 = vmatmul.mubr.f32.gmra.mxu0 %v5201
        %v5332 = vpop.f32.mrf.mxu0
        %v5333 = vadd.f32 0.0, %v5332
        %v5334 = vpop.f32.mrf.mxu0
        %v5335 = vadd.f32 0.0, %v5334
        %5336 = vmatprep.mubr.f32.mxu0 0.0
        %5337 = vmatmul.mubr.f32.gmra.mxu0 %v5204
        %v5338 = vpop.f32.mrf.mxu0
        %v5339 = vadd.f32 0.0, %v5338
        %v5340 = vpop.f32.mrf.mxu0
        %v5341 = vadd.f32 0.0, %v5340
        %5342 = vmatprep.mubr.f32.mxu0 0.0
        %5343 = vmatmul.mubr.f32.gmra.mxu0 %v5207
        %v5344 = vpop.f32.mrf.mxu0
        %v5345 = vadd.f32 0.0, %v5344
        %v5346 = vpop.f32.mrf.mxu0
        %v5347 = vadd.f32 0.0, %v5346
        %5348 = vmatprep.mubr.f32.mxu0 0.0
        %5349 = vmatmul.mubr.f32.gmra.mxu0 %v5210
        %v5350 = vpop.f32.mrf.mxu0
        %v5351 = vadd.f32 0.0, %v5350
        %v5352 = vpop.f32.mrf.mxu0
        %v5353 = vadd.f32 0.0, %v5352
        %5354 = vmatprep.mubr.f32.mxu0 0.0
        %5355 = vmatmul.mubr.f32.gmra.mxu0 %v5213
        %v5356 = vpop.f32.mrf.mxu0
        %v5357 = vadd.f32 0.0, %v5356
        %v5358 = vpop.f32.mrf.mxu0
        %v5359 = vadd.f32 0.0, %v5358
        %5360 = vmatprep.mubr.f32.mxu0 0.0
        %5361 = vmatmul.mubr.f32.gmra.mxu0 %v5216
        %v5362 = vpop.f32.mrf.mxu0
        %v5363 = vadd.f32 0.0, %v5362
        %v5364 = vpop.f32.mrf.mxu0
        %v5365 = vadd.f32 0.0, %v5364
        %5366 = vmatprep.mubr.f32.mxu0 0.0
        %5367 = vmatmul.mubr.f32.gmra.mxu0 %v5219
        %v5368 = vpop.f32.mrf.mxu0
        %v5369 = vadd.f32 0.0, %v5368
        %v5370 = vpop.f32.mrf.mxu0
        %v5371 = vadd.f32 0.0, %v5370
        %5372 = vmatprep.mubr.f32.mxu0 0.0
        %5373 = vmatmul.mubr.f32.gmra.mxu0 %v5222
        %v5374 = vpop.f32.mrf.mxu0
        %v5375 = vadd.f32 0.0, %v5374
        %v5376 = vpop.f32.mrf.mxu0
        %v5377 = vadd.f32 0.0, %v5376
        %5378 = vdwg.mxu0
        %5379 = vst [vmem:[#allocation3] sm:$0xff] %v5297
        %5380 = vst.msk [vmem:[#allocation3 + $0x8] sm:$0xff] %vm812, %v5299
        %5381 = vst [vmem:[#allocation3 + $0x10] sm:$0xff] %v5303
        %5382 = vst.msk [vmem:[#allocation3 + $0x18] sm:$0xff] %vm812, %v5305
        %5383 = vst [vmem:[#allocation3 + $0x20] sm:$0xff] %v5309
        %5384 = vst.msk [vmem:[#allocation3 + $0x28] sm:$0xff] %vm812, %v5311
        %5385 = vst [vmem:[#allocation3 + $0x30] sm:$0xff] %v5315
        %5386 = vst.msk [vmem:[#allocation3 + $0x38] sm:$0xff] %vm812, %v5317
        %5387 = vst [vmem:[#allocation3 + $0x40] sm:$0xff] %v5321
        %5388 = vst.msk [vmem:[#allocation3 + $0x48] sm:$0xff] %vm812, %v5323
        %5389 = vst [vmem:[#allocation3 + $0x50] sm:$0xff] %v5327
        %5390 = vst.msk [vmem:[#allocation3 + $0x58] sm:$0xff] %vm812, %v5329
        %5391 = vst [vmem:[#allocation3 + $0x60] sm:$0xff] %v5333
        %5392 = vst.msk [vmem:[#allocation3 + $0x68] sm:$0xff] %vm812, %v5335
        %5393 = vst [vmem:[#allocation3 + $0x70] sm:$0xff] %v5339
        %5394 = vst.msk [vmem:[#allocation3 + $0x78] sm:$0xff] %vm812, %v5341
        %5395 = vst [vmem:[#allocation3 + $0x80] sm:$0xff] %v5345
        %5396 = vst.msk [vmem:[#allocation3 + $0x88] sm:$0xff] %vm812, %v5347
        %5397 = vst [vmem:[#allocation3 + $0x90] sm:$0xff] %v5351
        %5398 = vst.msk [vmem:[#allocation3 + $0x98] sm:$0xff] %vm812, %v5353
        %5399 = vst [vmem:[#allocation3 + $0xa0] sm:$0xff] %v5357
        %5400 = vst.msk [vmem:[#allocation3 + $0xa8] sm:$0xff] %vm812, %v5359
        %5401 = vst [vmem:[#allocation3 + $0xb0] sm:$0xff] %v5363
        %5402 = vst.msk [vmem:[#allocation3 + $0xb8] sm:$0xff] %vm812, %v5365
        %5403 = vst [vmem:[#allocation3 + $0xc0] sm:$0xff] %v5369
        %5404 = vst.msk [vmem:[#allocation3 + $0xc8] sm:$0xff] %vm812, %v5371
        %5405 = vst [vmem:[#allocation3 + $0xd0] sm:$0xff] %v5375
        %5406 = vst.msk [vmem:[#allocation3 + $0xd8] sm:$0xff] %vm812, %v5377
        %v5407 = vld [vmem:[%s8 + $0xa0] sm:$0xf0]
        %v5408 = vld [vmem:[%s8 + $0xa8] sm:$0xf0]
        %v5409 = vld [vmem:[%s8 + $0xb0] sm:$0xff]
        %v5410 = vld [vmem:[%s8 + $0xb8] sm:$0xff]
        %v5411 = vld [vmem:[%s8 + $0xc0] sm:$0xff]
        %v5412 = vld [vmem:[%s8 + $0xc8] sm:$0xff]
        %v5413 = vld [vmem:[%s8 + $0xd0] sm:$0xff]
        %v5414 = vld [vmem:[%s8 + $0xd8] sm:$0xff]
        %v5415 = vld [vmem:[%s8 + $0xe0] sm:$0xff]
        %v5416 = vld [vmem:[%s8 + $0xe8] sm:$0xff]
        %v5417 = vld [vmem:[%s8 + $0xf0] sm:$0xff]
        %v5418 = vld [vmem:[%s8 + $0xf8] sm:$0xff]
        %v5419 = vld [vmem:[%s8 + $0x100] sm:$0xff]
        %v5420 = vld [vmem:[%s8 + $0x108] sm:$0xff]
        %v5421 = vld [vmem:[%s8 + $0x110] sm:$0xff]
        %v5422 = vld [vmem:[%s8 + $0x118] sm:$0xff]
        %v5423 = vld [vmem:[%s8 + $0x120] sm:$0xff]
        %v5424 = vld [vmem:[%s8 + $0x128] sm:$0xff]
        %v5425 = vld [vmem:[%s8 + $0x130] sm:$0xff]
        %v5426 = vld [vmem:[%s8 + $0x138] sm:$0xff]
        %v5427 = vld [vmem:[%s8 + $0x140] sm:$0xff]
        %v5428 = vld [vmem:[%s8 + $0x148] sm:$0xff]
        %v5451 = vrot.slane %v5407, 4
        %v5452 = vrot.slane %v5409, 4
        %v5453 = vsel %vm3888, %v5451, %v5452
        %v5454 = vrot.slane %v5408, 4
        %v5455 = vrot.slane %v5410, 4
        %v5456 = vsel %vm3888, %v5454, %v5455
        %v5457 = vrot.slane %v5411, 4
        %v5458 = vsel %vm3888, %v5452, %v5457
        %v5459 = vrot.slane %v5412, 4
        %v5460 = vsel %vm3888, %v5455, %v5459
        %v5461 = vrot.slane %v5413, 4
        %v5462 = vsel %vm3888, %v5457, %v5461
        %v5463 = vrot.slane %v5414, 4
        %v5464 = vsel %vm3888, %v5459, %v5463
        %v5465 = vrot.slane %v5415, 4
        %v5466 = vsel %vm3888, %v5461, %v5465
        %v5467 = vrot.slane %v5416, 4
        %v5468 = vsel %vm3888, %v5463, %v5467
        %v5469 = vrot.slane %v5417, 4
        %v5470 = vsel %vm3888, %v5465, %v5469
        %v5471 = vrot.slane %v5418, 4
        %v5472 = vsel %vm3888, %v5467, %v5471
        %v5473 = vrot.slane %v5419, 4
        %v5474 = vsel %vm3888, %v5469, %v5473
        %v5475 = vrot.slane %v5420, 4
        %v5476 = vsel %vm3888, %v5471, %v5475
        %v5477 = vrot.slane %v5421, 4
        %v5478 = vsel %vm3888, %v5473, %v5477
        %v5479 = vrot.slane %v5422, 4
        %v5480 = vsel %vm3888, %v5475, %v5479
        %v5481 = vrot.slane %v5423, 4
        %v5482 = vsel %vm3888, %v5477, %v5481
        %v5483 = vrot.slane %v5424, 4
        %v5484 = vsel %vm3888, %v5479, %v5483
        %v5485 = vrot.slane %v5425, 4
        %v5486 = vsel %vm3888, %v5481, %v5485
        %v5487 = vrot.slane %v5426, 4
        %v5488 = vsel %vm3888, %v5483, %v5487
        %v5489 = vrot.slane %v5427, 4
        %v5490 = vsel %vm3888, %v5485, %v5489
        %v5491 = vrot.slane %v5428, 4
        %v5492 = vsel %vm3888, %v5487, %v5491
        %v5513 = vsel %vm3888, %v5489, 0
        %v5515 = vsel %vm3888, %v5491, 0
        %5517 = vmatprep.subr.mxu0 0.0
        %5518 = vmatpush1.msra.mxu0 0.0
        %5519 = vmatprep.subr.mxu0 0.0
        %5520 = vmatpush1.msra.mxu0 0.0
        %5521 = vmatprep.subr.mxu0 0.0
        %5522 = vmatpush1.msra.mxu0 0.0
        %5523 = vmatprep.subr.mxu0 0.0
        %5524 = vmatpush1.msra.mxu0 0.0
        %5525 = vmatprep.subr.mxu0 0.0
        %5526 = vmatpush1.msra.mxu0 0.0
        %5527 = vmatprep.subr.mxu0 %v5515
        %5528 = vmatpush1.msra.mxu0 %v5513
        %5529 = vmatprep.subr.mxu0 %v5492
        %5530 = vmatpush1.msra.mxu0 %v5490
        %5531 = vmatprep.subr.mxu0 %v5488
        %5532 = vmatpush1.msra.mxu0 %v5486
        %5533 = vmatprep.subr.mxu0 %v5484
        %5534 = vmatpush1.msra.mxu0 %v5482
        %5535 = vmatprep.subr.mxu0 %v5480
        %5536 = vmatpush1.msra.mxu0 %v5478
        %5537 = vmatprep.subr.mxu0 %v5476
        %5538 = vmatpush1.msra.mxu0 %v5474
        %5539 = vmatprep.subr.mxu0 %v5472
        %5540 = vmatpush1.msra.mxu0 %v5470
        %5541 = vmatprep.subr.mxu0 %v5468
        %5542 = vmatpush1.msra.mxu0 %v5466
        %5543 = vmatprep.subr.mxu0 %v5464
        %5544 = vmatpush1.msra.mxu0 %v5462
        %5545 = vmatprep.subr.mxu0 %v5460
        %5546 = vmatpush1.msra.mxu0 %v5458
        %5547 = vmatprep.subr.mxu0 %v5456
        %5548 = vmatpush1.msra.mxu0 %v5453
        %5549 = vmatprep.subr.mxu0 0.0
        %5550 = vmatpush2.msra.mxu0 0.0
        %5551 = vmatprep.subr.mxu0 0.0
        %5552 = vmatpush2.msra.mxu0 0.0
        %5553 = vmatprep.subr.mxu0 0.0
        %5554 = vmatpush2.msra.mxu0 0.0
        %5555 = vmatprep.subr.mxu0 0.0
        %5556 = vmatpush2.msra.mxu0 0.0
        %5557 = vmatprep.subr.mxu0 0.0
        %5558 = vmatpush2.msra.mxu0 0.0
        %5559 = vmatprep.subr.mxu0 0.0
        %5560 = vmatpush2.msra.mxu0 0.0
        %5561 = vmatprep.subr.mxu0 0.0
        %5562 = vmatpush2.msra.mxu0 0.0
        %5563 = vmatprep.subr.mxu0 0.0
        %5564 = vmatpush2.msra.mxu0 0.0
        %5565 = vmatprep.subr.mxu0 0.0
        %5566 = vmatpush2.msra.mxu0 0.0
        %5567 = vmatprep.subr.mxu0 0.0
        %5568 = vmatpush2.msra.mxu0 0.0
        %5569 = vmatprep.subr.mxu0 0.0
        %5570 = vmatpush2.msra.mxu0 0.0
        %5571 = vmatprep.subr.mxu0 0.0
        %5572 = vmatpush2.msra.mxu0 0.0
        %5573 = vmatprep.subr.mxu0 0.0
        %5574 = vmatpush2.msra.mxu0 0.0
        %5575 = vmatprep.subr.mxu0 0.0
        %5576 = vmatpush2.msra.mxu0 0.0
        %5577 = vmatprep.subr.mxu0 0.0
        %5578 = vmatpush2.msra.mxu0 0.0
        %5579 = vmatprep.subr.mxu0 0.0
        %5580 = vmatpush2.msra.mxu0 0.0
        %5581 = vmatprep.mubr.f32.mxu0 0.0
        %5582 = vmatmul.mubr.f32.gmra.mxu0 %v5183
        %v5583 = vpop.f32.mrf.mxu0
        %v5584 = vadd.f32 0.0, %v5583
        %v5585 = vpop.f32.mrf.mxu0
        %v5586 = vadd.f32 0.0, %v5585
        %5587 = vmatprep.mubr.f32.mxu0 0.0
        %5588 = vmatmul.mubr.f32.gmra.mxu0 %v5186
        %v5589 = vpop.f32.mrf.mxu0
        %v5590 = vadd.f32 0.0, %v5589
        %v5591 = vpop.f32.mrf.mxu0
        %v5592 = vadd.f32 0.0, %v5591
        %5593 = vmatprep.mubr.f32.mxu0 0.0
        %5594 = vmatmul.mubr.f32.gmra.mxu0 %v5189
        %v5595 = vpop.f32.mrf.mxu0
        %v5596 = vadd.f32 0.0, %v5595
        %v5597 = vpop.f32.mrf.mxu0
        %v5598 = vadd.f32 0.0, %v5597
        %5599 = vmatprep.mubr.f32.mxu0 0.0
        %5600 = vmatmul.mubr.f32.gmra.mxu0 %v5192
        %v5601 = vpop.f32.mrf.mxu0
        %v5602 = vadd.f32 0.0, %v5601
        %v5603 = vpop.f32.mrf.mxu0
        %v5604 = vadd.f32 0.0, %v5603
        %5605 = vmatprep.mubr.f32.mxu0 0.0
        %5606 = vmatmul.mubr.f32.gmra.mxu0 %v5195
        %v5607 = vpop.f32.mrf.mxu0
        %v5608 = vadd.f32 0.0, %v5607
        %v5609 = vpop.f32.mrf.mxu0
        %v5610 = vadd.f32 0.0, %v5609
        %5611 = vmatprep.mubr.f32.mxu0 0.0
        %5612 = vmatmul.mubr.f32.gmra.mxu0 %v5198
        %v5613 = vpop.f32.mrf.mxu0
        %v5614 = vadd.f32 0.0, %v5613
        %v5615 = vpop.f32.mrf.mxu0
        %v5616 = vadd.f32 0.0, %v5615
        %5617 = vmatprep.mubr.f32.mxu0 0.0
        %5618 = vmatmul.mubr.f32.gmra.mxu0 %v5201
        %v5619 = vpop.f32.mrf.mxu0
        %v5620 = vadd.f32 0.0, %v5619
        %v5621 = vpop.f32.mrf.mxu0
        %v5622 = vadd.f32 0.0, %v5621
        %5623 = vmatprep.mubr.f32.mxu0 0.0
        %5624 = vmatmul.mubr.f32.gmra.mxu0 %v5204
        %v5625 = vpop.f32.mrf.mxu0
        %v5626 = vadd.f32 0.0, %v5625
        %v5627 = vpop.f32.mrf.mxu0
        %v5628 = vadd.f32 0.0, %v5627
        %5629 = vmatprep.mubr.f32.mxu0 0.0
        %5630 = vmatmul.mubr.f32.gmra.mxu0 %v5207
        %v5631 = vpop.f32.mrf.mxu0
        %v5632 = vadd.f32 0.0, %v5631
        %v5633 = vpop.f32.mrf.mxu0
        %v5634 = vadd.f32 0.0, %v5633
        %5635 = vmatprep.mubr.f32.mxu0 0.0
        %5636 = vmatmul.mubr.f32.gmra.mxu0 %v5210
        %v5637 = vpop.f32.mrf.mxu0
        %v5638 = vadd.f32 0.0, %v5637
        %v5639 = vpop.f32.mrf.mxu0
        %v5640 = vadd.f32 0.0, %v5639
        %5641 = vmatprep.mubr.f32.mxu0 0.0
        %5642 = vmatmul.mubr.f32.gmra.mxu0 %v5213
        %v5643 = vpop.f32.mrf.mxu0
        %v5644 = vadd.f32 0.0, %v5643
        %v5645 = vpop.f32.mrf.mxu0
        %v5646 = vadd.f32 0.0, %v5645
        %5647 = vmatprep.mubr.f32.mxu0 0.0
        %5648 = vmatmul.mubr.f32.gmra.mxu0 %v5216
        %v5649 = vpop.f32.mrf.mxu0
        %v5650 = vadd.f32 0.0, %v5649
        %v5651 = vpop.f32.mrf.mxu0
        %v5652 = vadd.f32 0.0, %v5651
        %5653 = vmatprep.mubr.f32.mxu0 0.0
        %5654 = vmatmul.mubr.f32.gmra.mxu0 %v5219
        %v5655 = vpop.f32.mrf.mxu0
        %v5656 = vadd.f32 0.0, %v5655
        %v5657 = vpop.f32.mrf.mxu0
        %v5658 = vadd.f32 0.0, %v5657
        %5659 = vmatprep.mubr.f32.mxu0 0.0
        %5660 = vmatmul.mubr.f32.gmra.mxu0 %v5222
        %v5661 = vpop.f32.mrf.mxu0
        %v5662 = vadd.f32 0.0, %v5661
        %v5663 = vpop.f32.mrf.mxu0
        %v5664 = vadd.f32 0.0, %v5663
        %5665 = vdwg.mxu0
        %5666 = vst [vmem:[#allocation3 + $0xe0] sm:$0xff] %v5584
        %5667 = vst.msk [vmem:[#allocation3 + $0xe8] sm:$0xff] %vm812, %v5586
        %5668 = vst [vmem:[#allocation3 + $0xf0] sm:$0xff] %v5590
        %5669 = vst.msk [vmem:[#allocation3 + $0xf8] sm:$0xff] %vm812, %v5592
        %5670 = vst [vmem:[#allocation3 + $0x100] sm:$0xff] %v5596
        %5671 = vst.msk [vmem:[#allocation3 + $0x108] sm:$0xff] %vm812, %v5598
        %5672 = vst [vmem:[#allocation3 + $0x110] sm:$0xff] %v5602
        %5673 = vst.msk [vmem:[#allocation3 + $0x118] sm:$0xff] %vm812, %v5604
        %5674 = vst [vmem:[#allocation3 + $0x120] sm:$0xff] %v5608
        %5675 = vst.msk [vmem:[#allocation3 + $0x128] sm:$0xff] %vm812, %v5610
        %5676 = vst [vmem:[#allocation3 + $0x130] sm:$0xff] %v5614
        %5677 = vst.msk [vmem:[#allocation3 + $0x138] sm:$0xff] %vm812, %v5616
        %5678 = vst [vmem:[#allocation3 + $0x140] sm:$0xff] %v5620
        %5679 = vst.msk [vmem:[#allocation3 + $0x148] sm:$0xff] %vm812, %v5622
        %5680 = vst [vmem:[#allocation3 + $0x150] sm:$0xff] %v5626
        %5681 = vst.msk [vmem:[#allocation3 + $0x158] sm:$0xff] %vm812, %v5628
        %5682 = vst [vmem:[#allocation3 + $0x160] sm:$0xff] %v5632
        %5683 = vst.msk [vmem:[#allocation3 + $0x168] sm:$0xff] %vm812, %v5634
        %5684 = vst [vmem:[#allocation3 + $0x170] sm:$0xff] %v5638
        %5685 = vst.msk [vmem:[#allocation3 + $0x178] sm:$0xff] %vm812, %v5640
        %5686 = vst [vmem:[#allocation3 + $0x180] sm:$0xff] %v5644
        %5687 = vst.msk [vmem:[#allocation3 + $0x188] sm:$0xff] %vm812, %v5646
        %5688 = vst [vmem:[#allocation3 + $0x190] sm:$0xff] %v5650
        %5689 = vst.msk [vmem:[#allocation3 + $0x198] sm:$0xff] %vm812, %v5652
        %5690 = vst [vmem:[#allocation3 + $0x1a0] sm:$0xff] %v5656
        %5691 = vst.msk [vmem:[#allocation3 + $0x1a8] sm:$0xff] %vm812, %v5658
        %5692 = vst [vmem:[#allocation3 + $0x1b0] sm:$0xff] %v5662
        %5693 = vst.msk [vmem:[#allocation3 + $0x1b8] sm:$0xff] %vm812, %v5664
        %v5694 = vld [vmem:[%s8 + $0x150] sm:$0xff]
        %v5695 = vld [vmem:[%s8 + $0x158] sm:$0xff]
        %v5696 = vld [vmem:[%s8 + $0x160] sm:$0xff]
        %v5697 = vld [vmem:[%s8 + $0x168] sm:$0xff]
        %v5698 = vld [vmem:[%s8 + $0x170] sm:$0xff]
        %v5699 = vld [vmem:[%s8 + $0x178] sm:$0xff]
        %v5700 = vld [vmem:[%s8 + $0x180] sm:$0xff]
        %v5701 = vld [vmem:[%s8 + $0x188] sm:$0xff]
        %v5702 = vld [vmem:[%s8 + $0x190] sm:$0xff]
        %v5703 = vld [vmem:[%s8 + $0x198] sm:$0xff]
        %v5704 = vld [vmem:[%s8 + $0x1a0] sm:$0xff]
        %v5705 = vld [vmem:[%s8 + $0x1a8] sm:$0xff]
        %v5706 = vld [vmem:[%s8 + $0x1b0] sm:$0xff]
        %v5707 = vld [vmem:[%s8 + $0x1b8] sm:$0xff]
        %v5708 = vld [vmem:[%s8 + $0x1c0] sm:$0xff]
        %v5709 = vld [vmem:[%s8 + $0x1c8] sm:$0xff]
        %v5710 = vld [vmem:[%s8 + $0x1d0] sm:$0xff]
        %v5711 = vld [vmem:[%s8 + $0x1d8] sm:$0xff]
        %v5712 = vld [vmem:[%s8 + $0x1e0] sm:$0xff]
        %v5713 = vld [vmem:[%s8 + $0x1e8] sm:$0xff]
        %v5714 = vld [vmem:[%s8 + $0x1f0] sm:$0xf]
        %v5715 = vld [vmem:[%s8 + $0x1f8] sm:$0xf]
        %v5717 = vsel %vm3888, %v5714, 0
        %v5720 = vsel %vm3888, %v5715, 0
        %5722 = vmatprep.subr.mxu0 0.0
        %5723 = vmatpush1.msra.mxu0 0.0
        %5724 = vmatprep.subr.mxu0 0.0
        %5725 = vmatpush1.msra.mxu0 0.0
        %5726 = vmatprep.subr.mxu0 0.0
        %5727 = vmatpush1.msra.mxu0 0.0
        %5728 = vmatprep.subr.mxu0 0.0
        %5729 = vmatpush1.msra.mxu0 0.0
        %5730 = vmatprep.subr.mxu0 0.0
        %5731 = vmatpush1.msra.mxu0 0.0
        %5732 = vmatprep.subr.mxu0 %v5720
        %5733 = vmatpush1.msra.mxu0 %v5717
        %5734 = vmatprep.subr.mxu0 %v5713
        %5735 = vmatpush1.msra.mxu0 %v5712
        %5736 = vmatprep.subr.mxu0 %v5711
        %5737 = vmatpush1.msra.mxu0 %v5710
        %5738 = vmatprep.subr.mxu0 %v5709
        %5739 = vmatpush1.msra.mxu0 %v5708
        %5740 = vmatprep.subr.mxu0 %v5707
        %5741 = vmatpush1.msra.mxu0 %v5706
        %5742 = vmatprep.subr.mxu0 %v5705
        %5743 = vmatpush1.msra.mxu0 %v5704
        %5744 = vmatprep.subr.mxu0 %v5703
        %5745 = vmatpush1.msra.mxu0 %v5702
        %5746 = vmatprep.subr.mxu0 %v5701
        %5747 = vmatpush1.msra.mxu0 %v5700
        %5748 = vmatprep.subr.mxu0 %v5699
        %5749 = vmatpush1.msra.mxu0 %v5698
        %5750 = vmatprep.subr.mxu0 %v5697
        %5751 = vmatpush1.msra.mxu0 %v5696
        %5752 = vmatprep.subr.mxu0 %v5695
        %5753 = vmatpush1.msra.mxu0 %v5694
        %5754 = vmatprep.subr.mxu0 0.0
        %5755 = vmatpush2.msra.mxu0 0.0
        %5756 = vmatprep.subr.mxu0 0.0
        %5757 = vmatpush2.msra.mxu0 0.0
        %5758 = vmatprep.subr.mxu0 0.0
        %5759 = vmatpush2.msra.mxu0 0.0
        %5760 = vmatprep.subr.mxu0 0.0
        %5761 = vmatpush2.msra.mxu0 0.0
        %5762 = vmatprep.subr.mxu0 0.0
        %5763 = vmatpush2.msra.mxu0 0.0
        %5764 = vmatprep.subr.mxu0 0.0
        %5765 = vmatpush2.msra.mxu0 0.0
        %5766 = vmatprep.subr.mxu0 0.0
        %5767 = vmatpush2.msra.mxu0 0.0
        %5768 = vmatprep.subr.mxu0 0.0
        %5769 = vmatpush2.msra.mxu0 0.0
        %5770 = vmatprep.subr.mxu0 0.0
        %5771 = vmatpush2.msra.mxu0 0.0
        %5772 = vmatprep.subr.mxu0 0.0
        %5773 = vmatpush2.msra.mxu0 0.0
        %5774 = vmatprep.subr.mxu0 0.0
        %5775 = vmatpush2.msra.mxu0 0.0
        %5776 = vmatprep.subr.mxu0 0.0
        %5777 = vmatpush2.msra.mxu0 0.0
        %5778 = vmatprep.subr.mxu0 0.0
        %5779 = vmatpush2.msra.mxu0 0.0
        %5780 = vmatprep.subr.mxu0 0.0
        %5781 = vmatpush2.msra.mxu0 0.0
        %5782 = vmatprep.subr.mxu0 0.0
        %5783 = vmatpush2.msra.mxu0 0.0
        %5784 = vmatprep.subr.mxu0 0.0
        %5785 = vmatpush2.msra.mxu0 0.0
        %5786 = vmatprep.mubr.f32.mxu0 0.0
        %5787 = vmatmul.mubr.f32.gmra.mxu0 %v5183
        %v5788 = vpop.f32.mrf.mxu0
        %v5789 = vadd.f32 0.0, %v5788
        %v5790 = vpop.f32.mrf.mxu0
        %v5791 = vadd.f32 0.0, %v5790
        %5792 = vmatprep.mubr.f32.mxu0 0.0
        %5793 = vmatmul.mubr.f32.gmra.mxu0 %v5186
        %v5794 = vpop.f32.mrf.mxu0
        %v5795 = vadd.f32 0.0, %v5794
        %v5796 = vpop.f32.mrf.mxu0
        %v5797 = vadd.f32 0.0, %v5796
        %5798 = vmatprep.mubr.f32.mxu0 0.0
        %5799 = vmatmul.mubr.f32.gmra.mxu0 %v5189
        %v5800 = vpop.f32.mrf.mxu0
        %v5801 = vadd.f32 0.0, %v5800
        %v5802 = vpop.f32.mrf.mxu0
        %v5803 = vadd.f32 0.0, %v5802
        %5804 = vmatprep.mubr.f32.mxu0 0.0
        %5805 = vmatmul.mubr.f32.gmra.mxu0 %v5192
        %v5806 = vpop.f32.mrf.mxu0
        %v5807 = vadd.f32 0.0, %v5806
        %v5808 = vpop.f32.mrf.mxu0
        %v5809 = vadd.f32 0.0, %v5808
        %5810 = vmatprep.mubr.f32.mxu0 0.0
        %5811 = vmatmul.mubr.f32.gmra.mxu0 %v5195
        %v5812 = vpop.f32.mrf.mxu0
        %v5813 = vadd.f32 0.0, %v5812
        %v5814 = vpop.f32.mrf.mxu0
        %v5815 = vadd.f32 0.0, %v5814
        %5816 = vmatprep.mubr.f32.mxu0 0.0
        %5817 = vmatmul.mubr.f32.gmra.mxu0 %v5198
        %v5818 = vpop.f32.mrf.mxu0
        %v5819 = vadd.f32 0.0, %v5818
        %v5820 = vpop.f32.mrf.mxu0
        %v5821 = vadd.f32 0.0, %v5820
        %5822 = vmatprep.mubr.f32.mxu0 0.0
        %5823 = vmatmul.mubr.f32.gmra.mxu0 %v5201
        %v5824 = vpop.f32.mrf.mxu0
        %v5825 = vadd.f32 0.0, %v5824
        %v5826 = vpop.f32.mrf.mxu0
        %v5827 = vadd.f32 0.0, %v5826
        %5828 = vmatprep.mubr.f32.mxu0 0.0
        %5829 = vmatmul.mubr.f32.gmra.mxu0 %v5204
        %v5830 = vpop.f32.mrf.mxu0
        %v5831 = vadd.f32 0.0, %v5830
        %v5832 = vpop.f32.mrf.mxu0
        %v5833 = vadd.f32 0.0, %v5832
        %5834 = vmatprep.mubr.f32.mxu0 0.0
        %5835 = vmatmul.mubr.f32.gmra.mxu0 %v5207
        %v5836 = vpop.f32.mrf.mxu0
        %v5837 = vadd.f32 0.0, %v5836
        %v5838 = vpop.f32.mrf.mxu0
        %v5839 = vadd.f32 0.0, %v5838
        %5840 = vmatprep.mubr.f32.mxu0 0.0
        %5841 = vmatmul.mubr.f32.gmra.mxu0 %v5210
        %v5842 = vpop.f32.mrf.mxu0
        %v5843 = vadd.f32 0.0, %v5842
        %v5844 = vpop.f32.mrf.mxu0
        %v5845 = vadd.f32 0.0, %v5844
        %5846 = vmatprep.mubr.f32.mxu0 0.0
        %5847 = vmatmul.mubr.f32.gmra.mxu0 %v5213
        %v5848 = vpop.f32.mrf.mxu0
        %v5849 = vadd.f32 0.0, %v5848
        %v5850 = vpop.f32.mrf.mxu0
        %v5851 = vadd.f32 0.0, %v5850
        %5852 = vmatprep.mubr.f32.mxu0 0.0
        %5853 = vmatmul.mubr.f32.gmra.mxu0 %v5216
        %v5854 = vpop.f32.mrf.mxu0
        %v5855 = vadd.f32 0.0, %v5854
        %v5856 = vpop.f32.mrf.mxu0
        %v5857 = vadd.f32 0.0, %v5856
        %5858 = vmatprep.mubr.f32.mxu0 0.0
        %5859 = vmatmul.mubr.f32.gmra.mxu0 %v5219
        %v5860 = vpop.f32.mrf.mxu0
        %v5861 = vadd.f32 0.0, %v5860
        %v5862 = vpop.f32.mrf.mxu0
        %v5863 = vadd.f32 0.0, %v5862
        %5864 = vmatprep.mubr.f32.mxu0 0.0
        %5865 = vmatmul.mubr.f32.gmra.mxu0 %v5222
        %v5866 = vpop.f32.mrf.mxu0
        %v5867 = vadd.f32 0.0, %v5866
        %v5868 = vpop.f32.mrf.mxu0
        %v5869 = vadd.f32 0.0, %v5868
        %5870 = vdwg.mxu0
        %5871 = vst [vmem:[#allocation3 + $0x1c0] sm:$0xff] %v5789
        %5872 = vst.msk [vmem:[#allocation3 + $0x1c8] sm:$0xff] %vm812, %v5791
        %5873 = vst [vmem:[#allocation3 + $0x1d0] sm:$0xff] %v5795
        %5874 = vst.msk [vmem:[#allocation3 + $0x1d8] sm:$0xff] %vm812, %v5797
        %5875 = vst [vmem:[#allocation3 + $0x1e0] sm:$0xff] %v5801
        %5876 = vst.msk [vmem:[#allocation3 + $0x1e8] sm:$0xff] %vm812, %v5803
        %5877 = vst [vmem:[#allocation3 + $0x1f0] sm:$0xff] %v5807
        %5878 = vst.msk [vmem:[#allocation3 + $0x1f8] sm:$0xff] %vm812, %v5809
        %5879 = vst [vmem:[#allocation3 + $0x200] sm:$0xff] %v5813
        %5880 = vst.msk [vmem:[#allocation3 + $0x208] sm:$0xff] %vm812, %v5815
        %5881 = vst [vmem:[#allocation3 + $0x210] sm:$0xff] %v5819
        %5882 = vst.msk [vmem:[#allocation3 + $0x218] sm:$0xff] %vm812, %v5821
        %5883 = vst [vmem:[#allocation3 + $0x220] sm:$0xff] %v5825
        %5884 = vst.msk [vmem:[#allocation3 + $0x228] sm:$0xff] %vm812, %v5827
        %5885 = vst [vmem:[#allocation3 + $0x230] sm:$0xff] %v5831
        %5886 = vst.msk [vmem:[#allocation3 + $0x238] sm:$0xff] %vm812, %v5833
        %5887 = vst [vmem:[#allocation3 + $0x240] sm:$0xff] %v5837
        %5888 = vst.msk [vmem:[#allocation3 + $0x248] sm:$0xff] %vm812, %v5839
        %5889 = vst [vmem:[#allocation3 + $0x250] sm:$0xff] %v5843
        %5890 = vst.msk [vmem:[#allocation3 + $0x258] sm:$0xff] %vm812, %v5845
        %5891 = vst [vmem:[#allocation3 + $0x260] sm:$0xff] %v5849
        %5892 = vst.msk [vmem:[#allocation3 + $0x268] sm:$0xff] %vm812, %v5851
        %5893 = vst [vmem:[#allocation3 + $0x270] sm:$0xff] %v5855
        %5894 = vst.msk [vmem:[#allocation3 + $0x278] sm:$0xff] %vm812, %v5857
        %5895 = vst [vmem:[#allocation3 + $0x280] sm:$0xff] %v5861
        %5896 = vst.msk [vmem:[#allocation3 + $0x288] sm:$0xff] %vm812, %v5863
        %5897 = vst [vmem:[#allocation3 + $0x290] sm:$0xff] %v5867
        %5898 = vst.msk [vmem:[#allocation3 + $0x298] sm:$0xff] %vm812, %v5869
        %v5899 = vld [vmem:[%s8 + $0x1f0] sm:$0xf0]
        %v5900 = vld [vmem:[%s8 + $0x1f8] sm:$0xf0]
        %v5901 = vld [vmem:[%s8 + $0x200] sm:$0xff]
        %v5902 = vld [vmem:[%s8 + $0x208] sm:$0xff]
        %v5903 = vld [vmem:[%s8 + $0x210] sm:$0xff]
        %v5904 = vld [vmem:[%s8 + $0x218] sm:$0xff]
        %v5905 = vld [vmem:[%s8 + $0x220] sm:$0xff]
        %v5906 = vld [vmem:[%s8 + $0x228] sm:$0xff]
        %v5907 = vld [vmem:[%s8 + $0x230] sm:$0xff]
        %v5908 = vld [vmem:[%s8 + $0x238] sm:$0xff]
        %v5909 = vld [vmem:[%s8 + $0x240] sm:$0xff]
        %v5910 = vld [vmem:[%s8 + $0x248] sm:$0xff]
        %v5911 = vld [vmem:[%s8 + $0x250] sm:$0xff]
        %v5912 = vld [vmem:[%s8 + $0x258] sm:$0xff]
        %v5913 = vld [vmem:[%s8 + $0x260] sm:$0xff]
        %v5914 = vld [vmem:[%s8 + $0x268] sm:$0xff]
        %v5915 = vld [vmem:[%s8 + $0x270] sm:$0xff]
        %v5916 = vld [vmem:[%s8 + $0x278] sm:$0xff]
        %v5917 = vld [vmem:[%s8 + $0x280] sm:$0xff]
        %v5918 = vld [vmem:[%s8 + $0x288] sm:$0xff]
        %v5919 = vld [vmem:[%s8 + $0x290] sm:$0xff]
        %v5920 = vld [vmem:[%s8 + $0x298] sm:$0xff]
        %v5943 = vrot.slane %v5899, 4
        %v5944 = vrot.slane %v5901, 4
        %v5945 = vsel %vm3888, %v5943, %v5944
        %v5946 = vrot.slane %v5900, 4
        %v5947 = vrot.slane %v5902, 4
        %v5948 = vsel %vm3888, %v5946, %v5947
        %v5949 = vrot.slane %v5903, 4
        %v5950 = vsel %vm3888, %v5944, %v5949
        %v5951 = vrot.slane %v5904, 4
        %v5952 = vsel %vm3888, %v5947, %v5951
        %v5953 = vrot.slane %v5905, 4
        %v5954 = vsel %vm3888, %v5949, %v5953
        %v5955 = vrot.slane %v5906, 4
        %v5956 = vsel %vm3888, %v5951, %v5955
        %v5957 = vrot.slane %v5907, 4
        %v5958 = vsel %vm3888, %v5953, %v5957
        %v5959 = vrot.slane %v5908, 4
        %v5960 = vsel %vm3888, %v5955, %v5959
        %v5961 = vrot.slane %v5909, 4
        %v5962 = vsel %vm3888, %v5957, %v5961
        %v5963 = vrot.slane %v5910, 4
        %v5964 = vsel %vm3888, %v5959, %v5963
        %v5965 = vrot.slane %v5911, 4
        %v5966 = vsel %vm3888, %v5961, %v5965
        %v5967 = vrot.slane %v5912, 4
        %v5968 = vsel %vm3888, %v5963, %v5967
        %v5969 = vrot.slane %v5913, 4
        %v5970 = vsel %vm3888, %v5965, %v5969
        %v5971 = vrot.slane %v5914, 4
        %v5972 = vsel %vm3888, %v5967, %v5971
        %v5973 = vrot.slane %v5915, 4
        %v5974 = vsel %vm3888, %v5969, %v5973
        %v5975 = vrot.slane %v5916, 4
        %v5976 = vsel %vm3888, %v5971, %v5975
        %v5977 = vrot.slane %v5917, 4
        %v5978 = vsel %vm3888, %v5973, %v5977
        %v5979 = vrot.slane %v5918, 4
        %v5980 = vsel %vm3888, %v5975, %v5979
        %v5981 = vrot.slane %v5919, 4
        %v5982 = vsel %vm3888, %v5977, %v5981
        %v5983 = vrot.slane %v5920, 4
        %v5984 = vsel %vm3888, %v5979, %v5983
        %v6005 = vsel %vm3888, %v5981, 0
        %v6007 = vsel %vm3888, %v5983, 0
        %6009 = vmatprep.subr.mxu0 0.0
        %6010 = vmatpush1.msra.mxu0 0.0
        %6011 = vmatprep.subr.mxu0 0.0
        %6012 = vmatpush1.msra.mxu0 0.0
        %6013 = vmatprep.subr.mxu0 0.0
        %6014 = vmatpush1.msra.mxu0 0.0
        %6015 = vmatprep.subr.mxu0 0.0
        %6016 = vmatpush1.msra.mxu0 0.0
        %6017 = vmatprep.subr.mxu0 0.0
        %6018 = vmatpush1.msra.mxu0 0.0
        %6019 = vmatprep.subr.mxu0 %v6007
        %6020 = vmatpush1.msra.mxu0 %v6005
        %6021 = vmatprep.subr.mxu0 %v5984
        %6022 = vmatpush1.msra.mxu0 %v5982
        %6023 = vmatprep.subr.mxu0 %v5980
        %6024 = vmatpush1.msra.mxu0 %v5978
        %6025 = vmatprep.subr.mxu0 %v5976
        %6026 = vmatpush1.msra.mxu0 %v5974
        %6027 = vmatprep.subr.mxu0 %v5972
        %6028 = vmatpush1.msra.mxu0 %v5970
        %6029 = vmatprep.subr.mxu0 %v5968
        %6030 = vmatpush1.msra.mxu0 %v5966
        %6031 = vmatprep.subr.mxu0 %v5964
        %6032 = vmatpush1.msra.mxu0 %v5962
        %6033 = vmatprep.subr.mxu0 %v5960
        %6034 = vmatpush1.msra.mxu0 %v5958
        %6035 = vmatprep.subr.mxu0 %v5956
        %6036 = vmatpush1.msra.mxu0 %v5954
        %6037 = vmatprep.subr.mxu0 %v5952
        %6038 = vmatpush1.msra.mxu0 %v5950
        %6039 = vmatprep.subr.mxu0 %v5948
        %6040 = vmatpush1.msra.mxu0 %v5945
        %6041 = vmatprep.subr.mxu0 0.0
        %6042 = vmatpush2.msra.mxu0 0.0
        %6043 = vmatprep.subr.mxu0 0.0
        %6044 = vmatpush2.msra.mxu0 0.0
        %6045 = vmatprep.subr.mxu0 0.0
        %6046 = vmatpush2.msra.mxu0 0.0
        %6047 = vmatprep.subr.mxu0 0.0
        %6048 = vmatpush2.msra.mxu0 0.0
        %6049 = vmatprep.subr.mxu0 0.0
        %6050 = vmatpush2.msra.mxu0 0.0
        %6051 = vmatprep.subr.mxu0 0.0
        %6052 = vmatpush2.msra.mxu0 0.0
        %6053 = vmatprep.subr.mxu0 0.0
        %6054 = vmatpush2.msra.mxu0 0.0
        %6055 = vmatprep.subr.mxu0 0.0
        %6056 = vmatpush2.msra.mxu0 0.0
        %6057 = vmatprep.subr.mxu0 0.0
        %6058 = vmatpush2.msra.mxu0 0.0
        %6059 = vmatprep.subr.mxu0 0.0
        %6060 = vmatpush2.msra.mxu0 0.0
        %6061 = vmatprep.subr.mxu0 0.0
        %6062 = vmatpush2.msra.mxu0 0.0
        %6063 = vmatprep.subr.mxu0 0.0
        %6064 = vmatpush2.msra.mxu0 0.0
        %6065 = vmatprep.subr.mxu0 0.0
        %6066 = vmatpush2.msra.mxu0 0.0
        %6067 = vmatprep.subr.mxu0 0.0
        %6068 = vmatpush2.msra.mxu0 0.0
        %6069 = vmatprep.subr.mxu0 0.0
        %6070 = vmatpush2.msra.mxu0 0.0
        %6071 = vmatprep.subr.mxu0 0.0
        %6072 = vmatpush2.msra.mxu0 0.0
        %6073 = vmatprep.mubr.f32.mxu0 0.0
        %6074 = vmatmul.mubr.f32.gmra.mxu0 %v5183
        %v6075 = vpop.f32.mrf.mxu0
        %v6076 = vadd.f32 0.0, %v6075
        %v6077 = vpop.f32.mrf.mxu0
        %v6078 = vadd.f32 0.0, %v6077
        %6079 = vmatprep.mubr.f32.mxu0 0.0
        %6080 = vmatmul.mubr.f32.gmra.mxu0 %v5186
        %v6081 = vpop.f32.mrf.mxu0
        %v6082 = vadd.f32 0.0, %v6081
        %v6083 = vpop.f32.mrf.mxu0
        %v6084 = vadd.f32 0.0, %v6083
        %6085 = vmatprep.mubr.f32.mxu0 0.0
        %6086 = vmatmul.mubr.f32.gmra.mxu0 %v5189
        %v6087 = vpop.f32.mrf.mxu0
        %v6088 = vadd.f32 0.0, %v6087
        %v6089 = vpop.f32.mrf.mxu0
        %v6090 = vadd.f32 0.0, %v6089
        %6091 = vmatprep.mubr.f32.mxu0 0.0
        %6092 = vmatmul.mubr.f32.gmra.mxu0 %v5192
        %v6093 = vpop.f32.mrf.mxu0
        %v6094 = vadd.f32 0.0, %v6093
        %v6095 = vpop.f32.mrf.mxu0
        %v6096 = vadd.f32 0.0, %v6095
        %6097 = vmatprep.mubr.f32.mxu0 0.0
        %6098 = vmatmul.mubr.f32.gmra.mxu0 %v5195
        %v6099 = vpop.f32.mrf.mxu0
        %v6100 = vadd.f32 0.0, %v6099
        %v6101 = vpop.f32.mrf.mxu0
        %v6102 = vadd.f32 0.0, %v6101
        %6103 = vmatprep.mubr.f32.mxu0 0.0
        %6104 = vmatmul.mubr.f32.gmra.mxu0 %v5198
        %v6105 = vpop.f32.mrf.mxu0
        %v6106 = vadd.f32 0.0, %v6105
        %v6107 = vpop.f32.mrf.mxu0
        %v6108 = vadd.f32 0.0, %v6107
        %6109 = vmatprep.mubr.f32.mxu0 0.0
        %6110 = vmatmul.mubr.f32.gmra.mxu0 %v5201
        %v6111 = vpop.f32.mrf.mxu0
        %v6112 = vadd.f32 0.0, %v6111
        %v6113 = vpop.f32.mrf.mxu0
        %v6114 = vadd.f32 0.0, %v6113
        %6115 = vmatprep.mubr.f32.mxu0 0.0
        %6116 = vmatmul.mubr.f32.gmra.mxu0 %v5204
        %v6117 = vpop.f32.mrf.mxu0
        %v6118 = vadd.f32 0.0, %v6117
        %v6119 = vpop.f32.mrf.mxu0
        %v6120 = vadd.f32 0.0, %v6119
        %6121 = vmatprep.mubr.f32.mxu0 0.0
        %6122 = vmatmul.mubr.f32.gmra.mxu0 %v5207
        %v6123 = vpop.f32.mrf.mxu0
        %v6124 = vadd.f32 0.0, %v6123
        %v6125 = vpop.f32.mrf.mxu0
        %v6126 = vadd.f32 0.0, %v6125
        %6127 = vmatprep.mubr.f32.mxu0 0.0
        %6128 = vmatmul.mubr.f32.gmra.mxu0 %v5210
        %v6129 = vpop.f32.mrf.mxu0
        %v6130 = vadd.f32 0.0, %v6129
        %v6131 = vpop.f32.mrf.mxu0
        %v6132 = vadd.f32 0.0, %v6131
        %6133 = vmatprep.mubr.f32.mxu0 0.0
        %6134 = vmatmul.mubr.f32.gmra.mxu0 %v5213
        %v6135 = vpop.f32.mrf.mxu0
        %v6136 = vadd.f32 0.0, %v6135
        %v6137 = vpop.f32.mrf.mxu0
        %v6138 = vadd.f32 0.0, %v6137
        %6139 = vmatprep.mubr.f32.mxu0 0.0
        %6140 = vmatmul.mubr.f32.gmra.mxu0 %v5216
        %v6141 = vpop.f32.mrf.mxu0
        %v6142 = vadd.f32 0.0, %v6141
        %v6143 = vpop.f32.mrf.mxu0
        %v6144 = vadd.f32 0.0, %v6143
        %6145 = vmatprep.mubr.f32.mxu0 0.0
        %6146 = vmatmul.mubr.f32.gmra.mxu0 %v5219
        %v6147 = vpop.f32.mrf.mxu0
        %v6148 = vadd.f32 0.0, %v6147
        %v6149 = vpop.f32.mrf.mxu0
        %v6150 = vadd.f32 0.0, %v6149
        %6151 = vmatprep.mubr.f32.mxu0 0.0
        %6152 = vmatmul.mubr.f32.gmra.mxu0 %v5222
        %v6153 = vpop.f32.mrf.mxu0
        %v6154 = vadd.f32 0.0, %v6153
        %v6155 = vpop.f32.mrf.mxu0
        %v6156 = vadd.f32 0.0, %v6155
        %6157 = vdwg.mxu0
        %6158 = vst [vmem:[#allocation3 + $0x2a0] sm:$0xff] %v6076
        %6159 = vst.msk [vmem:[#allocation3 + $0x2a8] sm:$0xff] %vm812, %v6078
        %6160 = vst [vmem:[#allocation3 + $0x2b0] sm:$0xff] %v6082
        %6161 = vst.msk [vmem:[#allocation3 + $0x2b8] sm:$0xff] %vm812, %v6084
        %6162 = vst [vmem:[#allocation3 + $0x2c0] sm:$0xff] %v6088
        %6163 = vst.msk [vmem:[#allocation3 + $0x2c8] sm:$0xff] %vm812, %v6090
        %6164 = vst [vmem:[#allocation3 + $0x2d0] sm:$0xff] %v6094
        %6165 = vst.msk [vmem:[#allocation3 + $0x2d8] sm:$0xff] %vm812, %v6096
        %6166 = vst [vmem:[#allocation3 + $0x2e0] sm:$0xff] %v6100
        %6167 = vst.msk [vmem:[#allocation3 + $0x2e8] sm:$0xff] %vm812, %v6102
        %6168 = vst [vmem:[#allocation3 + $0x2f0] sm:$0xff] %v6106
        %6169 = vst.msk [vmem:[#allocation3 + $0x2f8] sm:$0xff] %vm812, %v6108
        %6170 = vst [vmem:[#allocation3 + $0x300] sm:$0xff] %v6112
        %6171 = vst.msk [vmem:[#allocation3 + $0x308] sm:$0xff] %vm812, %v6114
        %6172 = vst [vmem:[#allocation3 + $0x310] sm:$0xff] %v6118
        %6173 = vst.msk [vmem:[#allocation3 + $0x318] sm:$0xff] %vm812, %v6120
        %6174 = vst [vmem:[#allocation3 + $0x320] sm:$0xff] %v6124
        %6175 = vst.msk [vmem:[#allocation3 + $0x328] sm:$0xff] %vm812, %v6126
        %6176 = vst [vmem:[#allocation3 + $0x330] sm:$0xff] %v6130
        %6177 = vst.msk [vmem:[#allocation3 + $0x338] sm:$0xff] %vm812, %v6132
        %6178 = vst [vmem:[#allocation3 + $0x340] sm:$0xff] %v6136
        %6179 = vst.msk [vmem:[#allocation3 + $0x348] sm:$0xff] %vm812, %v6138
        %6180 = vst [vmem:[#allocation3 + $0x350] sm:$0xff] %v6142
        %6181 = vst.msk [vmem:[#allocation3 + $0x358] sm:$0xff] %vm812, %v6144
        %6182 = vst [vmem:[#allocation3 + $0x360] sm:$0xff] %v6148
        %6183 = vst.msk [vmem:[#allocation3 + $0x368] sm:$0xff] %vm812, %v6150
        %6184 = vst [vmem:[#allocation3 + $0x370] sm:$0xff] %v6154
        %6185 = vst.msk [vmem:[#allocation3 + $0x378] sm:$0xff] %vm812, %v6156
        %v6186 = vld [vmem:[%s8 + $0x2a0] sm:$0xff]
        %v6187 = vld [vmem:[%s8 + $0x2a8] sm:$0xff]
        %v6188 = vld [vmem:[%s8 + $0x2b0] sm:$0xff]
        %v6189 = vld [vmem:[%s8 + $0x2b8] sm:$0xff]
        %v6190 = vld [vmem:[%s8 + $0x2c0] sm:$0xff]
        %v6191 = vld [vmem:[%s8 + $0x2c8] sm:$0xff]
        %v6192 = vld [vmem:[%s8 + $0x2d0] sm:$0xff]
        %v6193 = vld [vmem:[%s8 + $0x2d8] sm:$0xff]
        %v6194 = vld [vmem:[%s8 + $0x2e0] sm:$0xff]
        %v6195 = vld [vmem:[%s8 + $0x2e8] sm:$0xff]
        %v6196 = vld [vmem:[%s8 + $0x2f0] sm:$0xff]
        %v6197 = vld [vmem:[%s8 + $0x2f8] sm:$0xff]
        %v6198 = vld [vmem:[%s8 + $0x300] sm:$0xff]
        %v6199 = vld [vmem:[%s8 + $0x308] sm:$0xff]
        %v6200 = vld [vmem:[%s8 + $0x310] sm:$0xff]
        %v6201 = vld [vmem:[%s8 + $0x318] sm:$0xff]
        %v6202 = vld [vmem:[%s8 + $0x320] sm:$0xff]
        %v6203 = vld [vmem:[%s8 + $0x328] sm:$0xff]
        %v6204 = vld [vmem:[%s8 + $0x330] sm:$0xff]
        %v6205 = vld [vmem:[%s8 + $0x338] sm:$0xff]
        %v6206 = vld [vmem:[%s8 + $0x340] sm:$0xf]
        %v6207 = vld [vmem:[%s8 + $0x348] sm:$0xf]
        %v6209 = vsel %vm3888, %v6206, 0
        %v6212 = vsel %vm3888, %v6207, 0
        %6214 = vmatprep.subr.mxu0 0.0
        %6215 = vmatpush1.msra.mxu0 0.0
        %6216 = vmatprep.subr.mxu0 0.0
        %6217 = vmatpush1.msra.mxu0 0.0
        %6218 = vmatprep.subr.mxu0 0.0
        %6219 = vmatpush1.msra.mxu0 0.0
        %6220 = vmatprep.subr.mxu0 0.0
        %6221 = vmatpush1.msra.mxu0 0.0
        %6222 = vmatprep.subr.mxu0 0.0
        %6223 = vmatpush1.msra.mxu0 0.0
        %6224 = vmatprep.subr.mxu0 %v6212
        %6225 = vmatpush1.msra.mxu0 %v6209
        %6226 = vmatprep.subr.mxu0 %v6205
        %6227 = vmatpush1.msra.mxu0 %v6204
        %6228 = vmatprep.subr.mxu0 %v6203
        %6229 = vmatpush1.msra.mxu0 %v6202
        %6230 = vmatprep.subr.mxu0 %v6201
        %6231 = vmatpush1.msra.mxu0 %v6200
        %6232 = vmatprep.subr.mxu0 %v6199
        %6233 = vmatpush1.msra.mxu0 %v6198
        %6234 = vmatprep.subr.mxu0 %v6197
        %6235 = vmatpush1.msra.mxu0 %v6196
        %6236 = vmatprep.subr.mxu0 %v6195
        %6237 = vmatpush1.msra.mxu0 %v6194
        %6238 = vmatprep.subr.mxu0 %v6193
        %6239 = vmatpush1.msra.mxu0 %v6192
        %6240 = vmatprep.subr.mxu0 %v6191
        %6241 = vmatpush1.msra.mxu0 %v6190
        %6242 = vmatprep.subr.mxu0 %v6189
        %6243 = vmatpush1.msra.mxu0 %v6188
        %6244 = vmatprep.subr.mxu0 %v6187
        %6245 = vmatpush1.msra.mxu0 %v6186
        %6246 = vmatprep.subr.mxu0 0.0
        %6247 = vmatpush2.msra.mxu0 0.0
        %6248 = vmatprep.subr.mxu0 0.0
        %6249 = vmatpush2.msra.mxu0 0.0
        %6250 = vmatprep.subr.mxu0 0.0
        %6251 = vmatpush2.msra.mxu0 0.0
        %6252 = vmatprep.subr.mxu0 0.0
        %6253 = vmatpush2.msra.mxu0 0.0
        %6254 = vmatprep.subr.mxu0 0.0
        %6255 = vmatpush2.msra.mxu0 0.0
        %6256 = vmatprep.subr.mxu0 0.0
        %6257 = vmatpush2.msra.mxu0 0.0
        %6258 = vmatprep.subr.mxu0 0.0
        %6259 = vmatpush2.msra.mxu0 0.0
        %6260 = vmatprep.subr.mxu0 0.0
        %6261 = vmatpush2.msra.mxu0 0.0
        %6262 = vmatprep.subr.mxu0 0.0
        %6263 = vmatpush2.msra.mxu0 0.0
        %6264 = vmatprep.subr.mxu0 0.0
        %6265 = vmatpush2.msra.mxu0 0.0
        %6266 = vmatprep.subr.mxu0 0.0
        %6267 = vmatpush2.msra.mxu0 0.0
        %6268 = vmatprep.subr.mxu0 0.0
        %6269 = vmatpush2.msra.mxu0 0.0
        %6270 = vmatprep.subr.mxu0 0.0
        %6271 = vmatpush2.msra.mxu0 0.0
        %6272 = vmatprep.subr.mxu0 0.0
        %6273 = vmatpush2.msra.mxu0 0.0
        %6274 = vmatprep.subr.mxu0 0.0
        %6275 = vmatpush2.msra.mxu0 0.0
        %6276 = vmatprep.subr.mxu0 0.0
        %6277 = vmatpush2.msra.mxu0 0.0
        %6278 = vmatprep.mubr.f32.mxu0 0.0
        %6279 = vmatmul.mubr.f32.gmra.mxu0 %v5183
        %v6280 = vpop.f32.mrf.mxu0
        %v6281 = vadd.f32 0.0, %v6280
        %v6282 = vpop.f32.mrf.mxu0
        %v6283 = vadd.f32 0.0, %v6282
        %6284 = vmatprep.mubr.f32.mxu0 0.0
        %6285 = vmatmul.mubr.f32.gmra.mxu0 %v5186
        %v6286 = vpop.f32.mrf.mxu0
        %v6287 = vadd.f32 0.0, %v6286
        %v6288 = vpop.f32.mrf.mxu0
        %v6289 = vadd.f32 0.0, %v6288
        %6290 = vmatprep.mubr.f32.mxu0 0.0
        %6291 = vmatmul.mubr.f32.gmra.mxu0 %v5189
        %v6292 = vpop.f32.mrf.mxu0
        %v6293 = vadd.f32 0.0, %v6292
        %v6294 = vpop.f32.mrf.mxu0
        %v6295 = vadd.f32 0.0, %v6294
        %6296 = vmatprep.mubr.f32.mxu0 0.0
        %6297 = vmatmul.mubr.f32.gmra.mxu0 %v5192
        %v6298 = vpop.f32.mrf.mxu0
        %v6299 = vadd.f32 0.0, %v6298
        %v6300 = vpop.f32.mrf.mxu0
        %v6301 = vadd.f32 0.0, %v6300
        %6302 = vmatprep.mubr.f32.mxu0 0.0
        %6303 = vmatmul.mubr.f32.gmra.mxu0 %v5195
        %v6304 = vpop.f32.mrf.mxu0
        %v6305 = vadd.f32 0.0, %v6304
        %v6306 = vpop.f32.mrf.mxu0
        %v6307 = vadd.f32 0.0, %v6306
        %6308 = vmatprep.mubr.f32.mxu0 0.0
        %6309 = vmatmul.mubr.f32.gmra.mxu0 %v5198
        %v6310 = vpop.f32.mrf.mxu0
        %v6311 = vadd.f32 0.0, %v6310
        %v6312 = vpop.f32.mrf.mxu0
        %v6313 = vadd.f32 0.0, %v6312
        %6314 = vmatprep.mubr.f32.mxu0 0.0
        %6315 = vmatmul.mubr.f32.gmra.mxu0 %v5201
        %v6316 = vpop.f32.mrf.mxu0
        %v6317 = vadd.f32 0.0, %v6316
        %v6318 = vpop.f32.mrf.mxu0
        %v6319 = vadd.f32 0.0, %v6318
        %6320 = vmatprep.mubr.f32.mxu0 0.0
        %6321 = vmatmul.mubr.f32.gmra.mxu0 %v5204
        %v6322 = vpop.f32.mrf.mxu0
        %v6323 = vadd.f32 0.0, %v6322
        %v6324 = vpop.f32.mrf.mxu0
        %v6325 = vadd.f32 0.0, %v6324
        %6326 = vmatprep.mubr.f32.mxu0 0.0
        %6327 = vmatmul.mubr.f32.gmra.mxu0 %v5207
        %v6328 = vpop.f32.mrf.mxu0
        %v6329 = vadd.f32 0.0, %v6328
        %v6330 = vpop.f32.mrf.mxu0
        %v6331 = vadd.f32 0.0, %v6330
        %6332 = vmatprep.mubr.f32.mxu0 0.0
        %6333 = vmatmul.mubr.f32.gmra.mxu0 %v5210
        %v6334 = vpop.f32.mrf.mxu0
        %v6335 = vadd.f32 0.0, %v6334
        %v6336 = vpop.f32.mrf.mxu0
        %v6337 = vadd.f32 0.0, %v6336
        %6338 = vmatprep.mubr.f32.mxu0 0.0
        %6339 = vmatmul.mubr.f32.gmra.mxu0 %v5213
        %v6340 = vpop.f32.mrf.mxu0
        %v6341 = vadd.f32 0.0, %v6340
        %v6342 = vpop.f32.mrf.mxu0
        %v6343 = vadd.f32 0.0, %v6342
        %6344 = vmatprep.mubr.f32.mxu0 0.0
        %6345 = vmatmul.mubr.f32.gmra.mxu0 %v5216
        %v6346 = vpop.f32.mrf.mxu0
        %v6347 = vadd.f32 0.0, %v6346
        %v6348 = vpop.f32.mrf.mxu0
        %v6349 = vadd.f32 0.0, %v6348
        %6350 = vmatprep.mubr.f32.mxu0 0.0
        %6351 = vmatmul.mubr.f32.gmra.mxu0 %v5219
        %v6352 = vpop.f32.mrf.mxu0
        %v6353 = vadd.f32 0.0, %v6352
        %v6354 = vpop.f32.mrf.mxu0
        %v6355 = vadd.f32 0.0, %v6354
        %6356 = vmatprep.mubr.f32.mxu0 0.0
        %6357 = vmatmul.mubr.f32.gmra.mxu0 %v5222
        %v6358 = vpop.f32.mrf.mxu0
        %v6359 = vadd.f32 0.0, %v6358
        %v6360 = vpop.f32.mrf.mxu0
        %v6361 = vadd.f32 0.0, %v6360
        %6362 = vdwg.mxu0
        %6363 = vst [vmem:[#allocation3 + $0x380] sm:$0xff] %v6281
        %6364 = vst.msk [vmem:[#allocation3 + $0x388] sm:$0xff] %vm812, %v6283
        %6365 = vst [vmem:[#allocation3 + $0x390] sm:$0xff] %v6287
        %6366 = vst.msk [vmem:[#allocation3 + $0x398] sm:$0xff] %vm812, %v6289
        %6367 = vst [vmem:[#allocation3 + $0x3a0] sm:$0xff] %v6293
        %6368 = vst.msk [vmem:[#allocation3 + $0x3a8] sm:$0xff] %vm812, %v6295
        %6369 = vst [vmem:[#allocation3 + $0x3b0] sm:$0xff] %v6299
        %6370 = vst.msk [vmem:[#allocation3 + $0x3b8] sm:$0xff] %vm812, %v6301
        %6371 = vst [vmem:[#allocation3 + $0x3c0] sm:$0xff] %v6305
        %6372 = vst.msk [vmem:[#allocation3 + $0x3c8] sm:$0xff] %vm812, %v6307
        %6373 = vst [vmem:[#allocation3 + $0x3d0] sm:$0xff] %v6311
        %6374 = vst.msk [vmem:[#allocation3 + $0x3d8] sm:$0xff] %vm812, %v6313
        %6375 = vst [vmem:[#allocation3 + $0x3e0] sm:$0xff] %v6317
        %6376 = vst.msk [vmem:[#allocation3 + $0x3e8] sm:$0xff] %vm812, %v6319
        %6377 = vst [vmem:[#allocation3 + $0x3f0] sm:$0xff] %v6323
        %6378 = vst.msk [vmem:[#allocation3 + $0x3f8] sm:$0xff] %vm812, %v6325
        %6379 = vst [vmem:[#allocation3 + $0x400] sm:$0xff] %v6329
        %6380 = vst.msk [vmem:[#allocation3 + $0x408] sm:$0xff] %vm812, %v6331
        %6381 = vst [vmem:[#allocation3 + $0x410] sm:$0xff] %v6335
        %6382 = vst.msk [vmem:[#allocation3 + $0x418] sm:$0xff] %vm812, %v6337
        %6383 = vst [vmem:[#allocation3 + $0x420] sm:$0xff] %v6341
        %6384 = vst.msk [vmem:[#allocation3 + $0x428] sm:$0xff] %vm812, %v6343
        %6385 = vst [vmem:[#allocation3 + $0x430] sm:$0xff] %v6347
        %6386 = vst.msk [vmem:[#allocation3 + $0x438] sm:$0xff] %vm812, %v6349
        %6387 = vst [vmem:[#allocation3 + $0x440] sm:$0xff] %v6353
        %6388 = vst.msk [vmem:[#allocation3 + $0x448] sm:$0xff] %vm812, %v6355
        %6389 = vst [vmem:[#allocation3 + $0x450] sm:$0xff] %v6359
        %6390 = vst.msk [vmem:[#allocation3 + $0x458] sm:$0xff] %vm812, %v6361
        %v6391 = vld [vmem:[#allocation3] sm:$0xff]
        %v6392 = vld [vmem:[#allocation3 + $0x8] sm:$0xff]
        %v6393 = vld [vmem:[#allocation3 + $0x10] sm:$0xff]
        %v6394 = vld [vmem:[#allocation3 + $0x18] sm:$0xff]
        %v6395 = vld [vmem:[#allocation3 + $0x20] sm:$0xff]
        %v6396 = vld [vmem:[#allocation3 + $0x28] sm:$0xff]
        %v6397 = vld [vmem:[#allocation3 + $0x30] sm:$0xff]
        %v6398 = vld [vmem:[#allocation3 + $0x38] sm:$0xff]
        %v6399 = vld [vmem:[#allocation3 + $0x40] sm:$0xff]
        %v6400 = vld [vmem:[#allocation3 + $0x48] sm:$0xff]
        %v6401 = vld [vmem:[#allocation3 + $0x50] sm:$0xff]
        %v6402 = vld [vmem:[#allocation3 + $0x58] sm:$0xff]
        %v6403 = vld [vmem:[#allocation3 + $0x60] sm:$0xff]
        %v6404 = vld [vmem:[#allocation3 + $0x68] sm:$0xff]
        %v6405 = vld [vmem:[#allocation3 + $0x70] sm:$0xff]
        %v6406 = vld [vmem:[#allocation3 + $0x78] sm:$0xff]
        %v6407 = vld [vmem:[#allocation3 + $0x80] sm:$0xff]
        %v6408 = vld [vmem:[#allocation3 + $0x88] sm:$0xff]
        %v6409 = vld [vmem:[#allocation3 + $0x90] sm:$0xff]
        %v6410 = vld [vmem:[#allocation3 + $0x98] sm:$0xff]
        %v6411 = vld [vmem:[#allocation3 + $0xa0] sm:$0xff]
        %v6412 = vld [vmem:[#allocation3 + $0xa8] sm:$0xff]
        %v6413 = vld [vmem:[#allocation3 + $0xb0] sm:$0xff]
        %v6414 = vld [vmem:[#allocation3 + $0xb8] sm:$0xff]
        %v6415 = vld [vmem:[#allocation3 + $0xc0] sm:$0xff]
        %v6416 = vld [vmem:[#allocation3 + $0xc8] sm:$0xff]
        %v6417 = vld [vmem:[#allocation3 + $0xd0] sm:$0xf]
        %v6418 = vld [vmem:[#allocation3 + $0xd8] sm:$0xf]
        %v6419 = vld [vmem:[#allocation3 + $0xe0] sm:$0xfe]
        %v6420 = vld [vmem:[#allocation3 + $0xe8] sm:$0xfe]
        %v6421 = vld [vmem:[#allocation3 + $0xf0] sm:$0xff]
        %v6422 = vld [vmem:[#allocation3 + $0xf8] sm:$0xff]
        %v6423 = vld [vmem:[#allocation3 + $0x100] sm:$0xff]
        %v6424 = vld [vmem:[#allocation3 + $0x108] sm:$0xff]
        %v6425 = vld [vmem:[#allocation3 + $0x110] sm:$0xff]
        %v6426 = vld [vmem:[#allocation3 + $0x118] sm:$0xff]
        %v6427 = vld [vmem:[#allocation3 + $0x120] sm:$0xff]
        %v6428 = vld [vmem:[#allocation3 + $0x128] sm:$0xff]
        %v6429 = vld [vmem:[#allocation3 + $0x130] sm:$0xff]
        %v6430 = vld [vmem:[#allocation3 + $0x138] sm:$0xff]
        %v6431 = vld [vmem:[#allocation3 + $0x140] sm:$0xff]
        %v6432 = vld [vmem:[#allocation3 + $0x148] sm:$0xff]
        %v6433 = vld [vmem:[#allocation3 + $0x150] sm:$0xff]
        %v6434 = vld [vmem:[#allocation3 + $0x158] sm:$0xff]
        %v6435 = vld [vmem:[#allocation3 + $0x160] sm:$0xff]
        %v6436 = vld [vmem:[#allocation3 + $0x168] sm:$0xff]
        %v6437 = vld [vmem:[#allocation3 + $0x170] sm:$0xff]
        %v6438 = vld [vmem:[#allocation3 + $0x178] sm:$0xff]
        %v6439 = vld [vmem:[#allocation3 + $0x180] sm:$0xff]
        %v6440 = vld [vmem:[#allocation3 + $0x188] sm:$0xff]
        %v6441 = vld [vmem:[#allocation3 + $0x190] sm:$0xff]
        %v6442 = vld [vmem:[#allocation3 + $0x198] sm:$0xff]
        %v6443 = vld [vmem:[#allocation3 + $0x1a0] sm:$0xff]
        %v6444 = vld [vmem:[#allocation3 + $0x1a8] sm:$0xff]
        %v6445 = vld [vmem:[#allocation3 + $0x1b0] sm:$0x1f]
        %v6446 = vld [vmem:[#allocation3 + $0x1b8] sm:$0x1f]
        %v6475 = vrot.slane %v6419, 1
        %v6476 = vrot.slane %v6421, 1
        %v6477 = vsel %vm2739, %v6475, %v6476
        %v6478 = vrot.slane %v6420, 1
        %v6479 = vrot.slane %v6422, 1
        %v6480 = vsel %vm2739, %v6478, %v6479
        %v6481 = vrot.slane %v6423, 1
        %v6482 = vsel %vm2739, %v6476, %v6481
        %v6483 = vrot.slane %v6424, 1
        %v6484 = vsel %vm2739, %v6479, %v6483
        %v6485 = vrot.slane %v6425, 1
        %v6486 = vsel %vm2739, %v6481, %v6485
        %v6487 = vrot.slane %v6426, 1
        %v6488 = vsel %vm2739, %v6483, %v6487
        %v6489 = vrot.slane %v6427, 1
        %v6490 = vsel %vm2739, %v6485, %v6489
        %v6491 = vrot.slane %v6428, 1
        %v6492 = vsel %vm2739, %v6487, %v6491
        %v6493 = vrot.slane %v6429, 1
        %v6494 = vsel %vm2739, %v6489, %v6493
        %v6495 = vrot.slane %v6430, 1
        %v6496 = vsel %vm2739, %v6491, %v6495
        %v6497 = vrot.slane %v6431, 1
        %v6498 = vsel %vm2739, %v6493, %v6497
        %v6499 = vrot.slane %v6432, 1
        %v6500 = vsel %vm2739, %v6495, %v6499
        %v6501 = vrot.slane %v6433, 1
        %v6502 = vsel %vm2739, %v6497, %v6501
        %v6503 = vrot.slane %v6434, 1
        %v6504 = vsel %vm2739, %v6499, %v6503
        %v6505 = vrot.slane %v6435, 1
        %v6506 = vsel %vm2739, %v6501, %v6505
        %v6507 = vrot.slane %v6436, 1
        %v6508 = vsel %vm2739, %v6503, %v6507
        %v6509 = vrot.slane %v6437, 1
        %v6510 = vsel %vm2739, %v6505, %v6509
        %v6511 = vrot.slane %v6438, 1
        %v6512 = vsel %vm2739, %v6507, %v6511
        %v6513 = vrot.slane %v6439, 1
        %v6514 = vsel %vm2739, %v6509, %v6513
        %v6515 = vrot.slane %v6440, 1
        %v6516 = vsel %vm2739, %v6511, %v6515
        %v6517 = vrot.slane %v6441, 1
        %v6518 = vsel %vm2739, %v6513, %v6517
        %v6519 = vrot.slane %v6442, 1
        %v6520 = vsel %vm2739, %v6515, %v6519
        %v6521 = vrot.slane %v6443, 1
        %v6522 = vsel %vm2739, %v6517, %v6521
        %v6523 = vrot.slane %v6444, 1
        %v6524 = vsel %vm2739, %v6519, %v6523
        %v6525 = vrot.slane %v6445, 1
        %v6526 = vsel %vm2739, %v6521, %v6525
        %v6527 = vrot.slane %v6446, 1
        %v6528 = vsel %vm2739, %v6523, %v6527
        %v6557 = vadd.f32 %v6391, %v6477
        %v6558 = vadd.f32 %v6392, %v6480
        %v6559 = vadd.f32 %v6393, %v6482
        %v6560 = vadd.f32 %v6394, %v6484
        %v6561 = vadd.f32 %v6395, %v6486
        %v6562 = vadd.f32 %v6396, %v6488
        %v6563 = vadd.f32 %v6397, %v6490
        %v6564 = vadd.f32 %v6398, %v6492
        %v6565 = vadd.f32 %v6399, %v6494
        %v6566 = vadd.f32 %v6400, %v6496
        %v6567 = vadd.f32 %v6401, %v6498
        %v6568 = vadd.f32 %v6402, %v6500
        %v6569 = vadd.f32 %v6403, %v6502
        %v6570 = vadd.f32 %v6404, %v6504
        %v6571 = vadd.f32 %v6405, %v6506
        %v6572 = vadd.f32 %v6406, %v6508
        %v6573 = vadd.f32 %v6407, %v6510
        %v6574 = vadd.f32 %v6408, %v6512
        %v6575 = vadd.f32 %v6409, %v6514
        %v6576 = vadd.f32 %v6410, %v6516
        %v6577 = vadd.f32 %v6411, %v6518
        %v6578 = vadd.f32 %v6412, %v6520
        %v6579 = vadd.f32 %v6413, %v6522
        %v6580 = vadd.f32 %v6414, %v6524
        %v6581 = vadd.f32 %v6415, %v6526
        %v6582 = vadd.f32 %v6416, %v6528
        %v6583 = vadd.f32 %v6417, %v6525
        %v6584 = vadd.f32 %v6418, %v6527
        %v6585 = vld [vmem:[#allocation3 + $0x1c0] sm:$0xfc]
        %v6586 = vld [vmem:[#allocation3 + $0x1c8] sm:$0xfc]
        %v6587 = vld [vmem:[#allocation3 + $0x1d0] sm:$0xff]
        %v6588 = vld [vmem:[#allocation3 + $0x1d8] sm:$0xff]
        %v6589 = vld [vmem:[#allocation3 + $0x1e0] sm:$0xff]
        %v6590 = vld [vmem:[#allocation3 + $0x1e8] sm:$0xff]
        %v6591 = vld [vmem:[#allocation3 + $0x1f0] sm:$0xff]
        %v6592 = vld [vmem:[#allocation3 + $0x1f8] sm:$0xff]
        %v6593 = vld [vmem:[#allocation3 + $0x200] sm:$0xff]
        %v6594 = vld [vmem:[#allocation3 + $0x208] sm:$0xff]
        %v6595 = vld [vmem:[#allocation3 + $0x210] sm:$0xff]
        %v6596 = vld [vmem:[#allocation3 + $0x218] sm:$0xff]
        %v6597 = vld [vmem:[#allocation3 + $0x220] sm:$0xff]
        %v6598 = vld [vmem:[#allocation3 + $0x228] sm:$0xff]
        %v6599 = vld [vmem:[#allocation3 + $0x230] sm:$0xff]
        %v6600 = vld [vmem:[#allocation3 + $0x238] sm:$0xff]
        %v6601 = vld [vmem:[#allocation3 + $0x240] sm:$0xff]
        %v6602 = vld [vmem:[#allocation3 + $0x248] sm:$0xff]
        %v6603 = vld [vmem:[#allocation3 + $0x250] sm:$0xff]
        %v6604 = vld [vmem:[#allocation3 + $0x258] sm:$0xff]
        %v6605 = vld [vmem:[#allocation3 + $0x260] sm:$0xff]
        %v6606 = vld [vmem:[#allocation3 + $0x268] sm:$0xff]
        %v6607 = vld [vmem:[#allocation3 + $0x270] sm:$0xff]
        %v6608 = vld [vmem:[#allocation3 + $0x278] sm:$0xff]
        %v6609 = vld [vmem:[#allocation3 + $0x280] sm:$0xff]
        %v6610 = vld [vmem:[#allocation3 + $0x288] sm:$0xff]
        %v6611 = vld [vmem:[#allocation3 + $0x290] sm:$0x3f]
        %v6612 = vld [vmem:[#allocation3 + $0x298] sm:$0x3f]
        %v6641 = vrot.slane %v6585, 2
        %v6642 = vrot.slane %v6587, 2
        %v6643 = vsel %vm3122, %v6641, %v6642
        %v6644 = vrot.slane %v6586, 2
        %v6645 = vrot.slane %v6588, 2
        %v6646 = vsel %vm3122, %v6644, %v6645
        %v6647 = vrot.slane %v6589, 2
        %v6648 = vsel %vm3122, %v6642, %v6647
        %v6649 = vrot.slane %v6590, 2
        %v6650 = vsel %vm3122, %v6645, %v6649
        %v6651 = vrot.slane %v6591, 2
        %v6652 = vsel %vm3122, %v6647, %v6651
        %v6653 = vrot.slane %v6592, 2
        %v6654 = vsel %vm3122, %v6649, %v6653
        %v6655 = vrot.slane %v6593, 2
        %v6656 = vsel %vm3122, %v6651, %v6655
        %v6657 = vrot.slane %v6594, 2
        %v6658 = vsel %vm3122, %v6653, %v6657
        %v6659 = vrot.slane %v6595, 2
        %v6660 = vsel %vm3122, %v6655, %v6659
        %v6661 = vrot.slane %v6596, 2
        %v6662 = vsel %vm3122, %v6657, %v6661
        %v6663 = vrot.slane %v6597, 2
        %v6664 = vsel %vm3122, %v6659, %v6663
        %v6665 = vrot.slane %v6598, 2
        %v6666 = vsel %vm3122, %v6661, %v6665
        %v6667 = vrot.slane %v6599, 2
        %v6668 = vsel %vm3122, %v6663, %v6667
        %v6669 = vrot.slane %v6600, 2
        %v6670 = vsel %vm3122, %v6665, %v6669
        %v6671 = vrot.slane %v6601, 2
        %v6672 = vsel %vm3122, %v6667, %v6671
        %v6673 = vrot.slane %v6602, 2
        %v6674 = vsel %vm3122, %v6669, %v6673
        %v6675 = vrot.slane %v6603, 2
        %v6676 = vsel %vm3122, %v6671, %v6675
        %v6677 = vrot.slane %v6604, 2
        %v6678 = vsel %vm3122, %v6673, %v6677
        %v6679 = vrot.slane %v6605, 2
        %v6680 = vsel %vm3122, %v6675, %v6679
        %v6681 = vrot.slane %v6606, 2
        %v6682 = vsel %vm3122, %v6677, %v6681
        %v6683 = vrot.slane %v6607, 2
        %v6684 = vsel %vm3122, %v6679, %v6683
        %v6685 = vrot.slane %v6608, 2
        %v6686 = vsel %vm3122, %v6681, %v6685
        %v6687 = vrot.slane %v6609, 2
        %v6688 = vsel %vm3122, %v6683, %v6687
        %v6689 = vrot.slane %v6610, 2
        %v6690 = vsel %vm3122, %v6685, %v6689
        %v6691 = vrot.slane %v6611, 2
        %v6692 = vsel %vm3122, %v6687, %v6691
        %v6693 = vrot.slane %v6612, 2
        %v6694 = vsel %vm3122, %v6689, %v6693
        %v6723 = vadd.f32 %v6557, %v6643
        %v6724 = vadd.f32 %v6558, %v6646
        %v6725 = vadd.f32 %v6559, %v6648
        %v6726 = vadd.f32 %v6560, %v6650
        %v6727 = vadd.f32 %v6561, %v6652
        %v6728 = vadd.f32 %v6562, %v6654
        %v6729 = vadd.f32 %v6563, %v6656
        %v6730 = vadd.f32 %v6564, %v6658
        %v6731 = vadd.f32 %v6565, %v6660
        %v6732 = vadd.f32 %v6566, %v6662
        %v6733 = vadd.f32 %v6567, %v6664
        %v6734 = vadd.f32 %v6568, %v6666
        %v6735 = vadd.f32 %v6569, %v6668
        %v6736 = vadd.f32 %v6570, %v6670
        %v6737 = vadd.f32 %v6571, %v6672
        %v6738 = vadd.f32 %v6572, %v6674
        %v6739 = vadd.f32 %v6573, %v6676
        %v6740 = vadd.f32 %v6574, %v6678
        %v6741 = vadd.f32 %v6575, %v6680
        %v6742 = vadd.f32 %v6576, %v6682
        %v6743 = vadd.f32 %v6577, %v6684
        %v6744 = vadd.f32 %v6578, %v6686
        %v6745 = vadd.f32 %v6579, %v6688
        %v6746 = vadd.f32 %v6580, %v6690
        %v6747 = vadd.f32 %v6581, %v6692
        %v6748 = vadd.f32 %v6582, %v6694
        %v6749 = vadd.f32 %v6583, %v6691
        %v6750 = vadd.f32 %v6584, %v6693
        %v6751 = vld [vmem:[#allocation3 + $0x2a0] sm:$0xf8]
        %v6752 = vld [vmem:[#allocation3 + $0x2a8] sm:$0xf8]
        %v6753 = vld [vmem:[#allocation3 + $0x2b0] sm:$0xff]
        %v6754 = vld [vmem:[#allocation3 + $0x2b8] sm:$0xff]
        %v6755 = vld [vmem:[#allocation3 + $0x2c0] sm:$0xff]
        %v6756 = vld [vmem:[#allocation3 + $0x2c8] sm:$0xff]
        %v6757 = vld [vmem:[#allocation3 + $0x2d0] sm:$0xff]
        %v6758 = vld [vmem:[#allocation3 + $0x2d8] sm:$0xff]
        %v6759 = vld [vmem:[#allocation3 + $0x2e0] sm:$0xff]
        %v6760 = vld [vmem:[#allocation3 + $0x2e8] sm:$0xff]
        %v6761 = vld [vmem:[#allocation3 + $0x2f0] sm:$0xff]
        %v6762 = vld [vmem:[#allocation3 + $0x2f8] sm:$0xff]
        %v6763 = vld [vmem:[#allocation3 + $0x300] sm:$0xff]
        %v6764 = vld [vmem:[#allocation3 + $0x308] sm:$0xff]
        %v6765 = vld [vmem:[#allocation3 + $0x310] sm:$0xff]
        %v6766 = vld [vmem:[#allocation3 + $0x318] sm:$0xff]
        %v6767 = vld [vmem:[#allocation3 + $0x320] sm:$0xff]
        %v6768 = vld [vmem:[#allocation3 + $0x328] sm:$0xff]
        %v6769 = vld [vmem:[#allocation3 + $0x330] sm:$0xff]
        %v6770 = vld [vmem:[#allocation3 + $0x338] sm:$0xff]
        %v6771 = vld [vmem:[#allocation3 + $0x340] sm:$0xff]
        %v6772 = vld [vmem:[#allocation3 + $0x348] sm:$0xff]
        %v6773 = vld [vmem:[#allocation3 + $0x350] sm:$0xff]
        %v6774 = vld [vmem:[#allocation3 + $0x358] sm:$0xff]
        %v6775 = vld [vmem:[#allocation3 + $0x360] sm:$0xff]
        %v6776 = vld [vmem:[#allocation3 + $0x368] sm:$0xff]
        %v6777 = vld [vmem:[#allocation3 + $0x370] sm:$0x7f]
        %v6778 = vld [vmem:[#allocation3 + $0x378] sm:$0x7f]
        %v6807 = vrot.slane %v6751, 3
        %v6808 = vrot.slane %v6753, 3
        %v6809 = vsel %vm3505, %v6807, %v6808
        %v6810 = vrot.slane %v6752, 3
        %v6811 = vrot.slane %v6754, 3
        %v6812 = vsel %vm3505, %v6810, %v6811
        %v6813 = vrot.slane %v6755, 3
        %v6814 = vsel %vm3505, %v6808, %v6813
        %v6815 = vrot.slane %v6756, 3
        %v6816 = vsel %vm3505, %v6811, %v6815
        %v6817 = vrot.slane %v6757, 3
        %v6818 = vsel %vm3505, %v6813, %v6817
        %v6819 = vrot.slane %v6758, 3
        %v6820 = vsel %vm3505, %v6815, %v6819
        %v6821 = vrot.slane %v6759, 3
        %v6822 = vsel %vm3505, %v6817, %v6821
        %v6823 = vrot.slane %v6760, 3
        %v6824 = vsel %vm3505, %v6819, %v6823
        %v6825 = vrot.slane %v6761, 3
        %v6826 = vsel %vm3505, %v6821, %v6825
        %v6827 = vrot.slane %v6762, 3
        %v6828 = vsel %vm3505, %v6823, %v6827
        %v6829 = vrot.slane %v6763, 3
        %v6830 = vsel %vm3505, %v6825, %v6829
        %v6831 = vrot.slane %v6764, 3
        %v6832 = vsel %vm3505, %v6827, %v6831
        %v6833 = vrot.slane %v6765, 3
        %v6834 = vsel %vm3505, %v6829, %v6833
        %v6835 = vrot.slane %v6766, 3
        %v6836 = vsel %vm3505, %v6831, %v6835
        %v6837 = vrot.slane %v6767, 3
        %v6838 = vsel %vm3505, %v6833, %v6837
        %v6839 = vrot.slane %v6768, 3
        %v6840 = vsel %vm3505, %v6835, %v6839
        %v6841 = vrot.slane %v6769, 3
        %v6842 = vsel %vm3505, %v6837, %v6841
        %v6843 = vrot.slane %v6770, 3
        %v6844 = vsel %vm3505, %v6839, %v6843
        %v6845 = vrot.slane %v6771, 3
        %v6846 = vsel %vm3505, %v6841, %v6845
        %v6847 = vrot.slane %v6772, 3
        %v6848 = vsel %vm3505, %v6843, %v6847
        %v6849 = vrot.slane %v6773, 3
        %v6850 = vsel %vm3505, %v6845, %v6849
        %v6851 = vrot.slane %v6774, 3
        %v6852 = vsel %vm3505, %v6847, %v6851
        %v6853 = vrot.slane %v6775, 3
        %v6854 = vsel %vm3505, %v6849, %v6853
        %v6855 = vrot.slane %v6776, 3
        %v6856 = vsel %vm3505, %v6851, %v6855
        %v6857 = vrot.slane %v6777, 3
        %v6858 = vsel %vm3505, %v6853, %v6857
        %v6859 = vrot.slane %v6778, 3
        %v6860 = vsel %vm3505, %v6855, %v6859
        %v6889 = vadd.f32 %v6723, %v6809
        %v6890 = vadd.f32 %v6724, %v6812
        %v6891 = vadd.f32 %v6725, %v6814
        %v6892 = vadd.f32 %v6726, %v6816
        %v6893 = vadd.f32 %v6727, %v6818
        %v6894 = vadd.f32 %v6728, %v6820
        %v6895 = vadd.f32 %v6729, %v6822
        %v6896 = vadd.f32 %v6730, %v6824
        %v6897 = vadd.f32 %v6731, %v6826
        %v6898 = vadd.f32 %v6732, %v6828
        %v6899 = vadd.f32 %v6733, %v6830
        %v6900 = vadd.f32 %v6734, %v6832
        %v6901 = vadd.f32 %v6735, %v6834
        %v6902 = vadd.f32 %v6736, %v6836
        %v6903 = vadd.f32 %v6737, %v6838
        %v6904 = vadd.f32 %v6738, %v6840
        %v6905 = vadd.f32 %v6739, %v6842
        %v6906 = vadd.f32 %v6740, %v6844
        %v6907 = vadd.f32 %v6741, %v6846
        %v6908 = vadd.f32 %v6742, %v6848
        %v6909 = vadd.f32 %v6743, %v6850
        %v6910 = vadd.f32 %v6744, %v6852
        %v6911 = vadd.f32 %v6745, %v6854
        %v6912 = vadd.f32 %v6746, %v6856
        %v6913 = vadd.f32 %v6747, %v6858
        %v6914 = vadd.f32 %v6748, %v6860
        %v6915 = vadd.f32 %v6749, %v6857
        %v6916 = vadd.f32 %v6750, %v6859
        %v6917 = vld [vmem:[#allocation3 + $0x380] sm:$0xf0]
        %v6918 = vld [vmem:[#allocation3 + $0x388] sm:$0xf0]
        %v6919 = vld [vmem:[#allocation3 + $0x390] sm:$0xff]
        %v6920 = vld [vmem:[#allocation3 + $0x398] sm:$0xff]
        %v6921 = vld [vmem:[#allocation3 + $0x3a0] sm:$0xff]
        %v6922 = vld [vmem:[#allocation3 + $0x3a8] sm:$0xff]
        %v6923 = vld [vmem:[#allocation3 + $0x3b0] sm:$0xff]
        %v6924 = vld [vmem:[#allocation3 + $0x3b8] sm:$0xff]
        %v6925 = vld [vmem:[#allocation3 + $0x3c0] sm:$0xff]
        %v6926 = vld [vmem:[#allocation3 + $0x3c8] sm:$0xff]
        %v6927 = vld [vmem:[#allocation3 + $0x3d0] sm:$0xff]
        %v6928 = vld [vmem:[#allocation3 + $0x3d8] sm:$0xff]
        %v6929 = vld [vmem:[#allocation3 + $0x3e0] sm:$0xff]
        %v6930 = vld [vmem:[#allocation3 + $0x3e8] sm:$0xff]
        %v6931 = vld [vmem:[#allocation3 + $0x3f0] sm:$0xff]
        %v6932 = vld [vmem:[#allocation3 + $0x3f8] sm:$0xff]
        %v6933 = vld [vmem:[#allocation3 + $0x400] sm:$0xff]
        %v6934 = vld [vmem:[#allocation3 + $0x408] sm:$0xff]
        %v6935 = vld [vmem:[#allocation3 + $0x410] sm:$0xff]
        %v6936 = vld [vmem:[#allocation3 + $0x418] sm:$0xff]
        %v6937 = vld [vmem:[#allocation3 + $0x420] sm:$0xff]
        %v6938 = vld [vmem:[#allocation3 + $0x428] sm:$0xff]
        %v6939 = vld [vmem:[#allocation3 + $0x430] sm:$0xff]
        %v6940 = vld [vmem:[#allocation3 + $0x438] sm:$0xff]
        %v6941 = vld [vmem:[#allocation3 + $0x440] sm:$0xff]
        %v6942 = vld [vmem:[#allocation3 + $0x448] sm:$0xff]
        %v6943 = vld [vmem:[#allocation3 + $0x450] sm:$0xff]
        %v6944 = vld [vmem:[#allocation3 + $0x458] sm:$0xff]
        %v6973 = vrot.slane %v6917, 4
        %v6974 = vrot.slane %v6919, 4
        %v6975 = vsel %vm3888, %v6973, %v6974
        %v6976 = vrot.slane %v6918, 4
        %v6977 = vrot.slane %v6920, 4
        %v6978 = vsel %vm3888, %v6976, %v6977
        %v6979 = vrot.slane %v6921, 4
        %v6980 = vsel %vm3888, %v6974, %v6979
        %v6981 = vrot.slane %v6922, 4
        %v6982 = vsel %vm3888, %v6977, %v6981
        %v6983 = vrot.slane %v6923, 4
        %v6984 = vsel %vm3888, %v6979, %v6983
        %v6985 = vrot.slane %v6924, 4
        %v6986 = vsel %vm3888, %v6981, %v6985
        %v6987 = vrot.slane %v6925, 4
        %v6988 = vsel %vm3888, %v6983, %v6987
        %v6989 = vrot.slane %v6926, 4
        %v6990 = vsel %vm3888, %v6985, %v6989
        %v6991 = vrot.slane %v6927, 4
        %v6992 = vsel %vm3888, %v6987, %v6991
        %v6993 = vrot.slane %v6928, 4
        %v6994 = vsel %vm3888, %v6989, %v6993
        %v6995 = vrot.slane %v6929, 4
        %v6996 = vsel %vm3888, %v6991, %v6995
        %v6997 = vrot.slane %v6930, 4
        %v6998 = vsel %vm3888, %v6993, %v6997
        %v6999 = vrot.slane %v6931, 4
        %v7000 = vsel %vm3888, %v6995, %v6999
        %v7001 = vrot.slane %v6932, 4
        %v7002 = vsel %vm3888, %v6997, %v7001
        %v7003 = vrot.slane %v6933, 4
        %v7004 = vsel %vm3888, %v6999, %v7003
        %v7005 = vrot.slane %v6934, 4
        %v7006 = vsel %vm3888, %v7001, %v7005
        %v7007 = vrot.slane %v6935, 4
        %v7008 = vsel %vm3888, %v7003, %v7007
        %v7009 = vrot.slane %v6936, 4
        %v7010 = vsel %vm3888, %v7005, %v7009
        %v7011 = vrot.slane %v6937, 4
        %v7012 = vsel %vm3888, %v7007, %v7011
        %v7013 = vrot.slane %v6938, 4
        %v7014 = vsel %vm3888, %v7009, %v7013
        %v7015 = vrot.slane %v6939, 4
        %v7016 = vsel %vm3888, %v7011, %v7015
        %v7017 = vrot.slane %v6940, 4
        %v7018 = vsel %vm3888, %v7013, %v7017
        %v7019 = vrot.slane %v6941, 4
        %v7020 = vsel %vm3888, %v7015, %v7019
        %v7021 = vrot.slane %v6942, 4
        %v7022 = vsel %vm3888, %v7017, %v7021
        %v7023 = vrot.slane %v6943, 4
        %v7024 = vsel %vm3888, %v7019, %v7023
        %v7025 = vrot.slane %v6944, 4
        %v7026 = vsel %vm3888, %v7021, %v7025
        %v7055 = vadd.f32 %v6889, %v6975
        %v7056 = vadd.f32 %v6890, %v6978
        %v7057 = vadd.f32 %v6891, %v6980
        %v7058 = vadd.f32 %v6892, %v6982
        %v7059 = vadd.f32 %v6893, %v6984
        %v7060 = vadd.f32 %v6894, %v6986
        %v7061 = vadd.f32 %v6895, %v6988
        %v7062 = vadd.f32 %v6896, %v6990
        %v7063 = vadd.f32 %v6897, %v6992
        %v7064 = vadd.f32 %v6898, %v6994
        %v7065 = vadd.f32 %v6899, %v6996
        %v7066 = vadd.f32 %v6900, %v6998
        %v7067 = vadd.f32 %v6901, %v7000
        %v7068 = vadd.f32 %v6902, %v7002
        %v7069 = vadd.f32 %v6903, %v7004
        %v7070 = vadd.f32 %v6904, %v7006
        %v7071 = vadd.f32 %v6905, %v7008
        %v7072 = vadd.f32 %v6906, %v7010
        %v7073 = vadd.f32 %v6907, %v7012
        %v7074 = vadd.f32 %v6908, %v7014
        %v7075 = vadd.f32 %v6909, %v7016
        %v7076 = vadd.f32 %v6910, %v7018
        %v7077 = vadd.f32 %v6911, %v7020
        %v7078 = vadd.f32 %v6912, %v7022
        %v7079 = vadd.f32 %v6913, %v7024
        %v7080 = vadd.f32 %v6914, %v7026
        %v7081 = vadd.f32 %v6915, %v7023
        %v7082 = vadd.f32 %v6916, %v7025
        %v7083 = vld [vmem:[%s9] sm:$0x3]
        %v7085 = vlaneseq
        %v7086 = vshrl.u32 %v7085, 7
        %v7087 = vsub.s32 0, %v7086
        %v7088 = vrot.slane %v7083, %v7087
        %v7089 = vlaneseq
        %v7090 = vshrl.u32 %v7089, 7
        %v7091 = vsub.s32 1, %v7090
        %v7092 = vrot.slane %v7083, %v7091
        %v7095 = vadd.f32 %v7055, %v7088
        %v7096 = vadd.f32 %v7056, %v7092
        %v7097 = vadd.f32 %v7057, %v7088
        %v7098 = vadd.f32 %v7058, %v7092
        %v7099 = vadd.f32 %v7059, %v7088
        %v7100 = vadd.f32 %v7060, %v7092
        %v7101 = vadd.f32 %v7061, %v7088
        %v7102 = vadd.f32 %v7062, %v7092
        %v7103 = vadd.f32 %v7063, %v7088
        %v7104 = vadd.f32 %v7064, %v7092
        %v7105 = vadd.f32 %v7065, %v7088
        %v7106 = vadd.f32 %v7066, %v7092
        %v7107 = vadd.f32 %v7067, %v7088
        %v7108 = vadd.f32 %v7068, %v7092
        %v7109 = vadd.f32 %v7069, %v7088
        %v7110 = vadd.f32 %v7070, %v7092
        %v7111 = vadd.f32 %v7071, %v7088
        %v7112 = vadd.f32 %v7072, %v7092
        %v7113 = vadd.f32 %v7073, %v7088
        %v7114 = vadd.f32 %v7074, %v7092
        %v7115 = vadd.f32 %v7075, %v7088
        %v7116 = vadd.f32 %v7076, %v7092
        %v7117 = vadd.f32 %v7077, %v7088
        %v7118 = vadd.f32 %v7078, %v7092
        %v7119 = vadd.f32 %v7079, %v7088
        %v7120 = vadd.f32 %v7080, %v7092
        %v7121 = vadd.f32 %v7081, %v7088
        %v7122 = vadd.f32 %v7082, %v7092
        %v7123 = vtanh.pop %v7095
        %v7124 = vtanh.pop %v7096
        %v7125 = vtanh.pop %v7097
        %v7126 = vtanh.pop %v7098
        %v7127 = vtanh.pop %v7099
        %v7128 = vtanh.pop %v7100
        %v7129 = vtanh.pop %v7101
        %v7130 = vtanh.pop %v7102
        %v7131 = vtanh.pop %v7103
        %v7132 = vtanh.pop %v7104
        %v7133 = vtanh.pop %v7105
        %v7134 = vtanh.pop %v7106
        %v7135 = vtanh.pop %v7107
        %v7136 = vtanh.pop %v7108
        %v7137 = vtanh.pop %v7109
        %v7138 = vtanh.pop %v7110
        %v7139 = vtanh.pop %v7111
        %v7140 = vtanh.pop %v7112
        %v7141 = vtanh.pop %v7113
        %v7142 = vtanh.pop %v7114
        %v7143 = vtanh.pop %v7115
        %v7144 = vtanh.pop %v7116
        %v7145 = vtanh.pop %v7117
        %v7146 = vtanh.pop %v7118
        %v7147 = vtanh.pop %v7119
        %v7148 = vtanh.pop %v7120
        %v7149 = vtanh.pop %v7121
        %v7150 = vtanh.pop %v7122
        %v7151 = vld [vmem:[%s10] sm:$0xff]
        %v7152 = vld [vmem:[%s10 + $0x8] sm:$0xff]
        %v7153 = vld [vmem:[%s10 + $0x10] sm:$0xff]
        %v7154 = vld [vmem:[%s10 + $0x18] sm:$0xff]
        %v7155 = vld [vmem:[%s10 + $0x20] sm:$0xff]
        %vm7156 = vcmask 883712
        %v7158 = vsel %vm7156, %v7151, 0
        %v7161 = vsel %vm7156, %v7152, 0
        %v7164 = vsel %vm7156, %v7153, 0
        %v7167 = vsel %vm7156, %v7154, 0
        %v7170 = vsel %vm7156, %v7155, 0
        %v7173 = vsel %vm3888, %v7149, 0
        %v7176 = vsel %vm3888, %v7150, 0
        %7178 = vmatprep.subr.mxu0 0.0
        %7179 = vmatpush1.msra.mxu0 0.0
        %7180 = vmatprep.subr.mxu0 0.0
        %7181 = vmatpush1.msra.mxu0 0.0
        %7182 = vmatprep.subr.mxu0 %v7176
        %7183 = vmatpush1.msra.mxu0 %v7173
        %7184 = vmatprep.subr.mxu0 %v7148
        %7185 = vmatpush1.msra.mxu0 %v7147
        %7186 = vmatprep.subr.mxu0 %v7146
        %7187 = vmatpush1.msra.mxu0 %v7145
        %7188 = vmatprep.subr.mxu0 %v7144
        %7189 = vmatpush1.msra.mxu0 %v7143
        %7190 = vmatprep.subr.mxu0 %v7142
        %7191 = vmatpush1.msra.mxu0 %v7141
        %7192 = vmatprep.subr.mxu0 %v7140
        %7193 = vmatpush1.msra.mxu0 %v7139
        %7194 = vmatprep.subr.mxu0 %v7138
        %7195 = vmatpush1.msra.mxu0 %v7137
        %7196 = vmatprep.subr.mxu0 %v7136
        %7197 = vmatpush1.msra.mxu0 %v7135
        %7198 = vmatprep.subr.mxu0 %v7134
        %7199 = vmatpush1.msra.mxu0 %v7133
        %7200 = vmatprep.subr.mxu0 %v7132
        %7201 = vmatpush1.msra.mxu0 %v7131
        %7202 = vmatprep.subr.mxu0 %v7130
        %7203 = vmatpush1.msra.mxu0 %v7129
        %7204 = vmatprep.subr.mxu0 %v7128
        %7205 = vmatpush1.msra.mxu0 %v7127
        %7206 = vmatprep.subr.mxu0 %v7126
        %7207 = vmatpush1.msra.mxu0 %v7125
        %7208 = vmatprep.subr.mxu0 %v7124
        %7209 = vmatpush1.msra.mxu0 %v7123
        %7210 = vmatprep.subr.mxu0 0.0
        %7211 = vmatpush2.msra.mxu0 0.0
        %7212 = vmatprep.subr.mxu0 0.0
        %7213 = vmatpush2.msra.mxu0 0.0
        %7214 = vmatprep.subr.mxu0 0.0
        %7215 = vmatpush2.msra.mxu0 0.0
        %7216 = vmatprep.subr.mxu0 0.0
        %7217 = vmatpush2.msra.mxu0 0.0
        %7218 = vmatprep.subr.mxu0 0.0
        %7219 = vmatpush2.msra.mxu0 0.0
        %7220 = vmatprep.subr.mxu0 0.0
        %7221 = vmatpush2.msra.mxu0 0.0
        %7222 = vmatprep.subr.mxu0 0.0
        %7223 = vmatpush2.msra.mxu0 0.0
        %7224 = vmatprep.subr.mxu0 0.0
        %7225 = vmatpush2.msra.mxu0 0.0
        %7226 = vmatprep.subr.mxu0 0.0
        %7227 = vmatpush2.msra.mxu0 0.0
        %7228 = vmatprep.subr.mxu0 0.0
        %7229 = vmatpush2.msra.mxu0 0.0
        %7230 = vmatprep.subr.mxu0 0.0
        %7231 = vmatpush2.msra.mxu0 0.0
        %7232 = vmatprep.subr.mxu0 0.0
        %7233 = vmatpush2.msra.mxu0 0.0
        %7234 = vmatprep.subr.mxu0 0.0
        %7235 = vmatpush2.msra.mxu0 0.0
        %7236 = vmatprep.subr.mxu0 0.0
        %7237 = vmatpush2.msra.mxu0 0.0
        %7238 = vmatprep.subr.mxu0 0.0
        %7239 = vmatpush2.msra.mxu0 0.0
        %7240 = vmatprep.subr.mxu0 0.0
        %7241 = vmatpush2.msra.mxu0 0.0
        %7242 = vmatprep.mubr.f32.mxu0 0.0
        %7243 = vmatmul.mubr.f32.gmra.mxu0 %v7158
        %v7244 = vpop.f32.mrf.mxu0
        %v7245 = vadd.f32 0.0, %v7244
        %v7246 = vpop.f32.mrf.mxu0
        %v7247 = vadd.f32 0.0, %v7246
        %7248 = vmatprep.mubr.f32.mxu0 0.0
        %7249 = vmatmul.mubr.f32.gmra.mxu0 %v7161
        %v7250 = vpop.f32.mrf.mxu0
        %v7251 = vadd.f32 0.0, %v7250
        %v7252 = vpop.f32.mrf.mxu0
        %v7253 = vadd.f32 0.0, %v7252
        %7254 = vmatprep.mubr.f32.mxu0 0.0
        %7255 = vmatmul.mubr.f32.gmra.mxu0 %v7164
        %v7256 = vpop.f32.mrf.mxu0
        %v7257 = vadd.f32 0.0, %v7256
        %v7258 = vpop.f32.mrf.mxu0
        %v7259 = vadd.f32 0.0, %v7258
        %7260 = vmatprep.mubr.f32.mxu0 0.0
        %7261 = vmatmul.mubr.f32.gmra.mxu0 %v7167
        %v7262 = vpop.f32.mrf.mxu0
        %v7263 = vadd.f32 0.0, %v7262
        %v7264 = vpop.f32.mrf.mxu0
        %v7265 = vadd.f32 0.0, %v7264
        %7266 = vmatprep.mubr.f32.mxu0 0.0
        %7267 = vmatmul.mubr.f32.gmra.mxu0 %v7170
        %v7268 = vpop.f32.mrf.mxu0
        %v7269 = vadd.f32 0.0, %v7268
        %v7270 = vpop.f32.mrf.mxu0
        %v7271 = vadd.f32 0.0, %v7270
        %7272 = vdwg.mxu0
        %v7273 = vld [vmem:[#allocation9] sm:$0xff]
        %v7274 = vld [vmem:[#allocation9 + $0x8] sm:$0xff]
        %v7275 = vld [vmem:[#allocation9 + $0x10] sm:$0xff]
        %v7276 = vld [vmem:[#allocation9 + $0x18] sm:$0xff]
        %v7277 = vld [vmem:[#allocation9 + $0x20] sm:$0xff]
        %v7279 = vsel %vm7156, %v7273, 0
        %v7282 = vsel %vm7156, %v7274, 0
        %v7285 = vsel %vm7156, %v7275, 0
        %v7288 = vsel %vm7156, %v7276, 0
        %v7291 = vsel %vm7156, %v7277, 0
        %7293 = vmatprep.subr.mxu0 0.0
        %7294 = vmatpush1.msra.mxu0 0.0
        %7295 = vmatprep.subr.mxu0 0.0
        %7296 = vmatpush1.msra.mxu0 0.0
        %7297 = vmatprep.subr.mxu0 %v7176
        %7298 = vmatpush1.msra.mxu0 %v7173
        %7299 = vmatprep.subr.mxu0 %v7148
        %7300 = vmatpush1.msra.mxu0 %v7147
        %7301 = vmatprep.subr.mxu0 %v7146
        %7302 = vmatpush1.msra.mxu0 %v7145
        %7303 = vmatprep.subr.mxu0 %v7144
        %7304 = vmatpush1.msra.mxu0 %v7143
        %7305 = vmatprep.subr.mxu0 %v7142
        %7306 = vmatpush1.msra.mxu0 %v7141
        %7307 = vmatprep.subr.mxu0 %v7140
        %7308 = vmatpush1.msra.mxu0 %v7139
        %7309 = vmatprep.subr.mxu0 %v7138
        %7310 = vmatpush1.msra.mxu0 %v7137
        %7311 = vmatprep.subr.mxu0 %v7136
        %7312 = vmatpush1.msra.mxu0 %v7135
        %7313 = vmatprep.subr.mxu0 %v7134
        %7314 = vmatpush1.msra.mxu0 %v7133
        %7315 = vmatprep.subr.mxu0 %v7132
        %7316 = vmatpush1.msra.mxu0 %v7131
        %7317 = vmatprep.subr.mxu0 %v7130
        %7318 = vmatpush1.msra.mxu0 %v7129
        %7319 = vmatprep.subr.mxu0 %v7128
        %7320 = vmatpush1.msra.mxu0 %v7127
        %7321 = vmatprep.subr.mxu0 %v7126
        %7322 = vmatpush1.msra.mxu0 %v7125
        %7323 = vmatprep.subr.mxu0 %v7124
        %7324 = vmatpush1.msra.mxu0 %v7123
        %7325 = vmatprep.subr.mxu0 0.0
        %7326 = vmatpush2.msra.mxu0 0.0
        %7327 = vmatprep.subr.mxu0 0.0
        %7328 = vmatpush2.msra.mxu0 0.0
        %7329 = vmatprep.subr.mxu0 0.0
        %7330 = vmatpush2.msra.mxu0 0.0
        %7331 = vmatprep.subr.mxu0 0.0
        %7332 = vmatpush2.msra.mxu0 0.0
        %7333 = vmatprep.subr.mxu0 0.0
        %7334 = vmatpush2.msra.mxu0 0.0
        %7335 = vmatprep.subr.mxu0 0.0
        %7336 = vmatpush2.msra.mxu0 0.0
        %7337 = vmatprep.subr.mxu0 0.0
        %7338 = vmatpush2.msra.mxu0 0.0
        %7339 = vmatprep.subr.mxu0 0.0
        %7340 = vmatpush2.msra.mxu0 0.0
        %7341 = vmatprep.subr.mxu0 0.0
        %7342 = vmatpush2.msra.mxu0 0.0
        %7343 = vmatprep.subr.mxu0 0.0
        %7344 = vmatpush2.msra.mxu0 0.0
        %7345 = vmatprep.subr.mxu0 0.0
        %7346 = vmatpush2.msra.mxu0 0.0
        %7347 = vmatprep.subr.mxu0 0.0
        %7348 = vmatpush2.msra.mxu0 0.0
        %7349 = vmatprep.subr.mxu0 0.0
        %7350 = vmatpush2.msra.mxu0 0.0
        %7351 = vmatprep.subr.mxu0 0.0
        %7352 = vmatpush2.msra.mxu0 0.0
        %7353 = vmatprep.subr.mxu0 0.0
        %7354 = vmatpush2.msra.mxu0 0.0
        %7355 = vmatprep.subr.mxu0 0.0
        %7356 = vmatpush2.msra.mxu0 0.0
        %7357 = vmatprep.mubr.f32.mxu0 0.0
        %7358 = vmatmul.mubr.f32.gmra.mxu0 %v7279
        %v7359 = vpop.f32.mrf.mxu0
        %v7360 = vadd.f32 0.0, %v7359
        %v7361 = vpop.f32.mrf.mxu0
        %v7362 = vadd.f32 0.0, %v7361
        %7363 = vmatprep.mubr.f32.mxu0 0.0
        %7364 = vmatmul.mubr.f32.gmra.mxu0 %v7282
        %v7365 = vpop.f32.mrf.mxu0
        %v7366 = vadd.f32 0.0, %v7365
        %v7367 = vpop.f32.mrf.mxu0
        %v7368 = vadd.f32 0.0, %v7367
        %7369 = vmatprep.mubr.f32.mxu0 0.0
        %7370 = vmatmul.mubr.f32.gmra.mxu0 %v7285
        %v7371 = vpop.f32.mrf.mxu0
        %v7372 = vadd.f32 0.0, %v7371
        %v7373 = vpop.f32.mrf.mxu0
        %v7374 = vadd.f32 0.0, %v7373
        %7375 = vmatprep.mubr.f32.mxu0 0.0
        %7376 = vmatmul.mubr.f32.gmra.mxu0 %v7288
        %v7377 = vpop.f32.mrf.mxu0
        %v7378 = vadd.f32 0.0, %v7377
        %v7379 = vpop.f32.mrf.mxu0
        %v7380 = vadd.f32 0.0, %v7379
        %7381 = vmatprep.mubr.f32.mxu0 0.0
        %7382 = vmatmul.mubr.f32.gmra.mxu0 %v7291
        %v7383 = vpop.f32.mrf.mxu0
        %v7384 = vadd.f32 0.0, %v7383
        %v7385 = vpop.f32.mrf.mxu0
        %v7386 = vadd.f32 0.0, %v7385
        %7387 = vdwg.mxu0
        %v7388 = vld [vmem:[#allocation10] sm:$0xff]
        %v7389 = vld [vmem:[#allocation10 + $0x8] sm:$0xff]
        %v7390 = vld [vmem:[#allocation10 + $0x10] sm:$0xff]
        %v7391 = vld [vmem:[#allocation10 + $0x18] sm:$0xff]
        %v7392 = vld [vmem:[#allocation10 + $0x20] sm:$0xff]
        %v7393 = vld [vmem:[#allocation10 + $0x28] sm:$0xff]
        %v7394 = vld [vmem:[#allocation10 + $0x30] sm:$0xff]
        %v7395 = vld [vmem:[#allocation10 + $0x38] sm:$0xff]
        %v7396 = vld [vmem:[#allocation10 + $0x40] sm:$0xff]
        %v7397 = vld [vmem:[#allocation10 + $0x48] sm:$0xff]
        %v7398 = vld [vmem:[#allocation10 + $0x50] sm:$0xff]
        %v7399 = vld [vmem:[#allocation10 + $0x58] sm:$0xff]
        %v7400 = vld [vmem:[#allocation10 + $0x60] sm:$0xff]
        %v7401 = vld [vmem:[#allocation10 + $0x68] sm:$0xff]
        %v7402 = vld [vmem:[#allocation10 + $0x70] sm:$0xff]
        %v7403 = vld [vmem:[#allocation10 + $0x78] sm:$0xff]
        %v7404 = vld [vmem:[#allocation10 + $0x80] sm:$0xff]
        %v7405 = vld [vmem:[#allocation10 + $0x88] sm:$0xff]
        %v7406 = vld [vmem:[#allocation10 + $0x90] sm:$0xff]
        %v7407 = vld [vmem:[#allocation10 + $0x98] sm:$0xff]
        %v7408 = vld [vmem:[#allocation12] sm:$0xff]
        %v7409 = vld [vmem:[#allocation12 + $0x8] sm:$0xff]
        %v7410 = vld [vmem:[#allocation12 + $0x10] sm:$0xff]
        %v7411 = vld [vmem:[#allocation12 + $0x18] sm:$0xff]
        %v7412 = vld [vmem:[#allocation12 + $0x20] sm:$0xff]
        %v7413 = vld [vmem:[#allocation12 + $0x28] sm:$0xff]
        %v7414 = vld [vmem:[#allocation12 + $0x30] sm:$0xff]
        %v7415 = vld [vmem:[#allocation12 + $0x38] sm:$0xff]
        %v7416 = vld [vmem:[#allocation12 + $0x40] sm:$0xff]
        %v7417 = vld [vmem:[#allocation12 + $0x48] sm:$0xff]
        %v7418 = vld [vmem:[#allocation12 + $0x50] sm:$0xff]
        %v7419 = vld [vmem:[#allocation12 + $0x58] sm:$0xff]
        %v7420 = vld [vmem:[#allocation12 + $0x60] sm:$0xff]
        %v7421 = vld [vmem:[#allocation12 + $0x68] sm:$0xff]
        %v7422 = vld [vmem:[#allocation12 + $0x70] sm:$0xff]
        %v7423 = vld [vmem:[#allocation12 + $0x78] sm:$0xff]
        %v7424 = vld [vmem:[#allocation12 + $0x80] sm:$0xff]
        %v7425 = vld [vmem:[#allocation12 + $0x88] sm:$0xff]
        %v7426 = vld [vmem:[#allocation12 + $0x90] sm:$0xff]
        %v7427 = vld [vmem:[#allocation12 + $0x98] sm:$0xff]
        %v7429 = vsel %vm812, %v7362, 0
        %v7432 = vsel %vm812, %v7368, 0
        %v7435 = vsel %vm812, %v7374, 0
        %v7438 = vsel %vm812, %v7380, 0
        %v7441 = vsel %vm812, %v7386, 0
        %7443 = vmatprep.subr.mxu0 0.0
        %7444 = vmatpush1.msra.mxu0 %v7423
        %7445 = vmatprep.subr.mxu0 0.0
        %7446 = vmatpush1.msra.mxu0 %v7422
        %7447 = vmatprep.subr.mxu0 0.0
        %7448 = vmatpush1.msra.mxu0 %v7421
        %7449 = vmatprep.subr.mxu0 0.0
        %7450 = vmatpush1.msra.mxu0 %v7420
        %7451 = vmatprep.subr.mxu0 0.0
        %7452 = vmatpush1.msra.mxu0 %v7419
        %7453 = vmatprep.subr.mxu0 0.0
        %7454 = vmatpush1.msra.mxu0 %v7418
        %7455 = vmatprep.subr.mxu0 0.0
        %7456 = vmatpush1.msra.mxu0 %v7417
        %7457 = vmatprep.subr.mxu0 0.0
        %7458 = vmatpush1.msra.mxu0 %v7416
        %7459 = vmatprep.subr.mxu0 0.0
        %7460 = vmatpush1.msra.mxu0 %v7415
        %7461 = vmatprep.subr.mxu0 0.0
        %7462 = vmatpush1.msra.mxu0 %v7414
        %7463 = vmatprep.subr.mxu0 0.0
        %7464 = vmatpush1.msra.mxu0 %v7413
        %7465 = vmatprep.subr.mxu0 0.0
        %7466 = vmatpush1.msra.mxu0 %v7412
        %7467 = vmatprep.subr.mxu0 0.0
        %7468 = vmatpush1.msra.mxu0 %v7411
        %7469 = vmatprep.subr.mxu0 0.0
        %7470 = vmatpush1.msra.mxu0 %v7410
        %7471 = vmatprep.subr.mxu0 0.0
        %7472 = vmatpush1.msra.mxu0 %v7409
        %7473 = vmatprep.subr.mxu0 0.0
        %7474 = vmatpush1.msra.mxu0 %v7408
        %7475 = vmatprep.subr.mxu0 0.0
        %7476 = vmatpush2.msra.mxu0 0.0
        %7477 = vmatprep.subr.mxu0 0.0
        %7478 = vmatpush2.msra.mxu0 0.0
        %7479 = vmatprep.subr.mxu0 0.0
        %7480 = vmatpush2.msra.mxu0 0.0
        %7481 = vmatprep.subr.mxu0 0.0
        %7482 = vmatpush2.msra.mxu0 0.0
        %7483 = vmatprep.subr.mxu0 0.0
        %7484 = vmatpush2.msra.mxu0 0.0
        %7485 = vmatprep.subr.mxu0 0.0
        %7486 = vmatpush2.msra.mxu0 0.0
        %7487 = vmatprep.subr.mxu0 0.0
        %7488 = vmatpush2.msra.mxu0 0.0
        %7489 = vmatprep.subr.mxu0 0.0
        %7490 = vmatpush2.msra.mxu0 0.0
        %7491 = vmatprep.subr.mxu0 0.0
        %7492 = vmatpush2.msra.mxu0 0.0
        %7493 = vmatprep.subr.mxu0 0.0
        %7494 = vmatpush2.msra.mxu0 0.0
        %7495 = vmatprep.subr.mxu0 0.0
        %7496 = vmatpush2.msra.mxu0 0.0
        %7497 = vmatprep.subr.mxu0 0.0
        %7498 = vmatpush2.msra.mxu0 0.0
        %7499 = vmatprep.subr.mxu0 0.0
        %7500 = vmatpush2.msra.mxu0 %v7427
        %7501 = vmatprep.subr.mxu0 0.0
        %7502 = vmatpush2.msra.mxu0 %v7426
        %7503 = vmatprep.subr.mxu0 0.0
        %7504 = vmatpush2.msra.mxu0 %v7425
        %7505 = vmatprep.subr.mxu0 0.0
        %7506 = vmatpush2.msra.mxu0 %v7424
        %7507 = vmatprep.mubr.f32.mxu0 %v7429
        %7508 = vmatmul.mubr.f32.gmra.mxu0 %v7360
        %v7509 = vpop.f32.mrf.mxu0
        %v7510 = vadd.f32 0.0, %v7509
        %v7511 = vpop.f32.mrf.mxu0
        %7512 = vmatprep.mubr.f32.mxu0 %v7432
        %7513 = vmatmul.mubr.f32.gmra.mxu0 %v7366
        %v7514 = vpop.f32.mrf.mxu0
        %v7515 = vadd.f32 0.0, %v7514
        %v7516 = vpop.f32.mrf.mxu0
        %7517 = vmatprep.mubr.f32.mxu0 %v7435
        %7518 = vmatmul.mubr.f32.gmra.mxu0 %v7372
        %v7519 = vpop.f32.mrf.mxu0
        %v7520 = vadd.f32 0.0, %v7519
        %v7521 = vpop.f32.mrf.mxu0
        %7522 = vmatprep.mubr.f32.mxu0 %v7438
        %7523 = vmatmul.mubr.f32.gmra.mxu0 %v7378
        %v7524 = vpop.f32.mrf.mxu0
        %v7525 = vadd.f32 0.0, %v7524
        %v7526 = vpop.f32.mrf.mxu0
        %7527 = vmatprep.mubr.f32.mxu0 %v7441
        %7528 = vmatmul.mubr.f32.gmra.mxu0 %v7384
        %v7529 = vpop.f32.mrf.mxu0
        %v7530 = vadd.f32 0.0, %v7529
        %v7531 = vpop.f32.mrf.mxu0
        %7532 = vdwg.mxu0
        %v7534 = vsel %vm812, %v7247, 0
        %v7537 = vsel %vm812, %v7253, 0
        %v7540 = vsel %vm812, %v7259, 0
        %v7543 = vsel %vm812, %v7265, 0
        %v7546 = vsel %vm812, %v7271, 0
        %7548 = vmatprep.subr.mxu0 0.0
        %7549 = vmatpush1.msra.mxu0 %v7403
        %7550 = vmatprep.subr.mxu0 0.0
        %7551 = vmatpush1.msra.mxu0 %v7402
        %7552 = vmatprep.subr.mxu0 0.0
        %7553 = vmatpush1.msra.mxu0 %v7401
        %7554 = vmatprep.subr.mxu0 0.0
        %7555 = vmatpush1.msra.mxu0 %v7400
        %7556 = vmatprep.subr.mxu0 0.0
        %7557 = vmatpush1.msra.mxu0 %v7399
        %7558 = vmatprep.subr.mxu0 0.0
        %7559 = vmatpush1.msra.mxu0 %v7398
        %7560 = vmatprep.subr.mxu0 0.0
        %7561 = vmatpush1.msra.mxu0 %v7397
        %7562 = vmatprep.subr.mxu0 0.0
        %7563 = vmatpush1.msra.mxu0 %v7396
        %7564 = vmatprep.subr.mxu0 0.0
        %7565 = vmatpush1.msra.mxu0 %v7395
        %7566 = vmatprep.subr.mxu0 0.0
        %7567 = vmatpush1.msra.mxu0 %v7394
        %7568 = vmatprep.subr.mxu0 0.0
        %7569 = vmatpush1.msra.mxu0 %v7393
        %7570 = vmatprep.subr.mxu0 0.0
        %7571 = vmatpush1.msra.mxu0 %v7392
        %7572 = vmatprep.subr.mxu0 0.0
        %7573 = vmatpush1.msra.mxu0 %v7391
        %7574 = vmatprep.subr.mxu0 0.0
        %7575 = vmatpush1.msra.mxu0 %v7390
        %7576 = vmatprep.subr.mxu0 0.0
        %7577 = vmatpush1.msra.mxu0 %v7389
        %7578 = vmatprep.subr.mxu0 0.0
        %7579 = vmatpush1.msra.mxu0 %v7388
        %7580 = vmatprep.subr.mxu0 0.0
        %7581 = vmatpush2.msra.mxu0 0.0
        %7582 = vmatprep.subr.mxu0 0.0
        %7583 = vmatpush2.msra.mxu0 0.0
        %7584 = vmatprep.subr.mxu0 0.0
        %7585 = vmatpush2.msra.mxu0 0.0
        %7586 = vmatprep.subr.mxu0 0.0
        %7587 = vmatpush2.msra.mxu0 0.0
        %7588 = vmatprep.subr.mxu0 0.0
        %7589 = vmatpush2.msra.mxu0 0.0
        %7590 = vmatprep.subr.mxu0 0.0
        %7591 = vmatpush2.msra.mxu0 0.0
        %7592 = vmatprep.subr.mxu0 0.0
        %7593 = vmatpush2.msra.mxu0 0.0
        %7594 = vmatprep.subr.mxu0 0.0
        %7595 = vmatpush2.msra.mxu0 0.0
        %7596 = vmatprep.subr.mxu0 0.0
        %7597 = vmatpush2.msra.mxu0 0.0
        %7598 = vmatprep.subr.mxu0 0.0
        %7599 = vmatpush2.msra.mxu0 0.0
        %7600 = vmatprep.subr.mxu0 0.0
        %7601 = vmatpush2.msra.mxu0 0.0
        %7602 = vmatprep.subr.mxu0 0.0
        %7603 = vmatpush2.msra.mxu0 0.0
        %7604 = vmatprep.subr.mxu0 0.0
        %7605 = vmatpush2.msra.mxu0 %v7407
        %7606 = vmatprep.subr.mxu0 0.0
        %7607 = vmatpush2.msra.mxu0 %v7406
        %7608 = vmatprep.subr.mxu0 0.0
        %7609 = vmatpush2.msra.mxu0 %v7405
        %7610 = vmatprep.subr.mxu0 0.0
        %7611 = vmatpush2.msra.mxu0 %v7404
        %7612 = vmatprep.mubr.f32.mxu0 %v7534
        %7613 = vmatmul.mubr.f32.gmra.mxu0 %v7245
        %v7614 = vpop.f32.mrf.mxu0
        %v7615 = vadd.f32 %v7510, %v7614
        %v7616 = vpop.f32.mrf.mxu0
        %7617 = vmatprep.mubr.f32.mxu0 %v7537
        %7618 = vmatmul.mubr.f32.gmra.mxu0 %v7251
        %v7619 = vpop.f32.mrf.mxu0
        %v7620 = vadd.f32 %v7515, %v7619
        %v7621 = vpop.f32.mrf.mxu0
        %7622 = vmatprep.mubr.f32.mxu0 %v7540
        %7623 = vmatmul.mubr.f32.gmra.mxu0 %v7257
        %v7624 = vpop.f32.mrf.mxu0
        %v7625 = vadd.f32 %v7520, %v7624
        %v7626 = vpop.f32.mrf.mxu0
        %7627 = vmatprep.mubr.f32.mxu0 %v7543
        %7628 = vmatmul.mubr.f32.gmra.mxu0 %v7263
        %v7629 = vpop.f32.mrf.mxu0
        %v7630 = vadd.f32 %v7525, %v7629
        %v7631 = vpop.f32.mrf.mxu0
        %7632 = vmatprep.mubr.f32.mxu0 %v7546
        %7633 = vmatmul.mubr.f32.gmra.mxu0 %v7269
        %v7634 = vpop.f32.mrf.mxu0
        %v7635 = vadd.f32 %v7530, %v7634
        %v7636 = vpop.f32.mrf.mxu0
        %7637 = vdwg.mxu0
        %v7638 = vld [vmem:[%s14] sm:$0x1]
        %v7640 = vlaneseq
        %v7641 = vshrl.u32 %v7640, 7
        %v7642 = vsub.s32 0, %v7641
        %v7643 = vrot.slane %v7638, %v7642
        %v7645 = vadd.f32 %v7615, %v7643
        %v7646 = vadd.f32 %v7620, %v7643
        %v7647 = vadd.f32 %v7625, %v7643
        %v7648 = vadd.f32 %v7630, %v7643
        %v7649 = vadd.f32 %v7635, %v7643
        %v7650 = vtanh.pop %v7645
        %v7651 = vtanh.pop %v7646
        %v7652 = vtanh.pop %v7647
        %v7653 = vtanh.pop %v7648
        %v7654 = vtanh.pop %v7649
        %v7655 = vld [vmem:[#allocation13] sm:$0xff]
        %v7657 = vsel %vm1167, %v7655, 0
        %7659 = vmatprep.subr.mxu0 0.0
        %7660 = vmatpush1.msra.mxu0 0.0
        %7661 = vmatprep.subr.mxu0 0.0
        %7662 = vmatpush1.msra.mxu0 0.0
        %7663 = vmatprep.subr.mxu0 0.0
        %7664 = vmatpush1.msra.mxu0 0.0
        %7665 = vmatprep.subr.mxu0 0.0
        %7666 = vmatpush1.msra.mxu0 0.0
        %7667 = vmatprep.subr.mxu0 0.0
        %7668 = vmatpush1.msra.mxu0 0.0
        %7669 = vmatprep.subr.mxu0 0.0
        %7670 = vmatpush1.msra.mxu0 0.0
        %7671 = vmatprep.subr.mxu0 0.0
        %7672 = vmatpush1.msra.mxu0 0.0
        %7673 = vmatprep.subr.mxu0 0.0
        %7674 = vmatpush1.msra.mxu0 0.0
        %7675 = vmatprep.subr.mxu0 0.0
        %7676 = vmatpush1.msra.mxu0 0.0
        %7677 = vmatprep.subr.mxu0 0.0
        %7678 = vmatpush1.msra.mxu0 0.0
        %7679 = vmatprep.subr.mxu0 0.0
        %7680 = vmatpush1.msra.mxu0 0.0
        %7681 = vmatprep.subr.mxu0 0.0
        %7682 = vmatpush1.msra.mxu0 %v7654
        %7683 = vmatprep.subr.mxu0 0.0
        %7684 = vmatpush1.msra.mxu0 %v7653
        %7685 = vmatprep.subr.mxu0 0.0
        %7686 = vmatpush1.msra.mxu0 %v7652
        %7687 = vmatprep.subr.mxu0 0.0
        %7688 = vmatpush1.msra.mxu0 %v7651
        %7689 = vmatprep.subr.mxu0 0.0
        %7690 = vmatpush1.msra.mxu0 %v7650
        %7691 = vmatprep.subr.mxu0 0.0
        %7692 = vmatpush2.msra.mxu0 0.0
        %7693 = vmatprep.subr.mxu0 0.0
        %7694 = vmatpush2.msra.mxu0 0.0
        %7695 = vmatprep.subr.mxu0 0.0
        %7696 = vmatpush2.msra.mxu0 0.0
        %7697 = vmatprep.subr.mxu0 0.0
        %7698 = vmatpush2.msra.mxu0 0.0
        %7699 = vmatprep.subr.mxu0 0.0
        %7700 = vmatpush2.msra.mxu0 0.0
        %7701 = vmatprep.subr.mxu0 0.0
        %7702 = vmatpush2.msra.mxu0 0.0
        %7703 = vmatprep.subr.mxu0 0.0
        %7704 = vmatpush2.msra.mxu0 0.0
        %7705 = vmatprep.subr.mxu0 0.0
        %7706 = vmatpush2.msra.mxu0 0.0
        %7707 = vmatprep.subr.mxu0 0.0
        %7708 = vmatpush2.msra.mxu0 0.0
        %7709 = vmatprep.subr.mxu0 0.0
        %7710 = vmatpush2.msra.mxu0 0.0
        %7711 = vmatprep.subr.mxu0 0.0
        %7712 = vmatpush2.msra.mxu0 0.0
        %7713 = vmatprep.subr.mxu0 0.0
        %7714 = vmatpush2.msra.mxu0 0.0
        %7715 = vmatprep.subr.mxu0 0.0
        %7716 = vmatpush2.msra.mxu0 0.0
        %7717 = vmatprep.subr.mxu0 0.0
        %7718 = vmatpush2.msra.mxu0 0.0
        %7719 = vmatprep.subr.mxu0 0.0
        %7720 = vmatpush2.msra.mxu0 0.0
        %7721 = vmatprep.subr.mxu0 0.0
        %7722 = vmatpush2.msra.mxu0 0.0
        %7723 = vmatprep.mubr.f32.mxu0 0.0
        %7724 = vmatmul.mubr.f32.gmra.mxu0 %v7657
        %v7725 = vpop.f32.mrf.mxu0
        %v7726 = vadd.f32 0.0, %v7725
        %v7727 = vpop.f32.mrf.mxu0
        %7728 = vdwg.mxu0
        %v7729 = vld [vmem:[%s16] sm:$0xff]
        %v7730 = vld [vmem:[%s16 + $0x8] sm:$0xff]
        %v7731 = vld [vmem:[%s16 + $0x10] sm:$0xff]
        %v7732 = vld [vmem:[%s16 + $0x18] sm:$0xff]
        %v7733 = vld [vmem:[%s16 + $0x20] sm:$0xff]
        %v7734 = vld [vmem:[%s16 + $0x28] sm:$0xff]
        %v7735 = vld [vmem:[%s16 + $0x30] sm:$0xff]
        %v7736 = vld [vmem:[%s16 + $0x38] sm:$0xff]
        %v7737 = vld [vmem:[%s16 + $0x40] sm:$0xff]
        %v7738 = vld [vmem:[%s16 + $0x48] sm:$0xff]
        %v7739 = vld [vmem:[#allocation13 + $0x8] sm:$0xff]
        %v7741 = vsel %vm1167, %v7739, 0
        %7743 = vmatprep.subr.mxu0 0.0
        %7744 = vmatpush1.msra.mxu0 0.0
        %7745 = vmatprep.subr.mxu0 0.0
        %7746 = vmatpush1.msra.mxu0 0.0
        %7747 = vmatprep.subr.mxu0 0.0
        %7748 = vmatpush1.msra.mxu0 0.0
        %7749 = vmatprep.subr.mxu0 0.0
        %7750 = vmatpush1.msra.mxu0 0.0
        %7751 = vmatprep.subr.mxu0 0.0
        %7752 = vmatpush1.msra.mxu0 0.0
        %7753 = vmatprep.subr.mxu0 0.0
        %7754 = vmatpush1.msra.mxu0 0.0
        %7755 = vmatprep.subr.mxu0 0.0
        %7756 = vmatpush1.msra.mxu0 0.0
        %7757 = vmatprep.subr.mxu0 0.0
        %7758 = vmatpush1.msra.mxu0 0.0
        %7759 = vmatprep.subr.mxu0 0.0
        %7760 = vmatpush1.msra.mxu0 0.0
        %7761 = vmatprep.subr.mxu0 0.0
        %7762 = vmatpush1.msra.mxu0 0.0
        %7763 = vmatprep.subr.mxu0 0.0
        %7764 = vmatpush1.msra.mxu0 0.0
        %7765 = vmatprep.subr.mxu0 0.0
        %7766 = vmatpush1.msra.mxu0 %v7654
        %7767 = vmatprep.subr.mxu0 0.0
        %7768 = vmatpush1.msra.mxu0 %v7653
        %7769 = vmatprep.subr.mxu0 0.0
        %7770 = vmatpush1.msra.mxu0 %v7652
        %7771 = vmatprep.subr.mxu0 0.0
        %7772 = vmatpush1.msra.mxu0 %v7651
        %7773 = vmatprep.subr.mxu0 0.0
        %7774 = vmatpush1.msra.mxu0 %v7650
        %7775 = vmatprep.subr.mxu0 0.0
        %7776 = vmatpush2.msra.mxu0 0.0
        %7777 = vmatprep.subr.mxu0 0.0
        %7778 = vmatpush2.msra.mxu0 0.0
        %7779 = vmatprep.subr.mxu0 0.0
        %7780 = vmatpush2.msra.mxu0 0.0
        %7781 = vmatprep.subr.mxu0 0.0
        %7782 = vmatpush2.msra.mxu0 0.0
        %7783 = vmatprep.subr.mxu0 0.0
        %7784 = vmatpush2.msra.mxu0 0.0
        %7785 = vmatprep.subr.mxu0 0.0
        %7786 = vmatpush2.msra.mxu0 0.0
        %7787 = vmatprep.subr.mxu0 0.0
        %7788 = vmatpush2.msra.mxu0 0.0
        %7789 = vmatprep.subr.mxu0 0.0
        %7790 = vmatpush2.msra.mxu0 0.0
        %7791 = vmatprep.subr.mxu0 0.0
        %7792 = vmatpush2.msra.mxu0 0.0
        %7793 = vmatprep.subr.mxu0 0.0
        %7794 = vmatpush2.msra.mxu0 0.0
        %7795 = vmatprep.subr.mxu0 0.0
        %7796 = vmatpush2.msra.mxu0 0.0
        %7797 = vmatprep.subr.mxu0 0.0
        %7798 = vmatpush2.msra.mxu0 0.0
        %7799 = vmatprep.subr.mxu0 0.0
        %7800 = vmatpush2.msra.mxu0 0.0
        %7801 = vmatprep.subr.mxu0 0.0
        %7802 = vmatpush2.msra.mxu0 0.0
        %7803 = vmatprep.subr.mxu0 0.0
        %7804 = vmatpush2.msra.mxu0 0.0
        %7805 = vmatprep.subr.mxu0 0.0
        %7806 = vmatpush2.msra.mxu0 0.0
        %7807 = vmatprep.mubr.f32.mxu0 0.0
        %7808 = vmatmul.mubr.f32.gmra.mxu0 %v7741
        %v7809 = vpop.f32.mrf.mxu0
        %v7810 = vadd.f32 0.0, %v7809
        %v7811 = vpop.f32.mrf.mxu0
        %7812 = vdwg.mxu0
        %v7813 = vld [vmem:[%s16 + $0x50] sm:$0xff]
        %v7814 = vld [vmem:[%s16 + $0x58] sm:$0xff]
        %v7815 = vld [vmem:[%s16 + $0x60] sm:$0xff]
        %v7816 = vld [vmem:[%s16 + $0x68] sm:$0xff]
        %v7817 = vld [vmem:[%s16 + $0x70] sm:$0xff]
        %v7818 = vld [vmem:[%s16 + $0x78] sm:$0xff]
        %v7819 = vld [vmem:[%s16 + $0x80] sm:$0xff]
        %v7820 = vld [vmem:[%s16 + $0x88] sm:$0xff]
        %v7821 = vld [vmem:[%s16 + $0x90] sm:$0xff]
        %v7822 = vld [vmem:[%s16 + $0x98] sm:$0xff]
        %vm7823 = vcmask 654336
        %v7825 = vsel %vm7823, %v7810, 0
        %7827 = vmatprep.subr.mxu0 0.0
        %7828 = vmatpush1.msra.mxu0 0.0
        %7829 = vmatprep.subr.mxu0 0.0
        %7830 = vmatpush1.msra.mxu0 0.0
        %7831 = vmatprep.subr.mxu0 0.0
        %7832 = vmatpush1.msra.mxu0 0.0
        %7833 = vmatprep.subr.mxu0 0.0
        %7834 = vmatpush1.msra.mxu0 0.0
        %7835 = vmatprep.subr.mxu0 0.0
        %7836 = vmatpush1.msra.mxu0 0.0
        %7837 = vmatprep.subr.mxu0 0.0
        %7838 = vmatpush1.msra.mxu0 0.0
        %7839 = vmatprep.subr.mxu0 0.0
        %7840 = vmatpush1.msra.mxu0 %v7822
        %7841 = vmatprep.subr.mxu0 0.0
        %7842 = vmatpush1.msra.mxu0 %v7821
        %7843 = vmatprep.subr.mxu0 0.0
        %7844 = vmatpush1.msra.mxu0 %v7820
        %7845 = vmatprep.subr.mxu0 0.0
        %7846 = vmatpush1.msra.mxu0 %v7819
        %7847 = vmatprep.subr.mxu0 0.0
        %7848 = vmatpush1.msra.mxu0 %v7818
        %7849 = vmatprep.subr.mxu0 0.0
        %7850 = vmatpush1.msra.mxu0 %v7817
        %7851 = vmatprep.subr.mxu0 0.0
        %7852 = vmatpush1.msra.mxu0 %v7816
        %7853 = vmatprep.subr.mxu0 0.0
        %7854 = vmatpush1.msra.mxu0 %v7815
        %7855 = vmatprep.subr.mxu0 0.0
        %7856 = vmatpush1.msra.mxu0 %v7814
        %7857 = vmatprep.subr.mxu0 0.0
        %7858 = vmatpush1.msra.mxu0 %v7813
        %7859 = vmatprep.subr.mxu0 0.0
        %7860 = vmatpush2.msra.mxu0 0.0
        %7861 = vmatprep.subr.mxu0 0.0
        %7862 = vmatpush2.msra.mxu0 0.0
        %7863 = vmatprep.subr.mxu0 0.0
        %7864 = vmatpush2.msra.mxu0 0.0
        %7865 = vmatprep.subr.mxu0 0.0
        %7866 = vmatpush2.msra.mxu0 0.0
        %7867 = vmatprep.subr.mxu0 0.0
        %7868 = vmatpush2.msra.mxu0 0.0
        %7869 = vmatprep.subr.mxu0 0.0
        %7870 = vmatpush2.msra.mxu0 0.0
        %7871 = vmatprep.subr.mxu0 0.0
        %7872 = vmatpush2.msra.mxu0 0.0
        %7873 = vmatprep.subr.mxu0 0.0
        %7874 = vmatpush2.msra.mxu0 0.0
        %7875 = vmatprep.subr.mxu0 0.0
        %7876 = vmatpush2.msra.mxu0 0.0
        %7877 = vmatprep.subr.mxu0 0.0
        %7878 = vmatpush2.msra.mxu0 0.0
        %7879 = vmatprep.subr.mxu0 0.0
        %7880 = vmatpush2.msra.mxu0 0.0
        %7881 = vmatprep.subr.mxu0 0.0
        %7882 = vmatpush2.msra.mxu0 0.0
        %7883 = vmatprep.subr.mxu0 0.0
        %7884 = vmatpush2.msra.mxu0 0.0
        %7885 = vmatprep.subr.mxu0 0.0
        %7886 = vmatpush2.msra.mxu0 0.0
        %7887 = vmatprep.subr.mxu0 0.0
        %7888 = vmatpush2.msra.mxu0 0.0
        %7889 = vmatprep.subr.mxu0 0.0
        %7890 = vmatpush2.msra.mxu0 0.0
        %7891 = vmatprep.mubr.f32.mxu0 0.0
        %7892 = vmatmul.mubr.f32.gmra.mxu0 %v7825
        %v7893 = vpop.f32.mrf.mxu0
        %v7894 = vadd.f32 0.0, %v7893
        %v7895 = vpop.f32.mrf.mxu0
        %7896 = vdwg.mxu0
        %v7898 = vsel %vm7823, %v7726, 0
        %7900 = vmatprep.subr.mxu0 0.0
        %7901 = vmatpush1.msra.mxu0 0.0
        %7902 = vmatprep.subr.mxu0 0.0
        %7903 = vmatpush1.msra.mxu0 0.0
        %7904 = vmatprep.subr.mxu0 0.0
        %7905 = vmatpush1.msra.mxu0 0.0
        %7906 = vmatprep.subr.mxu0 0.0
        %7907 = vmatpush1.msra.mxu0 0.0
        %7908 = vmatprep.subr.mxu0 0.0
        %7909 = vmatpush1.msra.mxu0 0.0
        %7910 = vmatprep.subr.mxu0 0.0
        %7911 = vmatpush1.msra.mxu0 0.0
        %7912 = vmatprep.subr.mxu0 0.0
        %7913 = vmatpush1.msra.mxu0 %v7738
        %7914 = vmatprep.subr.mxu0 0.0
        %7915 = vmatpush1.msra.mxu0 %v7737
        %7916 = vmatprep.subr.mxu0 0.0
        %7917 = vmatpush1.msra.mxu0 %v7736
        %7918 = vmatprep.subr.mxu0 0.0
        %7919 = vmatpush1.msra.mxu0 %v7735
        %7920 = vmatprep.subr.mxu0 0.0
        %7921 = vmatpush1.msra.mxu0 %v7734
        %7922 = vmatprep.subr.mxu0 0.0
        %7923 = vmatpush1.msra.mxu0 %v7733
        %7924 = vmatprep.subr.mxu0 0.0
        %7925 = vmatpush1.msra.mxu0 %v7732
        %7926 = vmatprep.subr.mxu0 0.0
        %7927 = vmatpush1.msra.mxu0 %v7731
        %7928 = vmatprep.subr.mxu0 0.0
        %7929 = vmatpush1.msra.mxu0 %v7730
        %7930 = vmatprep.subr.mxu0 0.0
        %7931 = vmatpush1.msra.mxu0 %v7729
        %7932 = vmatprep.subr.mxu0 0.0
        %7933 = vmatpush2.msra.mxu0 0.0
        %7934 = vmatprep.subr.mxu0 0.0
        %7935 = vmatpush2.msra.mxu0 0.0
        %7936 = vmatprep.subr.mxu0 0.0
        %7937 = vmatpush2.msra.mxu0 0.0
        %7938 = vmatprep.subr.mxu0 0.0
        %7939 = vmatpush2.msra.mxu0 0.0
        %7940 = vmatprep.subr.mxu0 0.0
        %7941 = vmatpush2.msra.mxu0 0.0
        %7942 = vmatprep.subr.mxu0 0.0
        %7943 = vmatpush2.msra.mxu0 0.0
        %7944 = vmatprep.subr.mxu0 0.0
        %7945 = vmatpush2.msra.mxu0 0.0
        %7946 = vmatprep.subr.mxu0 0.0
        %7947 = vmatpush2.msra.mxu0 0.0
        %7948 = vmatprep.subr.mxu0 0.0
        %7949 = vmatpush2.msra.mxu0 0.0
        %7950 = vmatprep.subr.mxu0 0.0
        %7951 = vmatpush2.msra.mxu0 0.0
        %7952 = vmatprep.subr.mxu0 0.0
        %7953 = vmatpush2.msra.mxu0 0.0
        %7954 = vmatprep.subr.mxu0 0.0
        %7955 = vmatpush2.msra.mxu0 0.0
        %7956 = vmatprep.subr.mxu0 0.0
        %7957 = vmatpush2.msra.mxu0 0.0
        %7958 = vmatprep.subr.mxu0 0.0
        %7959 = vmatpush2.msra.mxu0 0.0
        %7960 = vmatprep.subr.mxu0 0.0
        %7961 = vmatpush2.msra.mxu0 0.0
        %7962 = vmatprep.subr.mxu0 0.0
        %7963 = vmatpush2.msra.mxu0 0.0
        %7964 = vmatprep.mubr.f32.mxu0 0.0
        %7965 = vmatmul.mubr.f32.gmra.mxu0 %v7898
        %v7966 = vpop.f32.mrf.mxu0
        %v7967 = vadd.f32 %v7894, %v7966
        %v7968 = vpop.f32.mrf.mxu0
        %7969 = vdwg.mxu0
        %v7970 = vld [vmem:[#allocation13 + $0x10] sm:$0xff]
        %v7972 = vsel %vm1167, %v7970, 0
        %7974 = vmatprep.subr.mxu0 0.0
        %7975 = vmatpush1.msra.mxu0 0.0
        %7976 = vmatprep.subr.mxu0 0.0
        %7977 = vmatpush1.msra.mxu0 0.0
        %7978 = vmatprep.subr.mxu0 0.0
        %7979 = vmatpush1.msra.mxu0 0.0
        %7980 = vmatprep.subr.mxu0 0.0
        %7981 = vmatpush1.msra.mxu0 0.0
        %7982 = vmatprep.subr.mxu0 0.0
        %7983 = vmatpush1.msra.mxu0 0.0
        %7984 = vmatprep.subr.mxu0 0.0
        %7985 = vmatpush1.msra.mxu0 0.0
        %7986 = vmatprep.subr.mxu0 0.0
        %7987 = vmatpush1.msra.mxu0 0.0
        %7988 = vmatprep.subr.mxu0 0.0
        %7989 = vmatpush1.msra.mxu0 0.0
        %7990 = vmatprep.subr.mxu0 0.0
        %7991 = vmatpush1.msra.mxu0 0.0
        %7992 = vmatprep.subr.mxu0 0.0
        %7993 = vmatpush1.msra.mxu0 0.0
        %7994 = vmatprep.subr.mxu0 0.0
        %7995 = vmatpush1.msra.mxu0 0.0
        %7996 = vmatprep.subr.mxu0 0.0
        %7997 = vmatpush1.msra.mxu0 %v7654
        %7998 = vmatprep.subr.mxu0 0.0
        %7999 = vmatpush1.msra.mxu0 %v7653
        %8000 = vmatprep.subr.mxu0 0.0
        %8001 = vmatpush1.msra.mxu0 %v7652
        %8002 = vmatprep.subr.mxu0 0.0
        %8003 = vmatpush1.msra.mxu0 %v7651
        %8004 = vmatprep.subr.mxu0 0.0
        %8005 = vmatpush1.msra.mxu0 %v7650
        %8006 = vmatprep.subr.mxu0 0.0
        %8007 = vmatpush2.msra.mxu0 0.0
        %8008 = vmatprep.subr.mxu0 0.0
        %8009 = vmatpush2.msra.mxu0 0.0
        %8010 = vmatprep.subr.mxu0 0.0
        %8011 = vmatpush2.msra.mxu0 0.0
        %8012 = vmatprep.subr.mxu0 0.0
        %8013 = vmatpush2.msra.mxu0 0.0
        %8014 = vmatprep.subr.mxu0 0.0
        %8015 = vmatpush2.msra.mxu0 0.0
        %8016 = vmatprep.subr.mxu0 0.0
        %8017 = vmatpush2.msra.mxu0 0.0
        %8018 = vmatprep.subr.mxu0 0.0
        %8019 = vmatpush2.msra.mxu0 0.0
        %8020 = vmatprep.subr.mxu0 0.0
        %8021 = vmatpush2.msra.mxu0 0.0
        %8022 = vmatprep.subr.mxu0 0.0
        %8023 = vmatpush2.msra.mxu0 0.0
        %8024 = vmatprep.subr.mxu0 0.0
        %8025 = vmatpush2.msra.mxu0 0.0
        %8026 = vmatprep.subr.mxu0 0.0
        %8027 = vmatpush2.msra.mxu0 0.0
        %8028 = vmatprep.subr.mxu0 0.0
        %8029 = vmatpush2.msra.mxu0 0.0
        %8030 = vmatprep.subr.mxu0 0.0
        %8031 = vmatpush2.msra.mxu0 0.0
        %8032 = vmatprep.subr.mxu0 0.0
        %8033 = vmatpush2.msra.mxu0 0.0
        %8034 = vmatprep.subr.mxu0 0.0
        %8035 = vmatpush2.msra.mxu0 0.0
        %8036 = vmatprep.subr.mxu0 0.0
        %8037 = vmatpush2.msra.mxu0 0.0
        %8038 = vmatprep.mubr.f32.mxu0 0.0
        %8039 = vmatmul.mubr.f32.gmra.mxu0 %v7972
        %v8040 = vpop.f32.mrf.mxu0
        %v8041 = vadd.f32 0.0, %v8040
        %v8042 = vpop.f32.mrf.mxu0
        %8043 = vdwg.mxu0
        %v8044 = vld [vmem:[%s16 + $0xa0] sm:$0xff]
        %v8045 = vld [vmem:[%s16 + $0xa8] sm:$0xff]
        %v8046 = vld [vmem:[%s16 + $0xb0] sm:$0xff]
        %v8047 = vld [vmem:[%s16 + $0xb8] sm:$0xff]
        %v8048 = vld [vmem:[%s16 + $0xc0] sm:$0xff]
        %v8049 = vld [vmem:[%s16 + $0xc8] sm:$0xff]
        %v8050 = vld [vmem:[%s16 + $0xd0] sm:$0xff]
        %v8051 = vld [vmem:[%s16 + $0xd8] sm:$0xff]
        %v8052 = vld [vmem:[%s16 + $0xe0] sm:$0xff]
        %v8053 = vld [vmem:[%s16 + $0xe8] sm:$0xff]
        %v8055 = vsel %vm7823, %v8041, 0
        %8057 = vmatprep.subr.mxu0 0.0
        %8058 = vmatpush1.msra.mxu0 0.0
        %8059 = vmatprep.subr.mxu0 0.0
        %8060 = vmatpush1.msra.mxu0 0.0
        %8061 = vmatprep.subr.mxu0 0.0
        %8062 = vmatpush1.msra.mxu0 0.0
        %8063 = vmatprep.subr.mxu0 0.0
        %8064 = vmatpush1.msra.mxu0 0.0
        %8065 = vmatprep.subr.mxu0 0.0
        %8066 = vmatpush1.msra.mxu0 0.0
        %8067 = vmatprep.subr.mxu0 0.0
        %8068 = vmatpush1.msra.mxu0 0.0
        %8069 = vmatprep.subr.mxu0 0.0
        %8070 = vmatpush1.msra.mxu0 %v8053
        %8071 = vmatprep.subr.mxu0 0.0
        %8072 = vmatpush1.msra.mxu0 %v8052
        %8073 = vmatprep.subr.mxu0 0.0
        %8074 = vmatpush1.msra.mxu0 %v8051
        %8075 = vmatprep.subr.mxu0 0.0
        %8076 = vmatpush1.msra.mxu0 %v8050
        %8077 = vmatprep.subr.mxu0 0.0
        %8078 = vmatpush1.msra.mxu0 %v8049
        %8079 = vmatprep.subr.mxu0 0.0
        %8080 = vmatpush1.msra.mxu0 %v8048
        %8081 = vmatprep.subr.mxu0 0.0
        %8082 = vmatpush1.msra.mxu0 %v8047
        %8083 = vmatprep.subr.mxu0 0.0
        %8084 = vmatpush1.msra.mxu0 %v8046
        %8085 = vmatprep.subr.mxu0 0.0
        %8086 = vmatpush1.msra.mxu0 %v8045
        %8087 = vmatprep.subr.mxu0 0.0
        %8088 = vmatpush1.msra.mxu0 %v8044
        %8089 = vmatprep.subr.mxu0 0.0
        %8090 = vmatpush2.msra.mxu0 0.0
        %8091 = vmatprep.subr.mxu0 0.0
        %8092 = vmatpush2.msra.mxu0 0.0
        %8093 = vmatprep.subr.mxu0 0.0
        %8094 = vmatpush2.msra.mxu0 0.0
        %8095 = vmatprep.subr.mxu0 0.0
        %8096 = vmatpush2.msra.mxu0 0.0
        %8097 = vmatprep.subr.mxu0 0.0
        %8098 = vmatpush2.msra.mxu0 0.0
        %8099 = vmatprep.subr.mxu0 0.0
        %8100 = vmatpush2.msra.mxu0 0.0
        %8101 = vmatprep.subr.mxu0 0.0
        %8102 = vmatpush2.msra.mxu0 0.0
        %8103 = vmatprep.subr.mxu0 0.0
        %8104 = vmatpush2.msra.mxu0 0.0
        %8105 = vmatprep.subr.mxu0 0.0
        %8106 = vmatpush2.msra.mxu0 0.0
        %8107 = vmatprep.subr.mxu0 0.0
        %8108 = vmatpush2.msra.mxu0 0.0
        %8109 = vmatprep.subr.mxu0 0.0
        %8110 = vmatpush2.msra.mxu0 0.0
        %8111 = vmatprep.subr.mxu0 0.0
        %8112 = vmatpush2.msra.mxu0 0.0
        %8113 = vmatprep.subr.mxu0 0.0
        %8114 = vmatpush2.msra.mxu0 0.0
        %8115 = vmatprep.subr.mxu0 0.0
        %8116 = vmatpush2.msra.mxu0 0.0
        %8117 = vmatprep.subr.mxu0 0.0
        %8118 = vmatpush2.msra.mxu0 0.0
        %8119 = vmatprep.subr.mxu0 0.0
        %8120 = vmatpush2.msra.mxu0 0.0
        %8121 = vmatprep.mubr.f32.mxu0 0.0
        %8122 = vmatmul.mubr.f32.gmra.mxu0 %v8055
        %v8123 = vpop.f32.mrf.mxu0
        %v8124 = vadd.f32 0.0, %v8123
        %v8125 = vpop.f32.mrf.mxu0
        %8126 = vdwg.mxu0
        %v8127 = vadd.f32 %v7967, %v8124
        %v8128 = vld [vmem:[#allocation13 + $0x18] sm:$0xff]
        %v8130 = vsel %vm1167, %v8128, 0
        %8132 = vmatprep.subr.mxu0 0.0
        %8133 = vmatpush1.msra.mxu0 0.0
        %8134 = vmatprep.subr.mxu0 0.0
        %8135 = vmatpush1.msra.mxu0 0.0
        %8136 = vmatprep.subr.mxu0 0.0
        %8137 = vmatpush1.msra.mxu0 0.0
        %8138 = vmatprep.subr.mxu0 0.0
        %8139 = vmatpush1.msra.mxu0 0.0
        %8140 = vmatprep.subr.mxu0 0.0
        %8141 = vmatpush1.msra.mxu0 0.0
        %8142 = vmatprep.subr.mxu0 0.0
        %8143 = vmatpush1.msra.mxu0 0.0
        %8144 = vmatprep.subr.mxu0 0.0
        %8145 = vmatpush1.msra.mxu0 0.0
        %8146 = vmatprep.subr.mxu0 0.0
        %8147 = vmatpush1.msra.mxu0 0.0
        %8148 = vmatprep.subr.mxu0 0.0
        %8149 = vmatpush1.msra.mxu0 0.0
        %8150 = vmatprep.subr.mxu0 0.0
        %8151 = vmatpush1.msra.mxu0 0.0
        %8152 = vmatprep.subr.mxu0 0.0
        %8153 = vmatpush1.msra.mxu0 0.0
        %8154 = vmatprep.subr.mxu0 0.0
        %8155 = vmatpush1.msra.mxu0 %v7654
        %8156 = vmatprep.subr.mxu0 0.0
        %8157 = vmatpush1.msra.mxu0 %v7653
        %8158 = vmatprep.subr.mxu0 0.0
        %8159 = vmatpush1.msra.mxu0 %v7652
        %8160 = vmatprep.subr.mxu0 0.0
        %8161 = vmatpush1.msra.mxu0 %v7651
        %8162 = vmatprep.subr.mxu0 0.0
        %8163 = vmatpush1.msra.mxu0 %v7650
        %8164 = vmatprep.subr.mxu0 0.0
        %8165 = vmatpush2.msra.mxu0 0.0
        %8166 = vmatprep.subr.mxu0 0.0
        %8167 = vmatpush2.msra.mxu0 0.0
        %8168 = vmatprep.subr.mxu0 0.0
        %8169 = vmatpush2.msra.mxu0 0.0
        %8170 = vmatprep.subr.mxu0 0.0
        %8171 = vmatpush2.msra.mxu0 0.0
        %8172 = vmatprep.subr.mxu0 0.0
        %8173 = vmatpush2.msra.mxu0 0.0
        %8174 = vmatprep.subr.mxu0 0.0
        %8175 = vmatpush2.msra.mxu0 0.0
        %8176 = vmatprep.subr.mxu0 0.0
        %8177 = vmatpush2.msra.mxu0 0.0
        %8178 = vmatprep.subr.mxu0 0.0
        %8179 = vmatpush2.msra.mxu0 0.0
        %8180 = vmatprep.subr.mxu0 0.0
        %8181 = vmatpush2.msra.mxu0 0.0
        %8182 = vmatprep.subr.mxu0 0.0
        %8183 = vmatpush2.msra.mxu0 0.0
        %8184 = vmatprep.subr.mxu0 0.0
        %8185 = vmatpush2.msra.mxu0 0.0
        %8186 = vmatprep.subr.mxu0 0.0
        %8187 = vmatpush2.msra.mxu0 0.0
        %8188 = vmatprep.subr.mxu0 0.0
        %8189 = vmatpush2.msra.mxu0 0.0
        %8190 = vmatprep.subr.mxu0 0.0
        %8191 = vmatpush2.msra.mxu0 0.0
        %8192 = vmatprep.subr.mxu0 0.0
        %8193 = vmatpush2.msra.mxu0 0.0
        %8194 = vmatprep.subr.mxu0 0.0
        %8195 = vmatpush2.msra.mxu0 0.0
        %8196 = vmatprep.mubr.f32.mxu0 0.0
        %8197 = vmatmul.mubr.f32.gmra.mxu0 %v8130
        %v8198 = vpop.f32.mrf.mxu0
        %v8199 = vadd.f32 0.0, %v8198
        %v8200 = vpop.f32.mrf.mxu0
        %8201 = vdwg.mxu0
        %v8202 = vld [vmem:[%s16 + $0xf0] sm:$0xff]
        %v8203 = vld [vmem:[%s16 + $0xf8] sm:$0xff]
        %v8204 = vld [vmem:[%s16 + $0x100] sm:$0xff]
        %v8205 = vld [vmem:[%s16 + $0x108] sm:$0xff]
        %v8206 = vld [vmem:[%s16 + $0x110] sm:$0xff]
        %v8207 = vld [vmem:[%s16 + $0x118] sm:$0xff]
        %v8208 = vld [vmem:[%s16 + $0x120] sm:$0xff]
        %v8209 = vld [vmem:[%s16 + $0x128] sm:$0xff]
        %v8210 = vld [vmem:[%s16 + $0x130] sm:$0xff]
        %v8211 = vld [vmem:[%s16 + $0x138] sm:$0xff]
        %v8213 = vsel %vm7823, %v8199, 0
        %8215 = vmatprep.subr.mxu0 0.0
        %8216 = vmatpush1.msra.mxu0 0.0
        %8217 = vmatprep.subr.mxu0 0.0
        %8218 = vmatpush1.msra.mxu0 0.0
        %8219 = vmatprep.subr.mxu0 0.0
        %8220 = vmatpush1.msra.mxu0 0.0
        %8221 = vmatprep.subr.mxu0 0.0
        %8222 = vmatpush1.msra.mxu0 0.0
        %8223 = vmatprep.subr.mxu0 0.0
        %8224 = vmatpush1.msra.mxu0 0.0
        %8225 = vmatprep.subr.mxu0 0.0
        %8226 = vmatpush1.msra.mxu0 0.0
        %8227 = vmatprep.subr.mxu0 0.0
        %8228 = vmatpush1.msra.mxu0 %v8211
        %8229 = vmatprep.subr.mxu0 0.0
        %8230 = vmatpush1.msra.mxu0 %v8210
        %8231 = vmatprep.subr.mxu0 0.0
        %8232 = vmatpush1.msra.mxu0 %v8209
        %8233 = vmatprep.subr.mxu0 0.0
        %8234 = vmatpush1.msra.mxu0 %v8208
        %8235 = vmatprep.subr.mxu0 0.0
        %8236 = vmatpush1.msra.mxu0 %v8207
        %8237 = vmatprep.subr.mxu0 0.0
        %8238 = vmatpush1.msra.mxu0 %v8206
        %8239 = vmatprep.subr.mxu0 0.0
        %8240 = vmatpush1.msra.mxu0 %v8205
        %8241 = vmatprep.subr.mxu0 0.0
        %8242 = vmatpush1.msra.mxu0 %v8204
        %8243 = vmatprep.subr.mxu0 0.0
        %8244 = vmatpush1.msra.mxu0 %v8203
        %8245 = vmatprep.subr.mxu0 0.0
        %8246 = vmatpush1.msra.mxu0 %v8202
        %8247 = vmatprep.subr.mxu0 0.0
        %8248 = vmatpush2.msra.mxu0 0.0
        %8249 = vmatprep.subr.mxu0 0.0
        %8250 = vmatpush2.msra.mxu0 0.0
        %8251 = vmatprep.subr.mxu0 0.0
        %8252 = vmatpush2.msra.mxu0 0.0
        %8253 = vmatprep.subr.mxu0 0.0
        %8254 = vmatpush2.msra.mxu0 0.0
        %8255 = vmatprep.subr.mxu0 0.0
        %8256 = vmatpush2.msra.mxu0 0.0
        %8257 = vmatprep.subr.mxu0 0.0
        %8258 = vmatpush2.msra.mxu0 0.0
        %8259 = vmatprep.subr.mxu0 0.0
        %8260 = vmatpush2.msra.mxu0 0.0
        %8261 = vmatprep.subr.mxu0 0.0
        %8262 = vmatpush2.msra.mxu0 0.0
        %8263 = vmatprep.subr.mxu0 0.0
        %8264 = vmatpush2.msra.mxu0 0.0
        %8265 = vmatprep.subr.mxu0 0.0
        %8266 = vmatpush2.msra.mxu0 0.0
        %8267 = vmatprep.subr.mxu0 0.0
        %8268 = vmatpush2.msra.mxu0 0.0
        %8269 = vmatprep.subr.mxu0 0.0
        %8270 = vmatpush2.msra.mxu0 0.0
        %8271 = vmatprep.subr.mxu0 0.0
        %8272 = vmatpush2.msra.mxu0 0.0
        %8273 = vmatprep.subr.mxu0 0.0
        %8274 = vmatpush2.msra.mxu0 0.0
        %8275 = vmatprep.subr.mxu0 0.0
        %8276 = vmatpush2.msra.mxu0 0.0
        %8277 = vmatprep.subr.mxu0 0.0
        %8278 = vmatpush2.msra.mxu0 0.0
        %8279 = vmatprep.mubr.f32.mxu0 0.0
        %8280 = vmatmul.mubr.f32.gmra.mxu0 %v8213
        %v8281 = vpop.f32.mrf.mxu0
        %v8282 = vadd.f32 0.0, %v8281
        %v8283 = vpop.f32.mrf.mxu0
        %8284 = vdwg.mxu0
        %v8285 = vadd.f32 %v8127, %v8282
        %v8286 = vld [vmem:[#allocation13 + $0x20] sm:$0xff]
        %v8288 = vsel %vm1167, %v8286, 0
        %8290 = vmatprep.subr.mxu0 0.0
        %8291 = vmatpush1.msra.mxu0 0.0
        %8292 = vmatprep.subr.mxu0 0.0
        %8293 = vmatpush1.msra.mxu0 0.0
        %8294 = vmatprep.subr.mxu0 0.0
        %8295 = vmatpush1.msra.mxu0 0.0
        %8296 = vmatprep.subr.mxu0 0.0
        %8297 = vmatpush1.msra.mxu0 0.0
        %8298 = vmatprep.subr.mxu0 0.0
        %8299 = vmatpush1.msra.mxu0 0.0
        %8300 = vmatprep.subr.mxu0 0.0
        %8301 = vmatpush1.msra.mxu0 0.0
        %8302 = vmatprep.subr.mxu0 0.0
        %8303 = vmatpush1.msra.mxu0 0.0
        %8304 = vmatprep.subr.mxu0 0.0
        %8305 = vmatpush1.msra.mxu0 0.0
        %8306 = vmatprep.subr.mxu0 0.0
        %8307 = vmatpush1.msra.mxu0 0.0
        %8308 = vmatprep.subr.mxu0 0.0
        %8309 = vmatpush1.msra.mxu0 0.0
        %8310 = vmatprep.subr.mxu0 0.0
        %8311 = vmatpush1.msra.mxu0 0.0
        %8312 = vmatprep.subr.mxu0 0.0
        %8313 = vmatpush1.msra.mxu0 %v7654
        %8314 = vmatprep.subr.mxu0 0.0
        %8315 = vmatpush1.msra.mxu0 %v7653
        %8316 = vmatprep.subr.mxu0 0.0
        %8317 = vmatpush1.msra.mxu0 %v7652
        %8318 = vmatprep.subr.mxu0 0.0
        %8319 = vmatpush1.msra.mxu0 %v7651
        %8320 = vmatprep.subr.mxu0 0.0
        %8321 = vmatpush1.msra.mxu0 %v7650
        %8322 = vmatprep.subr.mxu0 0.0
        %8323 = vmatpush2.msra.mxu0 0.0
        %8324 = vmatprep.subr.mxu0 0.0
        %8325 = vmatpush2.msra.mxu0 0.0
        %8326 = vmatprep.subr.mxu0 0.0
        %8327 = vmatpush2.msra.mxu0 0.0
        %8328 = vmatprep.subr.mxu0 0.0
        %8329 = vmatpush2.msra.mxu0 0.0
        %8330 = vmatprep.subr.mxu0 0.0
        %8331 = vmatpush2.msra.mxu0 0.0
        %8332 = vmatprep.subr.mxu0 0.0
        %8333 = vmatpush2.msra.mxu0 0.0
        %8334 = vmatprep.subr.mxu0 0.0
        %8335 = vmatpush2.msra.mxu0 0.0
        %8336 = vmatprep.subr.mxu0 0.0
        %8337 = vmatpush2.msra.mxu0 0.0
        %8338 = vmatprep.subr.mxu0 0.0
        %8339 = vmatpush2.msra.mxu0 0.0
        %8340 = vmatprep.subr.mxu0 0.0
        %8341 = vmatpush2.msra.mxu0 0.0
        %8342 = vmatprep.subr.mxu0 0.0
        %8343 = vmatpush2.msra.mxu0 0.0
        %8344 = vmatprep.subr.mxu0 0.0
        %8345 = vmatpush2.msra.mxu0 0.0
        %8346 = vmatprep.subr.mxu0 0.0
        %8347 = vmatpush2.msra.mxu0 0.0
        %8348 = vmatprep.subr.mxu0 0.0
        %8349 = vmatpush2.msra.mxu0 0.0
        %8350 = vmatprep.subr.mxu0 0.0
        %8351 = vmatpush2.msra.mxu0 0.0
        %8352 = vmatprep.subr.mxu0 0.0
        %8353 = vmatpush2.msra.mxu0 0.0
        %8354 = vmatprep.mubr.f32.mxu0 0.0
        %8355 = vmatmul.mubr.f32.gmra.mxu0 %v8288
        %v8356 = vpop.f32.mrf.mxu0
        %v8357 = vadd.f32 0.0, %v8356
        %v8358 = vpop.f32.mrf.mxu0
        %8359 = vdwg.mxu0
        %v8360 = vld [vmem:[%s16 + $0x140] sm:$0xff]
        %v8361 = vld [vmem:[%s16 + $0x148] sm:$0xff]
        %v8362 = vld [vmem:[%s16 + $0x150] sm:$0xff]
        %v8363 = vld [vmem:[%s16 + $0x158] sm:$0xff]
        %v8364 = vld [vmem:[%s16 + $0x160] sm:$0xff]
        %v8365 = vld [vmem:[%s16 + $0x168] sm:$0xff]
        %v8366 = vld [vmem:[%s16 + $0x170] sm:$0xff]
        %v8367 = vld [vmem:[%s16 + $0x178] sm:$0xff]
        %v8368 = vld [vmem:[%s16 + $0x180] sm:$0xff]
        %v8369 = vld [vmem:[%s16 + $0x188] sm:$0xff]
        %v8371 = vsel %vm7823, %v8357, 0
        %8373 = vmatprep.subr.mxu0 0.0
        %8374 = vmatpush1.msra.mxu0 0.0
        %8375 = vmatprep.subr.mxu0 0.0
        %8376 = vmatpush1.msra.mxu0 0.0
        %8377 = vmatprep.subr.mxu0 0.0
        %8378 = vmatpush1.msra.mxu0 0.0
        %8379 = vmatprep.subr.mxu0 0.0
        %8380 = vmatpush1.msra.mxu0 0.0
        %8381 = vmatprep.subr.mxu0 0.0
        %8382 = vmatpush1.msra.mxu0 0.0
        %8383 = vmatprep.subr.mxu0 0.0
        %8384 = vmatpush1.msra.mxu0 0.0
        %8385 = vmatprep.subr.mxu0 0.0
        %8386 = vmatpush1.msra.mxu0 %v8369
        %8387 = vmatprep.subr.mxu0 0.0
        %8388 = vmatpush1.msra.mxu0 %v8368
        %8389 = vmatprep.subr.mxu0 0.0
        %8390 = vmatpush1.msra.mxu0 %v8367
        %8391 = vmatprep.subr.mxu0 0.0
        %8392 = vmatpush1.msra.mxu0 %v8366
        %8393 = vmatprep.subr.mxu0 0.0
        %8394 = vmatpush1.msra.mxu0 %v8365
        %8395 = vmatprep.subr.mxu0 0.0
        %8396 = vmatpush1.msra.mxu0 %v8364
        %8397 = vmatprep.subr.mxu0 0.0
        %8398 = vmatpush1.msra.mxu0 %v8363
        %8399 = vmatprep.subr.mxu0 0.0
        %8400 = vmatpush1.msra.mxu0 %v8362
        %8401 = vmatprep.subr.mxu0 0.0
        %8402 = vmatpush1.msra.mxu0 %v8361
        %8403 = vmatprep.subr.mxu0 0.0
        %8404 = vmatpush1.msra.mxu0 %v8360
        %8405 = vmatprep.subr.mxu0 0.0
        %8406 = vmatpush2.msra.mxu0 0.0
        %8407 = vmatprep.subr.mxu0 0.0
        %8408 = vmatpush2.msra.mxu0 0.0
        %8409 = vmatprep.subr.mxu0 0.0
        %8410 = vmatpush2.msra.mxu0 0.0
        %8411 = vmatprep.subr.mxu0 0.0
        %8412 = vmatpush2.msra.mxu0 0.0
        %8413 = vmatprep.subr.mxu0 0.0
        %8414 = vmatpush2.msra.mxu0 0.0
        %8415 = vmatprep.subr.mxu0 0.0
        %8416 = vmatpush2.msra.mxu0 0.0
        %8417 = vmatprep.subr.mxu0 0.0
        %8418 = vmatpush2.msra.mxu0 0.0
        %8419 = vmatprep.subr.mxu0 0.0
        %8420 = vmatpush2.msra.mxu0 0.0
        %8421 = vmatprep.subr.mxu0 0.0
        %8422 = vmatpush2.msra.mxu0 0.0
        %8423 = vmatprep.subr.mxu0 0.0
        %8424 = vmatpush2.msra.mxu0 0.0
        %8425 = vmatprep.subr.mxu0 0.0
        %8426 = vmatpush2.msra.mxu0 0.0
        %8427 = vmatprep.subr.mxu0 0.0
        %8428 = vmatpush2.msra.mxu0 0.0
        %8429 = vmatprep.subr.mxu0 0.0
        %8430 = vmatpush2.msra.mxu0 0.0
        %8431 = vmatprep.subr.mxu0 0.0
        %8432 = vmatpush2.msra.mxu0 0.0
        %8433 = vmatprep.subr.mxu0 0.0
        %8434 = vmatpush2.msra.mxu0 0.0
        %8435 = vmatprep.subr.mxu0 0.0
        %8436 = vmatpush2.msra.mxu0 0.0
        %8437 = vmatprep.mubr.f32.mxu0 0.0
        %8438 = vmatmul.mubr.f32.gmra.mxu0 %v8371
        %v8439 = vpop.f32.mrf.mxu0
        %v8440 = vadd.f32 0.0, %v8439
        %v8441 = vpop.f32.mrf.mxu0
        %8442 = vdwg.mxu0
        %v8443 = vadd.f32 %v8285, %v8440
        %v8444 = vld [vmem:[%s17] sm:$0x1]
        %v8446 = vlaneseq
        %v8447 = vshrl.u32 %v8446, 7
        %v8448 = vsub.s32 0, %v8447
        %v8449 = vrot.slane %v8444, %v8448
        %v8451 = vadd.f32 %v8443, %v8449
        %v8452 = vtanh.pop %v8451
        %v8453 = vld [vmem:[%s18] sm:$0xff]
        %v8454 = vld [vmem:[%s18 + $0x8] sm:$0xff]
        %v8455 = vld [vmem:[%s18 + $0x10] sm:$0xff]
        %v8456 = vld [vmem:[%s18 + $0x18] sm:$0xff]
        %v8457 = vld [vmem:[%s18 + $0x20] sm:$0xff]
        %v8458 = vld [vmem:[%s18 + $0x28] sm:$0xff]
        %v8459 = vld [vmem:[%s18 + $0x30] sm:$0xff]
        %v8460 = vld [vmem:[%s18 + $0x38] sm:$0xff]
        %v8461 = vld [vmem:[%s18 + $0x40] sm:$0xff]
        %v8462 = vld [vmem:[%s18 + $0x48] sm:$0xff]
        %v8463 = vld [vmem:[%s18 + $0x50] sm:$0xff]
        %v8464 = vld [vmem:[%s18 + $0x58] sm:$0xff]
        %v8465 = vld [vmem:[%s18 + $0x60] sm:$0xff]
        %v8466 = vld [vmem:[%s18 + $0x68] sm:$0xff]
        %v8467 = vld [vmem:[%s18 + $0x70] sm:$0xff]
        %v8468 = vld [vmem:[%s19] sm:$0x1]
        %v8470 = vlaneseq
        %v8471 = vshrl.u32 %v8470, 7
        %v8472 = vsub.s32 0, %v8471
        %v8473 = vrot.slane %v8468, %v8472
        %vm8475 = vcmask 982016
        %v8477 = vsel %vm8475, %v8452, 0
        %8479 = vmatprep.subr.mxu0 0.0
        %8480 = vmatpush1.msra.mxu0 0.0
        %8481 = vmatprep.subr.mxu0 0.0
        %8482 = vmatpush1.msra.mxu0 %v8467
        %8483 = vmatprep.subr.mxu0 0.0
        %8484 = vmatpush1.msra.mxu0 %v8466
        %8485 = vmatprep.subr.mxu0 0.0
        %8486 = vmatpush1.msra.mxu0 %v8465
        %8487 = vmatprep.subr.mxu0 0.0
        %8488 = vmatpush1.msra.mxu0 %v8464
        %8489 = vmatprep.subr.mxu0 0.0
        %8490 = vmatpush1.msra.mxu0 %v8463
        %8491 = vmatprep.subr.mxu0 0.0
        %8492 = vmatpush1.msra.mxu0 %v8462
        %8493 = vmatprep.subr.mxu0 0.0
        %8494 = vmatpush1.msra.mxu0 %v8461
        %8495 = vmatprep.subr.mxu0 0.0
        %8496 = vmatpush1.msra.mxu0 %v8460
        %8497 = vmatprep.subr.mxu0 0.0
        %8498 = vmatpush1.msra.mxu0 %v8459
        %8499 = vmatprep.subr.mxu0 0.0
        %8500 = vmatpush1.msra.mxu0 %v8458
        %8501 = vmatprep.subr.mxu0 0.0
        %8502 = vmatpush1.msra.mxu0 %v8457
        %8503 = vmatprep.subr.mxu0 0.0
        %8504 = vmatpush1.msra.mxu0 %v8456
        %8505 = vmatprep.subr.mxu0 0.0
        %8506 = vmatpush1.msra.mxu0 %v8455
        %8507 = vmatprep.subr.mxu0 0.0
        %8508 = vmatpush1.msra.mxu0 %v8454
        %8509 = vmatprep.subr.mxu0 0.0
        %8510 = vmatpush1.msra.mxu0 %v8453
        %8511 = vmatprep.subr.mxu0 0.0
        %8512 = vmatpush2.msra.mxu0 0.0
        %8513 = vmatprep.subr.mxu0 0.0
        %8514 = vmatpush2.msra.mxu0 0.0
        %8515 = vmatprep.subr.mxu0 0.0
        %8516 = vmatpush2.msra.mxu0 0.0
        %8517 = vmatprep.subr.mxu0 0.0
        %8518 = vmatpush2.msra.mxu0 0.0
        %8519 = vmatprep.subr.mxu0 0.0
        %8520 = vmatpush2.msra.mxu0 0.0
        %8521 = vmatprep.subr.mxu0 0.0
        %8522 = vmatpush2.msra.mxu0 0.0
        %8523 = vmatprep.subr.mxu0 0.0
        %8524 = vmatpush2.msra.mxu0 0.0
        %8525 = vmatprep.subr.mxu0 0.0
        %8526 = vmatpush2.msra.mxu0 0.0
        %8527 = vmatprep.subr.mxu0 0.0
        %8528 = vmatpush2.msra.mxu0 0.0
        %8529 = vmatprep.subr.mxu0 0.0
        %8530 = vmatpush2.msra.mxu0 0.0
        %8531 = vmatprep.subr.mxu0 0.0
        %8532 = vmatpush2.msra.mxu0 0.0
        %8533 = vmatprep.subr.mxu0 0.0
        %8534 = vmatpush2.msra.mxu0 0.0
        %8535 = vmatprep.subr.mxu0 0.0
        %8536 = vmatpush2.msra.mxu0 0.0
        %8537 = vmatprep.subr.mxu0 0.0
        %8538 = vmatpush2.msra.mxu0 0.0
        %8539 = vmatprep.subr.mxu0 0.0
        %8540 = vmatpush2.msra.mxu0 0.0
        %8541 = vmatprep.subr.mxu0 0.0
        %8542 = vmatpush2.msra.mxu0 0.0
        %8543 = vmatprep.mubr.f32.mxu0 0.0
        %8544 = vmatmul.mubr.f32.gmra.mxu0 %v8477
        %v8545 = vpop.f32.mrf.mxu0
        %v8546 = vadd.f32 %v8473, %v8545
        %v8547 = vpop.f32.mrf.mxu0
        %8548 = vdwg.mxu0
        %v8549 = vtanh.pop %v8546
        %v8550 = vmul.f32 %v8549, 1.7159
        %v8551 = vmul.f32 %v8550, %v8550
        %v8552 = vsel %vm5181, %v8551, 0.0
        %8553 = vadd.xlane.f32.xlu0 %v8552
        %v8554 = vpop.xlane.xlu0 %8553
        %v8555 = vld [vmem:[%s20] sm:$0xff]
        %v8556 = vld [vmem:[%s20 + $0x8] sm:$0xff]
        %v8557 = vld [vmem:[%s20 + $0x10] sm:$0xff]
        %v8558 = vld [vmem:[%s20 + $0x18] sm:$0xff]
        %v8559 = vld [vmem:[%s20 + $0x20] sm:$0xff]
        %v8560 = vld [vmem:[%s20 + $0x28] sm:$0xff]
        %v8561 = vld [vmem:[%s20 + $0x30] sm:$0xff]
        %v8562 = vld [vmem:[%s20 + $0x38] sm:$0xff]
        %v8563 = vld [vmem:[%s20 + $0x40] sm:$0xff]
        %v8564 = vld [vmem:[%s20 + $0x48] sm:$0xff]
        %v8565 = vld [vmem:[%s20 + $0x50] sm:$0xf]
        %v8567 = vsel %vm5181, %v8550, 0
        %v8570 = vsel %vm3888, %v8565, 0
        %8572 = vmatprep.subr.mxu0 0.0
        %8573 = vmatpush1.msra.mxu0 0.0
        %8574 = vmatprep.subr.mxu0 0.0
        %8575 = vmatpush1.msra.mxu0 0.0
        %8576 = vmatprep.subr.mxu0 0.0
        %8577 = vmatpush1.msra.mxu0 0.0
        %8578 = vmatprep.subr.mxu0 0.0
        %8579 = vmatpush1.msra.mxu0 0.0
        %8580 = vmatprep.subr.mxu0 0.0
        %8581 = vmatpush1.msra.mxu0 0.0
        %8582 = vmatprep.subr.mxu0 0.0
        %8583 = vmatpush1.msra.mxu0 %v8570
        %8584 = vmatprep.subr.mxu0 0.0
        %8585 = vmatpush1.msra.mxu0 %v8564
        %8586 = vmatprep.subr.mxu0 0.0
        %8587 = vmatpush1.msra.mxu0 %v8563
        %8588 = vmatprep.subr.mxu0 0.0
        %8589 = vmatpush1.msra.mxu0 %v8562
        %8590 = vmatprep.subr.mxu0 0.0
        %8591 = vmatpush1.msra.mxu0 %v8561
        %8592 = vmatprep.subr.mxu0 0.0
        %8593 = vmatpush1.msra.mxu0 %v8560
        %8594 = vmatprep.subr.mxu0 0.0
        %8595 = vmatpush1.msra.mxu0 %v8559
        %8596 = vmatprep.subr.mxu0 0.0
        %8597 = vmatpush1.msra.mxu0 %v8558
        %8598 = vmatprep.subr.mxu0 0.0
        %8599 = vmatpush1.msra.mxu0 %v8557
        %8600 = vmatprep.subr.mxu0 0.0
        %8601 = vmatpush1.msra.mxu0 %v8556
        %8602 = vmatprep.subr.mxu0 0.0
        %8603 = vmatpush1.msra.mxu0 %v8555
        %8604 = vmatprep.subr.mxu0 0.0
        %8605 = vmatpush2.msra.mxu0 0.0
        %8606 = vmatprep.subr.mxu0 0.0
        %8607 = vmatpush2.msra.mxu0 0.0
        %8608 = vmatprep.subr.mxu0 0.0
        %8609 = vmatpush2.msra.mxu0 0.0
        %8610 = vmatprep.subr.mxu0 0.0
        %8611 = vmatpush2.msra.mxu0 0.0
        %8612 = vmatprep.subr.mxu0 0.0
        %8613 = vmatpush2.msra.mxu0 0.0
        %8614 = vmatprep.subr.mxu0 0.0
        %8615 = vmatpush2.msra.mxu0 0.0
        %8616 = vmatprep.subr.mxu0 0.0
        %8617 = vmatpush2.msra.mxu0 0.0
        %8618 = vmatprep.subr.mxu0 0.0
        %8619 = vmatpush2.msra.mxu0 0.0
        %8620 = vmatprep.subr.mxu0 0.0
        %8621 = vmatpush2.msra.mxu0 0.0
        %8622 = vmatprep.subr.mxu0 0.0
        %8623 = vmatpush2.msra.mxu0 0.0
        %8624 = vmatprep.subr.mxu0 0.0
        %8625 = vmatpush2.msra.mxu0 0.0
        %8626 = vmatprep.subr.mxu0 0.0
        %8627 = vmatpush2.msra.mxu0 0.0
        %8628 = vmatprep.subr.mxu0 0.0
        %8629 = vmatpush2.msra.mxu0 0.0
        %8630 = vmatprep.subr.mxu0 0.0
        %8631 = vmatpush2.msra.mxu0 0.0
        %8632 = vmatprep.subr.mxu0 0.0
        %8633 = vmatpush2.msra.mxu0 0.0
        %8634 = vmatprep.subr.mxu0 0.0
        %8635 = vmatpush2.msra.mxu0 0.0
        %8636 = vmatprep.mubr.f32.mxu0 0.0
        %8637 = vmatmul.mubr.f32.gmra.mxu0 %v8567
        %v8638 = vpop.f32.mrf.mxu0
        %v8639 = vadd.f32 0.0, %v8638
        %v8640 = vpop.f32.mrf.mxu0
        %8641 = vdwg.mxu0
        %v8642 = vmul.f32 %v8639, 2.0
        %v8643 = vsub.f32 %v8554, %v8642
        %v8644 = vld [vmem:[%s21] sm:$0x1]
        %v8646 = vlaneseq
        %v8647 = vshrl.u32 %v8646, 7
        %v8648 = vsub.s32 0, %v8647
        %v8649 = vrot.slane %v8644, %v8648
        %v8651 = vadd.f32 %v8643, %v8649
        %vm8652 = vcmask 80896
        %8653 = vst.msk [vmem:[%s765] sm:$0xff] %vm8652, %v8651
        %s8654 = sand.u32 %s515, 1
        %s8655 = scalar_lea.sflag [#allocation6], %s8654
        %s8656 = sand.u32 %s515, 1
        %s8657 = smul.addr %s8656, 8
        %s8658 = scalar_lea.vmem [#allocation15], %s8657
        // Predicated region
        $region133: #{lenet5_forward.1} parent=107 // pred_check
          %p8659 = pneg %p525
        $region134: #{lenet5_forward.1} parent=107 // pred_check_branch
          %8661 = sbr.rel (%p8659) target = $region136
        $region135: #{lenet5_forward.1} parent=107 // pred_region
          %s8663 = ssub.s32 128, 128
          %8664 = vsyncadd %s8655, %s8663
          %s8665 = smul.addr %s40, 128
          %s8666 = scalar_lea.hbm %s22, %s8665
          %s8668 = sshll.u32 %s8658, 4
          %s8669 = int_to_ptr.vmem [resolvable:$true] %s8668
          %8671 = dma.vmem_to_hbm [thread:$0]  %s8669, 128, %s8666, %s8655
        $region136: #{lenet5_forward.1} parent=107 // pred_fallthru
          _
      $region108: #{lenet5_forward.1} parent=5 // pred_fallthru
        _
      %p8672 = scmp.le.s32.totalorder 2, %s35
      // Predicated region
      $region137: #{lenet5_forward.1} parent=5 // pred_check
        %p8673 = pneg %p8672
      $region138: #{lenet5_forward.1} parent=5 // pred_check_branch
        %8675 = sbr.rel (%p8673) target = $region140
      $region139: #{lenet5_forward.1} parent=5 // pred_region
        %s8676 = ssub.s32 %s35, 2
        // Predicated region
        $region141: #{lenet5_forward.1} parent=139 // pred_check
          %p8677 = pneg %p531
        $region142: #{lenet5_forward.1} parent=139 // pred_check_branch
          %8679 = sbr.rel (%p8677) target = $region144
        $region143: #{lenet5_forward.1} parent=139 // pred_region
          %s8680 = sand.u32 %s516, 1
          %s8681 = scalar_lea.sflag [#allocation6], %s8680
          %s8682 = sand.u32 %s516, 1
          %s8683 = smul.addr %s8682, 8
          %s8684 = scalar_lea.vmem [#allocation15], %s8683
          %8685 = dma.done %s8681, 128
        $region144: #{lenet5_forward.1} parent=139 // pred_fallthru
          _
      $region140: #{lenet5_forward.1} parent=5 // pred_fallthru
        _
    $region6: #{lenet5_forward.1} parent=1 // loop_footer
      %s39 = sadd.s32 1, %s35
    $region7: #{lenet5_forward.1} parent=1 // loop_footer_branch
      %34 = sbr.rel target = $region3
    $region8: #{lenet5_forward.1} parent=1 // loop_exit
      _
    %8686 = vsyncpa [#allocation5], 1
    %s8687 = scalar_lea.sflag [#allocation5], 1
    %8688 = vsyncpa %s8687, 1
    %8689 = vsyncpa [#allocation8], 1
    %8690 = vsyncpa [#allocation11], 1
    %8691 = vsyncpa [#allocation14], 1
    %8692 = vsyncpa [#allocation6], 1
    %s8693 = scalar_lea.sflag [#allocation6], 1
    %8694 = vsyncpa %s8693, 1

</llo_original>
